<compile_context>
chip_gen: v5e
topology: v5e:2x2
jax: 0.10.0
libtpu: 0.0.40
codegen_flags: <defaults>
</compile_context>

<pallas_src>
import functools
import math

import jax
import jax.numpy as jnp
from jax import lax
from jax.experimental import pallas as pl
from jax.experimental.pallas import tpu as pltpu


# ----------------------------- spec helpers ----------------------------------

def _full_spec(a):
    """BlockSpec covering the whole array (single-block kernels)."""
    nd = a.ndim
    return pl.BlockSpec(a.shape, lambda *_: (0,) * nd)


def _const_spec(shape):
    """Grid-invariant block (fetched once, stays resident in VMEM)."""
    n = len(shape)
    return pl.BlockSpec(shape, lambda l: (0,) * n)


def _stacked_spec(shape):
    """Per-layer block of a layer-stacked array (leading dim = layer index)."""
    n = len(shape)
    return pl.BlockSpec((1,) + tuple(shape), lambda l: (l,) + (0,) * n)


# ----------------------------- Pallas kernels --------------------------------

def _time_embed_kernel(tsin_ref, gctx_ref, tw1_ref, tb1_ref, tw2_ref, tb2_ref,
                       gw_ref, gb_ref, o_ref):
    """SiLU(time_emb(t) + curr_gripper_emb(ctx)) — the only downstream use of time_embs."""
    f32 = jnp.float32
    h = jnp.dot(tsin_ref[...], tw1_ref[...], preferred_element_type=f32) + tb1_ref[...]
    h = jnp.maximum(h, 0.0)
    tf = jnp.dot(h, tw2_ref[...], preferred_element_type=f32) + tb2_ref[...]
    gf = jnp.dot(gctx_ref[...], gw_ref[...], preferred_element_type=f32) + gb_ref[...]
    te = tf + gf
    o_ref[...] = te * jax.nn.sigmoid(te)


def _layer_stack_kernel(x0_ref, cos_ref, sin_ref, st_ref,
                        awa_ref, aba_ref, wqe_ref, bqe_ref, wkve_ref, bkve_ref,
                        wo_ref, bo_ref, crossv_ref, alnw_ref, alnb_ref,
                        awf_ref, abf_ref, w1_ref, b1_ref, w2_ref, b2_ref,
                        flnw_ref, flnb_ref,
                        xo_ref, attn_scr,
                        *, B, L, C, H):
    """One grid step == one transformer layer (attention + FFW).

    Even layers: self-attention over the L trajectory tokens (with rotary PE
    folded into the projection weights).  Odd layers: cross-attention to a
    single all-ones context token, whose output is the per-layer constant in
    crossv_ref (softmax over one key is exactly 1).
    """
    f32 = jnp.float32
    M = B * L
    Dh = C // H
    l = pl.program_id(0)

    @pl.when(l == 0)
    def _init():
        xo_ref[...] = x0_ref[...]

    x3 = xo_ref[...].astype(f32)          # (B, L, C) carried activations
    x2 = x3.reshape(M, C)
    st = st_ref[...]                      # (B, C) = SiLU(time_embs)

    def layer_norm(v, w, b):
        mu = jnp.mean(v, axis=-1, keepdims=True)
        vc = v - mu
        var = jnp.mean(vc * vc, axis=-1, keepdims=True)
        return vc * lax.rsqrt(var + 1e-5) * w + b

    # ----------------------- attention block ---------------------------------
    @pl.when(l % 2 == 0)
    def _self_attention():
        # AdaLN: modulation = Linear(SiLU(t)); applied to the query tokens only.
        amod = jnp.dot(st, awa_ref[0], preferred_element_type=f32) + aba_ref[0]   # (B, 2C)
        xq2 = (x3 * (1.0 + amod[:, :C][:, None, :])
               + amod[:, C:][:, None, :]).reshape(M, C)

        cos = cos_ref[...].reshape(M, C)
        sin = sin_ref[...].reshape(M, C)

        # Fused [Wq | Wq@P] and [Wk | Wk@P | Wv] projections; rotary becomes
        # q*cos + rot(q)*sin with rot() pre-folded into the weights.
        qq = jnp.dot(xq2, wqe_ref[0], preferred_element_type=f32) + bqe_ref[0]    # (M, 2C)
        q = qq[:, :C] * cos + qq[:, C:] * sin
        kk = jnp.dot(x2, wkve_ref[0], preferred_element_type=f32) + bkve_ref[0]   # (M, 3C)
        k = kk[:, :C] * cos + kk[:, C:2 * C] * sin
        v = kk[:, 2 * C:]

        wo = wo_ref[0]
        sc = 1.0 / math.sqrt(Dh)
        for b in range(B):
            r0 = b * L
            acc = jnp.zeros((L, C), f32)
            for h in range(H):
                c0 = h * Dh
                qh = q[r0:r0 + L, c0:c0 + Dh] * sc
                kh = k[r0:r0 + L, c0:c0 + Dh]
                vh = v[r0:r0 + L, c0:c0 + Dh]
                s = lax.dot_general(qh, kh, (((1,), (1,)), ((), ())),
                                    preferred_element_type=f32)                  # (L, L)
                m = jnp.max(s, axis=-1, keepdims=True)
                e = jnp.exp(s - m)
                p = e / jnp.sum(e, axis=-1, keepdims=True)
                o = jnp.dot(p, vh, preferred_element_type=f32)                   # (L, Dh)
                # concat_h(o_h) @ Wo == sum_h o_h @ Wo[h*Dh:(h+1)*Dh, :]
                acc = acc + jnp.dot(o, wo[c0:c0 + Dh, :], preferred_element_type=f32)
            attn_scr[r0:r0 + L, :] = acc + bo_ref[0]

    @pl.when(l % 2 == 1)
    def _cross_attention():
        # Lk == 1 (single all-ones context token): attention output == its V.
        av = jnp.dot(crossv_ref[0], wo_ref[0], preferred_element_type=f32) + bo_ref[0]
        attn_scr[...] = jnp.broadcast_to(av, (M, C))

    y2 = layer_norm(x2 + attn_scr[...], alnw_ref[0], alnb_ref[0])                # (M, C)

    # ----------------------- feed-forward block ------------------------------
    fmod = jnp.dot(st, awf_ref[0], preferred_element_type=f32) + abf_ref[0]      # (B, 2C)
    y3 = y2.reshape(B, L, C)
    yp2 = (y3 * (1.0 + fmod[:, :C][:, None, :])
           + fmod[:, C:][:, None, :]).reshape(M, C)
    h1 = jnp.maximum(jnp.dot(yp2, w1_ref[0], preferred_element_type=f32) + b1_ref[0], 0.0)
    h2 = jnp.dot(h1, w2_ref[0], preferred_element_type=f32) + b2_ref[0]
    out2 = layer_norm(y2 + h2, flnw_ref[0], flnb_ref[0])
    xo_ref[...] = out2.reshape(B, L, C)


def _predictor_kernel(x_ref, w1_ref, b1_ref, w2_ref, b2_ref, o_ref):
    """position_predictor: Linear -> SiLU -> Linear (output padded to 128 lanes)."""
    f32 = jnp.float32
    h = jnp.dot(x_ref[...], w1_ref[...], preferred_element_type=f32) + b1_ref[...]
    h = h * jax.nn.sigmoid(h)
    o_ref[...] = jnp.dot(h, w2_ref[...], preferred_element_type=f32) + b2_ref[...]


# ----------------------------- kernel wrappers --------------------------------

def time_embed_silu(prep, t_sin, gctx):
    B, C = t_sin.shape
    ins = [t_sin, gctx, prep["time_w1"], prep["time_b1"], prep["time_w2"],
           prep["time_b2"], prep["grip_w"], prep["grip_b"]]
    return pl.pallas_call(
        _time_embed_kernel,
        grid=(1,),
        in_specs=[_full_spec(a) for a in ins],
        out_specs=pl.BlockSpec((B, C), lambda i: (0, 0)),
        out_shape=jax.ShapeDtypeStruct((B, C), jnp.float32),
    )(*ins)


def layer_stack(prep, x0, q_cos, q_sin, silu_t, *, H):
    B, L, C = x0.shape
    NL = prep["awa"].shape[0]
    in_specs = [
        _const_spec((B, L, C)),        # x0
        _const_spec((B, L, C)),        # cos
        _const_spec((B, L, C)),        # sin
        _const_spec((B, C)),           # silu(time_embs)
        _stacked_spec((C, 2 * C)),     # attn adaln W
        _stacked_spec((1, 2 * C)),     # attn adaln b
        _stacked_spec((C, 2 * C)),     # [Wq | Wq@P]
        _stacked_spec((1, 2 * C)),     # [bq | bq@P]
        _stacked_spec((C, 3 * C)),     # [Wk | Wk@P | Wv]
        _stacked_spec((1, 3 * C)),     # [bk | bk@P | bv]
        _stacked_spec((C, C)),         # Wo
        _stacked_spec((1, C)),         # bo
        _stacked_spec((1, C)),         # cross-attn constant V
        _stacked_spec((1, C)),         # attn LN w
        _stacked_spec((1, C)),         # attn LN b
        _stacked_spec((C, 2 * C)),     # ffw adaln W
        _stacked_spec((1, 2 * C)),     # ffw adaln b
        _stacked_spec((C, C)),         # ffw W1
        _stacked_spec((1, C)),         # ffw b1
        _stacked_spec((C, C)),         # ffw W2
        _stacked_spec((1, C)),         # ffw b2
        _stacked_spec((1, C)),         # ffw LN w
        _stacked_spec((1, C)),         # ffw LN b
    ]
    return pl.pallas_call(
        functools.partial(_layer_stack_kernel, B=B, L=L, C=C, H=H),
        grid=(NL,),
        in_specs=in_specs,
        out_specs=pl.BlockSpec((B, L, C), lambda l: (0, 0, 0)),
        out_shape=jax.ShapeDtypeStruct((B, L, C), jnp.float32),
        scratch_shapes=[pltpu.VMEM((B * L, C), jnp.float32)],
        compiler_params=pltpu.CompilerParams(dimension_semantics=("arbitrary",)),
    )(x0, q_cos, q_sin, silu_t,
      prep["awa"], prep["aba"], prep["wqe"], prep["bqe"], prep["wkve"], prep["bkve"],
      prep["wo"], prep["bo"], prep["crossv"], prep["alnw"], prep["alnb"],
      prep["awf"], prep["abf"], prep["w1"], prep["b1"], prep["w2"], prep["b2"],
      prep["flnw"], prep["flnb"])


def predictor(prep, x):
    M, C = x.shape
    P = prep["pred_w2p"].shape[1]
    ins = [x, prep["pred_w1"], prep["pred_b1"], prep["pred_w2p"], prep["pred_b2p"]]
    return pl.pallas_call(
        _predictor_kernel,
        grid=(1,),
        in_specs=[_full_spec(a) for a in ins],
        out_specs=pl.BlockSpec((M, P), lambda i: (0, 0)),
        out_shape=jax.ShapeDtypeStruct((M, P), jnp.float32),
    )(*ins)


# ----------------------------- plain-JAX glue ---------------------------------

def sinusoidal_pos_emb(x, dim):
    """SinusoidalPosEmb: x (N,) -> (N, dim)."""
    half = dim // 2
    emb = math.log(10000.0) / (half - 1)
    freqs = jnp.exp(jnp.arange(half, dtype=jnp.float32) * -emb)
    args = x[:, None] * freqs[None, :]
    return jnp.concatenate([jnp.sin(args), jnp.cos(args)], axis=-1)


def rotary_pe_3d(xyz, dim):
    """RotaryPositionEncoding3D: xyz (B, N, 3) -> (cos, sin), each (B, N, dim)."""
    B, N, _ = xyz.shape
    d3 = dim // 3
    div_term = jnp.exp(
        jnp.arange(0, d3, 2, dtype=jnp.float32) * (-math.log(10000.0) / d3)
    ).reshape(1, 1, -1)

    def dup(f):  # torch.stack([f, f], -1).view(B, N, -1)
        return jnp.stack([f, f], axis=-1).reshape(B, N, -1)

    cos_parts, sin_parts = [], []
    for a in range(3):
        pos = xyz[..., a:a + 1]
        sin_parts.append(dup(jnp.sin(pos * div_term)))
        cos_parts.append(dup(jnp.cos(pos * div_term)))
    return jnp.concatenate(cos_parts, -1), jnp.concatenate(sin_parts, -1)


def rotate_pairs(x):
    """Pairwise rotation along the last axis: out[2i] = -x[2i+1], out[2i+1] = x[2i]."""
    xr = x.reshape(*x.shape[:-1], -1, 2)
    return jnp.stack([-xr[..., 1], xr[..., 0]], axis=-1).reshape(x.shape)


# ----------------------------- param preparation ------------------------------

def prepare_params(params, *, C=192):
    """One-time (outside jit) stacking of per-layer weights + rotary folding."""
    def r1(b):
        return b.reshape(1, -1)

    cols = {k: [] for k in ("awa", "aba", "wqe", "bqe", "wkve", "bkve", "wo", "bo",
                            "crossv", "alnw", "alnb", "awf", "abf", "w1", "b1",
                            "w2", "b2", "flnw", "flnb")}
    for lp in params["layers"]:
        a, f = lp["attn"], lp["ffw"]
        cols["awa"].append(a["adaln_w"]); cols["aba"].append(r1(a["adaln_b"]))
        wq, bq = a["wq"], a["bq"]
        cols["wqe"].append(jnp.concatenate([wq, rotate_pairs(wq)], axis=1))
        cols["bqe"].append(r1(jnp.concatenate([bq, rotate_pairs(bq)], axis=0)))
        wkv, bkv = a["wkv"], a["bkv"]
        wk, wv = wkv[:, :C], wkv[:, C:]
        bk, bv = bkv[:C], bkv[C:]
        cols["wkve"].append(jnp.concatenate([wk, rotate_pairs(wk), wv], axis=1))
        cols["bkve"].append(r1(jnp.concatenate([bk, rotate_pairs(bk), bv], axis=0)))
        cols["wo"].append(a["wo"]); cols["bo"].append(r1(a["bo"]))
        # cross-attention constant: V-projection of the all-ones context token
        cols["crossv"].append((jnp.ones((1, C), jnp.float32) @ wkv + bkv[None, :])[:, C:])
        cols["alnw"].append(r1(a["ln_w"])); cols["alnb"].append(r1(a["ln_b"]))
        cols["awf"].append(f["adaln_w"]); cols["abf"].append(r1(f["adaln_b"]))
        cols["w1"].append(f["w1"]); cols["b1"].append(r1(f["b1"]))
        cols["w2"].append(f["w2"]); cols["b2"].append(r1(f["b2"]))
        cols["flnw"].append(r1(f["ln_w"])); cols["flnb"].append(r1(f["ln_b"]))

    prep = {k: jnp.stack(v, axis=0) for k, v in cols.items()}
    prep.update(
        time_w1=params["time_w1"], time_b1=params["time_b1"].reshape(1, -1),
        time_w2=params["time_w2"], time_b2=params["time_b2"].reshape(1, -1),
        grip_w=params["grip_w"], grip_b=params["grip_b"].reshape(1, -1),
        pred_w1=params["pred_w1"], pred_b1=params["pred_b1"].reshape(1, -1),
    )
    # Pad the 2-wide final projection to a full 128-lane slab (sliced in glue).
    pw2, pb2 = params["pred_w2"], params["pred_b2"]
    PAD = 128
    prep["pred_w2p"] = jnp.zeros((C, PAD), jnp.float32).at[:, :pw2.shape[1]].set(pw2)
    prep["pred_b2p"] = jnp.zeros((1, PAD), jnp.float32).at[0, :pb2.shape[0]].set(pb2)
    return prep


# ------------------------------ full forward ----------------------------------

def step_diffusion_head_forward(prep, noisy_trajectory, timesteps, local_cond,
                                global_cond, *, C=192, H=8):
    del local_cond  # unused in the reference forward
    B, L, _ = noisy_trajectory.shape
    f32 = jnp.float32

    # trajectory = cat([noisy_trajectory, zeros], -1)  -> (B, L, 3)
    trajectory = jnp.concatenate(
        [noisy_trajectory, jnp.zeros_like(noisy_trajectory[..., :1])], axis=-1)

    # initial trajectory features: sinusoidal time-position embeddings only
    traj_time_pos = sinusoidal_pos_emb(jnp.arange(L, dtype=f32), C)         # (L, C)
    x0 = jnp.broadcast_to(traj_time_pos[None], (B, L, C)).astype(f32)

    global_context, global_coordinate = global_cond
    del global_coordinate  # rotary PE of the single ones-context token is dead (Lk=1)

    # encode_denoising_timestep -> SiLU(time_feats + gripper_feats)
    t_sin = sinusoidal_pos_emb(timesteps.astype(f32), C)                    # (B, C)
    silu_t = time_embed_silu(prep, t_sin, global_context)                   # (B, C)

    # rotary position codes of the trajectory (query side)
    q_cos, q_sin = rotary_pe_3d(trajectory, C)                              # (B, L, C)

    # fused 11-layer FFWRelativeSelfCrossAttentionModule (6 self + 5 cross)
    x = layer_stack(prep, x0, q_cos, q_sin, silu_t, H=H)                    # (B, L, C)

    # position_predictor: Linear -> SiLU -> Linear(., 2) (lane-padded output)
    pos = predictor(prep, x.reshape(B * L, C))[:, :2]
    return pos.reshape(B, L, 2)


# ------------------------------ params init -----------------------------------

def init_params(key, *, C=192, nhist=2, num_layers=11):
    keys = iter(jax.random.split(key, 512))

    def lin(fan_in, fan_out):
        bound = 1.0 / math.sqrt(fan_in)
        w = jax.random.uniform(next(keys), (fan_in, fan_out), jnp.float32, -bound, bound)
        b = jax.random.uniform(next(keys), (fan_out,), jnp.float32, -bound, bound)
        return w, b

    def attn_block():
        adaln_w, adaln_b = lin(C, 2 * C)
        wq, bq = lin(C, C)
        wkv, bkv = lin(C, 2 * C)
        wo, bo = lin(C, C)
        return dict(adaln_w=adaln_w, adaln_b=adaln_b, wq=wq, bq=bq,
                    wkv=wkv, bkv=bkv, wo=wo, bo=bo,
                    ln_w=jnp.ones((C,), jnp.float32), ln_b=jnp.zeros((C,), jnp.float32))

    def ffw_block():
        adaln_w, adaln_b = lin(C, 2 * C)
        w1, b1 = lin(C, C)
        w2, b2 = lin(C, C)
        return dict(adaln_w=adaln_w, adaln_b=adaln_b, w1=w1, b1=b1, w2=w2, b2=b2,
                    ln_w=jnp.ones((C,), jnp.float32), ln_b=jnp.zeros((C,), jnp.float32))

    time_w1, time_b1 = lin(C, C)
    time_w2, time_b2 = lin(C, C)
    grip_w, grip_b = lin(C * nhist, C)
    pred_w1, pred_b1 = lin(C, C)
    pred_w2, pred_b2 = lin(C, 2)
    layers = [dict(attn=attn_block(), ffw=ffw_block()) for _ in range(num_layers)]
    return dict(time_w1=time_w1, time_b1=time_b1, time_w2=time_w2, time_b2=time_b2,
                grip_w=grip_w, grip_b=grip_b,
                pred_w1=pred_w1, pred_b1=pred_b1, pred_w2=pred_w2, pred_b2=pred_b2,
                layers=layers)


# --------------------------------- main ----------------------------------------

if __name__ == "__main__":
    C, H, nhist = 192, 8, 2     # embedding_dim, num_attn_heads, nhist (module defaults)
    B, L = 2, 8                 # batch, trajectory_length

    key = jax.random.PRNGKey(0)
    kp, k1, k2, k3, k4, k5 = jax.random.split(key, 6)

    params = init_params(kp, C=C, nhist=nhist)
    prep = prepare_params(params, C=C)     # one-time stacking / rotary folding

    noisy_trajectory = jax.random.normal(k1, (B, L, 2), jnp.float32)
    timesteps = jax.random.randint(k2, (B,), 0, 100)                     # (B,)
    global_context = jax.random.normal(k3, (B, C * nhist), jnp.float32)  # (B, F*To)
    global_coordinate = jax.random.normal(k4, (B, 1, 3), jnp.float32)
    global_cond = (global_context, global_coordinate)
    local_cond = (jax.random.normal(k5, (B, C * nhist), jnp.float32),
                  jnp.zeros((B, 1, 3), jnp.float32))                     # unused

    fwd = jax.jit(functools.partial(step_diffusion_head_forward, C=C, H=H))
    out = fwd(prep, noisy_trajectory, timesteps, local_cond, global_cond)
    out = jax.block_until_ready(out)

    assert out.shape == (B, L, 2), out.shape
    assert bool(jnp.all(jnp.isfinite(out)))
    print("KERNEL_OK")
</pallas_src>

<mosaic_0001>
module attributes {stable_mosaic.version = 11 : i64} {
  func.func @_time_embed_kernel(%arg0: i32, %arg1: memref<2x192xf32, #tpu.memory_space<vmem>>, %arg2: memref<2x384xf32, #tpu.memory_space<vmem>>, %arg3: memref<192x192xf32, #tpu.memory_space<vmem>>, %arg4: memref<1x192xf32, #tpu.memory_space<vmem>>, %arg5: memref<192x192xf32, #tpu.memory_space<vmem>>, %arg6: memref<1x192xf32, #tpu.memory_space<vmem>>, %arg7: memref<384x192xf32, #tpu.memory_space<vmem>>, %arg8: memref<1x192xf32, #tpu.memory_space<vmem>>, %arg9: memref<2x192xf32, #tpu.memory_space<vmem>>) attributes {dimension_semantics = [#tpu.dimension_semantics<arbitrary>], iteration_bounds = array<i64: 1>, scalar_prefetch = 0 : i64, scratch_operands = 0 : i64, tpu.core_type = #tpu.core_type<tc>, window_params = [{pipeline_mode = #tpu.pipeline_mode<synchronous>, transform_indices = @transform_0, window_bounds = array<i64: 2, 192>}, {pipeline_mode = #tpu.pipeline_mode<synchronous>, transform_indices = @transform_1, window_bounds = array<i64: 2, 384>}, {pipeline_mode = #tpu.pipeline_mode<synchronous>, transform_indices = @transform_2, window_bounds = array<i64: 192, 192>}, {pipeline_mode = #tpu.pipeline_mode<synchronous>, transform_indices = @transform_3, window_bounds = array<i64: 1, 192>}, {pipeline_mode = #tpu.pipeline_mode<synchronous>, transform_indices = @transform_4, window_bounds = array<i64: 192, 192>}, {pipeline_mode = #tpu.pipeline_mode<synchronous>, transform_indices = @transform_5, window_bounds = array<i64: 1, 192>}, {pipeline_mode = #tpu.pipeline_mode<synchronous>, transform_indices = @transform_6, window_bounds = array<i64: 384, 192>}, {pipeline_mode = #tpu.pipeline_mode<synchronous>, transform_indices = @transform_7, window_bounds = array<i64: 1, 192>}, {pipeline_mode = #tpu.pipeline_mode<synchronous>, transform_indices = @transform_8, window_bounds = array<i64: 2, 192>}]} {
    %c0 = arith.constant 0 : index
    %c0_0 = arith.constant 0 : index
    %0 = vector.load %arg1[%c0, %c0_0] : memref<2x192xf32, #tpu.memory_space<vmem>>, vector<2x192xf32>
    %c0_1 = arith.constant 0 : index
    %c0_2 = arith.constant 0 : index
    %1 = vector.load %arg3[%c0_1, %c0_2] : memref<192x192xf32, #tpu.memory_space<vmem>>, vector<192x192xf32>
    %cst = arith.constant dense<0.000000e+00> : vector<2x192xf32>
    %2 = tpu.matmul %0, %1, %cst {dimension_numbers = #tpu.dot_dimension_numbers<[1], [0], [0], [1], [0, 0, 1, 1], [], []>} : vector<2x192xf32>, vector<192x192xf32>, vector<2x192xf32> -> vector<2x192xf32>
    %c0_3 = arith.constant 0 : index
    %c0_4 = arith.constant 0 : index
    %3 = vector.load %arg4[%c0_3, %c0_4] : memref<1x192xf32, #tpu.memory_space<vmem>>, vector<1x192xf32>
    %4 = vector.broadcast %3 : vector<1x192xf32> to vector<2x192xf32>
    %5 = arith.addf %2, %4 : vector<2x192xf32>
    %cst_5 = arith.constant 0.000000e+00 : f32
    %6 = vector.broadcast %cst_5 : f32 to vector<2x192xf32>
    %7 = arith.maximumf %5, %6 : vector<2x192xf32>
    %c0_6 = arith.constant 0 : index
    %c0_7 = arith.constant 0 : index
    %8 = vector.load %arg5[%c0_6, %c0_7] : memref<192x192xf32, #tpu.memory_space<vmem>>, vector<192x192xf32>
    %cst_8 = arith.constant dense<0.000000e+00> : vector<2x192xf32>
    %9 = tpu.matmul %7, %8, %cst_8 {dimension_numbers = #tpu.dot_dimension_numbers<[1], [0], [0], [1], [0, 0, 1, 1], [], []>} : vector<2x192xf32>, vector<192x192xf32>, vector<2x192xf32> -> vector<2x192xf32>
    %c0_9 = arith.constant 0 : index
    %c0_10 = arith.constant 0 : index
    %10 = vector.load %arg6[%c0_9, %c0_10] : memref<1x192xf32, #tpu.memory_space<vmem>>, vector<1x192xf32>
    %11 = vector.broadcast %10 : vector<1x192xf32> to vector<2x192xf32>
    %12 = arith.addf %9, %11 : vector<2x192xf32>
    %c0_11 = arith.constant 0 : index
    %c0_12 = arith.constant 0 : index
    %13 = vector.load %arg2[%c0_11, %c0_12] : memref<2x384xf32, #tpu.memory_space<vmem>>, vector<2x384xf32>
    %c0_13 = arith.constant 0 : index
    %c0_14 = arith.constant 0 : index
    %14 = vector.load %arg7[%c0_13, %c0_14] : memref<384x192xf32, #tpu.memory_space<vmem>>, vector<384x192xf32>
    %cst_15 = arith.constant dense<0.000000e+00> : vector<2x192xf32>
    %15 = tpu.matmul %13, %14, %cst_15 {dimension_numbers = #tpu.dot_dimension_numbers<[1], [0], [0], [1], [0, 0, 1, 1], [], []>} : vector<2x384xf32>, vector<384x192xf32>, vector<2x192xf32> -> vector<2x192xf32>
    %c0_16 = arith.constant 0 : index
    %c0_17 = arith.constant 0 : index
    %16 = vector.load %arg8[%c0_16, %c0_17] : memref<1x192xf32, #tpu.memory_space<vmem>>, vector<1x192xf32>
    %17 = vector.broadcast %16 : vector<1x192xf32> to vector<2x192xf32>
    %18 = arith.addf %15, %17 : vector<2x192xf32>
    %19 = arith.addf %12, %18 : vector<2x192xf32>
    %20 = arith.negf %19 : vector<2x192xf32>
    %21 = math.exp %20 : vector<2x192xf32>
    %cst_18 = arith.constant 1.000000e+00 : f32
    %22 = vector.broadcast %cst_18 : f32 to vector<2x192xf32>
    %23 = arith.addf %22, %21 : vector<2x192xf32>
    %24 = arith.divf %22, %23 : vector<2x192xf32>
    %25 = arith.mulf %19, %24 : vector<2x192xf32>
    %c0_19 = arith.constant 0 : index
    %c0_20 = arith.constant 0 : index
    %26 = vector.load %arg9[%c0_19, %c0_20] : memref<2x192xf32, #tpu.memory_space<vmem>>, vector<2x192xf32>
    tpu.vector_store %arg9[%c0_19, %c0_20], %25 {strides = array<i32>} : memref<2x192xf32, #tpu.memory_space<vmem>>, vector<2x192xf32>,
    return
  }
  func.func @transform_0(%arg0: i32) -> (i32, i32) {
    %c0_i32 = arith.constant 0 : i32
    %c0_i32_0 = arith.constant 0 : i32
    %c0_i32_1 = arith.constant 0 : i32
    return %c0_i32, %c0_i32_0 : i32, i32
  }
  func.func @transform_1(%arg0: i32) -> (i32, i32) {
    %c0_i32 = arith.constant 0 : i32
    %c0_i32_0 = arith.constant 0 : i32
    %c0_i32_1 = arith.constant 0 : i32
    return %c0_i32, %c0_i32_0 : i32, i32
  }
  func.func @transform_2(%arg0: i32) -> (i32, i32) {
    %c0_i32 = arith.constant 0 : i32
    %c0_i32_0 = arith.constant 0 : i32
    %c0_i32_1 = arith.constant 0 : i32
    return %c0_i32, %c0_i32_0 : i32, i32
  }
  func.func @transform_3(%arg0: i32) -> (i32, i32) {
    %c0_i32 = arith.constant 0 : i32
    %c0_i32_0 = arith.constant 0 : i32
    %c0_i32_1 = arith.constant 0 : i32
    return %c0_i32, %c0_i32_0 : i32, i32
  }
  func.func @transform_4(%arg0: i32) -> (i32, i32) {
    %c0_i32 = arith.constant 0 : i32
    %c0_i32_0 = arith.constant 0 : i32
    %c0_i32_1 = arith.constant 0 : i32
    return %c0_i32, %c0_i32_0 : i32, i32
  }
  func.func @transform_5(%arg0: i32) -> (i32, i32) {
    %c0_i32 = arith.constant 0 : i32
    %c0_i32_0 = arith.constant 0 : i32
    %c0_i32_1 = arith.constant 0 : i32
    return %c0_i32, %c0_i32_0 : i32, i32
  }
  func.func @transform_6(%arg0: i32) -> (i32, i32) {
    %c0_i32 = arith.constant 0 : i32
    %c0_i32_0 = arith.constant 0 : i32
    %c0_i32_1 = arith.constant 0 : i32
    return %c0_i32, %c0_i32_0 : i32, i32
  }
  func.func @transform_7(%arg0: i32) -> (i32, i32) {
    %c0_i32 = arith.constant 0 : i32
    %c0_i32_0 = arith.constant 0 : i32
    %c0_i32_1 = arith.constant 0 : i32
    return %c0_i32, %c0_i32_0 : i32, i32
  }
  func.func @transform_8(%arg0: i32) -> (i32, i32) {
    %c0_i32 = arith.constant 0 : i32
    %c0_i32_0 = arith.constant 0 : i32
    %c0_i32_1 = arith.constant 0 : i32
    return %c0_i32, %c0_i32_0 : i32, i32
  }
}

module attributes {stable_mosaic.version = 11 : i64} {
  func.func @_predictor_kernel(%arg0: i32, %arg1: memref<16x192xf32, #tpu.memory_space<vmem>>, %arg2: memref<192x192xf32, #tpu.memory_space<vmem>>, %arg3: memref<1x192xf32, #tpu.memory_space<vmem>>, %arg4: memref<192x128xf32, #tpu.memory_space<vmem>>, %arg5: memref<1x128xf32, #tpu.memory_space<vmem>>, %arg6: memref<16x128xf32, #tpu.memory_space<vmem>>) attributes {dimension_semantics = [#tpu.dimension_semantics<arbitrary>], iteration_bounds = array<i64: 1>, scalar_prefetch = 0 : i64, scratch_operands = 0 : i64, tpu.core_type = #tpu.core_type<tc>, window_params = [{pipeline_mode = #tpu.pipeline_mode<synchronous>, transform_indices = @transform_0, window_bounds = array<i64: 16, 192>}, {pipeline_mode = #tpu.pipeline_mode<synchronous>, transform_indices = @transform_1, window_bounds = array<i64: 192, 192>}, {pipeline_mode = #tpu.pipeline_mode<synchronous>, transform_indices = @transform_2, window_bounds = array<i64: 1, 192>}, {pipeline_mode = #tpu.pipeline_mode<synchronous>, transform_indices = @transform_3, window_bounds = array<i64: 192, 128>}, {pipeline_mode = #tpu.pipeline_mode<synchronous>, transform_indices = @transform_4, window_bounds = array<i64: 1, 128>}, {pipeline_mode = #tpu.pipeline_mode<synchronous>, transform_indices = @transform_5, window_bounds = array<i64: 16, 128>}]} {
    %c0 = arith.constant 0 : index
    %c0_0 = arith.constant 0 : index
    %0 = vector.load %arg1[%c0, %c0_0] : memref<16x192xf32, #tpu.memory_space<vmem>>, vector<16x192xf32>
    %c0_1 = arith.constant 0 : index
    %c0_2 = arith.constant 0 : index
    %1 = vector.load %arg2[%c0_1, %c0_2] : memref<192x192xf32, #tpu.memory_space<vmem>>, vector<192x192xf32>
    %cst = arith.constant dense<0.000000e+00> : vector<16x192xf32>
    %2 = tpu.matmul %0, %1, %cst {dimension_numbers = #tpu.dot_dimension_numbers<[1], [0], [0], [1], [0, 0, 1, 1], [], []>} : vector<16x192xf32>, vector<192x192xf32>, vector<16x192xf32> -> vector<16x192xf32>
    %c0_3 = arith.constant 0 : index
    %c0_4 = arith.constant 0 : index
    %3 = vector.load %arg3[%c0_3, %c0_4] : memref<1x192xf32, #tpu.memory_space<vmem>>, vector<1x192xf32>
    %4 = vector.broadcast %3 : vector<1x192xf32> to vector<16x192xf32>
    %5 = arith.addf %2, %4 : vector<16x192xf32>
    %6 = arith.negf %5 : vector<16x192xf32>
    %7 = math.exp %6 : vector<16x192xf32>
    %cst_5 = arith.constant 1.000000e+00 : f32
    %8 = vector.broadcast %cst_5 : f32 to vector<16x192xf32>
    %9 = arith.addf %8, %7 : vector<16x192xf32>
    %10 = arith.divf %8, %9 : vector<16x192xf32>
    %11 = arith.mulf %5, %10 : vector<16x192xf32>
    %c0_6 = arith.constant 0 : index
    %c0_7 = arith.constant 0 : index
    %12 = vector.load %arg4[%c0_6, %c0_7] : memref<192x128xf32, #tpu.memory_space<vmem>>, vector<192x128xf32>
    %cst_8 = arith.constant dense<0.000000e+00> : vector<16x128xf32>
    %13 = tpu.matmul %11, %12, %cst_8 {dimension_numbers = #tpu.dot_dimension_numbers<[1], [0], [0], [1], [0, 0, 1, 1], [], []>} : vector<16x192xf32>, vector<192x128xf32>, vector<16x128xf32> -> vector<16x128xf32>
    %c0_9 = arith.constant 0 : index
    %c0_10 = arith.constant 0 : index
    %14 = vector.load %arg5[%c0_9, %c0_10] : memref<1x128xf32, #tpu.memory_space<vmem>>, vector<1x128xf32>
    %15 = vector.broadcast %14 : vector<1x128xf32> to vector<16x128xf32>
    %16 = arith.addf %13, %15 : vector<16x128xf32>
    %c0_11 = arith.constant 0 : index
    %c0_12 = arith.constant 0 : index
    %17 = vector.load %arg6[%c0_11, %c0_12] : memref<16x128xf32, #tpu.memory_space<vmem>>, vector<16x128xf32>
    tpu.vector_store %arg6[%c0_11, %c0_12], %16 {strides = array<i32>} : memref<16x128xf32, #tpu.memory_space<vmem>>, vector<16x128xf32>,
    return
  }
  func.func @transform_0(%arg0: i32) -> (i32, i32) {
    %c0_i32 = arith.constant 0 : i32
    %c0_i32_0 = arith.constant 0 : i32
    %c0_i32_1 = arith.constant 0 : i32
    return %c0_i32, %c0_i32_0 : i32, i32
  }
  func.func @transform_1(%arg0: i32) -> (i32, i32) {
    %c0_i32 = arith.constant 0 : i32
    %c0_i32_0 = arith.constant 0 : i32
    %c0_i32_1 = arith.constant 0 : i32
    return %c0_i32, %c0_i32_0 : i32, i32
  }
  func.func @transform_2(%arg0: i32) -> (i32, i32) {
    %c0_i32 = arith.constant 0 : i32
    %c0_i32_0 = arith.constant 0 : i32
    %c0_i32_1 = arith.constant 0 : i32
    return %c0_i32, %c0_i32_0 : i32, i32
  }
  func.func @transform_3(%arg0: i32) -> (i32, i32) {
    %c0_i32 = arith.constant 0 : i32
    %c0_i32_0 = arith.constant 0 : i32
    %c0_i32_1 = arith.constant 0 : i32
    return %c0_i32, %c0_i32_0 : i32, i32
  }
  func.func @transform_4(%arg0: i32) -> (i32, i32) {
    %c0_i32 = arith.constant 0 : i32
    %c0_i32_0 = arith.constant 0 : i32
    %c0_i32_1 = arith.constant 0 : i32
    return %c0_i32, %c0_i32_0 : i32, i32
  }
  func.func @transform_5(%arg0: i32) -> (i32, i32) {
    %c0_i32 = arith.constant 0 : i32
    %c0_i32_0 = arith.constant 0 : i32
    %c0_i32_1 = arith.constant 0 : i32
    return %c0_i32, %c0_i32_0 : i32, i32
  }
}

module attributes {stable_mosaic.version = 11 : i64} {
  func.func @_layer_stack_kernel(%arg0: i32, %arg1: memref<2x8x192xf32, #tpu.memory_space<vmem>>, %arg2: memref<2x8x192xf32, #tpu.memory_space<vmem>>, %arg3: memref<2x8x192xf32, #tpu.memory_space<vmem>>, %arg4: memref<2x192xf32, #tpu.memory_space<vmem>>, %arg5: memref<1x192x384xf32, #tpu.memory_space<vmem>>, %arg6: memref<1x1x384xf32, #tpu.memory_space<vmem>>, %arg7: memref<1x192x384xf32, #tpu.memory_space<vmem>>, %arg8: memref<1x1x384xf32, #tpu.memory_space<vmem>>, %arg9: memref<1x192x576xf32, #tpu.memory_space<vmem>>, %arg10: memref<1x1x576xf32, #tpu.memory_space<vmem>>, %arg11: memref<1x192x192xf32, #tpu.memory_space<vmem>>, %arg12: memref<1x1x192xf32, #tpu.memory_space<vmem>>, %arg13: memref<1x1x192xf32, #tpu.memory_space<vmem>>, %arg14: memref<1x1x192xf32, #tpu.memory_space<vmem>>, %arg15: memref<1x1x192xf32, #tpu.memory_space<vmem>>, %arg16: memref<1x192x384xf32, #tpu.memory_space<vmem>>, %arg17: memref<1x1x384xf32, #tpu.memory_space<vmem>>, %arg18: memref<1x192x192xf32, #tpu.memory_space<vmem>>, %arg19: memref<1x1x192xf32, #tpu.memory_space<vmem>>, %arg20: memref<1x192x192xf32, #tpu.memory_space<vmem>>, %arg21: memref<1x1x192xf32, #tpu.memory_space<vmem>>, %arg22: memref<1x1x192xf32, #tpu.memory_space<vmem>>, %arg23: memref<1x1x192xf32, #tpu.memory_space<vmem>>, %arg24: memref<2x8x192xf32, #tpu.memory_space<vmem>>, %arg25: memref<16x192xf32, #tpu.memory_space<vmem>>) attributes {dimension_semantics = [#tpu.dimension_semantics<arbitrary>], iteration_bounds = array<i64: 11>, scalar_prefetch = 0 : i64, scratch_operands = 1 : i64, tpu.core_type = #tpu.core_type<tc>, window_params = [{pipeline_mode = #tpu.pipeline_mode<synchronous>, transform_indices = @transform_0, window_bounds = array<i64: 2, 8, 192>}, {pipeline_mode = #tpu.pipeline_mode<synchronous>, transform_indices = @transform_1, window_bounds = array<i64: 2, 8, 192>}, {pipeline_mode = #tpu.pipeline_mode<synchronous>, transform_indices = @transform_2, window_bounds = array<i64: 2, 8, 192>}, {pipeline_mode = #tpu.pipeline_mode<synchronous>, transform_indices = @transform_3, window_bounds = array<i64: 2, 192>}, {transform_indices = @transform_4, window_bounds = array<i64: 1, 192, 384>}, {transform_indices = @transform_5, window_bounds = array<i64: 1, 1, 384>}, {transform_indices = @transform_6, window_bounds = array<i64: 1, 192, 384>}, {transform_indices = @transform_7, window_bounds = array<i64: 1, 1, 384>}, {transform_indices = @transform_8, window_bounds = array<i64: 1, 192, 576>}, {transform_indices = @transform_9, window_bounds = array<i64: 1, 1, 576>}, {transform_indices = @transform_10, window_bounds = array<i64: 1, 192, 192>}, {transform_indices = @transform_11, window_bounds = array<i64: 1, 1, 192>}, {transform_indices = @transform_12, window_bounds = array<i64: 1, 1, 192>}, {transform_indices = @transform_13, window_bounds = array<i64: 1, 1, 192>}, {transform_indices = @transform_14, window_bounds = array<i64: 1, 1, 192>}, {transform_indices = @transform_15, window_bounds = array<i64: 1, 192, 384>}, {transform_indices = @transform_16, window_bounds = array<i64: 1, 1, 384>}, {transform_indices = @transform_17, window_bounds = array<i64: 1, 192, 192>}, {transform_indices = @transform_18, window_bounds = array<i64: 1, 1, 192>}, {transform_indices = @transform_19, window_bounds = array<i64: 1, 192, 192>}, {transform_indices = @transform_20, window_bounds = array<i64: 1, 1, 192>}, {transform_indices = @transform_21, window_bounds = array<i64: 1, 1, 192>}, {transform_indices = @transform_22, window_bounds = array<i64: 1, 1, 192>}, {pipeline_mode = #tpu.pipeline_mode<synchronous>, transform_indices = @transform_23, window_bounds = array<i64: 2, 8, 192>}]} {
    %c0_i32 = arith.constant 0 : i32
    %0 = arith.cmpi eq, %arg0, %c0_i32 : i32
    %1 = arith.extui %0 : i1 to i32
    %c0_i32_0 = arith.constant 0 : i32
    %2 = arith.cmpi ne, %1, %c0_i32_0 : i32
    scf.if %2 {
      %c0_68 = arith.constant 0 : index
      %c0_69 = arith.constant 0 : index
      %c0_70 = arith.constant 0 : index
      %120 = vector.load %arg1[%c0_68, %c0_69, %c0_70] : memref<2x8x192xf32, #tpu.memory_space<vmem>>, vector<2x8x192xf32>
      %c0_71 = arith.constant 0 : index
      %c0_72 = arith.constant 0 : index
      %c0_73 = arith.constant 0 : index
      %121 = vector.load %arg24[%c0_71, %c0_72, %c0_73] : memref<2x8x192xf32, #tpu.memory_space<vmem>>, vector<2x8x192xf32>
      tpu.vector_store %arg24[%c0_71, %c0_72, %c0_73], %120 {strides = array<i32>} : memref<2x8x192xf32, #tpu.memory_space<vmem>>, vector<2x8x192xf32>,
    } else {
    }
    %c0 = arith.constant 0 : index
    %c0_1 = arith.constant 0 : index
    %c0_2 = arith.constant 0 : index
    %3 = vector.load %arg24[%c0, %c0_1, %c0_2] : memref<2x8x192xf32, #tpu.memory_space<vmem>>, vector<2x8x192xf32>
    %4 = vector.shape_cast %3 : vector<2x8x192xf32> to vector<16x192xf32>
    %c0_3 = arith.constant 0 : index
    %c0_4 = arith.constant 0 : index
    %5 = vector.load %arg4[%c0_3, %c0_4] : memref<2x192xf32, #tpu.memory_space<vmem>>, vector<2x192xf32>
    %c2_i32 = arith.constant 2 : i32
    %c0_i32_5 = arith.constant 0 : i32
    %6 = arith.cmpi eq, %c2_i32, %c0_i32_5 : i32
    %c1_i32 = arith.constant 1 : i32
    %7 = arith.select %6, %c1_i32, %c2_i32 : i32
    %8 = arith.remsi %arg0, %7 : i32
    %c0_i32_6 = arith.constant 0 : i32
    %9 = arith.cmpi ne, %8, %c0_i32_6 : i32
    %c0_i32_7 = arith.constant 0 : i32
    %10 = arith.cmpi slt, %8, %c0_i32_7 : i32
    %c0_i32_8 = arith.constant 0 : i32
    %11 = arith.cmpi slt, %7, %c0_i32_8 : i32
    %12 = arith.xori %10, %11 : i1
    %13 = arith.andi %12, %9 : i1
    %14 = arith.addi %8, %7 : i32
    %15 = arith.select %13, %14, %8 : i32
    %c0_i32_9 = arith.constant 0 : i32
    %16 = arith.cmpi eq, %15, %c0_i32_9 : i32
    %17 = arith.extui %16 : i1 to i32
    %c0_i32_10 = arith.constant 0 : i32
    %18 = arith.cmpi ne, %17, %c0_i32_10 : i32
    scf.if %18 {
      %c0_68 = arith.constant 0 : index
      %c0_69 = arith.constant 0 : index
      %c0_70 = arith.constant 0 : index
      %120 = vector.load %arg5[%c0_68, %c0_69, %c0_70] : memref<1x192x384xf32, #tpu.memory_space<vmem>>, vector<1x192x384xf32>
      %121 = vector.shape_cast %120 : vector<1x192x384xf32> to vector<192x384xf32>
      %cst_71 = arith.constant dense<0.000000e+00> : vector<2x384xf32>
      %122 = tpu.matmul %5, %121, %cst_71 {dimension_numbers = #tpu.dot_dimension_numbers<[1], [0], [0], [1], [0, 0, 1, 1], [], []>} : vector<2x192xf32>, vector<192x384xf32>, vector<2x384xf32> -> vector<2x384xf32>
      %c0_72 = arith.constant 0 : index
      %c0_73 = arith.constant 0 : index
      %c0_74 = arith.constant 0 : index
      %123 = vector.load %arg6[%c0_72, %c0_73, %c0_74] : memref<1x1x384xf32, #tpu.memory_space<vmem>>, vector<1x1x384xf32>
      %124 = vector.shape_cast %123 : vector<1x1x384xf32> to vector<1x384xf32>
      %125 = vector.broadcast %124 : vector<1x384xf32> to vector<2x384xf32>
      %126 = arith.addf %122, %125 : vector<2x384xf32>
      %127 = vector.extract_strided_slice %126 {offsets = [0, 0], sizes = [2, 192], strides = [1, 1]} : vector<2x384xf32> to vector<2x192xf32>
      %128 = vector.shape_cast %127 : vector<2x192xf32> to vector<2x1x192xf32>
      %cst_75 = arith.constant 1.000000e+00 : f32
      %129 = vector.broadcast %cst_75 : f32 to vector<2x1x192xf32>
      %130 = arith.addf %129, %128 : vector<2x1x192xf32>
      %131 = vector.broadcast %130 : vector<2x1x192xf32> to vector<2x8x192xf32>
      %132 = arith.mulf %3, %131 : vector<2x8x192xf32>
      %133 = vector.extract_strided_slice %126 {offsets = [0, 192], sizes = [2, 192], strides = [1, 1]} : vector<2x384xf32> to vector<2x192xf32>
      %134 = vector.shape_cast %133 : vector<2x192xf32> to vector<2x1x192xf32>
      %135 = vector.broadcast %134 : vector<2x1x192xf32> to vector<2x8x192xf32>
      %136 = arith.addf %132, %135 : vector<2x8x192xf32>
      %137 = vector.shape_cast %136 : vector<2x8x192xf32> to vector<16x192xf32>
      %c0_76 = arith.constant 0 : index
      %c0_77 = arith.constant 0 : index
      %c0_78 = arith.constant 0 : index
      %138 = vector.load %arg2[%c0_76, %c0_77, %c0_78] : memref<2x8x192xf32, #tpu.memory_space<vmem>>, vector<2x8x192xf32>
      %139 = vector.shape_cast %138 : vector<2x8x192xf32> to vector<16x192xf32>
      %c0_79 = arith.constant 0 : index
      %c0_80 = arith.constant 0 : index
      %c0_81 = arith.constant 0 : index
      %140 = vector.load %arg3[%c0_79, %c0_80, %c0_81] : memref<2x8x192xf32, #tpu.memory_space<vmem>>, vector<2x8x192xf32>
      %141 = vector.shape_cast %140 : vector<2x8x192xf32> to vector<16x192xf32>
      %c0_82 = arith.constant 0 : index
      %c0_83 = arith.constant 0 : index
      %c0_84 = arith.constant 0 : index
      %142 = vector.load %arg7[%c0_82, %c0_83, %c0_84] : memref<1x192x384xf32, #tpu.memory_space<vmem>>, vector<1x192x384xf32>
      %143 = vector.shape_cast %142 : vector<1x192x384xf32> to vector<192x384xf32>
      %cst_85 = arith.constant dense<0.000000e+00> : vector<16x384xf32>
      %144 = tpu.matmul %137, %143, %cst_85 {dimension_numbers = #tpu.dot_dimension_numbers<[1], [0], [0], [1], [0, 0, 1, 1], [], []>} : vector<16x192xf32>, vector<192x384xf32>, vector<16x384xf32> -> vector<16x384xf32>
      %c0_86 = arith.constant 0 : index
      %c0_87 = arith.constant 0 : index
      %c0_88 = arith.constant 0 : index
      %145 = vector.load %arg8[%c0_86, %c0_87, %c0_88] : memref<1x1x384xf32, #tpu.memory_space<vmem>>, vector<1x1x384xf32>
      %146 = vector.shape_cast %145 : vector<1x1x384xf32> to vector<1x384xf32>
      %147 = vector.broadcast %146 : vector<1x384xf32> to vector<16x384xf32>
      %148 = arith.addf %144, %147 : vector<16x384xf32>
      %149 = vector.extract_strided_slice %148 {offsets = [0, 0], sizes = [16, 192], strides = [1, 1]} : vector<16x384xf32> to vector<16x192xf32>
      %150 = arith.mulf %149, %139 : vector<16x192xf32>
      %151 = vector.extract_strided_slice %148 {offsets = [0, 192], sizes = [16, 192], strides = [1, 1]} : vector<16x384xf32> to vector<16x192xf32>
      %152 = arith.mulf %151, %141 : vector<16x192xf32>
      %153 = arith.addf %150, %152 : vector<16x192xf32>
      %c0_89 = arith.constant 0 : index
      %c0_90 = arith.constant 0 : index
      %c0_91 = arith.constant 0 : index
      %154 = vector.load %arg9[%c0_89, %c0_90, %c0_91] : memref<1x192x576xf32, #tpu.memory_space<vmem>>, vector<1x192x576xf32>
      %155 = vector.shape_cast %154 : vector<1x192x576xf32> to vector<192x576xf32>
      %cst_92 = arith.constant dense<0.000000e+00> : vector<16x576xf32>
      %156 = tpu.matmul %4, %155, %cst_92 {dimension_numbers = #tpu.dot_dimension_numbers<[1], [0], [0], [1], [0, 0, 1, 1], [], []>} : vector<16x192xf32>, vector<192x576xf32>, vector<16x576xf32> -> vector<16x576xf32>
      %c0_93 = arith.constant 0 : index
      %c0_94 = arith.constant 0 : index
      %c0_95 = arith.constant 0 : index
      %157 = vector.load %arg10[%c0_93, %c0_94, %c0_95] : memref<1x1x576xf32, #tpu.memory_space<vmem>>, vector<1x1x576xf32>
      %158 = vector.shape_cast %157 : vector<1x1x576xf32> to vector<1x576xf32>
      %159 = vector.broadcast %158 : vector<1x576xf32> to vector<16x576xf32>
      %160 = arith.addf %156, %159 : vector<16x576xf32>
      %161 = vector.extract_strided_slice %160 {offsets = [0, 0], sizes = [16, 192], strides = [1, 1]} : vector<16x576xf32> to vector<16x192xf32>
      %162 = arith.mulf %161, %139 : vector<16x192xf32>
      %163 = vector.extract_strided_slice %160 {offsets = [0, 192], sizes = [16, 192], strides = [1, 1]} : vector<16x576xf32> to vector<16x192xf32>
      %164 = arith.mulf %163, %141 : vector<16x192xf32>
      %165 = arith.addf %162, %164 : vector<16x192xf32>
      %166 = vector.extract_strided_slice %160 {offsets = [0, 384], sizes = [16, 192], strides = [1, 1]} : vector<16x576xf32> to vector<16x192xf32>
      %c0_96 = arith.constant 0 : index
      %c0_97 = arith.constant 0 : index
      %c0_98 = arith.constant 0 : index
      %167 = vector.load %arg11[%c0_96, %c0_97, %c0_98] : memref<1x192x192xf32, #tpu.memory_space<vmem>>, vector<1x192x192xf32>
      %168 = vector.shape_cast %167 : vector<1x192x192xf32> to vector<192x192xf32>
      %cst_99 = arith.constant 0.000000e+00 : f32
      %169 = vector.broadcast %cst_99 : f32 to vector<8x192xf32>
      %170 = vector.extract_strided_slice %153 {offsets = [0, 0], sizes = [8, 24], strides = [1, 1]} : vector<16x192xf32> to vector<8x24xf32>
      %cst_100 = arith.constant 0.204124153 : f32
      %171 = vector.broadcast %cst_100 : f32 to vector<8x24xf32>
      %172 = arith.mulf %170, %171 : vector<8x24xf32>
      %173 = vector.extract_strided_slice %165 {offsets = [0, 0], sizes = [8, 24], strides = [1, 1]} : vector<16x192xf32> to vector<8x24xf32>
      %174 = vector.extract_strided_slice %166 {offsets = [0, 0], sizes = [8, 24], strides = [1, 1]} : vector<16x192xf32> to vector<8x24xf32>
      %cst_101 = arith.constant dense<0.000000e+00> : vector<8x8xf32>
      %175 = tpu.matmul %172, %173, %cst_101 {dimension_numbers = #tpu.dot_dimension_numbers<[1], [1], [0], [0], [0, 0, 1, 0], [], []>} : vector<8x24xf32>, vector<8x24xf32>, vector<8x8xf32> -> vector<8x8xf32>
      %cst_102 = arith.constant dense<0xFF800000> : vector<8xf32>
      %176 = vector.multi_reduction <maximumf>, %175, %cst_102 [1] : vector<8x8xf32> to vector<8xf32>
      %177 = vector.shape_cast %176 : vector<8xf32> to vector<8x1xf32>
      %178 = vector.broadcast %177 : vector<8x1xf32> to vector<8x8xf32>
      %179 = arith.subf %175, %178 : vector<8x8xf32>
      %180 = math.exp %179 : vector<8x8xf32>
      %cst_103 = arith.constant dense<0.000000e+00> : vector<8xf32>
      %181 = vector.multi_reduction <add>, %180, %cst_103 [1] : vector<8x8xf32> to vector<8xf32>
      %182 = vector.shape_cast %181 : vector<8xf32> to vector<8x1xf32>
      %183 = vector.broadcast %182 : vector<8x1xf32> to vector<8x8xf32>
      %184 = arith.divf %180, %183 : vector<8x8xf32>
      %cst_104 = arith.constant dense<0.000000e+00> : vector<8x24xf32>
      %185 = tpu.matmul %184, %174, %cst_104 {dimension_numbers = #tpu.dot_dimension_numbers<[1], [0], [0], [1], [0, 0, 1, 1], [], []>} : vector<8x8xf32>, vector<8x24xf32>, vector<8x24xf32> -> vector<8x24xf32>
      %186 = vector.extract_strided_slice %168 {offsets = [0, 0], sizes = [24, 192], strides = [1, 1]} : vector<192x192xf32> to vector<24x192xf32>
      %cst_105 = arith.constant dense<0.000000e+00> : vector<8x192xf32>
      %187 = tpu.matmul %185, %186, %cst_105 {dimension_numbers = #tpu.dot_dimension_numbers<[1], [0], [0], [1], [0, 0, 1, 1], [], []>} : vector<8x24xf32>, vector<24x192xf32>, vector<8x192xf32> -> vector<8x192xf32>
      %188 = arith.addf %169, %187 : vector<8x192xf32>
      %189 = vector.extract_strided_slice %153 {offsets = [0, 24], sizes = [8, 24], strides = [1, 1]} : vector<16x192xf32> to vector<8x24xf32>
      %cst_106 = arith.constant 0.204124153 : f32
      %190 = vector.broadcast %cst_106 : f32 to vector<8x24xf32>
      %191 = arith.mulf %189, %190 : vector<8x24xf32>
      %192 = vector.extract_strided_slice %165 {offsets = [0, 24], sizes = [8, 24], strides = [1, 1]} : vector<16x192xf32> to vector<8x24xf32>
      %193 = vector.extract_strided_slice %166 {offsets = [0, 24], sizes = [8, 24], strides = [1, 1]} : vector<16x192xf32> to vector<8x24xf32>
      %cst_107 = arith.constant dense<0.000000e+00> : vector<8x8xf32>
      %194 = tpu.matmul %191, %192, %cst_107 {dimension_numbers = #tpu.dot_dimension_numbers<[1], [1], [0], [0], [0, 0, 1, 0], [], []>} : vector<8x24xf32>, vector<8x24xf32>, vector<8x8xf32> -> vector<8x8xf32>
      %cst_108 = arith.constant dense<0xFF800000> : vector<8xf32>
      %195 = vector.multi_reduction <maximumf>, %194, %cst_108 [1] : vector<8x8xf32> to vector<8xf32>
      %196 = vector.shape_cast %195 : vector<8xf32> to vector<8x1xf32>
      %197 = vector.broadcast %196 : vector<8x1xf32> to vector<8x8xf32>
      %198 = arith.subf %194, %197 : vector<8x8xf32>
      %199 = math.exp %198 : vector<8x8xf32>
      %cst_109 = arith.constant dense<0.000000e+00> : vector<8xf32>
      %200 = vector.multi_reduction <add>, %199, %cst_109 [1] : vector<8x8xf32> to vector<8xf32>
      %201 = vector.shape_cast %200 : vector<8xf32> to vector<8x1xf32>
      %202 = vector.broadcast %201 : vector<8x1xf32> to vector<8x8xf32>
      %203 = arith.divf %199, %202 : vector<8x8xf32>
      %cst_110 = arith.constant dense<0.000000e+00> : vector<8x24xf32>
      %204 = tpu.matmul %203, %193, %cst_110 {dimension_numbers = #tpu.dot_dimension_numbers<[1], [0], [0], [1], [0, 0, 1, 1], [], []>} : vector<8x8xf32>, vector<8x24xf32>, vector<8x24xf32> -> vector<8x24xf32>
      %205 = vector.extract_strided_slice %168 {offsets = [24, 0], sizes = [24, 192], strides = [1, 1]} : vector<192x192xf32> to vector<24x192xf32>
      %cst_111 = arith.constant dense<0.000000e+00> : vector<8x192xf32>
      %206 = tpu.matmul %204, %205, %cst_111 {dimension_numbers = #tpu.dot_dimension_numbers<[1], [0], [0], [1], [0, 0, 1, 1], [], []>} : vector<8x24xf32>, vector<24x192xf32>, vector<8x192xf32> -> vector<8x192xf32>
      %207 = arith.addf %188, %206 : vector<8x192xf32>
      %208 = vector.extract_strided_slice %153 {offsets = [0, 48], sizes = [8, 24], strides = [1, 1]} : vector<16x192xf32> to vector<8x24xf32>
      %cst_112 = arith.constant 0.204124153 : f32
      %209 = vector.broadcast %cst_112 : f32 to vector<8x24xf32>
      %210 = arith.mulf %208, %209 : vector<8x24xf32>
      %211 = vector.extract_strided_slice %165 {offsets = [0, 48], sizes = [8, 24], strides = [1, 1]} : vector<16x192xf32> to vector<8x24xf32>
      %212 = vector.extract_strided_slice %166 {offsets = [0, 48], sizes = [8, 24], strides = [1, 1]} : vector<16x192xf32> to vector<8x24xf32>
      %cst_113 = arith.constant dense<0.000000e+00> : vector<8x8xf32>
      %213 = tpu.matmul %210, %211, %cst_113 {dimension_numbers = #tpu.dot_dimension_numbers<[1], [1], [0], [0], [0, 0, 1, 0], [], []>} : vector<8x24xf32>, vector<8x24xf32>, vector<8x8xf32> -> vector<8x8xf32>
      %cst_114 = arith.constant dense<0xFF800000> : vector<8xf32>
      %214 = vector.multi_reduction <maximumf>, %213, %cst_114 [1] : vector<8x8xf32> to vector<8xf32>
      %215 = vector.shape_cast %214 : vector<8xf32> to vector<8x1xf32>
      %216 = vector.broadcast %215 : vector<8x1xf32> to vector<8x8xf32>
      %217 = arith.subf %213, %216 : vector<8x8xf32>
      %218 = math.exp %217 : vector<8x8xf32>
      %cst_115 = arith.constant dense<0.000000e+00> : vector<8xf32>
      %219 = vector.multi_reduction <add>, %218, %cst_115 [1] : vector<8x8xf32> to vector<8xf32>
      %220 = vector.shape_cast %219 : vector<8xf32> to vector<8x1xf32>
      %221 = vector.broadcast %220 : vector<8x1xf32> to vector<8x8xf32>
      %222 = arith.divf %218, %221 : vector<8x8xf32>
      %cst_116 = arith.constant dense<0.000000e+00> : vector<8x24xf32>
      %223 = tpu.matmul %222, %212, %cst_116 {dimension_numbers = #tpu.dot_dimension_numbers<[1], [0], [0], [1], [0, 0, 1, 1], [], []>} : vector<8x8xf32>, vector<8x24xf32>, vector<8x24xf32> -> vector<8x24xf32>
      %224 = vector.extract_strided_slice %168 {offsets = [48, 0], sizes = [24, 192], strides = [1, 1]} : vector<192x192xf32> to vector<24x192xf32>
      %cst_117 = arith.constant dense<0.000000e+00> : vector<8x192xf32>
      %225 = tpu.matmul %223, %224, %cst_117 {dimension_numbers = #tpu.dot_dimension_numbers<[1], [0], [0], [1], [0, 0, 1, 1], [], []>} : vector<8x24xf32>, vector<24x192xf32>, vector<8x192xf32> -> vector<8x192xf32>
      %226 = arith.addf %207, %225 : vector<8x192xf32>
      %227 = vector.extract_strided_slice %153 {offsets = [0, 72], sizes = [8, 24], strides = [1, 1]} : vector<16x192xf32> to vector<8x24xf32>
      %cst_118 = arith.constant 0.204124153 : f32
      %228 = vector.broadcast %cst_118 : f32 to vector<8x24xf32>
      %229 = arith.mulf %227, %228 : vector<8x24xf32>
      %230 = vector.extract_strided_slice %165 {offsets = [0, 72], sizes = [8, 24], strides = [1, 1]} : vector<16x192xf32> to vector<8x24xf32>
      %231 = vector.extract_strided_slice %166 {offsets = [0, 72], sizes = [8, 24], strides = [1, 1]} : vector<16x192xf32> to vector<8x24xf32>
      %cst_119 = arith.constant dense<0.000000e+00> : vector<8x8xf32>
      %232 = tpu.matmul %229, %230, %cst_119 {dimension_numbers = #tpu.dot_dimension_numbers<[1], [1], [0], [0], [0, 0, 1, 0], [], []>} : vector<8x24xf32>, vector<8x24xf32>, vector<8x8xf32> -> vector<8x8xf32>
      %cst_120 = arith.constant dense<0xFF800000> : vector<8xf32>
      %233 = vector.multi_reduction <maximumf>, %232, %cst_120 [1] : vector<8x8xf32> to vector<8xf32>
      %234 = vector.shape_cast %233 : vector<8xf32> to vector<8x1xf32>
      %235 = vector.broadcast %234 : vector<8x1xf32> to vector<8x8xf32>
      %236 = arith.subf %232, %235 : vector<8x8xf32>
      %237 = math.exp %236 : vector<8x8xf32>
      %cst_121 = arith.constant dense<0.000000e+00> : vector<8xf32>
      %238 = vector.multi_reduction <add>, %237, %cst_121 [1] : vector<8x8xf32> to vector<8xf32>
      %239 = vector.shape_cast %238 : vector<8xf32> to vector<8x1xf32>
      %240 = vector.broadcast %239 : vector<8x1xf32> to vector<8x8xf32>
      %241 = arith.divf %237, %240 : vector<8x8xf32>
      %cst_122 = arith.constant dense<0.000000e+00> : vector<8x24xf32>
      %242 = tpu.matmul %241, %231, %cst_122 {dimension_numbers = #tpu.dot_dimension_numbers<[1], [0], [0], [1], [0, 0, 1, 1], [], []>} : vector<8x8xf32>, vector<8x24xf32>, vector<8x24xf32> -> vector<8x24xf32>
      %243 = vector.extract_strided_slice %168 {offsets = [72, 0], sizes = [24, 192], strides = [1, 1]} : vector<192x192xf32> to vector<24x192xf32>
      %cst_123 = arith.constant dense<0.000000e+00> : vector<8x192xf32>
      %244 = tpu.matmul %242, %243, %cst_123 {dimension_numbers = #tpu.dot_dimension_numbers<[1], [0], [0], [1], [0, 0, 1, 1], [], []>} : vector<8x24xf32>, vector<24x192xf32>, vector<8x192xf32> -> vector<8x192xf32>
      %245 = arith.addf %226, %244 : vector<8x192xf32>
      %246 = vector.extract_strided_slice %153 {offsets = [0, 96], sizes = [8, 24], strides = [1, 1]} : vector<16x192xf32> to vector<8x24xf32>
      %cst_124 = arith.constant 0.204124153 : f32
      %247 = vector.broadcast %cst_124 : f32 to vector<8x24xf32>
      %248 = arith.mulf %246, %247 : vector<8x24xf32>
      %249 = vector.extract_strided_slice %165 {offsets = [0, 96], sizes = [8, 24], strides = [1, 1]} : vector<16x192xf32> to vector<8x24xf32>
      %250 = vector.extract_strided_slice %166 {offsets = [0, 96], sizes = [8, 24], strides = [1, 1]} : vector<16x192xf32> to vector<8x24xf32>
      %cst_125 = arith.constant dense<0.000000e+00> : vector<8x8xf32>
      %251 = tpu.matmul %248, %249, %cst_125 {dimension_numbers = #tpu.dot_dimension_numbers<[1], [1], [0], [0], [0, 0, 1, 0], [], []>} : vector<8x24xf32>, vector<8x24xf32>, vector<8x8xf32> -> vector<8x8xf32>
      %cst_126 = arith.constant dense<0xFF800000> : vector<8xf32>
      %252 = vector.multi_reduction <maximumf>, %251, %cst_126 [1] : vector<8x8xf32> to vector<8xf32>
      %253 = vector.shape_cast %252 : vector<8xf32> to vector<8x1xf32>
      %254 = vector.broadcast %253 : vector<8x1xf32> to vector<8x8xf32>
      %255 = arith.subf %251, %254 : vector<8x8xf32>
      %256 = math.exp %255 : vector<8x8xf32>
      %cst_127 = arith.constant dense<0.000000e+00> : vector<8xf32>
      %257 = vector.multi_reduction <add>, %256, %cst_127 [1] : vector<8x8xf32> to vector<8xf32>
      %258 = vector.shape_cast %257 : vector<8xf32> to vector<8x1xf32>
      %259 = vector.broadcast %258 : vector<8x1xf32> to vector<8x8xf32>
      %260 = arith.divf %256, %259 : vector<8x8xf32>
      %cst_128 = arith.constant dense<0.000000e+00> : vector<8x24xf32>
      %261 = tpu.matmul %260, %250, %cst_128 {dimension_numbers = #tpu.dot_dimension_numbers<[1], [0], [0], [1], [0, 0, 1, 1], [], []>} : vector<8x8xf32>, vector<8x24xf32>, vector<8x24xf32> -> vector<8x24xf32>
      %262 = vector.extract_strided_slice %168 {offsets = [96, 0], sizes = [24, 192], strides = [1, 1]} : vector<192x192xf32> to vector<24x192xf32>
      %cst_129 = arith.constant dense<0.000000e+00> : vector<8x192xf32>
      %263 = tpu.matmul %261, %262, %cst_129 {dimension_numbers = #tpu.dot_dimension_numbers<[1], [0], [0], [1], [0, 0, 1, 1], [], []>} : vector<8x24xf32>, vector<24x192xf32>, vector<8x192xf32> -> vector<8x192xf32>
      %264 = arith.addf %245, %263 : vector<8x192xf32>
      %265 = vector.extract_strided_slice %153 {offsets = [0, 120], sizes = [8, 24], strides = [1, 1]} : vector<16x192xf32> to vector<8x24xf32>
      %cst_130 = arith.constant 0.204124153 : f32
      %266 = vector.broadcast %cst_130 : f32 to vector<8x24xf32>
      %267 = arith.mulf %265, %266 : vector<8x24xf32>
      %268 = vector.extract_strided_slice %165 {offsets = [0, 120], sizes = [8, 24], strides = [1, 1]} : vector<16x192xf32> to vector<8x24xf32>
      %269 = vector.extract_strided_slice %166 {offsets = [0, 120], sizes = [8, 24], strides = [1, 1]} : vector<16x192xf32> to vector<8x24xf32>
      %cst_131 = arith.constant dense<0.000000e+00> : vector<8x8xf32>
      %270 = tpu.matmul %267, %268, %cst_131 {dimension_numbers = #tpu.dot_dimension_numbers<[1], [1], [0], [0], [0, 0, 1, 0], [], []>} : vector<8x24xf32>, vector<8x24xf32>, vector<8x8xf32> -> vector<8x8xf32>
      %cst_132 = arith.constant dense<0xFF800000> : vector<8xf32>
      %271 = vector.multi_reduction <maximumf>, %270, %cst_132 [1] : vector<8x8xf32> to vector<8xf32>
      %272 = vector.shape_cast %271 : vector<8xf32> to vector<8x1xf32>
      %273 = vector.broadcast %272 : vector<8x1xf32> to vector<8x8xf32>
      %274 = arith.subf %270, %273 : vector<8x8xf32>
      %275 = math.exp %274 : vector<8x8xf32>
      %cst_133 = arith.constant dense<0.000000e+00> : vector<8xf32>
      %276 = vector.multi_reduction <add>, %275, %cst_133 [1] : vector<8x8xf32> to vector<8xf32>
      %277 = vector.shape_cast %276 : vector<8xf32> to vector<8x1xf32>
      %278 = vector.broadcast %277 : vector<8x1xf32> to vector<8x8xf32>
      %279 = arith.divf %275, %278 : vector<8x8xf32>
      %cst_134 = arith.constant dense<0.000000e+00> : vector<8x24xf32>
      %280 = tpu.matmul %279, %269, %cst_134 {dimension_numbers = #tpu.dot_dimension_numbers<[1], [0], [0], [1], [0, 0, 1, 1], [], []>} : vector<8x8xf32>, vector<8x24xf32>, vector<8x24xf32> -> vector<8x24xf32>
      %281 = vector.extract_strided_slice %168 {offsets = [120, 0], sizes = [24, 192], strides = [1, 1]} : vector<192x192xf32> to vector<24x192xf32>
      %cst_135 = arith.constant dense<0.000000e+00> : vector<8x192xf32>
      %282 = tpu.matmul %280, %281, %cst_135 {dimension_numbers = #tpu.dot_dimension_numbers<[1], [0], [0], [1], [0, 0, 1, 1], [], []>} : vector<8x24xf32>, vector<24x192xf32>, vector<8x192xf32> -> vector<8x192xf32>
      %283 = arith.addf %264, %282 : vector<8x192xf32>
      %284 = vector.extract_strided_slice %153 {offsets = [0, 144], sizes = [8, 24], strides = [1, 1]} : vector<16x192xf32> to vector<8x24xf32>
      %cst_136 = arith.constant 0.204124153 : f32
      %285 = vector.broadcast %cst_136 : f32 to vector<8x24xf32>
      %286 = arith.mulf %284, %285 : vector<8x24xf32>
      %287 = vector.extract_strided_slice %165 {offsets = [0, 144], sizes = [8, 24], strides = [1, 1]} : vector<16x192xf32> to vector<8x24xf32>
      %288 = vector.extract_strided_slice %166 {offsets = [0, 144], sizes = [8, 24], strides = [1, 1]} : vector<16x192xf32> to vector<8x24xf32>
      %cst_137 = arith.constant dense<0.000000e+00> : vector<8x8xf32>
      %289 = tpu.matmul %286, %287, %cst_137 {dimension_numbers = #tpu.dot_dimension_numbers<[1], [1], [0], [0], [0, 0, 1, 0], [], []>} : vector<8x24xf32>, vector<8x24xf32>, vector<8x8xf32> -> vector<8x8xf32>
      %cst_138 = arith.constant dense<0xFF800000> : vector<8xf32>
      %290 = vector.multi_reduction <maximumf>, %289, %cst_138 [1] : vector<8x8xf32> to vector<8xf32>
      %291 = vector.shape_cast %290 : vector<8xf32> to vector<8x1xf32>
      %292 = vector.broadcast %291 : vector<8x1xf32> to vector<8x8xf32>
      %293 = arith.subf %289, %292 : vector<8x8xf32>
      %294 = math.exp %293 : vector<8x8xf32>
      %cst_139 = arith.constant dense<0.000000e+00> : vector<8xf32>
      %295 = vector.multi_reduction <add>, %294, %cst_139 [1] : vector<8x8xf32> to vector<8xf32>
      %296 = vector.shape_cast %295 : vector<8xf32> to vector<8x1xf32>
      %297 = vector.broadcast %296 : vector<8x1xf32> to vector<8x8xf32>
      %298 = arith.divf %294, %297 : vector<8x8xf32>
      %cst_140 = arith.constant dense<0.000000e+00> : vector<8x24xf32>
      %299 = tpu.matmul %298, %288, %cst_140 {dimension_numbers = #tpu.dot_dimension_numbers<[1], [0], [0], [1], [0, 0, 1, 1], [], []>} : vector<8x8xf32>, vector<8x24xf32>, vector<8x24xf32> -> vector<8x24xf32>
      %300 = vector.extract_strided_slice %168 {offsets = [144, 0], sizes = [24, 192], strides = [1, 1]} : vector<192x192xf32> to vector<24x192xf32>
      %cst_141 = arith.constant dense<0.000000e+00> : vector<8x192xf32>
      %301 = tpu.matmul %299, %300, %cst_141 {dimension_numbers = #tpu.dot_dimension_numbers<[1], [0], [0], [1], [0, 0, 1, 1], [], []>} : vector<8x24xf32>, vector<24x192xf32>, vector<8x192xf32> -> vector<8x192xf32>
      %302 = arith.addf %283, %301 : vector<8x192xf32>
      %303 = vector.extract_strided_slice %153 {offsets = [0, 168], sizes = [8, 24], strides = [1, 1]} : vector<16x192xf32> to vector<8x24xf32>
      %cst_142 = arith.constant 0.204124153 : f32
      %304 = vector.broadcast %cst_142 : f32 to vector<8x24xf32>
      %305 = arith.mulf %303, %304 : vector<8x24xf32>
      %306 = vector.extract_strided_slice %165 {offsets = [0, 168], sizes = [8, 24], strides = [1, 1]} : vector<16x192xf32> to vector<8x24xf32>
      %307 = vector.extract_strided_slice %166 {offsets = [0, 168], sizes = [8, 24], strides = [1, 1]} : vector<16x192xf32> to vector<8x24xf32>
      %cst_143 = arith.constant dense<0.000000e+00> : vector<8x8xf32>
      %308 = tpu.matmul %305, %306, %cst_143 {dimension_numbers = #tpu.dot_dimension_numbers<[1], [1], [0], [0], [0, 0, 1, 0], [], []>} : vector<8x24xf32>, vector<8x24xf32>, vector<8x8xf32> -> vector<8x8xf32>
      %cst_144 = arith.constant dense<0xFF800000> : vector<8xf32>
      %309 = vector.multi_reduction <maximumf>, %308, %cst_144 [1] : vector<8x8xf32> to vector<8xf32>
      %310 = vector.shape_cast %309 : vector<8xf32> to vector<8x1xf32>
      %311 = vector.broadcast %310 : vector<8x1xf32> to vector<8x8xf32>
      %312 = arith.subf %308, %311 : vector<8x8xf32>
      %313 = math.exp %312 : vector<8x8xf32>
      %cst_145 = arith.constant dense<0.000000e+00> : vector<8xf32>
      %314 = vector.multi_reduction <add>, %313, %cst_145 [1] : vector<8x8xf32> to vector<8xf32>
      %315 = vector.shape_cast %314 : vector<8xf32> to vector<8x1xf32>
      %316 = vector.broadcast %315 : vector<8x1xf32> to vector<8x8xf32>
      %317 = arith.divf %313, %316 : vector<8x8xf32>
      %cst_146 = arith.constant dense<0.000000e+00> : vector<8x24xf32>
      %318 = tpu.matmul %317, %307, %cst_146 {dimension_numbers = #tpu.dot_dimension_numbers<[1], [0], [0], [1], [0, 0, 1, 1], [], []>} : vector<8x8xf32>, vector<8x24xf32>, vector<8x24xf32> -> vector<8x24xf32>
      %319 = vector.extract_strided_slice %168 {offsets = [168, 0], sizes = [24, 192], strides = [1, 1]} : vector<192x192xf32> to vector<24x192xf32>
      %cst_147 = arith.constant dense<0.000000e+00> : vector<8x192xf32>
      %320 = tpu.matmul %318, %319, %cst_147 {dimension_numbers = #tpu.dot_dimension_numbers<[1], [0], [0], [1], [0, 0, 1, 1], [], []>} : vector<8x24xf32>, vector<24x192xf32>, vector<8x192xf32> -> vector<8x192xf32>
      %321 = arith.addf %302, %320 : vector<8x192xf32>
      %c0_148 = arith.constant 0 : index
      %c0_149 = arith.constant 0 : index
      %c0_150 = arith.constant 0 : index
      %322 = vector.load %arg12[%c0_148, %c0_149, %c0_150] : memref<1x1x192xf32, #tpu.memory_space<vmem>>, vector<1x1x192xf32>
      %323 = vector.shape_cast %322 : vector<1x1x192xf32> to vector<1x192xf32>
      %324 = vector.broadcast %323 : vector<1x192xf32> to vector<8x192xf32>
      %325 = arith.addf %321, %324 : vector<8x192xf32>
      %c0_151 = arith.constant 0 : index
      %c0_152 = arith.constant 0 : index
      %326 = vector.load %arg25[%c0_151, %c0_152] : memref<16x192xf32, #tpu.memory_space<vmem>>, vector<8x192xf32>
      tpu.vector_store %arg25[%c0_151, %c0_152], %325 {strides = array<i32>} : memref<16x192xf32, #tpu.memory_space<vmem>>, vector<8x192xf32>,
      %cst_153 = arith.constant 0.000000e+00 : f32
      %327 = vector.broadcast %cst_153 : f32 to vector<8x192xf32>
      %328 = vector.extract_strided_slice %153 {offsets = [8, 0], sizes = [8, 24], strides = [1, 1]} : vector<16x192xf32> to vector<8x24xf32>
      %cst_154 = arith.constant 0.204124153 : f32
      %329 = vector.broadcast %cst_154 : f32 to vector<8x24xf32>
      %330 = arith.mulf %328, %329 : vector<8x24xf32>
      %331 = vector.extract_strided_slice %165 {offsets = [8, 0], sizes = [8, 24], strides = [1, 1]} : vector<16x192xf32> to vector<8x24xf32>
      %332 = vector.extract_strided_slice %166 {offsets = [8, 0], sizes = [8, 24], strides = [1, 1]} : vector<16x192xf32> to vector<8x24xf32>
      %cst_155 = arith.constant dense<0.000000e+00> : vector<8x8xf32>
      %333 = tpu.matmul %330, %331, %cst_155 {dimension_numbers = #tpu.dot_dimension_numbers<[1], [1], [0], [0], [0, 0, 1, 0], [], []>} : vector<8x24xf32>, vector<8x24xf32>, vector<8x8xf32> -> vector<8x8xf32>
      %cst_156 = arith.constant dense<0xFF800000> : vector<8xf32>
      %334 = vector.multi_reduction <maximumf>, %333, %cst_156 [1] : vector<8x8xf32> to vector<8xf32>
      %335 = vector.shape_cast %334 : vector<8xf32> to vector<8x1xf32>
      %336 = vector.broadcast %335 : vector<8x1xf32> to vector<8x8xf32>
      %337 = arith.subf %333, %336 : vector<8x8xf32>
      %338 = math.exp %337 : vector<8x8xf32>
      %cst_157 = arith.constant dense<0.000000e+00> : vector<8xf32>
      %339 = vector.multi_reduction <add>, %338, %cst_157 [1] : vector<8x8xf32> to vector<8xf32>
      %340 = vector.shape_cast %339 : vector<8xf32> to vector<8x1xf32>
      %341 = vector.broadcast %340 : vector<8x1xf32> to vector<8x8xf32>
      %342 = arith.divf %338, %341 : vector<8x8xf32>
      %cst_158 = arith.constant dense<0.000000e+00> : vector<8x24xf32>
      %343 = tpu.matmul %342, %332, %cst_158 {dimension_numbers = #tpu.dot_dimension_numbers<[1], [0], [0], [1], [0, 0, 1, 1], [], []>} : vector<8x8xf32>, vector<8x24xf32>, vector<8x24xf32> -> vector<8x24xf32>
      %344 = vector.extract_strided_slice %168 {offsets = [0, 0], sizes = [24, 192], strides = [1, 1]} : vector<192x192xf32> to vector<24x192xf32>
      %cst_159 = arith.constant dense<0.000000e+00> : vector<8x192xf32>
      %345 = tpu.matmul %343, %344, %cst_159 {dimension_numbers = #tpu.dot_dimension_numbers<[1], [0], [0], [1], [0, 0, 1, 1], [], []>} : vector<8x24xf32>, vector<24x192xf32>, vector<8x192xf32> -> vector<8x192xf32>
      %346 = arith.addf %327, %345 : vector<8x192xf32>
      %347 = vector.extract_strided_slice %153 {offsets = [8, 24], sizes = [8, 24], strides = [1, 1]} : vector<16x192xf32> to vector<8x24xf32>
      %cst_160 = arith.constant 0.204124153 : f32
      %348 = vector.broadcast %cst_160 : f32 to vector<8x24xf32>
      %349 = arith.mulf %347, %348 : vector<8x24xf32>
      %350 = vector.extract_strided_slice %165 {offsets = [8, 24], sizes = [8, 24], strides = [1, 1]} : vector<16x192xf32> to vector<8x24xf32>
      %351 = vector.extract_strided_slice %166 {offsets = [8, 24], sizes = [8, 24], strides = [1, 1]} : vector<16x192xf32> to vector<8x24xf32>
      %cst_161 = arith.constant dense<0.000000e+00> : vector<8x8xf32>
      %352 = tpu.matmul %349, %350, %cst_161 {dimension_numbers = #tpu.dot_dimension_numbers<[1], [1], [0], [0], [0, 0, 1, 0], [], []>} : vector<8x24xf32>, vector<8x24xf32>, vector<8x8xf32> -> vector<8x8xf32>
      %cst_162 = arith.constant dense<0xFF800000> : vector<8xf32>
      %353 = vector.multi_reduction <maximumf>, %352, %cst_162 [1] : vector<8x8xf32> to vector<8xf32>
      %354 = vector.shape_cast %353 : vector<8xf32> to vector<8x1xf32>
      %355 = vector.broadcast %354 : vector<8x1xf32> to vector<8x8xf32>
      %356 = arith.subf %352, %355 : vector<8x8xf32>
      %357 = math.exp %356 : vector<8x8xf32>
      %cst_163 = arith.constant dense<0.000000e+00> : vector<8xf32>
      %358 = vector.multi_reduction <add>, %357, %cst_163 [1] : vector<8x8xf32> to vector<8xf32>
      %359 = vector.shape_cast %358 : vector<8xf32> to vector<8x1xf32>
      %360 = vector.broadcast %359 : vector<8x1xf32> to vector<8x8xf32>
      %361 = arith.divf %357, %360 : vector<8x8xf32>
      %cst_164 = arith.constant dense<0.000000e+00> : vector<8x24xf32>
      %362 = tpu.matmul %361, %351, %cst_164 {dimension_numbers = #tpu.dot_dimension_numbers<[1], [0], [0], [1], [0, 0, 1, 1], [], []>} : vector<8x8xf32>, vector<8x24xf32>, vector<8x24xf32> -> vector<8x24xf32>
      %363 = vector.extract_strided_slice %168 {offsets = [24, 0], sizes = [24, 192], strides = [1, 1]} : vector<192x192xf32> to vector<24x192xf32>
      %cst_165 = arith.constant dense<0.000000e+00> : vector<8x192xf32>
      %364 = tpu.matmul %362, %363, %cst_165 {dimension_numbers = #tpu.dot_dimension_numbers<[1], [0], [0], [1], [0, 0, 1, 1], [], []>} : vector<8x24xf32>, vector<24x192xf32>, vector<8x192xf32> -> vector<8x192xf32>
      %365 = arith.addf %346, %364 : vector<8x192xf32>
      %366 = vector.extract_strided_slice %153 {offsets = [8, 48], sizes = [8, 24], strides = [1, 1]} : vector<16x192xf32> to vector<8x24xf32>
      %cst_166 = arith.constant 0.204124153 : f32
      %367 = vector.broadcast %cst_166 : f32 to vector<8x24xf32>
      %368 = arith.mulf %366, %367 : vector<8x24xf32>
      %369 = vector.extract_strided_slice %165 {offsets = [8, 48], sizes = [8, 24], strides = [1, 1]} : vector<16x192xf32> to vector<8x24xf32>
      %370 = vector.extract_strided_slice %166 {offsets = [8, 48], sizes = [8, 24], strides = [1, 1]} : vector<16x192xf32> to vector<8x24xf32>
      %cst_167 = arith.constant dense<0.000000e+00> : vector<8x8xf32>
      %371 = tpu.matmul %368, %369, %cst_167 {dimension_numbers = #tpu.dot_dimension_numbers<[1], [1], [0], [0], [0, 0, 1, 0], [], []>} : vector<8x24xf32>, vector<8x24xf32>, vector<8x8xf32> -> vector<8x8xf32>
      %cst_168 = arith.constant dense<0xFF800000> : vector<8xf32>
      %372 = vector.multi_reduction <maximumf>, %371, %cst_168 [1] : vector<8x8xf32> to vector<8xf32>
      %373 = vector.shape_cast %372 : vector<8xf32> to vector<8x1xf32>
      %374 = vector.broadcast %373 : vector<8x1xf32> to vector<8x8xf32>
      %375 = arith.subf %371, %374 : vector<8x8xf32>
      %376 = math.exp %375 : vector<8x8xf32>
      %cst_169 = arith.constant dense<0.000000e+00> : vector<8xf32>
      %377 = vector.multi_reduction <add>, %376, %cst_169 [1] : vector<8x8xf32> to vector<8xf32>
      %378 = vector.shape_cast %377 : vector<8xf32> to vector<8x1xf32>
      %379 = vector.broadcast %378 : vector<8x1xf32> to vector<8x8xf32>
      %380 = arith.divf %376, %379 : vector<8x8xf32>
      %cst_170 = arith.constant dense<0.000000e+00> : vector<8x24xf32>
      %381 = tpu.matmul %380, %370, %cst_170 {dimension_numbers = #tpu.dot_dimension_numbers<[1], [0], [0], [1], [0, 0, 1, 1], [], []>} : vector<8x8xf32>, vector<8x24xf32>, vector<8x24xf32> -> vector<8x24xf32>
      %382 = vector.extract_strided_slice %168 {offsets = [48, 0], sizes = [24, 192], strides = [1, 1]} : vector<192x192xf32> to vector<24x192xf32>
      %cst_171 = arith.constant dense<0.000000e+00> : vector<8x192xf32>
      %383 = tpu.matmul %381, %382, %cst_171 {dimension_numbers = #tpu.dot_dimension_numbers<[1], [0], [0], [1], [0, 0, 1, 1], [], []>} : vector<8x24xf32>, vector<24x192xf32>, vector<8x192xf32> -> vector<8x192xf32>
      %384 = arith.addf %365, %383 : vector<8x192xf32>
      %385 = vector.extract_strided_slice %153 {offsets = [8, 72], sizes = [8, 24], strides = [1, 1]} : vector<16x192xf32> to vector<8x24xf32>
      %cst_172 = arith.constant 0.204124153 : f32
      %386 = vector.broadcast %cst_172 : f32 to vector<8x24xf32>
      %387 = arith.mulf %385, %386 : vector<8x24xf32>
      %388 = vector.extract_strided_slice %165 {offsets = [8, 72], sizes = [8, 24], strides = [1, 1]} : vector<16x192xf32> to vector<8x24xf32>
      %389 = vector.extract_strided_slice %166 {offsets = [8, 72], sizes = [8, 24], strides = [1, 1]} : vector<16x192xf32> to vector<8x24xf32>
      %cst_173 = arith.constant dense<0.000000e+00> : vector<8x8xf32>
      %390 = tpu.matmul %387, %388, %cst_173 {dimension_numbers = #tpu.dot_dimension_numbers<[1], [1], [0], [0], [0, 0, 1, 0], [], []>} : vector<8x24xf32>, vector<8x24xf32>, vector<8x8xf32> -> vector<8x8xf32>
      %cst_174 = arith.constant dense<0xFF800000> : vector<8xf32>
      %391 = vector.multi_reduction <maximumf>, %390, %cst_174 [1] : vector<8x8xf32> to vector<8xf32>
      %392 = vector.shape_cast %391 : vector<8xf32> to vector<8x1xf32>
      %393 = vector.broadcast %392 : vector<8x1xf32> to vector<8x8xf32>
      %394 = arith.subf %390, %393 : vector<8x8xf32>
      %395 = math.exp %394 : vector<8x8xf32>
      %cst_175 = arith.constant dense<0.000000e+00> : vector<8xf32>
      %396 = vector.multi_reduction <add>, %395, %cst_175 [1] : vector<8x8xf32> to vector<8xf32>
      %397 = vector.shape_cast %396 : vector<8xf32> to vector<8x1xf32>
      %398 = vector.broadcast %397 : vector<8x1xf32> to vector<8x8xf32>
      %399 = arith.divf %395, %398 : vector<8x8xf32>
      %cst_176 = arith.constant dense<0.000000e+00> : vector<8x24xf32>
      %400 = tpu.matmul %399, %389, %cst_176 {dimension_numbers = #tpu.dot_dimension_numbers<[1], [0], [0], [1], [0, 0, 1, 1], [], []>} : vector<8x8xf32>, vector<8x24xf32>, vector<8x24xf32> -> vector<8x24xf32>
      %401 = vector.extract_strided_slice %168 {offsets = [72, 0], sizes = [24, 192], strides = [1, 1]} : vector<192x192xf32> to vector<24x192xf32>
      %cst_177 = arith.constant dense<0.000000e+00> : vector<8x192xf32>
      %402 = tpu.matmul %400, %401, %cst_177 {dimension_numbers = #tpu.dot_dimension_numbers<[1], [0], [0], [1], [0, 0, 1, 1], [], []>} : vector<8x24xf32>, vector<24x192xf32>, vector<8x192xf32> -> vector<8x192xf32>
      %403 = arith.addf %384, %402 : vector<8x192xf32>
      %404 = vector.extract_strided_slice %153 {offsets = [8, 96], sizes = [8, 24], strides = [1, 1]} : vector<16x192xf32> to vector<8x24xf32>
      %cst_178 = arith.constant 0.204124153 : f32
      %405 = vector.broadcast %cst_178 : f32 to vector<8x24xf32>
      %406 = arith.mulf %404, %405 : vector<8x24xf32>
      %407 = vector.extract_strided_slice %165 {offsets = [8, 96], sizes = [8, 24], strides = [1, 1]} : vector<16x192xf32> to vector<8x24xf32>
      %408 = vector.extract_strided_slice %166 {offsets = [8, 96], sizes = [8, 24], strides = [1, 1]} : vector<16x192xf32> to vector<8x24xf32>
      %cst_179 = arith.constant dense<0.000000e+00> : vector<8x8xf32>
      %409 = tpu.matmul %406, %407, %cst_179 {dimension_numbers = #tpu.dot_dimension_numbers<[1], [1], [0], [0], [0, 0, 1, 0], [], []>} : vector<8x24xf32>, vector<8x24xf32>, vector<8x8xf32> -> vector<8x8xf32>
      %cst_180 = arith.constant dense<0xFF800000> : vector<8xf32>
      %410 = vector.multi_reduction <maximumf>, %409, %cst_180 [1] : vector<8x8xf32> to vector<8xf32>
      %411 = vector.shape_cast %410 : vector<8xf32> to vector<8x1xf32>
      %412 = vector.broadcast %411 : vector<8x1xf32> to vector<8x8xf32>
      %413 = arith.subf %409, %412 : vector<8x8xf32>
      %414 = math.exp %413 : vector<8x8xf32>
      %cst_181 = arith.constant dense<0.000000e+00> : vector<8xf32>
      %415 = vector.multi_reduction <add>, %414, %cst_181 [1] : vector<8x8xf32> to vector<8xf32>
      %416 = vector.shape_cast %415 : vector<8xf32> to vector<8x1xf32>
      %417 = vector.broadcast %416 : vector<8x1xf32> to vector<8x8xf32>
      %418 = arith.divf %414, %417 : vector<8x8xf32>
      %cst_182 = arith.constant dense<0.000000e+00> : vector<8x24xf32>
      %419 = tpu.matmul %418, %408, %cst_182 {dimension_numbers = #tpu.dot_dimension_numbers<[1], [0], [0], [1], [0, 0, 1, 1], [], []>} : vector<8x8xf32>, vector<8x24xf32>, vector<8x24xf32> -> vector<8x24xf32>
      %420 = vector.extract_strided_slice %168 {offsets = [96, 0], sizes = [24, 192], strides = [1, 1]} : vector<192x192xf32> to vector<24x192xf32>
      %cst_183 = arith.constant dense<0.000000e+00> : vector<8x192xf32>
      %421 = tpu.matmul %419, %420, %cst_183 {dimension_numbers = #tpu.dot_dimension_numbers<[1], [0], [0], [1], [0, 0, 1, 1], [], []>} : vector<8x24xf32>, vector<24x192xf32>, vector<8x192xf32> -> vector<8x192xf32>
      %422 = arith.addf %403, %421 : vector<8x192xf32>
      %423 = vector.extract_strided_slice %153 {offsets = [8, 120], sizes = [8, 24], strides = [1, 1]} : vector<16x192xf32> to vector<8x24xf32>
      %cst_184 = arith.constant 0.204124153 : f32
      %424 = vector.broadcast %cst_184 : f32 to vector<8x24xf32>
      %425 = arith.mulf %423, %424 : vector<8x24xf32>
      %426 = vector.extract_strided_slice %165 {offsets = [8, 120], sizes = [8, 24], strides = [1, 1]} : vector<16x192xf32> to vector<8x24xf32>
      %427 = vector.extract_strided_slice %166 {offsets = [8, 120], sizes = [8, 24], strides = [1, 1]} : vector<16x192xf32> to vector<8x24xf32>
      %cst_185 = arith.constant dense<0.000000e+00> : vector<8x8xf32>
      %428 = tpu.matmul %425, %426, %cst_185 {dimension_numbers = #tpu.dot_dimension_numbers<[1], [1], [0], [0], [0, 0, 1, 0], [], []>} : vector<8x24xf32>, vector<8x24xf32>, vector<8x8xf32> -> vector<8x8xf32>
      %cst_186 = arith.constant dense<0xFF800000> : vector<8xf32>
      %429 = vector.multi_reduction <maximumf>, %428, %cst_186 [1] : vector<8x8xf32> to vector<8xf32>
      %430 = vector.shape_cast %429 : vector<8xf32> to vector<8x1xf32>
      %431 = vector.broadcast %430 : vector<8x1xf32> to vector<8x8xf32>
      %432 = arith.subf %428, %431 : vector<8x8xf32>
      %433 = math.exp %432 : vector<8x8xf32>
      %cst_187 = arith.constant dense<0.000000e+00> : vector<8xf32>
      %434 = vector.multi_reduction <add>, %433, %cst_187 [1] : vector<8x8xf32> to vector<8xf32>
      %435 = vector.shape_cast %434 : vector<8xf32> to vector<8x1xf32>
      %436 = vector.broadcast %435 : vector<8x1xf32> to vector<8x8xf32>
      %437 = arith.divf %433, %436 : vector<8x8xf32>
      %cst_188 = arith.constant dense<0.000000e+00> : vector<8x24xf32>
      %438 = tpu.matmul %437, %427, %cst_188 {dimension_numbers = #tpu.dot_dimension_numbers<[1], [0], [0], [1], [0, 0, 1, 1], [], []>} : vector<8x8xf32>, vector<8x24xf32>, vector<8x24xf32> -> vector<8x24xf32>
      %439 = vector.extract_strided_slice %168 {offsets = [120, 0], sizes = [24, 192], strides = [1, 1]} : vector<192x192xf32> to vector<24x192xf32>
      %cst_189 = arith.constant dense<0.000000e+00> : vector<8x192xf32>
      %440 = tpu.matmul %438, %439, %cst_189 {dimension_numbers = #tpu.dot_dimension_numbers<[1], [0], [0], [1], [0, 0, 1, 1], [], []>} : vector<8x24xf32>, vector<24x192xf32>, vector<8x192xf32> -> vector<8x192xf32>
      %441 = arith.addf %422, %440 : vector<8x192xf32>
      %442 = vector.extract_strided_slice %153 {offsets = [8, 144], sizes = [8, 24], strides = [1, 1]} : vector<16x192xf32> to vector<8x24xf32>
      %cst_190 = arith.constant 0.204124153 : f32
      %443 = vector.broadcast %cst_190 : f32 to vector<8x24xf32>
      %444 = arith.mulf %442, %443 : vector<8x24xf32>
      %445 = vector.extract_strided_slice %165 {offsets = [8, 144], sizes = [8, 24], strides = [1, 1]} : vector<16x192xf32> to vector<8x24xf32>
      %446 = vector.extract_strided_slice %166 {offsets = [8, 144], sizes = [8, 24], strides = [1, 1]} : vector<16x192xf32> to vector<8x24xf32>
      %cst_191 = arith.constant dense<0.000000e+00> : vector<8x8xf32>
      %447 = tpu.matmul %444, %445, %cst_191 {dimension_numbers = #tpu.dot_dimension_numbers<[1], [1], [0], [0], [0, 0, 1, 0], [], []>} : vector<8x24xf32>, vector<8x24xf32>, vector<8x8xf32> -> vector<8x8xf32>
      %cst_192 = arith.constant dense<0xFF800000> : vector<8xf32>
      %448 = vector.multi_reduction <maximumf>, %447, %cst_192 [1] : vector<8x8xf32> to vector<8xf32>
      %449 = vector.shape_cast %448 : vector<8xf32> to vector<8x1xf32>
      %450 = vector.broadcast %449 : vector<8x1xf32> to vector<8x8xf32>
      %451 = arith.subf %447, %450 : vector<8x8xf32>
      %452 = math.exp %451 : vector<8x8xf32>
      %cst_193 = arith.constant dense<0.000000e+00> : vector<8xf32>
      %453 = vector.multi_reduction <add>, %452, %cst_193 [1] : vector<8x8xf32> to vector<8xf32>
      %454 = vector.shape_cast %453 : vector<8xf32> to vector<8x1xf32>
      %455 = vector.broadcast %454 : vector<8x1xf32> to vector<8x8xf32>
      %456 = arith.divf %452, %455 : vector<8x8xf32>
      %cst_194 = arith.constant dense<0.000000e+00> : vector<8x24xf32>
      %457 = tpu.matmul %456, %446, %cst_194 {dimension_numbers = #tpu.dot_dimension_numbers<[1], [0], [0], [1], [0, 0, 1, 1], [], []>} : vector<8x8xf32>, vector<8x24xf32>, vector<8x24xf32> -> vector<8x24xf32>
      %458 = vector.extract_strided_slice %168 {offsets = [144, 0], sizes = [24, 192], strides = [1, 1]} : vector<192x192xf32> to vector<24x192xf32>
      %cst_195 = arith.constant dense<0.000000e+00> : vector<8x192xf32>
      %459 = tpu.matmul %457, %458, %cst_195 {dimension_numbers = #tpu.dot_dimension_numbers<[1], [0], [0], [1], [0, 0, 1, 1], [], []>} : vector<8x24xf32>, vector<24x192xf32>, vector<8x192xf32> -> vector<8x192xf32>
      %460 = arith.addf %441, %459 : vector<8x192xf32>
      %461 = vector.extract_strided_slice %153 {offsets = [8, 168], sizes = [8, 24], strides = [1, 1]} : vector<16x192xf32> to vector<8x24xf32>
      %cst_196 = arith.constant 0.204124153 : f32
      %462 = vector.broadcast %cst_196 : f32 to vector<8x24xf32>
      %463 = arith.mulf %461, %462 : vector<8x24xf32>
      %464 = vector.extract_strided_slice %165 {offsets = [8, 168], sizes = [8, 24], strides = [1, 1]} : vector<16x192xf32> to vector<8x24xf32>
      %465 = vector.extract_strided_slice %166 {offsets = [8, 168], sizes = [8, 24], strides = [1, 1]} : vector<16x192xf32> to vector<8x24xf32>
      %cst_197 = arith.constant dense<0.000000e+00> : vector<8x8xf32>
      %466 = tpu.matmul %463, %464, %cst_197 {dimension_numbers = #tpu.dot_dimension_numbers<[1], [1], [0], [0], [0, 0, 1, 0], [], []>} : vector<8x24xf32>, vector<8x24xf32>, vector<8x8xf32> -> vector<8x8xf32>
      %cst_198 = arith.constant dense<0xFF800000> : vector<8xf32>
      %467 = vector.multi_reduction <maximumf>, %466, %cst_198 [1] : vector<8x8xf32> to vector<8xf32>
      %468 = vector.shape_cast %467 : vector<8xf32> to vector<8x1xf32>
      %469 = vector.broadcast %468 : vector<8x1xf32> to vector<8x8xf32>
      %470 = arith.subf %466, %469 : vector<8x8xf32>
      %471 = math.exp %470 : vector<8x8xf32>
      %cst_199 = arith.constant dense<0.000000e+00> : vector<8xf32>
      %472 = vector.multi_reduction <add>, %471, %cst_199 [1] : vector<8x8xf32> to vector<8xf32>
      %473 = vector.shape_cast %472 : vector<8xf32> to vector<8x1xf32>
      %474 = vector.broadcast %473 : vector<8x1xf32> to vector<8x8xf32>
      %475 = arith.divf %471, %474 : vector<8x8xf32>
      %cst_200 = arith.constant dense<0.000000e+00> : vector<8x24xf32>
      %476 = tpu.matmul %475, %465, %cst_200 {dimension_numbers = #tpu.dot_dimension_numbers<[1], [0], [0], [1], [0, 0, 1, 1], [], []>} : vector<8x8xf32>, vector<8x24xf32>, vector<8x24xf32> -> vector<8x24xf32>
      %477 = vector.extract_strided_slice %168 {offsets = [168, 0], sizes = [24, 192], strides = [1, 1]} : vector<192x192xf32> to vector<24x192xf32>
      %cst_201 = arith.constant dense<0.000000e+00> : vector<8x192xf32>
      %478 = tpu.matmul %476, %477, %cst_201 {dimension_numbers = #tpu.dot_dimension_numbers<[1], [0], [0], [1], [0, 0, 1, 1], [], []>} : vector<8x24xf32>, vector<24x192xf32>, vector<8x192xf32> -> vector<8x192xf32>
      %479 = arith.addf %460, %478 : vector<8x192xf32>
      %c0_202 = arith.constant 0 : index
      %c0_203 = arith.constant 0 : index
      %c0_204 = arith.constant 0 : index
      %480 = vector.load %arg12[%c0_202, %c0_203, %c0_204] : memref<1x1x192xf32, #tpu.memory_space<vmem>>, vector<1x1x192xf32>
      %481 = vector.shape_cast %480 : vector<1x1x192xf32> to vector<1x192xf32>
      %482 = vector.broadcast %481 : vector<1x192xf32> to vector<8x192xf32>
      %483 = arith.addf %479, %482 : vector<8x192xf32>
      %c8 = arith.constant 8 : index
      %c0_205 = arith.constant 0 : index
      %484 = vector.load %arg25[%c8, %c0_205] : memref<16x192xf32, #tpu.memory_space<vmem>>, vector<8x192xf32>
      tpu.vector_store %arg25[%c8, %c0_205], %483 {strides = array<i32>} : memref<16x192xf32, #tpu.memory_space<vmem>>, vector<8x192xf32>,
    } else {
    }
    %c2_i32_11 = arith.constant 2 : i32
    %c0_i32_12 = arith.constant 0 : i32
    %19 = arith.cmpi eq, %c2_i32_11, %c0_i32_12 : i32
    %c1_i32_13 = arith.constant 1 : i32
    %20 = arith.select %19, %c1_i32_13, %c2_i32_11 : i32
    %21 = arith.remsi %arg0, %20 : i32
    %c0_i32_14 = arith.constant 0 : i32
    %22 = arith.cmpi ne, %21, %c0_i32_14 : i32
    %c0_i32_15 = arith.constant 0 : i32
    %23 = arith.cmpi slt, %21, %c0_i32_15 : i32
    %c0_i32_16 = arith.constant 0 : i32
    %24 = arith.cmpi slt, %20, %c0_i32_16 : i32
    %25 = arith.xori %23, %24 : i1
    %26 = arith.andi %25, %22 : i1
    %27 = arith.addi %21, %20 : i32
    %28 = arith.select %26, %27, %21 : i32
    %c1_i32_17 = arith.constant 1 : i32
    %29 = arith.cmpi eq, %28, %c1_i32_17 : i32
    %30 = arith.extui %29 : i1 to i32
    %c0_i32_18 = arith.constant 0 : i32
    %31 = arith.cmpi ne, %30, %c0_i32_18 : i32
    scf.if %31 {
      %c0_68 = arith.constant 0 : index
      %c0_69 = arith.constant 0 : index
      %c0_70 = arith.constant 0 : index
      %120 = vector.load %arg13[%c0_68, %c0_69, %c0_70] : memref<1x1x192xf32, #tpu.memory_space<vmem>>, vector<1x1x192xf32>
      %121 = vector.shape_cast %120 : vector<1x1x192xf32> to vector<1x192xf32>
      %c0_71 = arith.constant 0 : index
      %c0_72 = arith.constant 0 : index
      %c0_73 = arith.constant 0 : index
      %122 = vector.load %arg11[%c0_71, %c0_72, %c0_73] : memref<1x192x192xf32, #tpu.memory_space<vmem>>, vector<1x192x192xf32>
      %123 = vector.shape_cast %122 : vector<1x192x192xf32> to vector<192x192xf32>
      %cst_74 = arith.constant dense<0.000000e+00> : vector<1x192xf32>
      %124 = tpu.matmul %121, %123, %cst_74 {dimension_numbers = #tpu.dot_dimension_numbers<[1], [0], [0], [1], [0, 0, 1, 1], [], []>} : vector<1x192xf32>, vector<192x192xf32>, vector<1x192xf32> -> vector<1x192xf32>
      %c0_75 = arith.constant 0 : index
      %c0_76 = arith.constant 0 : index
      %c0_77 = arith.constant 0 : index
      %125 = vector.load %arg12[%c0_75, %c0_76, %c0_77] : memref<1x1x192xf32, #tpu.memory_space<vmem>>, vector<1x1x192xf32>
      %126 = vector.shape_cast %125 : vector<1x1x192xf32> to vector<1x192xf32>
      %127 = arith.addf %124, %126 : vector<1x192xf32>
      %128 = vector.shape_cast %127 : vector<1x192xf32> to vector<1x192xf32>
      %129 = vector.broadcast %128 : vector<1x192xf32> to vector<16x192xf32>
      %c0_78 = arith.constant 0 : index
      %c0_79 = arith.constant 0 : index
      %130 = vector.load %arg25[%c0_78, %c0_79] : memref<16x192xf32, #tpu.memory_space<vmem>>, vector<16x192xf32>
      tpu.vector_store %arg25[%c0_78, %c0_79], %129 {strides = array<i32>} : memref<16x192xf32, #tpu.memory_space<vmem>>, vector<16x192xf32>,
    } else {
    }
    %c0_19 = arith.constant 0 : index
    %c0_20 = arith.constant 0 : index
    %32 = vector.load %arg25[%c0_19, %c0_20] : memref<16x192xf32, #tpu.memory_space<vmem>>, vector<16x192xf32>
    %33 = arith.addf %4, %32 : vector<16x192xf32>
    %c0_21 = arith.constant 0 : index
    %c0_22 = arith.constant 0 : index
    %c0_23 = arith.constant 0 : index
    %34 = vector.load %arg14[%c0_21, %c0_22, %c0_23] : memref<1x1x192xf32, #tpu.memory_space<vmem>>, vector<1x1x192xf32>
    %35 = vector.shape_cast %34 : vector<1x1x192xf32> to vector<1x192xf32>
    %c0_24 = arith.constant 0 : index
    %c0_25 = arith.constant 0 : index
    %c0_26 = arith.constant 0 : index
    %36 = vector.load %arg15[%c0_24, %c0_25, %c0_26] : memref<1x1x192xf32, #tpu.memory_space<vmem>>, vector<1x1x192xf32>
    %37 = vector.shape_cast %36 : vector<1x1x192xf32> to vector<1x192xf32>
    %cst = arith.constant dense<0.000000e+00> : vector<16xf32>
    %38 = vector.multi_reduction <add>, %33, %cst [1] : vector<16x192xf32> to vector<16xf32>
    %39 = vector.shape_cast %38 : vector<16xf32> to vector<16x1xf32>
    %cst_27 = arith.constant 1.920000e+02 : f32
    %40 = vector.broadcast %cst_27 : f32 to vector<16x1xf32>
    %41 = arith.divf %39, %40 : vector<16x1xf32>
    %42 = vector.broadcast %41 : vector<16x1xf32> to vector<16x192xf32>
    %43 = arith.subf %33, %42 : vector<16x192xf32>
    %44 = arith.mulf %43, %43 : vector<16x192xf32>
    %cst_28 = arith.constant dense<0.000000e+00> : vector<16xf32>
    %45 = vector.multi_reduction <add>, %44, %cst_28 [1] : vector<16x192xf32> to vector<16xf32>
    %46 = vector.shape_cast %45 : vector<16xf32> to vector<16x1xf32>
    %cst_29 = arith.constant 1.920000e+02 : f32
    %47 = vector.broadcast %cst_29 : f32 to vector<16x1xf32>
    %48 = arith.divf %46, %47 : vector<16x1xf32>
    %cst_30 = arith.constant 9.99999974E-6 : f32
    %49 = vector.broadcast %cst_30 : f32 to vector<16x1xf32>
    %50 = arith.addf %48, %49 : vector<16x1xf32>
    %51 = math.rsqrt %50 : vector<16x1xf32>
    %52 = vector.broadcast %51 : vector<16x1xf32> to vector<16x192xf32>
    %53 = arith.mulf %43, %52 : vector<16x192xf32>
    %54 = vector.broadcast %35 : vector<1x192xf32> to vector<16x192xf32>
    %55 = arith.mulf %53, %54 : vector<16x192xf32>
    %56 = vector.broadcast %37 : vector<1x192xf32> to vector<16x192xf32>
    %57 = arith.addf %55, %56 : vector<16x192xf32>
    %c0_31 = arith.constant 0 : index
    %c0_32 = arith.constant 0 : index
    %c0_33 = arith.constant 0 : index
    %58 = vector.load %arg16[%c0_31, %c0_32, %c0_33] : memref<1x192x384xf32, #tpu.memory_space<vmem>>, vector<1x192x384xf32>
    %59 = vector.shape_cast %58 : vector<1x192x384xf32> to vector<192x384xf32>
    %cst_34 = arith.constant dense<0.000000e+00> : vector<2x384xf32>
    %60 = tpu.matmul %5, %59, %cst_34 {dimension_numbers = #tpu.dot_dimension_numbers<[1], [0], [0], [1], [0, 0, 1, 1], [], []>} : vector<2x192xf32>, vector<192x384xf32>, vector<2x384xf32> -> vector<2x384xf32>
    %c0_35 = arith.constant 0 : index
    %c0_36 = arith.constant 0 : index
    %c0_37 = arith.constant 0 : index
    %61 = vector.load %arg17[%c0_35, %c0_36, %c0_37] : memref<1x1x384xf32, #tpu.memory_space<vmem>>, vector<1x1x384xf32>
    %62 = vector.shape_cast %61 : vector<1x1x384xf32> to vector<1x384xf32>
    %63 = vector.broadcast %62 : vector<1x384xf32> to vector<2x384xf32>
    %64 = arith.addf %60, %63 : vector<2x384xf32>
    %65 = vector.shape_cast %57 : vector<16x192xf32> to vector<2x8x192xf32>
    %66 = vector.extract_strided_slice %64 {offsets = [0, 0], sizes = [2, 192], strides = [1, 1]} : vector<2x384xf32> to vector<2x192xf32>
    %67 = vector.shape_cast %66 : vector<2x192xf32> to vector<2x1x192xf32>
    %cst_38 = arith.constant 1.000000e+00 : f32
    %68 = vector.broadcast %cst_38 : f32 to vector<2x1x192xf32>
    %69 = arith.addf %68, %67 : vector<2x1x192xf32>
    %70 = vector.broadcast %69 : vector<2x1x192xf32> to vector<2x8x192xf32>
    %71 = arith.mulf %65, %70 : vector<2x8x192xf32>
    %72 = vector.extract_strided_slice %64 {offsets = [0, 192], sizes = [2, 192], strides = [1, 1]} : vector<2x384xf32> to vector<2x192xf32>
    %73 = vector.shape_cast %72 : vector<2x192xf32> to vector<2x1x192xf32>
    %74 = vector.broadcast %73 : vector<2x1x192xf32> to vector<2x8x192xf32>
    %75 = arith.addf %71, %74 : vector<2x8x192xf32>
    %76 = vector.shape_cast %75 : vector<2x8x192xf32> to vector<16x192xf32>
    %c0_39 = arith.constant 0 : index
    %c0_40 = arith.constant 0 : index
    %c0_41 = arith.constant 0 : index
    %77 = vector.load %arg18[%c0_39, %c0_40, %c0_41] : memref<1x192x192xf32, #tpu.memory_space<vmem>>, vector<1x192x192xf32>
    %78 = vector.shape_cast %77 : vector<1x192x192xf32> to vector<192x192xf32>
    %cst_42 = arith.constant dense<0.000000e+00> : vector<16x192xf32>
    %79 = tpu.matmul %76, %78, %cst_42 {dimension_numbers = #tpu.dot_dimension_numbers<[1], [0], [0], [1], [0, 0, 1, 1], [], []>} : vector<16x192xf32>, vector<192x192xf32>, vector<16x192xf32> -> vector<16x192xf32>
    %c0_43 = arith.constant 0 : index
    %c0_44 = arith.constant 0 : index
    %c0_45 = arith.constant 0 : index
    %80 = vector.load %arg19[%c0_43, %c0_44, %c0_45] : memref<1x1x192xf32, #tpu.memory_space<vmem>>, vector<1x1x192xf32>
    %81 = vector.shape_cast %80 : vector<1x1x192xf32> to vector<1x192xf32>
    %82 = vector.broadcast %81 : vector<1x192xf32> to vector<16x192xf32>
    %83 = arith.addf %79, %82 : vector<16x192xf32>
    %cst_46 = arith.constant 0.000000e+00 : f32
    %84 = vector.broadcast %cst_46 : f32 to vector<16x192xf32>
    %85 = arith.maximumf %83, %84 : vector<16x192xf32>
    %c0_47 = arith.constant 0 : index
    %c0_48 = arith.constant 0 : index
    %c0_49 = arith.constant 0 : index
    %86 = vector.load %arg20[%c0_47, %c0_48, %c0_49] : memref<1x192x192xf32, #tpu.memory_space<vmem>>, vector<1x192x192xf32>
    %87 = vector.shape_cast %86 : vector<1x192x192xf32> to vector<192x192xf32>
    %cst_50 = arith.constant dense<0.000000e+00> : vector<16x192xf32>
    %88 = tpu.matmul %85, %87, %cst_50 {dimension_numbers = #tpu.dot_dimension_numbers<[1], [0], [0], [1], [0, 0, 1, 1], [], []>} : vector<16x192xf32>, vector<192x192xf32>, vector<16x192xf32> -> vector<16x192xf32>
    %c0_51 = arith.constant 0 : index
    %c0_52 = arith.constant 0 : index
    %c0_53 = arith.constant 0 : index
    %89 = vector.load %arg21[%c0_51, %c0_52, %c0_53] : memref<1x1x192xf32, #tpu.memory_space<vmem>>, vector<1x1x192xf32>
    %90 = vector.shape_cast %89 : vector<1x1x192xf32> to vector<1x192xf32>
    %91 = vector.broadcast %90 : vector<1x192xf32> to vector<16x192xf32>
    %92 = arith.addf %88, %91 : vector<16x192xf32>
    %93 = arith.addf %57, %92 : vector<16x192xf32>
    %c0_54 = arith.constant 0 : index
    %c0_55 = arith.constant 0 : index
    %c0_56 = arith.constant 0 : index
    %94 = vector.load %arg22[%c0_54, %c0_55, %c0_56] : memref<1x1x192xf32, #tpu.memory_space<vmem>>, vector<1x1x192xf32>
    %95 = vector.shape_cast %94 : vector<1x1x192xf32> to vector<1x192xf32>
    %c0_57 = arith.constant 0 : index
    %c0_58 = arith.constant 0 : index
    %c0_59 = arith.constant 0 : index
    %96 = vector.load %arg23[%c0_57, %c0_58, %c0_59] : memref<1x1x192xf32, #tpu.memory_space<vmem>>, vector<1x1x192xf32>
    %97 = vector.shape_cast %96 : vector<1x1x192xf32> to vector<1x192xf32>
    %cst_60 = arith.constant dense<0.000000e+00> : vector<16xf32>
    %98 = vector.multi_reduction <add>, %93, %cst_60 [1] : vector<16x192xf32> to vector<16xf32>
    %99 = vector.shape_cast %98 : vector<16xf32> to vector<16x1xf32>
    %cst_61 = arith.constant 1.920000e+02 : f32
    %100 = vector.broadcast %cst_61 : f32 to vector<16x1xf32>
    %101 = arith.divf %99, %100 : vector<16x1xf32>
    %102 = vector.broadcast %101 : vector<16x1xf32> to vector<16x192xf32>
    %103 = arith.subf %93, %102 : vector<16x192xf32>
    %104 = arith.mulf %103, %103 : vector<16x192xf32>
    %cst_62 = arith.constant dense<0.000000e+00> : vector<16xf32>
    %105 = vector.multi_reduction <add>, %104, %cst_62 [1] : vector<16x192xf32> to vector<16xf32>
    %106 = vector.shape_cast %105 : vector<16xf32> to vector<16x1xf32>
    %cst_63 = arith.constant 1.920000e+02 : f32
    %107 = vector.broadcast %cst_63 : f32 to vector<16x1xf32>
    %108 = arith.divf %106, %107 : vector<16x1xf32>
    %cst_64 = arith.constant 9.99999974E-6 : f32
    %109 = vector.broadcast %cst_64 : f32 to vector<16x1xf32>
    %110 = arith.addf %108, %109 : vector<16x1xf32>
    %111 = math.rsqrt %110 : vector<16x1xf32>
    %112 = vector.broadcast %111 : vector<16x1xf32> to vector<16x192xf32>
    %113 = arith.mulf %103, %112 : vector<16x192xf32>
    %114 = vector.broadcast %95 : vector<1x192xf32> to vector<16x192xf32>
    %115 = arith.mulf %113, %114 : vector<16x192xf32>
    %116 = vector.broadcast %97 : vector<1x192xf32> to vector<16x192xf32>
    %117 = arith.addf %115, %116 : vector<16x192xf32>
    %118 = vector.shape_cast %117 : vector<16x192xf32> to vector<2x8x192xf32>
    %c0_65 = arith.constant 0 : index
    %c0_66 = arith.constant 0 : index
    %c0_67 = arith.constant 0 : index
    %119 = vector.load %arg24[%c0_65, %c0_66, %c0_67] : memref<2x8x192xf32, #tpu.memory_space<vmem>>, vector<2x8x192xf32>
    tpu.vector_store %arg24[%c0_65, %c0_66, %c0_67], %118 {strides = array<i32>} : memref<2x8x192xf32, #tpu.memory_space<vmem>>, vector<2x8x192xf32>,
    return
  }
  func.func @transform_0(%arg0: i32) -> (i32, i32, i32) {
    %c0_i32 = arith.constant 0 : i32
    %c0_i32_0 = arith.constant 0 : i32
    %c0_i32_1 = arith.constant 0 : i32
    %c0_i32_2 = arith.constant 0 : i32
    return %c0_i32, %c0_i32_0, %c0_i32_1 : i32, i32, i32
  }
  func.func @transform_1(%arg0: i32) -> (i32, i32, i32) {
    %c0_i32 = arith.constant 0 : i32
    %c0_i32_0 = arith.constant 0 : i32
    %c0_i32_1 = arith.constant 0 : i32
    %c0_i32_2 = arith.constant 0 : i32
    return %c0_i32, %c0_i32_0, %c0_i32_1 : i32, i32, i32
  }
  func.func @transform_2(%arg0: i32) -> (i32, i32, i32) {
    %c0_i32 = arith.constant 0 : i32
    %c0_i32_0 = arith.constant 0 : i32
    %c0_i32_1 = arith.constant 0 : i32
    %c0_i32_2 = arith.constant 0 : i32
    return %c0_i32, %c0_i32_0, %c0_i32_1 : i32, i32, i32
  }
  func.func @transform_3(%arg0: i32) -> (i32, i32) {
    %c0_i32 = arith.constant 0 : i32
    %c0_i32_0 = arith.constant 0 : i32
    %c0_i32_1 = arith.constant 0 : i32
    return %c0_i32, %c0_i32_0 : i32, i32
  }
  func.func @transform_4(%arg0: i32) -> (i32, i32, i32) {
    %c0_i32 = arith.constant 0 : i32
    %c0_i32_0 = arith.constant 0 : i32
    %c0_i32_1 = arith.constant 0 : i32
    return %arg0, %c0_i32, %c0_i32_0 : i32, i32, i32
  }
  func.func @transform_5(%arg0: i32) -> (i32, i32, i32) {
    %c0_i32 = arith.constant 0 : i32
    %c0_i32_0 = arith.constant 0 : i32
    %c0_i32_1 = arith.constant 0 : i32
    return %arg0, %c0_i32, %c0_i32_0 : i32, i32, i32
  }
  func.func @transform_6(%arg0: i32) -> (i32, i32, i32) {
    %c0_i32 = arith.constant 0 : i32
    %c0_i32_0 = arith.constant 0 : i32
    %c0_i32_1 = arith.constant 0 : i32
    return %arg0, %c0_i32, %c0_i32_0 : i32, i32, i32
  }
  func.func @transform_7(%arg0: i32) -> (i32, i32, i32) {
    %c0_i32 = arith.constant 0 : i32
    %c0_i32_0 = arith.constant 0 : i32
    %c0_i32_1 = arith.constant 0 : i32
    return %arg0, %c0_i32, %c0_i32_0 : i32, i32, i32
  }
  func.func @transform_8(%arg0: i32) -> (i32, i32, i32) {
    %c0_i32 = arith.constant 0 : i32
    %c0_i32_0 = arith.constant 0 : i32
    %c0_i32_1 = arith.constant 0 : i32
    return %arg0, %c0_i32, %c0_i32_0 : i32, i32, i32
  }
  func.func @transform_9(%arg0: i32) -> (i32, i32, i32) {
    %c0_i32 = arith.constant 0 : i32
    %c0_i32_0 = arith.constant 0 : i32
    %c0_i32_1 = arith.constant 0 : i32
    return %arg0, %c0_i32, %c0_i32_0 : i32, i32, i32
  }
  func.func @transform_10(%arg0: i32) -> (i32, i32, i32) {
    %c0_i32 = arith.constant 0 : i32
    %c0_i32_0 = arith.constant 0 : i32
    %c0_i32_1 = arith.constant 0 : i32
    return %arg0, %c0_i32, %c0_i32_0 : i32, i32, i32
  }
  func.func @transform_11(%arg0: i32) -> (i32, i32, i32) {
    %c0_i32 = arith.constant 0 : i32
    %c0_i32_0 = arith.constant 0 : i32
    %c0_i32_1 = arith.constant 0 : i32
    return %arg0, %c0_i32, %c0_i32_0 : i32, i32, i32
  }
  func.func @transform_12(%arg0: i32) -> (i32, i32, i32) {
    %c0_i32 = arith.constant 0 : i32
    %c0_i32_0 = arith.constant 0 : i32
    %c0_i32_1 = arith.constant 0 : i32
    return %arg0, %c0_i32, %c0_i32_0 : i32, i32, i32
  }
  func.func @transform_13(%arg0: i32) -> (i32, i32, i32) {
    %c0_i32 = arith.constant 0 : i32
    %c0_i32_0 = arith.constant 0 : i32
    %c0_i32_1 = arith.constant 0 : i32
    return %arg0, %c0_i32, %c0_i32_0 : i32, i32, i32
  }
  func.func @transform_14(%arg0: i32) -> (i32, i32, i32) {
    %c0_i32 = arith.constant 0 : i32
    %c0_i32_0 = arith.constant 0 : i32
    %c0_i32_1 = arith.constant 0 : i32
    return %arg0, %c0_i32, %c0_i32_0 : i32, i32, i32
  }
  func.func @transform_15(%arg0: i32) -> (i32, i32, i32) {
    %c0_i32 = arith.constant 0 : i32
    %c0_i32_0 = arith.constant 0 : i32
    %c0_i32_1 = arith.constant 0 : i32
    return %arg0, %c0_i32, %c0_i32_0 : i32, i32, i32
  }
  func.func @transform_16(%arg0: i32) -> (i32, i32, i32) {
    %c0_i32 = arith.constant 0 : i32
    %c0_i32_0 = arith.constant 0 : i32
    %c0_i32_1 = arith.constant 0 : i32
    return %arg0, %c0_i32, %c0_i32_0 : i32, i32, i32
  }
  func.func @transform_17(%arg0: i32) -> (i32, i32, i32) {
    %c0_i32 = arith.constant 0 : i32
    %c0_i32_0 = arith.constant 0 : i32
    %c0_i32_1 = arith.constant 0 : i32
    return %arg0, %c0_i32, %c0_i32_0 : i32, i32, i32
  }
  func.func @transform_18(%arg0: i32) -> (i32, i32, i32) {
    %c0_i32 = arith.constant 0 : i32
    %c0_i32_0 = arith.constant 0 : i32
    %c0_i32_1 = arith.constant 0 : i32
    return %arg0, %c0_i32, %c0_i32_0 : i32, i32, i32
  }
  func.func @transform_19(%arg0: i32) -> (i32, i32, i32) {
    %c0_i32 = arith.constant 0 : i32
    %c0_i32_0 = arith.constant 0 : i32
    %c0_i32_1 = arith.constant 0 : i32
    return %arg0, %c0_i32, %c0_i32_0 : i32, i32, i32
  }
  func.func @transform_20(%arg0: i32) -> (i32, i32, i32) {
    %c0_i32 = arith.constant 0 : i32
    %c0_i32_0 = arith.constant 0 : i32
    %c0_i32_1 = arith.constant 0 : i32
    return %arg0, %c0_i32, %c0_i32_0 : i32, i32, i32
  }
  func.func @transform_21(%arg0: i32) -> (i32, i32, i32) {
    %c0_i32 = arith.constant 0 : i32
    %c0_i32_0 = arith.constant 0 : i32
    %c0_i32_1 = arith.constant 0 : i32
    return %arg0, %c0_i32, %c0_i32_0 : i32, i32, i32
  }
  func.func @transform_22(%arg0: i32) -> (i32, i32, i32) {
    %c0_i32 = arith.constant 0 : i32
    %c0_i32_0 = arith.constant 0 : i32
    %c0_i32_1 = arith.constant 0 : i32
    return %arg0, %c0_i32, %c0_i32_0 : i32, i32, i32
  }
  func.func @transform_23(%arg0: i32) -> (i32, i32, i32) {
    %c0_i32 = arith.constant 0 : i32
    %c0_i32_0 = arith.constant 0 : i32
    %c0_i32_1 = arith.constant 0 : i32
    %c0_i32_2 = arith.constant 0 : i32
    return %c0_i32, %c0_i32_0, %c0_i32_1 : i32, i32, i32
  }
}

</mosaic_0001>

<llo_original>
// kernel: step_diffusion_head_forward.5
$region0: #{step_diffusion_head_forward.5}
  #allocation0 [shape = 'u32[]', space=smem, size = 0x4, offset = 0x4, fixed_abs, tag = 'smem constant byte address 0x4 - core index']
  #allocation1 [shape = 'u32[72,128]{1,0:T(1,128)}', space=vmem, size = 0x9000, scoped, tag = 'internal scratch']
  %s0 = inlined_call_operand.vmem [shape: f32[16,192], index: 0, kind: input, shape index: {}]
  %s1 = inlined_call_operand.hbm [shape: f32[192,192], index: 1, kind: input, shape index: {}]
  %s2 = inlined_call_operand.hbm [shape: f32[1,192], index: 2, kind: input, shape index: {}]
  %s3 = inlined_call_operand.hbm [shape: f32[192,128], index: 3, kind: input, shape index: {}]
  %s4 = inlined_call_operand.hbm [shape: f32[1,128], index: 4, kind: input, shape index: {}]
  %s5 = inlined_call_operand.vmem [shape: f32[16,128], index: 5, kind: output, shape index: {}]
  %s6 = sld [smem:[#allocation0]]
  $region46: #{step_diffusion_head_forward.5} parent=0
    _
  %s8 = ssub.s32 1, %s6
  %s9 = scalar_select 0, %s8, %s6
  $region1: #{step_diffusion_head_forward.5} parent=0
    #allocation2 [shape = 'u8[196608]{0}', space=vmem, size = 0x30000, scoped, tag = 'input window, operand 1, single buffered']
    #allocation3 [shape = 's32[1]{0}', space=sflag, size = 0x4, scoped, tag = 'scoped memory for step_diffusion_head_forward.5']
    #allocation4 [shape = 'u8[1024]{0}', space=vmem, size = 0x400, scoped, tag = 'input window, operand 2, single buffered']
    #allocation5 [shape = 's32[1]{0}', space=sflag, size = 0x4, scoped, tag = 'scoped memory for step_diffusion_head_forward.5']
    #allocation6 [shape = 'u8[98304]{0}', space=vmem, size = 0x18000, scoped, tag = 'input window, operand 3, single buffered']
    #allocation7 [shape = 'u8[512]{0}', space=vmem, size = 0x400, scoped, tag = 'input window, operand 4, single buffered']
    #allocation8 [shape = 's32[1]{0}', space=sflag, size = 0x4, scoped, tag = 'scoped memory for step_diffusion_head_forward.5']
    %10 = vsyncpa [#allocation3], 0
    %11 = vsyncpa [#allocation5], 0
    %12 = vsyncpa [#allocation8], 0
    // Predicated region
    $region2: #{step_diffusion_head_forward.5} parent=1 // pred_check
      _
    $region3: #{step_diffusion_head_forward.5} parent=1 // pred_check_branch
      %14 = sbr.rel (0) target = $region5
    $region4: #{step_diffusion_head_forward.5} parent=1 // pred_region
      _
    $region5: #{step_diffusion_head_forward.5} parent=1 // pred_fallthru
      _
    // Predicated region
    $region6: #{step_diffusion_head_forward.5} parent=1 // pred_check
      _
    $region7: #{step_diffusion_head_forward.5} parent=1 // pred_check_branch
      %16 = sbr.rel (0) target = $region9
    $region8: #{step_diffusion_head_forward.5} parent=1 // pred_region
      %18 = vsyncadd [#allocation3], 0
      %s19 = sshll.u32 %s1, 4
      %s20 = int_to_ptr.hbm [resolvable:$true] %s19
      %s21 = sshll.u32 [#allocation2], 4
      %s22 = int_to_ptr.vmem [resolvable:$true] %s21
      %27 = dma.hbm_to_vmem [thread:$0]  %s20, 6144, %s22, [#allocation3], 256, 256, 16
    $region9: #{step_diffusion_head_forward.5} parent=1 // pred_fallthru
      _
    // Predicated region
    $region10: #{step_diffusion_head_forward.5} parent=1 // pred_check
      _
    $region11: #{step_diffusion_head_forward.5} parent=1 // pred_check_branch
      %29 = sbr.rel (0) target = $region13
    $region12: #{step_diffusion_head_forward.5} parent=1 // pred_region
      %31 = vsyncadd [#allocation5], 0
      %s33 = sshll.u32 %s2, 4
      %s34 = int_to_ptr.hbm [resolvable:$true] %s33
      %s35 = sshll.u32 [#allocation4], 4
      %s36 = int_to_ptr.vmem [resolvable:$true] %s35
      %38 = dma.hbm_to_vmem [thread:$0]  %s34, 32, %s36, [#allocation5]
    $region13: #{step_diffusion_head_forward.5} parent=1 // pred_fallthru
      _
    // Predicated region
    $region14: #{step_diffusion_head_forward.5} parent=1 // pred_check
      _
    $region15: #{step_diffusion_head_forward.5} parent=1 // pred_check_branch
      %40 = sbr.rel (0) target = $region17
    $region16: #{step_diffusion_head_forward.5} parent=1 // pred_region
      %42 = vsyncadd [#allocation5], 0
      %s43 = sshll.u32 %s3, 4
      %s44 = int_to_ptr.hbm [resolvable:$true] %s43
      %s45 = sshll.u32 [#allocation6], 4
      %s46 = int_to_ptr.vmem [resolvable:$true] %s45
      %51 = dma.hbm_to_vmem [thread:$0]  %s44, 3072, %s46, [#allocation5], 128, 128, 8
    $region17: #{step_diffusion_head_forward.5} parent=1 // pred_fallthru
      _
    // Predicated region
    $region18: #{step_diffusion_head_forward.5} parent=1 // pred_check
      _
    $region19: #{step_diffusion_head_forward.5} parent=1 // pred_check_branch
      %53 = sbr.rel (0) target = $region21
    $region20: #{step_diffusion_head_forward.5} parent=1 // pred_region
      %55 = vsyncadd [#allocation8], 0
      %s57 = sshll.u32 %s4, 4
      %s58 = int_to_ptr.hbm [resolvable:$true] %s57
      %s59 = sshll.u32 [#allocation7], 4
      %s60 = int_to_ptr.vmem [resolvable:$true] %s59
      %62 = dma.hbm_to_vmem [thread:$0]  %s58, 16, %s60, [#allocation8]
    $region21: #{step_diffusion_head_forward.5} parent=1 // pred_fallthru
      _
    // Predicated region
    $region22: #{step_diffusion_head_forward.5} parent=1 // pred_check
      _
    $region23: #{step_diffusion_head_forward.5} parent=1 // pred_check_branch
      %64 = sbr.rel (0) target = $region25
    $region24: #{step_diffusion_head_forward.5} parent=1 // pred_region
      %66 = dma.done [#allocation3], 6144
    $region25: #{step_diffusion_head_forward.5} parent=1 // pred_fallthru
      _
    // Predicated region
    $region26: #{step_diffusion_head_forward.5} parent=1 // pred_check
      _
    $region27: #{step_diffusion_head_forward.5} parent=1 // pred_check_branch
      %68 = sbr.rel (0) target = $region29
    $region28: #{step_diffusion_head_forward.5} parent=1 // pred_region
      %70 = dma.done [#allocation5], 32
    $region29: #{step_diffusion_head_forward.5} parent=1 // pred_fallthru
      _
    // Predicated region
    $region30: #{step_diffusion_head_forward.5} parent=1 // pred_check
      _
    $region31: #{step_diffusion_head_forward.5} parent=1 // pred_check_branch
      %72 = sbr.rel (0) target = $region33
    $region32: #{step_diffusion_head_forward.5} parent=1 // pred_region
      %74 = dma.done [#allocation5], 3072
    $region33: #{step_diffusion_head_forward.5} parent=1 // pred_fallthru
      _
    // Predicated region
    $region34: #{step_diffusion_head_forward.5} parent=1 // pred_check
      _
    $region35: #{step_diffusion_head_forward.5} parent=1 // pred_check_branch
      %76 = sbr.rel (0) target = $region37
    $region36: #{step_diffusion_head_forward.5} parent=1 // pred_region
      %78 = dma.done [#allocation8], 16
    $region37: #{step_diffusion_head_forward.5} parent=1 // pred_fallthru
      _
    %v79 = vld [vmem:[%s0] sm:$0xff]
    %v80 = vld [vmem:[%s0 + $0x8] sm:$0xff]
    %v81 = vld [vmem:[%s0 + $0x10] sm:$0xff]
    %v82 = vld [vmem:[%s0 + $0x18] sm:$0xff]
    %v83 = vld [vmem:[#allocation2] sm:$0xff]
    %v84 = vld [vmem:[#allocation2 + $0x8] sm:$0xff]
    %v85 = vld [vmem:[#allocation2 + $0x10] sm:$0xff]
    %v86 = vld [vmem:[#allocation2 + $0x18] sm:$0xff]
    %v87 = vld [vmem:[#allocation2 + $0x20] sm:$0xff]
    %v88 = vld [vmem:[#allocation2 + $0x28] sm:$0xff]
    %v89 = vld [vmem:[#allocation2 + $0x30] sm:$0xff]
    %v90 = vld [vmem:[#allocation2 + $0x38] sm:$0xff]
    %v91 = vld [vmem:[#allocation2 + $0x40] sm:$0xff]
    %v92 = vld [vmem:[#allocation2 + $0x48] sm:$0xff]
    %v93 = vld [vmem:[#allocation2 + $0x50] sm:$0xff]
    %v94 = vld [vmem:[#allocation2 + $0x58] sm:$0xff]
    %v95 = vld [vmem:[#allocation2 + $0x60] sm:$0xff]
    %v96 = vld [vmem:[#allocation2 + $0x68] sm:$0xff]
    %v97 = vld [vmem:[#allocation2 + $0x70] sm:$0xff]
    %v98 = vld [vmem:[#allocation2 + $0x78] sm:$0xff]
    %v99 = vld [vmem:[#allocation2 + $0x80] sm:$0xff]
    %v100 = vld [vmem:[#allocation2 + $0x88] sm:$0xff]
    %v101 = vld [vmem:[#allocation2 + $0x90] sm:$0xff]
    %v102 = vld [vmem:[#allocation2 + $0x98] sm:$0xff]
    %v103 = vld [vmem:[#allocation2 + $0xa0] sm:$0xff]
    %v104 = vld [vmem:[#allocation2 + $0xa8] sm:$0xff]
    %v105 = vld [vmem:[#allocation2 + $0xb0] sm:$0xff]
    %v106 = vld [vmem:[#allocation2 + $0xb8] sm:$0xff]
    %v107 = vld [vmem:[#allocation2 + $0xc0] sm:$0xff]
    %v108 = vld [vmem:[#allocation2 + $0xc8] sm:$0xff]
    %v109 = vld [vmem:[#allocation2 + $0xd0] sm:$0xff]
    %v110 = vld [vmem:[#allocation2 + $0xd8] sm:$0xff]
    %v111 = vld [vmem:[#allocation2 + $0xe0] sm:$0xff]
    %v112 = vld [vmem:[#allocation2 + $0xe8] sm:$0xff]
    %v113 = vld [vmem:[#allocation2 + $0xf0] sm:$0xff]
    %v114 = vld [vmem:[#allocation2 + $0xf8] sm:$0xff]
    %v115 = vld [vmem:[#allocation2 + $0x100] sm:$0xff]
    %v116 = vld [vmem:[#allocation2 + $0x108] sm:$0xff]
    %v117 = vld [vmem:[#allocation2 + $0x110] sm:$0xff]
    %v118 = vld [vmem:[#allocation2 + $0x118] sm:$0xff]
    %v119 = vld [vmem:[#allocation2 + $0x120] sm:$0xff]
    %v120 = vld [vmem:[#allocation2 + $0x128] sm:$0xff]
    %v121 = vld [vmem:[#allocation2 + $0x130] sm:$0xff]
    %v122 = vld [vmem:[#allocation2 + $0x138] sm:$0xff]
    %v123 = vld [vmem:[#allocation2 + $0x140] sm:$0xff]
    %v124 = vld [vmem:[#allocation2 + $0x148] sm:$0xff]
    %v125 = vld [vmem:[#allocation2 + $0x150] sm:$0xff]
    %v126 = vld [vmem:[#allocation2 + $0x158] sm:$0xff]
    %v127 = vld [vmem:[#allocation2 + $0x160] sm:$0xff]
    %v128 = vld [vmem:[#allocation2 + $0x168] sm:$0xff]
    %v129 = vld [vmem:[#allocation2 + $0x170] sm:$0xff]
    %v130 = vld [vmem:[#allocation2 + $0x178] sm:$0xff]
    %v131 = vld [vmem:[#allocation4] sm:$0x3]
    %v133 = vperm.slane %v131, 0
    %v134 = vperm.slane %v131, 1
    %vm137 = vcmask 523264
    %v139 = vsel %vm137, %v80, 0
    %v142 = vsel %vm137, %v82, 0
    %144 = vmatpush.msra.mxu0 %v113
    %145 = vmatpush.msra.mxu0 %v111
    %146 = vmatpush.msra.mxu0 %v109
    %147 = vmatpush.msra.mxu0 %v107
    %148 = vmatpush.msra.mxu0 %v105
    %149 = vmatpush.msra.mxu0 %v103
    %150 = vmatpush.msra.mxu0 %v101
    %151 = vmatpush.msra.mxu0 %v99
    %152 = vmatpush.msra.mxu0 %v97
    %153 = vmatpush.msra.mxu0 %v95
    %154 = vmatpush.msra.mxu0 %v93
    %155 = vmatpush.msra.mxu0 %v91
    %156 = vmatpush.msra.mxu0 %v89
    %157 = vmatpush.msra.mxu0 %v87
    %158 = vmatpush.msra.mxu0 %v85
    %159 = vmatpush.msra.mxu0 %v83
    %160 = vmatmul.f32.gmra.mxu0 %v79
    %v161 = vpop.f32.mrf.mxu0
    %v162 = vadd.f32 %v133, %v161
    %163 = vmatmul.f32.gmra.mxu0 %v81
    %v164 = vpop.f32.mrf.mxu0
    %v165 = vadd.f32 %v133, %v164
    %166 = vdwg.mxu0
    %167 = vmatpush.msra.mxu0 0.0
    %168 = vmatpush.msra.mxu0 0.0
    %169 = vmatpush.msra.mxu0 0.0
    %170 = vmatpush.msra.mxu0 0.0
    %171 = vmatpush.msra.mxu0 0.0
    %172 = vmatpush.msra.mxu0 0.0
    %173 = vmatpush.msra.mxu0 0.0
    %174 = vmatpush.msra.mxu0 0.0
    %175 = vmatpush.msra.mxu0 %v129
    %176 = vmatpush.msra.mxu0 %v127
    %177 = vmatpush.msra.mxu0 %v125
    %178 = vmatpush.msra.mxu0 %v123
    %179 = vmatpush.msra.mxu0 %v121
    %180 = vmatpush.msra.mxu0 %v119
    %181 = vmatpush.msra.mxu0 %v117
    %182 = vmatpush.msra.mxu0 %v115
    %183 = vmatmul.f32.gmra.mxu0 %v139
    %v184 = vpop.f32.mrf.mxu0
    %v185 = vadd.f32 %v162, %v184
    %186 = vmatmul.f32.gmra.mxu0 %v142
    %v187 = vpop.f32.mrf.mxu0
    %v188 = vadd.f32 %v165, %v187
    %189 = vdwg.mxu0
    %190 = vmatpush.msra.mxu0 %v114
    %191 = vmatpush.msra.mxu0 %v112
    %192 = vmatpush.msra.mxu0 %v110
    %193 = vmatpush.msra.mxu0 %v108
    %194 = vmatpush.msra.mxu0 %v106
    %195 = vmatpush.msra.mxu0 %v104
    %196 = vmatpush.msra.mxu0 %v102
    %197 = vmatpush.msra.mxu0 %v100
    %198 = vmatpush.msra.mxu0 %v98
    %199 = vmatpush.msra.mxu0 %v96
    %200 = vmatpush.msra.mxu0 %v94
    %201 = vmatpush.msra.mxu0 %v92
    %202 = vmatpush.msra.mxu0 %v90
    %203 = vmatpush.msra.mxu0 %v88
    %204 = vmatpush.msra.mxu0 %v86
    %205 = vmatpush.msra.mxu0 %v84
    %206 = vmatmul.f32.gmra.mxu0 %v79
    %v207 = vpop.f32.mrf.mxu0
    %v208 = vadd.f32 %v134, %v207
    %209 = vmatmul.f32.gmra.mxu0 %v81
    %v210 = vpop.f32.mrf.mxu0
    %v211 = vadd.f32 %v134, %v210
    %212 = vdwg.mxu0
    %213 = vmatpush.msra.mxu0 0.0
    %214 = vmatpush.msra.mxu0 0.0
    %215 = vmatpush.msra.mxu0 0.0
    %216 = vmatpush.msra.mxu0 0.0
    %217 = vmatpush.msra.mxu0 0.0
    %218 = vmatpush.msra.mxu0 0.0
    %219 = vmatpush.msra.mxu0 0.0
    %220 = vmatpush.msra.mxu0 0.0
    %221 = vmatpush.msra.mxu0 %v130
    %222 = vmatpush.msra.mxu0 %v128
    %223 = vmatpush.msra.mxu0 %v126
    %224 = vmatpush.msra.mxu0 %v124
    %225 = vmatpush.msra.mxu0 %v122
    %226 = vmatpush.msra.mxu0 %v120
    %227 = vmatpush.msra.mxu0 %v118
    %228 = vmatpush.msra.mxu0 %v116
    %229 = vmatmul.f32.gmra.mxu0 %v139
    %v230 = vpop.f32.mrf.mxu0
    %v231 = vadd.f32 %v208, %v230
    %232 = vmatmul.f32.gmra.mxu0 %v142
    %v233 = vpop.f32.mrf.mxu0
    %v234 = vadd.f32 %v211, %v233
    %235 = vdwg.mxu0
    %v236 = vxor.u32 %v185, 2147483648
    %v237 = vxor.u32 %v231, 2147483648
    %v238 = vxor.u32 %v188, 2147483648
    %v239 = vxor.u32 %v234, 2147483648
    %v240 = vmul.f32 %v236, 1.442695
    %v241 = vpow.pop %v240
    %v242 = vmul.f32 %v237, 1.442695
    %v243 = vpow.pop %v242
    %v244 = vmul.f32 %v238, 1.442695
    %v245 = vpow.pop %v244
    %v246 = vmul.f32 %v239, 1.442695
    %v247 = vpow.pop %v246
    %v248 = vadd.f32 %v241, 1.0
    %v249 = vadd.f32 %v243, 1.0
    %v250 = vadd.f32 %v245, 1.0
    %v251 = vadd.f32 %v247, 1.0
    %v252 = vrcp.pop %v248
    %v253 = vmul.f32 %v248, %v252
    %v254 = vsub.f32 1.0, %v253
    %v255 = vmul.f32 %v252, %v254
    %v256 = vadd.f32 %v252, %v255
    %vm257 = vweird.f32 %v248
    %vm258 = vweird.f32 %v252
    %vm259 = vmor %vm257, %vm258
    %v260 = vsel %vm259, %v252, %v256
    %v261 = vand.u32 2147483647, %v248
    %vm262 = vcmp.eq.f32.partialorder %v261, 8.507059e+37
    %v263 = vand.u32 %v248, 2147483648
    %v264 = vor.u32 1.1754944e-38, %v263
    %v265 = vsel %vm262, %v264, %v260
    %v266 = vmul.f32 1.0, %v265
    %v267 = vrcp.pop %v249
    %v268 = vmul.f32 %v249, %v267
    %v269 = vsub.f32 1.0, %v268
    %v270 = vmul.f32 %v267, %v269
    %v271 = vadd.f32 %v267, %v270
    %vm272 = vweird.f32 %v249
    %vm273 = vweird.f32 %v267
    %vm274 = vmor %vm272, %vm273
    %v275 = vsel %vm274, %v267, %v271
    %v276 = vand.u32 2147483647, %v249
    %vm277 = vcmp.eq.f32.partialorder %v276, 8.507059e+37
    %v278 = vand.u32 %v249, 2147483648
    %v279 = vor.u32 1.1754944e-38, %v278
    %v280 = vsel %vm277, %v279, %v275
    %v281 = vmul.f32 1.0, %v280
    %v282 = vrcp.pop %v250
    %v283 = vmul.f32 %v250, %v282
    %v284 = vsub.f32 1.0, %v283
    %v285 = vmul.f32 %v282, %v284
    %v286 = vadd.f32 %v282, %v285
    %vm287 = vweird.f32 %v250
    %vm288 = vweird.f32 %v282
    %vm289 = vmor %vm287, %vm288
    %v290 = vsel %vm289, %v282, %v286
    %v291 = vand.u32 2147483647, %v250
    %vm292 = vcmp.eq.f32.partialorder %v291, 8.507059e+37
    %v293 = vand.u32 %v250, 2147483648
    %v294 = vor.u32 1.1754944e-38, %v293
    %v295 = vsel %vm292, %v294, %v290
    %v296 = vmul.f32 1.0, %v295
    %v297 = vrcp.pop %v251
    %v298 = vmul.f32 %v251, %v297
    %v299 = vsub.f32 1.0, %v298
    %v300 = vmul.f32 %v297, %v299
    %v301 = vadd.f32 %v297, %v300
    %vm302 = vweird.f32 %v251
    %vm303 = vweird.f32 %v297
    %vm304 = vmor %vm302, %vm303
    %v305 = vsel %vm304, %v297, %v301
    %v306 = vand.u32 2147483647, %v251
    %vm307 = vcmp.eq.f32.partialorder %v306, 8.507059e+37
    %v308 = vand.u32 %v251, 2147483648
    %v309 = vor.u32 1.1754944e-38, %v308
    %v310 = vsel %vm307, %v309, %v305
    %v311 = vmul.f32 1.0, %v310
    %v312 = vmul.f32 %v185, %v266
    %v313 = vmul.f32 %v231, %v281
    %v314 = vmul.f32 %v188, %v296
    %v315 = vmul.f32 %v234, %v311
    %v316 = vld [vmem:[#allocation6] sm:$0xff]
    %v317 = vld [vmem:[#allocation6 + $0x8] sm:$0xff]
    %v318 = vld [vmem:[#allocation6 + $0x10] sm:$0xff]
    %v319 = vld [vmem:[#allocation6 + $0x18] sm:$0xff]
    %v320 = vld [vmem:[#allocation6 + $0x20] sm:$0xff]
    %v321 = vld [vmem:[#allocation6 + $0x28] sm:$0xff]
    %v322 = vld [vmem:[#allocation6 + $0x30] sm:$0xff]
    %v323 = vld [vmem:[#allocation6 + $0x38] sm:$0xff]
    %v324 = vld [vmem:[#allocation6 + $0x40] sm:$0xff]
    %v325 = vld [vmem:[#allocation6 + $0x48] sm:$0xff]
    %v326 = vld [vmem:[#allocation6 + $0x50] sm:$0xff]
    %v327 = vld [vmem:[#allocation6 + $0x58] sm:$0xff]
    %v328 = vld [vmem:[#allocation6 + $0x60] sm:$0xff]
    %v329 = vld [vmem:[#allocation6 + $0x68] sm:$0xff]
    %v330 = vld [vmem:[#allocation6 + $0x70] sm:$0xff]
    %v331 = vld [vmem:[#allocation6 + $0x78] sm:$0xff]
    %v332 = vld [vmem:[#allocation6 + $0x80] sm:$0xff]
    %v333 = vld [vmem:[#allocation6 + $0x88] sm:$0xff]
    %v334 = vld [vmem:[#allocation6 + $0x90] sm:$0xff]
    %v335 = vld [vmem:[#allocation6 + $0x98] sm:$0xff]
    %v336 = vld [vmem:[#allocation6 + $0xa0] sm:$0xff]
    %v337 = vld [vmem:[#allocation6 + $0xa8] sm:$0xff]
    %v338 = vld [vmem:[#allocation6 + $0xb0] sm:$0xff]
    %v339 = vld [vmem:[#allocation6 + $0xb8] sm:$0xff]
    %v340 = vld [vmem:[#allocation7] sm:$0x1]
    %v342 = vperm.slane %v340, 0
    %v345 = vsel %vm137, %v313, 0
    %v348 = vsel %vm137, %v315, 0
    %350 = vmatpush.msra.mxu0 %v331
    %351 = vmatpush.msra.mxu0 %v330
    %352 = vmatpush.msra.mxu0 %v329
    %353 = vmatpush.msra.mxu0 %v328
    %354 = vmatpush.msra.mxu0 %v327
    %355 = vmatpush.msra.mxu0 %v326
    %356 = vmatpush.msra.mxu0 %v325
    %357 = vmatpush.msra.mxu0 %v324
    %358 = vmatpush.msra.mxu0 %v323
    %359 = vmatpush.msra.mxu0 %v322
    %360 = vmatpush.msra.mxu0 %v321
    %361 = vmatpush.msra.mxu0 %v320
    %362 = vmatpush.msra.mxu0 %v319
    %363 = vmatpush.msra.mxu0 %v318
    %364 = vmatpush.msra.mxu0 %v317
    %365 = vmatpush.msra.mxu0 %v316
    %366 = vmatmul.f32.gmra.mxu0 %v312
    %v367 = vpop.f32.mrf.mxu0
    %v368 = vadd.f32 %v342, %v367
    %369 = vmatmul.f32.gmra.mxu0 %v314
    %v370 = vpop.f32.mrf.mxu0
    %v371 = vadd.f32 %v342, %v370
    %372 = vdwg.mxu0
    %373 = vmatpush.msra.mxu0 0.0
    %374 = vmatpush.msra.mxu0 0.0
    %375 = vmatpush.msra.mxu0 0.0
    %376 = vmatpush.msra.mxu0 0.0
    %377 = vmatpush.msra.mxu0 0.0
    %378 = vmatpush.msra.mxu0 0.0
    %379 = vmatpush.msra.mxu0 0.0
    %380 = vmatpush.msra.mxu0 0.0
    %381 = vmatpush.msra.mxu0 %v339
    %382 = vmatpush.msra.mxu0 %v338
    %383 = vmatpush.msra.mxu0 %v337
    %384 = vmatpush.msra.mxu0 %v336
    %385 = vmatpush.msra.mxu0 %v335
    %386 = vmatpush.msra.mxu0 %v334
    %387 = vmatpush.msra.mxu0 %v333
    %388 = vmatpush.msra.mxu0 %v332
    %389 = vmatmul.f32.gmra.mxu0 %v345
    %v390 = vpop.f32.mrf.mxu0
    %v391 = vadd.f32 %v368, %v390
    %392 = vmatmul.f32.gmra.mxu0 %v348
    %v393 = vpop.f32.mrf.mxu0
    %v394 = vadd.f32 %v371, %v393
    %395 = vdwg.mxu0
    %396 = vst [vmem:[%s5] sm:$0xff] %v391
    %397 = vst [vmem:[%s5 + $0x8] sm:$0xff] %v394
    // Predicated region
    $region38: #{step_diffusion_head_forward.5} parent=1 // pred_check
      _
    $region39: #{step_diffusion_head_forward.5} parent=1 // pred_check_branch
      %399 = sbr.rel (0) target = $region41
    $region40: #{step_diffusion_head_forward.5} parent=1 // pred_region
      _
    $region41: #{step_diffusion_head_forward.5} parent=1 // pred_fallthru
      _
    // Predicated region
    $region42: #{step_diffusion_head_forward.5} parent=1 // pred_check
      _
    $region43: #{step_diffusion_head_forward.5} parent=1 // pred_check_branch
      %401 = sbr.rel (0) target = $region45
    $region44: #{step_diffusion_head_forward.5} parent=1 // pred_region
      _
    $region45: #{step_diffusion_head_forward.5} parent=1 // pred_fallthru
      _
    %402 = vsyncpa [#allocation3], 1
    %403 = vsyncpa [#allocation5], 1
    %404 = vsyncpa [#allocation8], 1

// kernel: step_diffusion_head_forward.3
$region0: #{step_diffusion_head_forward.3}
  #allocation0 [shape = 'u32[]', space=smem, size = 0x4, offset = 0x4, fixed_abs, tag = 'smem constant byte address 0x4 - core index']
  #allocation1 [shape = 'u32[72,128]{1,0:T(1,128)}', space=vmem, size = 0x9000, scoped, tag = 'internal scratch']
  %s0 = inlined_call_operand.vmem [shape: f32[2,192], index: 0, kind: input, shape index: {}]
  %s1 = inlined_call_operand.hbm [shape: f32[2,384], index: 1, kind: input, shape index: {}]
  %s2 = inlined_call_operand.hbm [shape: f32[192,192], index: 2, kind: input, shape index: {}]
  %s3 = inlined_call_operand.hbm [shape: f32[1,192], index: 3, kind: input, shape index: {}]
  %s4 = inlined_call_operand.hbm [shape: f32[192,192], index: 4, kind: input, shape index: {}]
  %s5 = inlined_call_operand.hbm [shape: f32[1,192], index: 5, kind: input, shape index: {}]
  %s6 = inlined_call_operand.vmem [shape: f32[384,192], index: 6, kind: input, shape index: {}]
  %s7 = inlined_call_operand.hbm [shape: f32[1,192], index: 7, kind: input, shape index: {}]
  %s8 = inlined_call_operand.vmem [shape: f32[2,192], index: 8, kind: output, shape index: {}]
  %s9 = sld [smem:[#allocation0]]
  $region66: #{step_diffusion_head_forward.3} parent=0
    _
  %s11 = ssub.s32 1, %s9
  %s12 = scalar_select 0, %s11, %s9
  $region1: #{step_diffusion_head_forward.3} parent=0
    #allocation2 [shape = 'u8[3072]{0}', space=vmem, size = 0xc00, scoped, tag = 'input window, operand 1, single buffered']
    #allocation3 [shape = 's32[1]{0}', space=sflag, size = 0x4, scoped, tag = 'scoped memory for step_diffusion_head_forward.3']
    #allocation4 [shape = 'u8[196608]{0}', space=vmem, size = 0x30000, scoped, tag = 'input window, operand 2, single buffered']
    #allocation5 [shape = 's32[1]{0}', space=sflag, size = 0x4, scoped, tag = 'scoped memory for step_diffusion_head_forward.3']
    #allocation6 [shape = 'u8[1024]{0}', space=vmem, size = 0x400, scoped, tag = 'input window, operand 3, single buffered']
    #allocation7 [shape = 'u8[196608]{0}', space=vmem, size = 0x30000, scoped, tag = 'input window, operand 4, single buffered']
    #allocation8 [shape = 's32[1]{0}', space=sflag, size = 0x4, scoped, tag = 'scoped memory for step_diffusion_head_forward.3']
    #allocation9 [shape = 'u8[1024]{0}', space=vmem, size = 0x400, scoped, tag = 'input window, operand 5, single buffered']
    #allocation10 [shape = 'u8[1024]{0}', space=vmem, size = 0x400, scoped, tag = 'input window, operand 7, single buffered']
    #allocation11 [shape = 's32[1]{0}', space=sflag, size = 0x4, scoped, tag = 'scoped memory for step_diffusion_head_forward.3']
    %13 = vsyncpa [#allocation3], 0
    %14 = vsyncpa [#allocation5], 0
    %15 = vsyncpa [#allocation8], 0
    %16 = vsyncpa [#allocation11], 0
    // Predicated region
    $region2: #{step_diffusion_head_forward.3} parent=1 // pred_check
      _
    $region3: #{step_diffusion_head_forward.3} parent=1 // pred_check_branch
      %18 = sbr.rel (0) target = $region5
    $region4: #{step_diffusion_head_forward.3} parent=1 // pred_region
      _
    $region5: #{step_diffusion_head_forward.3} parent=1 // pred_fallthru
      _
    // Predicated region
    $region6: #{step_diffusion_head_forward.3} parent=1 // pred_check
      _
    $region7: #{step_diffusion_head_forward.3} parent=1 // pred_check_branch
      %20 = sbr.rel (0) target = $region9
    $region8: #{step_diffusion_head_forward.3} parent=1 // pred_region
      %22 = vsyncadd [#allocation3], 0
      %s24 = sshll.u32 %s1, 4
      %s25 = int_to_ptr.hbm [resolvable:$true] %s24
      %s26 = sshll.u32 [#allocation2], 4
      %s27 = int_to_ptr.vmem [resolvable:$true] %s26
      %29 = dma.hbm_to_vmem [thread:$0]  %s25, 96, %s27, [#allocation3]
    $region9: #{step_diffusion_head_forward.3} parent=1 // pred_fallthru
      _
    // Predicated region
    $region10: #{step_diffusion_head_forward.3} parent=1 // pred_check
      _
    $region11: #{step_diffusion_head_forward.3} parent=1 // pred_check_branch
      %31 = sbr.rel (0) target = $region13
    $region12: #{step_diffusion_head_forward.3} parent=1 // pred_region
      %33 = vsyncadd [#allocation5], 0
      %s34 = sshll.u32 %s2, 4
      %s35 = int_to_ptr.hbm [resolvable:$true] %s34
      %s36 = sshll.u32 [#allocation4], 4
      %s37 = int_to_ptr.vmem [resolvable:$true] %s36
      %42 = dma.hbm_to_vmem [thread:$0]  %s35, 6144, %s37, [#allocation5], 256, 256, 16
    $region13: #{step_diffusion_head_forward.3} parent=1 // pred_fallthru
      _
    // Predicated region
    $region14: #{step_diffusion_head_forward.3} parent=1 // pred_check
      _
    $region15: #{step_diffusion_head_forward.3} parent=1 // pred_check_branch
      %44 = sbr.rel (0) target = $region17
    $region16: #{step_diffusion_head_forward.3} parent=1 // pred_region
      %46 = vsyncadd [#allocation5], 0
      %s48 = sshll.u32 %s3, 4
      %s49 = int_to_ptr.hbm [resolvable:$true] %s48
      %s50 = sshll.u32 [#allocation6], 4
      %s51 = int_to_ptr.vmem [resolvable:$true] %s50
      %53 = dma.hbm_to_vmem [thread:$0]  %s49, 32, %s51, [#allocation5]
    $region17: #{step_diffusion_head_forward.3} parent=1 // pred_fallthru
      _
    // Predicated region
    $region18: #{step_diffusion_head_forward.3} parent=1 // pred_check
      _
    $region19: #{step_diffusion_head_forward.3} parent=1 // pred_check_branch
      %55 = sbr.rel (0) target = $region21
    $region20: #{step_diffusion_head_forward.3} parent=1 // pred_region
      %57 = vsyncadd [#allocation8], 0
      %s58 = sshll.u32 %s4, 4
      %s59 = int_to_ptr.hbm [resolvable:$true] %s58
      %s60 = sshll.u32 [#allocation7], 4
      %s61 = int_to_ptr.vmem [resolvable:$true] %s60
      %66 = dma.hbm_to_vmem [thread:$0]  %s59, 6144, %s61, [#allocation8], 256, 256, 16
    $region21: #{step_diffusion_head_forward.3} parent=1 // pred_fallthru
      _
    // Predicated region
    $region22: #{step_diffusion_head_forward.3} parent=1 // pred_check
      _
    $region23: #{step_diffusion_head_forward.3} parent=1 // pred_check_branch
      %68 = sbr.rel (0) target = $region25
    $region24: #{step_diffusion_head_forward.3} parent=1 // pred_region
      %70 = vsyncadd [#allocation8], 0
      %s72 = sshll.u32 %s5, 4
      %s73 = int_to_ptr.hbm [resolvable:$true] %s72
      %s74 = sshll.u32 [#allocation9], 4
      %s75 = int_to_ptr.vmem [resolvable:$true] %s74
      %77 = dma.hbm_to_vmem [thread:$0]  %s73, 32, %s75, [#allocation8]
    $region25: #{step_diffusion_head_forward.3} parent=1 // pred_fallthru
      _
    // Predicated region
    $region26: #{step_diffusion_head_forward.3} parent=1 // pred_check
      _
    $region27: #{step_diffusion_head_forward.3} parent=1 // pred_check_branch
      %79 = sbr.rel (0) target = $region29
    $region28: #{step_diffusion_head_forward.3} parent=1 // pred_region
      _
    $region29: #{step_diffusion_head_forward.3} parent=1 // pred_fallthru
      _
    // Predicated region
    $region30: #{step_diffusion_head_forward.3} parent=1 // pred_check
      _
    $region31: #{step_diffusion_head_forward.3} parent=1 // pred_check_branch
      %81 = sbr.rel (0) target = $region33
    $region32: #{step_diffusion_head_forward.3} parent=1 // pred_region
      %83 = vsyncadd [#allocation11], 0
      %s85 = sshll.u32 %s7, 4
      %s86 = int_to_ptr.hbm [resolvable:$true] %s85
      %s87 = sshll.u32 [#allocation10], 4
      %s88 = int_to_ptr.vmem [resolvable:$true] %s87
      %90 = dma.hbm_to_vmem [thread:$0]  %s86, 32, %s88, [#allocation11]
    $region33: #{step_diffusion_head_forward.3} parent=1 // pred_fallthru
      _
    // Predicated region
    $region34: #{step_diffusion_head_forward.3} parent=1 // pred_check
      _
    $region35: #{step_diffusion_head_forward.3} parent=1 // pred_check_branch
      %92 = sbr.rel (0) target = $region37
    $region36: #{step_diffusion_head_forward.3} parent=1 // pred_region
      %94 = dma.done [#allocation3], 96
    $region37: #{step_diffusion_head_forward.3} parent=1 // pred_fallthru
      _
    // Predicated region
    $region38: #{step_diffusion_head_forward.3} parent=1 // pred_check
      _
    $region39: #{step_diffusion_head_forward.3} parent=1 // pred_check_branch
      %96 = sbr.rel (0) target = $region41
    $region40: #{step_diffusion_head_forward.3} parent=1 // pred_region
      %98 = dma.done [#allocation5], 6144
    $region41: #{step_diffusion_head_forward.3} parent=1 // pred_fallthru
      _
    // Predicated region
    $region42: #{step_diffusion_head_forward.3} parent=1 // pred_check
      _
    $region43: #{step_diffusion_head_forward.3} parent=1 // pred_check_branch
      %100 = sbr.rel (0) target = $region45
    $region44: #{step_diffusion_head_forward.3} parent=1 // pred_region
      %102 = dma.done [#allocation5], 32
    $region45: #{step_diffusion_head_forward.3} parent=1 // pred_fallthru
      _
    // Predicated region
    $region46: #{step_diffusion_head_forward.3} parent=1 // pred_check
      _
    $region47: #{step_diffusion_head_forward.3} parent=1 // pred_check_branch
      %104 = sbr.rel (0) target = $region49
    $region48: #{step_diffusion_head_forward.3} parent=1 // pred_region
      %106 = dma.done [#allocation8], 6144
    $region49: #{step_diffusion_head_forward.3} parent=1 // pred_fallthru
      _
    // Predicated region
    $region50: #{step_diffusion_head_forward.3} parent=1 // pred_check
      _
    $region51: #{step_diffusion_head_forward.3} parent=1 // pred_check_branch
      %108 = sbr.rel (0) target = $region53
    $region52: #{step_diffusion_head_forward.3} parent=1 // pred_region
      %110 = dma.done [#allocation8], 32
    $region53: #{step_diffusion_head_forward.3} parent=1 // pred_fallthru
      _
    // Predicated region
    $region54: #{step_diffusion_head_forward.3} parent=1 // pred_check
      _
    $region55: #{step_diffusion_head_forward.3} parent=1 // pred_check_branch
      %112 = sbr.rel (0) target = $region57
    $region56: #{step_diffusion_head_forward.3} parent=1 // pred_region
      %114 = dma.done [#allocation11], 32
    $region57: #{step_diffusion_head_forward.3} parent=1 // pred_fallthru
      _
    %v115 = vld [vmem:[%s0] sm:$0xf]
    %v116 = vld [vmem:[#allocation4] sm:$0xff]
    %v117 = vld [vmem:[#allocation4 + $0x8] sm:$0xff]
    %v118 = vld [vmem:[#allocation4 + $0x10] sm:$0xff]
    %v119 = vld [vmem:[#allocation4 + $0x18] sm:$0xff]
    %v120 = vld [vmem:[#allocation4 + $0x20] sm:$0xff]
    %v121 = vld [vmem:[#allocation4 + $0x28] sm:$0xff]
    %v122 = vld [vmem:[#allocation4 + $0x30] sm:$0xff]
    %v123 = vld [vmem:[#allocation4 + $0x38] sm:$0xff]
    %v124 = vld [vmem:[#allocation4 + $0x40] sm:$0xff]
    %v125 = vld [vmem:[#allocation4 + $0x48] sm:$0xff]
    %v126 = vld [vmem:[#allocation4 + $0x50] sm:$0xff]
    %v127 = vld [vmem:[#allocation4 + $0x58] sm:$0xff]
    %v128 = vld [vmem:[#allocation4 + $0x60] sm:$0xff]
    %v129 = vld [vmem:[#allocation4 + $0x68] sm:$0xff]
    %v130 = vld [vmem:[#allocation4 + $0x70] sm:$0xff]
    %v131 = vld [vmem:[#allocation4 + $0x78] sm:$0xff]
    %v132 = vld [vmem:[#allocation4 + $0x80] sm:$0xff]
    %v133 = vld [vmem:[#allocation4 + $0x88] sm:$0xff]
    %v134 = vld [vmem:[#allocation4 + $0x90] sm:$0xff]
    %v135 = vld [vmem:[#allocation4 + $0x98] sm:$0xff]
    %v136 = vld [vmem:[#allocation4 + $0xa0] sm:$0xff]
    %v137 = vld [vmem:[#allocation4 + $0xa8] sm:$0xff]
    %v138 = vld [vmem:[#allocation4 + $0xb0] sm:$0xff]
    %v139 = vld [vmem:[#allocation4 + $0xb8] sm:$0xff]
    %v140 = vld [vmem:[#allocation4 + $0xc0] sm:$0xff]
    %v141 = vld [vmem:[#allocation4 + $0xc8] sm:$0xff]
    %v142 = vld [vmem:[#allocation4 + $0xd0] sm:$0xff]
    %v143 = vld [vmem:[#allocation4 + $0xd8] sm:$0xff]
    %v144 = vld [vmem:[#allocation4 + $0xe0] sm:$0xff]
    %v145 = vld [vmem:[#allocation4 + $0xe8] sm:$0xff]
    %v146 = vld [vmem:[#allocation4 + $0xf0] sm:$0xff]
    %v147 = vld [vmem:[#allocation4 + $0xf8] sm:$0xff]
    %v148 = vld [vmem:[#allocation4 + $0x100] sm:$0xff]
    %v149 = vld [vmem:[#allocation4 + $0x108] sm:$0xff]
    %v150 = vld [vmem:[#allocation4 + $0x110] sm:$0xff]
    %v151 = vld [vmem:[#allocation4 + $0x118] sm:$0xff]
    %v152 = vld [vmem:[#allocation4 + $0x120] sm:$0xff]
    %v153 = vld [vmem:[#allocation4 + $0x128] sm:$0xff]
    %v154 = vld [vmem:[#allocation4 + $0x130] sm:$0xff]
    %v155 = vld [vmem:[#allocation4 + $0x138] sm:$0xff]
    %v156 = vld [vmem:[#allocation4 + $0x140] sm:$0xff]
    %v157 = vld [vmem:[#allocation4 + $0x148] sm:$0xff]
    %v158 = vld [vmem:[#allocation4 + $0x150] sm:$0xff]
    %v159 = vld [vmem:[#allocation4 + $0x158] sm:$0xff]
    %v160 = vld [vmem:[#allocation4 + $0x160] sm:$0xff]
    %v161 = vld [vmem:[#allocation4 + $0x168] sm:$0xff]
    %v162 = vld [vmem:[#allocation4 + $0x170] sm:$0xff]
    %v163 = vld [vmem:[#allocation4 + $0x178] sm:$0xff]
    %v164 = vld [vmem:[#allocation6] sm:$0x3]
    %v166 = vperm.slane %v164, 0
    %v167 = vperm.slane %v164, 1
    %171 = vst [vmem:[#allocation1] ss:$4 sm:$0xff] %v115
    %v172 = vld.sshfl [vmem:[#allocation1] sm:$0xff pattern:$0x73625140]
    %v173 = vld.sshfl [vmem:[#allocation1 + $0x8] sm:$0xff pattern:$0x73625140]
    %vm175 = vcmask 523264
    %v176 = vsel %vm175, %v173, 0
    %178 = vmatpush.msra.mxu0 %v146
    %179 = vmatpush.msra.mxu0 %v144
    %180 = vmatpush.msra.mxu0 %v142
    %181 = vmatpush.msra.mxu0 %v140
    %182 = vmatpush.msra.mxu0 %v138
    %183 = vmatpush.msra.mxu0 %v136
    %184 = vmatpush.msra.mxu0 %v134
    %185 = vmatpush.msra.mxu0 %v132
    %186 = vmatpush.msra.mxu0 %v130
    %187 = vmatpush.msra.mxu0 %v128
    %188 = vmatpush.msra.mxu0 %v126
    %189 = vmatpush.msra.mxu0 %v124
    %190 = vmatpush.msra.mxu0 %v122
    %191 = vmatpush.msra.mxu0 %v120
    %192 = vmatpush.msra.mxu0 %v118
    %193 = vmatpush.msra.mxu0 %v116
    %194 = vmatmul.f32.gmra.mxu0 %v172
    %v195 = vpop.f32.mrf.mxu0
    %v196 = vadd.f32 %v166, %v195
    %197 = vdwg.mxu0
    %198 = vmatpush.msra.mxu0 0.0
    %199 = vmatpush.msra.mxu0 0.0
    %200 = vmatpush.msra.mxu0 0.0
    %201 = vmatpush.msra.mxu0 0.0
    %202 = vmatpush.msra.mxu0 0.0
    %203 = vmatpush.msra.mxu0 0.0
    %204 = vmatpush.msra.mxu0 0.0
    %205 = vmatpush.msra.mxu0 0.0
    %206 = vmatpush.msra.mxu0 %v162
    %207 = vmatpush.msra.mxu0 %v160
    %208 = vmatpush.msra.mxu0 %v158
    %209 = vmatpush.msra.mxu0 %v156
    %210 = vmatpush.msra.mxu0 %v154
    %211 = vmatpush.msra.mxu0 %v152
    %212 = vmatpush.msra.mxu0 %v150
    %213 = vmatpush.msra.mxu0 %v148
    %214 = vmatmul.f32.gmra.mxu0 %v176
    %v215 = vpop.f32.mrf.mxu0
    %v216 = vadd.f32 %v196, %v215
    %217 = vdwg.mxu0
    %218 = vmatpush.msra.mxu0 %v147
    %219 = vmatpush.msra.mxu0 %v145
    %220 = vmatpush.msra.mxu0 %v143
    %221 = vmatpush.msra.mxu0 %v141
    %222 = vmatpush.msra.mxu0 %v139
    %223 = vmatpush.msra.mxu0 %v137
    %224 = vmatpush.msra.mxu0 %v135
    %225 = vmatpush.msra.mxu0 %v133
    %226 = vmatpush.msra.mxu0 %v131
    %227 = vmatpush.msra.mxu0 %v129
    %228 = vmatpush.msra.mxu0 %v127
    %229 = vmatpush.msra.mxu0 %v125
    %230 = vmatpush.msra.mxu0 %v123
    %231 = vmatpush.msra.mxu0 %v121
    %232 = vmatpush.msra.mxu0 %v119
    %233 = vmatpush.msra.mxu0 %v117
    %234 = vmatmul.f32.gmra.mxu0 %v172
    %v235 = vpop.f32.mrf.mxu0
    %v236 = vadd.f32 %v167, %v235
    %237 = vdwg.mxu0
    %238 = vmatpush.msra.mxu0 0.0
    %239 = vmatpush.msra.mxu0 0.0
    %240 = vmatpush.msra.mxu0 0.0
    %241 = vmatpush.msra.mxu0 0.0
    %242 = vmatpush.msra.mxu0 0.0
    %243 = vmatpush.msra.mxu0 0.0
    %244 = vmatpush.msra.mxu0 0.0
    %245 = vmatpush.msra.mxu0 0.0
    %246 = vmatpush.msra.mxu0 %v163
    %247 = vmatpush.msra.mxu0 %v161
    %248 = vmatpush.msra.mxu0 %v159
    %249 = vmatpush.msra.mxu0 %v157
    %250 = vmatpush.msra.mxu0 %v155
    %251 = vmatpush.msra.mxu0 %v153
    %252 = vmatpush.msra.mxu0 %v151
    %253 = vmatpush.msra.mxu0 %v149
    %254 = vmatmul.f32.gmra.mxu0 %v176
    %v255 = vpop.f32.mrf.mxu0
    %v256 = vadd.f32 %v236, %v255
    %257 = vdwg.mxu0
    %v258 = vmax.f32 %v216, 0.0
    %v259 = vmax.f32 %v256, 0.0
    %v260 = vld [vmem:[#allocation7] sm:$0xff]
    %v261 = vld [vmem:[#allocation7 + $0x8] sm:$0xff]
    %v262 = vld [vmem:[#allocation7 + $0x10] sm:$0xff]
    %v263 = vld [vmem:[#allocation7 + $0x18] sm:$0xff]
    %v264 = vld [vmem:[#allocation7 + $0x20] sm:$0xff]
    %v265 = vld [vmem:[#allocation7 + $0x28] sm:$0xff]
    %v266 = vld [vmem:[#allocation7 + $0x30] sm:$0xff]
    %v267 = vld [vmem:[#allocation7 + $0x38] sm:$0xff]
    %v268 = vld [vmem:[#allocation7 + $0x40] sm:$0xff]
    %v269 = vld [vmem:[#allocation7 + $0x48] sm:$0xff]
    %v270 = vld [vmem:[#allocation7 + $0x50] sm:$0xff]
    %v271 = vld [vmem:[#allocation7 + $0x58] sm:$0xff]
    %v272 = vld [vmem:[#allocation7 + $0x60] sm:$0xff]
    %v273 = vld [vmem:[#allocation7 + $0x68] sm:$0xff]
    %v274 = vld [vmem:[#allocation7 + $0x70] sm:$0xff]
    %v275 = vld [vmem:[#allocation7 + $0x78] sm:$0xff]
    %v276 = vld [vmem:[#allocation7 + $0x80] sm:$0xff]
    %v277 = vld [vmem:[#allocation7 + $0x88] sm:$0xff]
    %v278 = vld [vmem:[#allocation7 + $0x90] sm:$0xff]
    %v279 = vld [vmem:[#allocation7 + $0x98] sm:$0xff]
    %v280 = vld [vmem:[#allocation7 + $0xa0] sm:$0xff]
    %v281 = vld [vmem:[#allocation7 + $0xa8] sm:$0xff]
    %v282 = vld [vmem:[#allocation7 + $0xb0] sm:$0xff]
    %v283 = vld [vmem:[#allocation7 + $0xb8] sm:$0xff]
    %v284 = vld [vmem:[#allocation7 + $0xc0] sm:$0xff]
    %v285 = vld [vmem:[#allocation7 + $0xc8] sm:$0xff]
    %v286 = vld [vmem:[#allocation7 + $0xd0] sm:$0xff]
    %v287 = vld [vmem:[#allocation7 + $0xd8] sm:$0xff]
    %v288 = vld [vmem:[#allocation7 + $0xe0] sm:$0xff]
    %v289 = vld [vmem:[#allocation7 + $0xe8] sm:$0xff]
    %v290 = vld [vmem:[#allocation7 + $0xf0] sm:$0xff]
    %v291 = vld [vmem:[#allocation7 + $0xf8] sm:$0xff]
    %v292 = vld [vmem:[#allocation7 + $0x100] sm:$0xff]
    %v293 = vld [vmem:[#allocation7 + $0x108] sm:$0xff]
    %v294 = vld [vmem:[#allocation7 + $0x110] sm:$0xff]
    %v295 = vld [vmem:[#allocation7 + $0x118] sm:$0xff]
    %v296 = vld [vmem:[#allocation7 + $0x120] sm:$0xff]
    %v297 = vld [vmem:[#allocation7 + $0x128] sm:$0xff]
    %v298 = vld [vmem:[#allocation7 + $0x130] sm:$0xff]
    %v299 = vld [vmem:[#allocation7 + $0x138] sm:$0xff]
    %v300 = vld [vmem:[#allocation7 + $0x140] sm:$0xff]
    %v301 = vld [vmem:[#allocation7 + $0x148] sm:$0xff]
    %v302 = vld [vmem:[#allocation7 + $0x150] sm:$0xff]
    %v303 = vld [vmem:[#allocation7 + $0x158] sm:$0xff]
    %v304 = vld [vmem:[#allocation7 + $0x160] sm:$0xff]
    %v305 = vld [vmem:[#allocation7 + $0x168] sm:$0xff]
    %v306 = vld [vmem:[#allocation7 + $0x170] sm:$0xff]
    %v307 = vld [vmem:[#allocation7 + $0x178] sm:$0xff]
    %v308 = vld [vmem:[#allocation9] sm:$0x3]
    %v310 = vperm.slane %v308, 0
    %v311 = vperm.slane %v308, 1
    %v315 = vsel %vm175, %v259, 0
    %317 = vmatpush.msra.mxu0 %v290
    %318 = vmatpush.msra.mxu0 %v288
    %319 = vmatpush.msra.mxu0 %v286
    %320 = vmatpush.msra.mxu0 %v284
    %321 = vmatpush.msra.mxu0 %v282
    %322 = vmatpush.msra.mxu0 %v280
    %323 = vmatpush.msra.mxu0 %v278
    %324 = vmatpush.msra.mxu0 %v276
    %325 = vmatpush.msra.mxu0 %v274
    %326 = vmatpush.msra.mxu0 %v272
    %327 = vmatpush.msra.mxu0 %v270
    %328 = vmatpush.msra.mxu0 %v268
    %329 = vmatpush.msra.mxu0 %v266
    %330 = vmatpush.msra.mxu0 %v264
    %331 = vmatpush.msra.mxu0 %v262
    %332 = vmatpush.msra.mxu0 %v260
    %333 = vmatmul.f32.gmra.mxu0 %v258
    %v334 = vpop.f32.mrf.mxu0
    %v335 = vadd.f32 %v310, %v334
    %336 = vdwg.mxu0
    %337 = vmatpush.msra.mxu0 0.0
    %338 = vmatpush.msra.mxu0 0.0
    %339 = vmatpush.msra.mxu0 0.0
    %340 = vmatpush.msra.mxu0 0.0
    %341 = vmatpush.msra.mxu0 0.0
    %342 = vmatpush.msra.mxu0 0.0
    %343 = vmatpush.msra.mxu0 0.0
    %344 = vmatpush.msra.mxu0 0.0
    %345 = vmatpush.msra.mxu0 %v306
    %346 = vmatpush.msra.mxu0 %v304
    %347 = vmatpush.msra.mxu0 %v302
    %348 = vmatpush.msra.mxu0 %v300
    %349 = vmatpush.msra.mxu0 %v298
    %350 = vmatpush.msra.mxu0 %v296
    %351 = vmatpush.msra.mxu0 %v294
    %352 = vmatpush.msra.mxu0 %v292
    %353 = vmatmul.f32.gmra.mxu0 %v315
    %v354 = vpop.f32.mrf.mxu0
    %v355 = vadd.f32 %v335, %v354
    %356 = vdwg.mxu0
    %357 = vmatpush.msra.mxu0 %v291
    %358 = vmatpush.msra.mxu0 %v289
    %359 = vmatpush.msra.mxu0 %v287
    %360 = vmatpush.msra.mxu0 %v285
    %361 = vmatpush.msra.mxu0 %v283
    %362 = vmatpush.msra.mxu0 %v281
    %363 = vmatpush.msra.mxu0 %v279
    %364 = vmatpush.msra.mxu0 %v277
    %365 = vmatpush.msra.mxu0 %v275
    %366 = vmatpush.msra.mxu0 %v273
    %367 = vmatpush.msra.mxu0 %v271
    %368 = vmatpush.msra.mxu0 %v269
    %369 = vmatpush.msra.mxu0 %v267
    %370 = vmatpush.msra.mxu0 %v265
    %371 = vmatpush.msra.mxu0 %v263
    %372 = vmatpush.msra.mxu0 %v261
    %373 = vmatmul.f32.gmra.mxu0 %v258
    %v374 = vpop.f32.mrf.mxu0
    %v375 = vadd.f32 %v311, %v374
    %376 = vdwg.mxu0
    %377 = vmatpush.msra.mxu0 0.0
    %378 = vmatpush.msra.mxu0 0.0
    %379 = vmatpush.msra.mxu0 0.0
    %380 = vmatpush.msra.mxu0 0.0
    %381 = vmatpush.msra.mxu0 0.0
    %382 = vmatpush.msra.mxu0 0.0
    %383 = vmatpush.msra.mxu0 0.0
    %384 = vmatpush.msra.mxu0 0.0
    %385 = vmatpush.msra.mxu0 %v307
    %386 = vmatpush.msra.mxu0 %v305
    %387 = vmatpush.msra.mxu0 %v303
    %388 = vmatpush.msra.mxu0 %v301
    %389 = vmatpush.msra.mxu0 %v299
    %390 = vmatpush.msra.mxu0 %v297
    %391 = vmatpush.msra.mxu0 %v295
    %392 = vmatpush.msra.mxu0 %v293
    %393 = vmatmul.f32.gmra.mxu0 %v315
    %v394 = vpop.f32.mrf.mxu0
    %v395 = vadd.f32 %v375, %v394
    %396 = vdwg.mxu0
    %v397 = vld [vmem:[#allocation2] sm:$0x3f]
    %v398 = vld [vmem:[%s6] sm:$0xff]
    %v399 = vld [vmem:[%s6 + $0x8] sm:$0xff]
    %v400 = vld [vmem:[%s6 + $0x10] sm:$0xff]
    %v401 = vld [vmem:[%s6 + $0x18] sm:$0xff]
    %v402 = vld [vmem:[%s6 + $0x20] sm:$0xff]
    %v403 = vld [vmem:[%s6 + $0x28] sm:$0xff]
    %v404 = vld [vmem:[%s6 + $0x30] sm:$0xff]
    %v405 = vld [vmem:[%s6 + $0x38] sm:$0xff]
    %v406 = vld [vmem:[%s6 + $0x40] sm:$0xff]
    %v407 = vld [vmem:[%s6 + $0x48] sm:$0xff]
    %v408 = vld [vmem:[%s6 + $0x50] sm:$0xff]
    %v409 = vld [vmem:[%s6 + $0x58] sm:$0xff]
    %v410 = vld [vmem:[%s6 + $0x60] sm:$0xff]
    %v411 = vld [vmem:[%s6 + $0x68] sm:$0xff]
    %v412 = vld [vmem:[%s6 + $0x70] sm:$0xff]
    %v413 = vld [vmem:[%s6 + $0x78] sm:$0xff]
    %v414 = vld [vmem:[%s6 + $0x80] sm:$0xff]
    %v415 = vld [vmem:[%s6 + $0x88] sm:$0xff]
    %v416 = vld [vmem:[%s6 + $0x90] sm:$0xff]
    %v417 = vld [vmem:[%s6 + $0x98] sm:$0xff]
    %v418 = vld [vmem:[%s6 + $0xa0] sm:$0xff]
    %v419 = vld [vmem:[%s6 + $0xa8] sm:$0xff]
    %v420 = vld [vmem:[%s6 + $0xb0] sm:$0xff]
    %v421 = vld [vmem:[%s6 + $0xb8] sm:$0xff]
    %v422 = vld [vmem:[%s6 + $0xc0] sm:$0xff]
    %v423 = vld [vmem:[%s6 + $0xc8] sm:$0xff]
    %v424 = vld [vmem:[%s6 + $0xd0] sm:$0xff]
    %v425 = vld [vmem:[%s6 + $0xd8] sm:$0xff]
    %v426 = vld [vmem:[%s6 + $0xe0] sm:$0xff]
    %v427 = vld [vmem:[%s6 + $0xe8] sm:$0xff]
    %v428 = vld [vmem:[%s6 + $0xf0] sm:$0xff]
    %v429 = vld [vmem:[%s6 + $0xf8] sm:$0xff]
    %v430 = vld [vmem:[%s6 + $0x100] sm:$0xff]
    %v431 = vld [vmem:[%s6 + $0x108] sm:$0xff]
    %v432 = vld [vmem:[%s6 + $0x110] sm:$0xff]
    %v433 = vld [vmem:[%s6 + $0x118] sm:$0xff]
    %v434 = vld [vmem:[%s6 + $0x120] sm:$0xff]
    %v435 = vld [vmem:[%s6 + $0x128] sm:$0xff]
    %v436 = vld [vmem:[%s6 + $0x130] sm:$0xff]
    %v437 = vld [vmem:[%s6 + $0x138] sm:$0xff]
    %v438 = vld [vmem:[%s6 + $0x140] sm:$0xff]
    %v439 = vld [vmem:[%s6 + $0x148] sm:$0xff]
    %v440 = vld [vmem:[%s6 + $0x150] sm:$0xff]
    %v441 = vld [vmem:[%s6 + $0x158] sm:$0xff]
    %v442 = vld [vmem:[%s6 + $0x160] sm:$0xff]
    %v443 = vld [vmem:[%s6 + $0x168] sm:$0xff]
    %v444 = vld [vmem:[%s6 + $0x170] sm:$0xff]
    %v445 = vld [vmem:[%s6 + $0x178] sm:$0xff]
    %v446 = vld [vmem:[%s6 + $0x180] sm:$0xff]
    %v447 = vld [vmem:[%s6 + $0x188] sm:$0xff]
    %v448 = vld [vmem:[%s6 + $0x190] sm:$0xff]
    %v449 = vld [vmem:[%s6 + $0x198] sm:$0xff]
    %v450 = vld [vmem:[%s6 + $0x1a0] sm:$0xff]
    %v451 = vld [vmem:[%s6 + $0x1a8] sm:$0xff]
    %v452 = vld [vmem:[%s6 + $0x1b0] sm:$0xff]
    %v453 = vld [vmem:[%s6 + $0x1b8] sm:$0xff]
    %v454 = vld [vmem:[%s6 + $0x1c0] sm:$0xff]
    %v455 = vld [vmem:[%s6 + $0x1c8] sm:$0xff]
    %v456 = vld [vmem:[%s6 + $0x1d0] sm:$0xff]
    %v457 = vld [vmem:[%s6 + $0x1d8] sm:$0xff]
    %v458 = vld [vmem:[%s6 + $0x1e0] sm:$0xff]
    %v459 = vld [vmem:[%s6 + $0x1e8] sm:$0xff]
    %v460 = vld [vmem:[%s6 + $0x1f0] sm:$0xff]
    %v461 = vld [vmem:[%s6 + $0x1f8] sm:$0xff]
    %v462 = vld [vmem:[%s6 + $0x200] sm:$0xff]
    %v463 = vld [vmem:[%s6 + $0x208] sm:$0xff]
    %v464 = vld [vmem:[%s6 + $0x210] sm:$0xff]
    %v465 = vld [vmem:[%s6 + $0x218] sm:$0xff]
    %v466 = vld [vmem:[%s6 + $0x220] sm:$0xff]
    %v467 = vld [vmem:[%s6 + $0x228] sm:$0xff]
    %v468 = vld [vmem:[%s6 + $0x230] sm:$0xff]
    %v469 = vld [vmem:[%s6 + $0x238] sm:$0xff]
    %v470 = vld [vmem:[%s6 + $0x240] sm:$0xff]
    %v471 = vld [vmem:[%s6 + $0x248] sm:$0xff]
    %v472 = vld [vmem:[%s6 + $0x250] sm:$0xff]
    %v473 = vld [vmem:[%s6 + $0x258] sm:$0xff]
    %v474 = vld [vmem:[%s6 + $0x260] sm:$0xff]
    %v475 = vld [vmem:[%s6 + $0x268] sm:$0xff]
    %v476 = vld [vmem:[%s6 + $0x270] sm:$0xff]
    %v477 = vld [vmem:[%s6 + $0x278] sm:$0xff]
    %v478 = vld [vmem:[%s6 + $0x280] sm:$0xff]
    %v479 = vld [vmem:[%s6 + $0x288] sm:$0xff]
    %v480 = vld [vmem:[%s6 + $0x290] sm:$0xff]
    %v481 = vld [vmem:[%s6 + $0x298] sm:$0xff]
    %v482 = vld [vmem:[%s6 + $0x2a0] sm:$0xff]
    %v483 = vld [vmem:[%s6 + $0x2a8] sm:$0xff]
    %v484 = vld [vmem:[%s6 + $0x2b0] sm:$0xff]
    %v485 = vld [vmem:[%s6 + $0x2b8] sm:$0xff]
    %v486 = vld [vmem:[%s6 + $0x2c0] sm:$0xff]
    %v487 = vld [vmem:[%s6 + $0x2c8] sm:$0xff]
    %v488 = vld [vmem:[%s6 + $0x2d0] sm:$0xff]
    %v489 = vld [vmem:[%s6 + $0x2d8] sm:$0xff]
    %v490 = vld [vmem:[%s6 + $0x2e0] sm:$0xff]
    %v491 = vld [vmem:[%s6 + $0x2e8] sm:$0xff]
    %v492 = vld [vmem:[%s6 + $0x2f0] sm:$0xff]
    %v493 = vld [vmem:[%s6 + $0x2f8] sm:$0xff]
    %v494 = vld [vmem:[#allocation10] sm:$0x3]
    %v496 = vperm.slane %v494, 0
    %v497 = vperm.slane %v494, 1
    %501 = vst [vmem:[#allocation1] ss:$4 sm:$0xff] %v397
    %v502 = vld.sshfl [vmem:[#allocation1] sm:$0xff pattern:$0x73625140]
    %v503 = vld.sshfl [vmem:[#allocation1 + $0x8] sm:$0xff pattern:$0x73625140]
    %v504 = vld.sshfl [vmem:[#allocation1 + $0x10] sm:$0xff pattern:$0x73625140]
    %508 = vmatpush.msra.mxu0 %v428
    %509 = vmatpush.msra.mxu0 %v426
    %510 = vmatpush.msra.mxu0 %v424
    %511 = vmatpush.msra.mxu0 %v422
    %512 = vmatpush.msra.mxu0 %v420
    %513 = vmatpush.msra.mxu0 %v418
    %514 = vmatpush.msra.mxu0 %v416
    %515 = vmatpush.msra.mxu0 %v414
    %516 = vmatpush.msra.mxu0 %v412
    %517 = vmatpush.msra.mxu0 %v410
    %518 = vmatpush.msra.mxu0 %v408
    %519 = vmatpush.msra.mxu0 %v406
    %520 = vmatpush.msra.mxu0 %v404
    %521 = vmatpush.msra.mxu0 %v402
    %522 = vmatpush.msra.mxu0 %v400
    %523 = vmatpush.msra.mxu0 %v398
    %524 = vmatmul.f32.gmra.mxu0 %v502
    %v525 = vpop.f32.mrf.mxu0
    %v526 = vadd.f32 %v496, %v525
    %527 = vdwg.mxu0
    %528 = vmatpush.msra.mxu0 %v460
    %529 = vmatpush.msra.mxu0 %v458
    %530 = vmatpush.msra.mxu0 %v456
    %531 = vmatpush.msra.mxu0 %v454
    %532 = vmatpush.msra.mxu0 %v452
    %533 = vmatpush.msra.mxu0 %v450
    %534 = vmatpush.msra.mxu0 %v448
    %535 = vmatpush.msra.mxu0 %v446
    %536 = vmatpush.msra.mxu0 %v444
    %537 = vmatpush.msra.mxu0 %v442
    %538 = vmatpush.msra.mxu0 %v440
    %539 = vmatpush.msra.mxu0 %v438
    %540 = vmatpush.msra.mxu0 %v436
    %541 = vmatpush.msra.mxu0 %v434
    %542 = vmatpush.msra.mxu0 %v432
    %543 = vmatpush.msra.mxu0 %v430
    %544 = vmatmul.f32.gmra.mxu0 %v503
    %v545 = vpop.f32.mrf.mxu0
    %v546 = vadd.f32 %v526, %v545
    %547 = vdwg.mxu0
    %548 = vmatpush.msra.mxu0 %v492
    %549 = vmatpush.msra.mxu0 %v490
    %550 = vmatpush.msra.mxu0 %v488
    %551 = vmatpush.msra.mxu0 %v486
    %552 = vmatpush.msra.mxu0 %v484
    %553 = vmatpush.msra.mxu0 %v482
    %554 = vmatpush.msra.mxu0 %v480
    %555 = vmatpush.msra.mxu0 %v478
    %556 = vmatpush.msra.mxu0 %v476
    %557 = vmatpush.msra.mxu0 %v474
    %558 = vmatpush.msra.mxu0 %v472
    %559 = vmatpush.msra.mxu0 %v470
    %560 = vmatpush.msra.mxu0 %v468
    %561 = vmatpush.msra.mxu0 %v466
    %562 = vmatpush.msra.mxu0 %v464
    %563 = vmatpush.msra.mxu0 %v462
    %564 = vmatmul.f32.gmra.mxu0 %v504
    %v565 = vpop.f32.mrf.mxu0
    %v566 = vadd.f32 %v546, %v565
    %567 = vdwg.mxu0
    %568 = vmatpush.msra.mxu0 %v429
    %569 = vmatpush.msra.mxu0 %v427
    %570 = vmatpush.msra.mxu0 %v425
    %571 = vmatpush.msra.mxu0 %v423
    %572 = vmatpush.msra.mxu0 %v421
    %573 = vmatpush.msra.mxu0 %v419
    %574 = vmatpush.msra.mxu0 %v417
    %575 = vmatpush.msra.mxu0 %v415
    %576 = vmatpush.msra.mxu0 %v413
    %577 = vmatpush.msra.mxu0 %v411
    %578 = vmatpush.msra.mxu0 %v409
    %579 = vmatpush.msra.mxu0 %v407
    %580 = vmatpush.msra.mxu0 %v405
    %581 = vmatpush.msra.mxu0 %v403
    %582 = vmatpush.msra.mxu0 %v401
    %583 = vmatpush.msra.mxu0 %v399
    %584 = vmatmul.f32.gmra.mxu0 %v502
    %v585 = vpop.f32.mrf.mxu0
    %v586 = vadd.f32 %v497, %v585
    %587 = vdwg.mxu0
    %588 = vmatpush.msra.mxu0 %v461
    %589 = vmatpush.msra.mxu0 %v459
    %590 = vmatpush.msra.mxu0 %v457
    %591 = vmatpush.msra.mxu0 %v455
    %592 = vmatpush.msra.mxu0 %v453
    %593 = vmatpush.msra.mxu0 %v451
    %594 = vmatpush.msra.mxu0 %v449
    %595 = vmatpush.msra.mxu0 %v447
    %596 = vmatpush.msra.mxu0 %v445
    %597 = vmatpush.msra.mxu0 %v443
    %598 = vmatpush.msra.mxu0 %v441
    %599 = vmatpush.msra.mxu0 %v439
    %600 = vmatpush.msra.mxu0 %v437
    %601 = vmatpush.msra.mxu0 %v435
    %602 = vmatpush.msra.mxu0 %v433
    %603 = vmatpush.msra.mxu0 %v431
    %604 = vmatmul.f32.gmra.mxu0 %v503
    %v605 = vpop.f32.mrf.mxu0
    %v606 = vadd.f32 %v586, %v605
    %607 = vdwg.mxu0
    %608 = vmatpush.msra.mxu0 %v493
    %609 = vmatpush.msra.mxu0 %v491
    %610 = vmatpush.msra.mxu0 %v489
    %611 = vmatpush.msra.mxu0 %v487
    %612 = vmatpush.msra.mxu0 %v485
    %613 = vmatpush.msra.mxu0 %v483
    %614 = vmatpush.msra.mxu0 %v481
    %615 = vmatpush.msra.mxu0 %v479
    %616 = vmatpush.msra.mxu0 %v477
    %617 = vmatpush.msra.mxu0 %v475
    %618 = vmatpush.msra.mxu0 %v473
    %619 = vmatpush.msra.mxu0 %v471
    %620 = vmatpush.msra.mxu0 %v469
    %621 = vmatpush.msra.mxu0 %v467
    %622 = vmatpush.msra.mxu0 %v465
    %623 = vmatpush.msra.mxu0 %v463
    %624 = vmatmul.f32.gmra.mxu0 %v504
    %v625 = vpop.f32.mrf.mxu0
    %v626 = vadd.f32 %v606, %v625
    %627 = vdwg.mxu0
    %v628 = vadd.f32 %v355, %v566
    %v629 = vadd.f32 %v395, %v626
    %v630 = vxor.u32 %v628, 2147483648
    %v631 = vxor.u32 %v629, 2147483648
    %v632 = vmul.f32 %v630, 1.442695
    %v633 = vpow.pop %v632
    %v634 = vmul.f32 %v631, 1.442695
    %v635 = vpow.pop %v634
    %v636 = vadd.f32 %v633, 1.0
    %v637 = vadd.f32 %v635, 1.0
    %v638 = vrcp.pop %v636
    %v639 = vmul.f32 %v636, %v638
    %v640 = vsub.f32 1.0, %v639
    %v641 = vmul.f32 %v638, %v640
    %v642 = vadd.f32 %v638, %v641
    %vm643 = vweird.f32 %v636
    %vm644 = vweird.f32 %v638
    %vm645 = vmor %vm643, %vm644
    %v646 = vsel %vm645, %v638, %v642
    %v647 = vand.u32 2147483647, %v636
    %vm648 = vcmp.eq.f32.partialorder %v647, 8.507059e+37
    %v649 = vand.u32 %v636, 2147483648
    %v650 = vor.u32 1.1754944e-38, %v649
    %v651 = vsel %vm648, %v650, %v646
    %v652 = vmul.f32 1.0, %v651
    %v653 = vrcp.pop %v637
    %v654 = vmul.f32 %v637, %v653
    %v655 = vsub.f32 1.0, %v654
    %v656 = vmul.f32 %v653, %v655
    %v657 = vadd.f32 %v653, %v656
    %vm658 = vweird.f32 %v637
    %vm659 = vweird.f32 %v653
    %vm660 = vmor %vm658, %vm659
    %v661 = vsel %vm660, %v653, %v657
    %v662 = vand.u32 2147483647, %v637
    %vm663 = vcmp.eq.f32.partialorder %v662, 8.507059e+37
    %v664 = vand.u32 %v637, 2147483648
    %v665 = vor.u32 1.1754944e-38, %v664
    %v666 = vsel %vm663, %v665, %v661
    %v667 = vmul.f32 1.0, %v666
    %v668 = vmul.f32 %v628, %v652
    %v669 = vmul.f32 %v629, %v667
    %v672 = vrot.slane %v669, 6
    %vm673 = vcmask 1041408
    %v674 = vsel %vm673, %v668, %v672
    %vm676 = vcmask 519170
    %vm677 = vmor %vm676, %vm673
    %678 = vst.msk [vmem:[%s8] sm:$0xf] %vm677, %v674
    // Predicated region
    $region58: #{step_diffusion_head_forward.3} parent=1 // pred_check
      _
    $region59: #{step_diffusion_head_forward.3} parent=1 // pred_check_branch
      %680 = sbr.rel (0) target = $region61
    $region60: #{step_diffusion_head_forward.3} parent=1 // pred_region
      _
    $region61: #{step_diffusion_head_forward.3} parent=1 // pred_fallthru
      _
    // Predicated region
    $region62: #{step_diffusion_head_forward.3} parent=1 // pred_check
      _
    $region63: #{step_diffusion_head_forward.3} parent=1 // pred_check_branch
      %682 = sbr.rel (0) target = $region65
    $region64: #{step_diffusion_head_forward.3} parent=1 // pred_region
      _
    $region65: #{step_diffusion_head_forward.3} parent=1 // pred_fallthru
      _
    %683 = vsyncpa [#allocation3], 1
    %684 = vsyncpa [#allocation5], 1
    %685 = vsyncpa [#allocation8], 1
    %686 = vsyncpa [#allocation11], 1

// kernel: step_diffusion_head_forward.4
$region0: #{step_diffusion_head_forward.4}
  #allocation0 [shape = 'u32[]', space=smem, size = 0x4, offset = 0x4, fixed_abs, tag = 'smem constant byte address 0x4 - core index']
  #allocation1 [shape = 'u32[72,128]{1,0:T(1,128)}', space=vmem, size = 0x9000, scoped, tag = 'internal scratch']
  #allocation2 [shape = 'f32[16,192]{1,0:T(8,128)}', space=vmem, size = 0x4000, scoped, tag = 'scratch operand']
  %s0 = inlined_call_operand.vmem [shape: f32[2,8,192], index: 0, kind: input, shape index: {}]
  %s1 = inlined_call_operand.vmem [shape: f32[2,8,192], index: 1, kind: input, shape index: {}]
  %s2 = inlined_call_operand.vmem [shape: f32[2,8,192], index: 2, kind: input, shape index: {}]
  %s3 = inlined_call_operand.vmem [shape: f32[2,192], index: 3, kind: input, shape index: {}]
  %s4 = inlined_call_operand.hbm [shape: f32[11,192,384], index: 4, kind: input, shape index: {}]
  %s5 = inlined_call_operand.hbm [shape: f32[11,1,384], index: 5, kind: input, shape index: {}]
  %s6 = inlined_call_operand.hbm [shape: f32[11,192,384], index: 6, kind: input, shape index: {}]
  %s7 = inlined_call_operand.hbm [shape: f32[11,1,384], index: 7, kind: input, shape index: {}]
  %s8 = inlined_call_operand.hbm [shape: f32[11,192,576], index: 8, kind: input, shape index: {}]
  %s9 = inlined_call_operand.hbm [shape: f32[11,1,576], index: 9, kind: input, shape index: {}]
  %s10 = inlined_call_operand.hbm [shape: f32[11,192,192], index: 10, kind: input, shape index: {}]
  %s11 = inlined_call_operand.hbm [shape: f32[11,1,192], index: 11, kind: input, shape index: {}]
  %s12 = inlined_call_operand.hbm [shape: f32[11,1,192], index: 12, kind: input, shape index: {}]
  %s13 = inlined_call_operand.hbm [shape: f32[11,1,192], index: 13, kind: input, shape index: {}]
  %s14 = inlined_call_operand.hbm [shape: f32[11,1,192], index: 14, kind: input, shape index: {}]
  %s15 = inlined_call_operand.hbm [shape: f32[11,192,384], index: 15, kind: input, shape index: {}]
  %s16 = inlined_call_operand.hbm [shape: f32[11,1,384], index: 16, kind: input, shape index: {}]
  %s17 = inlined_call_operand.hbm [shape: f32[11,192,192], index: 17, kind: input, shape index: {}]
  %s18 = inlined_call_operand.hbm [shape: f32[11,1,192], index: 18, kind: input, shape index: {}]
  %s19 = inlined_call_operand.hbm [shape: f32[11,192,192], index: 19, kind: input, shape index: {}]
  %s20 = inlined_call_operand.hbm [shape: f32[11,1,192], index: 20, kind: input, shape index: {}]
  %s21 = inlined_call_operand.hbm [shape: f32[11,1,192], index: 21, kind: input, shape index: {}]
  %s22 = inlined_call_operand.hbm [shape: f32[11,1,192], index: 22, kind: input, shape index: {}]
  %s23 = inlined_call_operand.vmem [shape: f32[2,8,192], index: 23, kind: output, shape index: {}]
  %s24 = sld [smem:[#allocation0]]
  $region213: #{step_diffusion_head_forward.4} parent=0
    _
  %s26 = ssub.s32 1, %s24
  %s27 = scalar_select 0, %s26, %s24
  $region1: #{step_diffusion_head_forward.4} parent=0
    #allocation3 [shape = 'u8[589824]{0}', space=vmem, size = 0x90000, scoped, tag = 'input window, operand 4']
    #allocation4 [shape = 's32[2]{0}', space=sflag, size = 0x8, scoped, tag = 'scoped memory for step_diffusion_head_forward.4']
    #allocation5 [shape = 'u8[3072]{0}', space=vmem, size = 0xc00, scoped, tag = 'input window, operand 5']
    #allocation6 [shape = 's32[2]{0}', space=sflag, size = 0x8, scoped, tag = 'scoped memory for step_diffusion_head_forward.4']
    #allocation7 [shape = 'u8[589824]{0}', space=vmem, size = 0x90000, scoped, tag = 'input window, operand 6']
    #allocation8 [shape = 'u8[3072]{0}', space=vmem, size = 0xc00, scoped, tag = 'input window, operand 7']
    #allocation9 [shape = 's32[2]{0}', space=sflag, size = 0x8, scoped, tag = 'scoped memory for step_diffusion_head_forward.4']
    #allocation10 [shape = 'u8[983040]{0}', space=vmem, size = 0xf0000, scoped, tag = 'input window, operand 8']
    #allocation11 [shape = 'u8[5120]{0}', space=vmem, size = 0x1400, scoped, tag = 'input window, operand 9']
    #allocation12 [shape = 's32[2]{0}', space=sflag, size = 0x8, scoped, tag = 'scoped memory for step_diffusion_head_forward.4']
    #allocation13 [shape = 'u8[393216]{0}', space=vmem, size = 0x60000, scoped, tag = 'input window, operand 10']
    #allocation14 [shape = 'u8[2048]{0}', space=vmem, size = 0x800, scoped, tag = 'input window, operand 11']
    #allocation15 [shape = 's32[2]{0}', space=sflag, size = 0x8, scoped, tag = 'scoped memory for step_diffusion_head_forward.4']
    #allocation16 [shape = 'u8[2048]{0}', space=vmem, size = 0x800, scoped, tag = 'input window, operand 12']
    #allocation17 [shape = 'u8[2048]{0}', space=vmem, size = 0x800, scoped, tag = 'input window, operand 13']
    #allocation18 [shape = 's32[2]{0}', space=sflag, size = 0x8, scoped, tag = 'scoped memory for step_diffusion_head_forward.4']
    #allocation19 [shape = 'u8[2048]{0}', space=vmem, size = 0x800, scoped, tag = 'input window, operand 14']
    #allocation20 [shape = 'u8[589824]{0}', space=vmem, size = 0x90000, scoped, tag = 'input window, operand 15']
    #allocation21 [shape = 's32[2]{0}', space=sflag, size = 0x8, scoped, tag = 'scoped memory for step_diffusion_head_forward.4']
    #allocation22 [shape = 'u8[3072]{0}', space=vmem, size = 0xc00, scoped, tag = 'input window, operand 16']
    #allocation23 [shape = 'u8[393216]{0}', space=vmem, size = 0x60000, scoped, tag = 'input window, operand 17']
    #allocation24 [shape = 's32[2]{0}', space=sflag, size = 0x8, scoped, tag = 'scoped memory for step_diffusion_head_forward.4']
    #allocation25 [shape = 'u8[2048]{0}', space=vmem, size = 0x800, scoped, tag = 'input window, operand 18']
    #allocation26 [shape = 'u8[393216]{0}', space=vmem, size = 0x60000, scoped, tag = 'input window, operand 19']
    #allocation27 [shape = 's32[2]{0}', space=sflag, size = 0x8, scoped, tag = 'scoped memory for step_diffusion_head_forward.4']
    #allocation28 [shape = 'u8[2048]{0}', space=vmem, size = 0x800, scoped, tag = 'input window, operand 20']
    #allocation29 [shape = 'u8[2048]{0}', space=vmem, size = 0x800, scoped, tag = 'input window, operand 21']
    #allocation30 [shape = 's32[2]{0}', space=sflag, size = 0x8, scoped, tag = 'scoped memory for step_diffusion_head_forward.4']
    #allocation31 [shape = 'u8[2048]{0}', space=vmem, size = 0x800, scoped, tag = 'input window, operand 22']
    %28 = vsyncpa [#allocation4], 0
    %s29 = scalar_lea.sflag [#allocation4], 1
    %30 = vsyncpa %s29, 0
    %31 = vsyncpa [#allocation6], 0
    %s32 = scalar_lea.sflag [#allocation6], 1
    %33 = vsyncpa %s32, 0
    %34 = vsyncpa [#allocation9], 0
    %s35 = scalar_lea.sflag [#allocation9], 1
    %36 = vsyncpa %s35, 0
    %37 = vsyncpa [#allocation12], 0
    %s38 = scalar_lea.sflag [#allocation12], 1
    %39 = vsyncpa %s38, 0
    %40 = vsyncpa [#allocation15], 0
    %s41 = scalar_lea.sflag [#allocation15], 1
    %42 = vsyncpa %s41, 0
    %43 = vsyncpa [#allocation18], 0
    %s44 = scalar_lea.sflag [#allocation18], 1
    %45 = vsyncpa %s44, 0
    %46 = vsyncpa [#allocation21], 0
    %s47 = scalar_lea.sflag [#allocation21], 1
    %48 = vsyncpa %s47, 0
    %49 = vsyncpa [#allocation24], 0
    %s50 = scalar_lea.sflag [#allocation24], 1
    %51 = vsyncpa %s50, 0
    %52 = vsyncpa [#allocation27], 0
    %s53 = scalar_lea.sflag [#allocation27], 1
    %54 = vsyncpa %s53, 0
    %55 = vsyncpa [#allocation30], 0
    %s56 = scalar_lea.sflag [#allocation30], 1
    %57 = vsyncpa %s56, 0
    loop: start=0, step=1, limit=13
    $region2: #{step_diffusion_head_forward.4} parent=1 // loop_pre_header
      _
    $region3: #{step_diffusion_head_forward.4} parent=1 // loop_header
      %s59 = sphi 0, %s63
      %p60 = scmp.ge.s32.totalorder %s59, 13
      %s67 = sphi 0, %s67
      %s69 = sphi 0, %s67
      %s70 = sphi 0, %s69
      %s84 = sphi 0, %s70
      %s88 = sphi 0, %s88
      %s90 = sphi 0, %s88
      %s91 = sphi 0, %s90
      %s105 = sphi 0, %s91
      %s109 = sphi 0, %s109
      %s111 = sphi 0, %s109
      %s112 = sphi 0, %s111
      %s126 = sphi 0, %s112
      %s130 = sphi 0, %s130
      %s132 = sphi 0, %s130
      %s133 = sphi 0, %s132
      %s147 = sphi 0, %s133
      %s153 = sphi 0, %s155
      %s156 = sphi 0, %s153
      %s157 = sphi 0, %s156
      %s173 = sphi 0, %s157
      %s179 = sphi 0, %s181
      %s182 = sphi 0, %s179
      %s183 = sphi 0, %s182
      %s199 = sphi 0, %s183
      %s205 = sphi 0, %s207
      %s208 = sphi 0, %s205
      %s209 = sphi 0, %s208
      %s225 = sphi 0, %s209
      %s231 = sphi 0, %s233
      %s234 = sphi 0, %s231
      %s235 = sphi 0, %s234
      %s251 = sphi 0, %s235
      %s257 = sphi 0, %s259
      %s260 = sphi 0, %s257
      %s261 = sphi 0, %s260
      %s277 = sphi 0, %s261
      %s283 = sphi 0, %s285
      %s286 = sphi 0, %s283
      %s287 = sphi 0, %s286
      %s303 = sphi 0, %s287
      %s309 = sphi 0, %s311
      %s312 = sphi 0, %s309
      %s313 = sphi 0, %s312
      %s329 = sphi 0, %s313
      %s335 = sphi 0, %s337
      %s338 = sphi 0, %s335
      %s339 = sphi 0, %s338
      %s355 = sphi 0, %s339
      %s361 = sphi 0, %s363
      %s364 = sphi 0, %s361
      %s365 = sphi 0, %s364
      %s381 = sphi 0, %s365
      %s387 = sphi 0, %s389
      %s390 = sphi 0, %s387
      %s391 = sphi 0, %s390
      %s407 = sphi 0, %s391
      %s413 = sphi 0, %s415
      %s416 = sphi 0, %s413
      %s417 = sphi 0, %s416
      %s433 = sphi 0, %s417
      %s439 = sphi 0, %s441
      %s442 = sphi 0, %s439
      %s443 = sphi 0, %s442
      %s459 = sphi 0, %s443
      %s465 = sphi 0, %s467
      %s468 = sphi 0, %s465
      %s469 = sphi 0, %s468
      %s485 = sphi 0, %s469
      %s491 = sphi 0, %s493
      %s494 = sphi 0, %s491
      %s495 = sphi 0, %s494
      %s511 = sphi 0, %s495
      %s517 = sphi 0, %s519
      %s520 = sphi 0, %s517
      %s521 = sphi 0, %s520
      %s537 = sphi 0, %s521
      %s543 = sphi 0, %s545
      %s546 = sphi 0, %s543
      %s547 = sphi 0, %s546
      %s563 = sphi 0, %s547
      %s569 = sphi 0, %s571
      %s572 = sphi 0, %s569
      %s573 = sphi 0, %s572
      %s589 = sphi 0, %s573
      %s595 = sphi 0, %s597
      %s598 = sphi 0, %s595
      %s599 = sphi 0, %s598
      %s615 = sphi 0, %s599
      %s621 = sphi 0, %s623
      %s624 = sphi 0, %s621
      %s625 = sphi 0, %s624
      %s641 = sphi 0, %s625
      %s645 = sphi 0, %s645
      %s647 = sphi 0, %s645
      %s648 = sphi 0, %s647
      %s662 = sphi 0, %s648
    $region4: #{step_diffusion_head_forward.4} parent=1 // loop_header_branch
      %62 = sbr.rel (%p60) target = $region8
    $region5: #{step_diffusion_head_forward.4} parent=1 // loop_body
      %s64 = ssub.s32 %s59, 1
      %s65 = ssub.s32 %s59, 2
      %s66 = sadd.s32 %s59, 1
      %s68 = sadd.s32 %s67, 1
      %p71 = scmp.eq.s32.totalorder %s59, 10
      %p72 = scmp.ne.s32.totalorder %s67, %s69
      %p73 = scmp.eq.s32.totalorder %s59, 0
      %p74 = por %p72, %p73
      %p75 = scmp.ne.s32.totalorder %s67, %s69
      %p76 = scmp.eq.s32.totalorder %s64, 10
      %p77 = por %p75, %p76
      %p78 = scmp.ne.s32.totalorder %s69, %s70
      %p79 = scmp.eq.s32.totalorder %s64, 0
      %p80 = por %p78, %p79
      %p81 = scmp.ne.s32.totalorder %s69, %s70
      %p82 = scmp.eq.s32.totalorder %s65, 10
      %p83 = por %p81, %p82
      %p85 = scmp.ne.s32.totalorder %s70, %s84
      %p86 = scmp.eq.s32.totalorder %s65, 0
      %p87 = por %p85, %p86
      %s89 = sadd.s32 %s88, 1
      %p92 = scmp.eq.s32.totalorder %s59, 10
      %p93 = scmp.ne.s32.totalorder %s88, %s90
      %p94 = scmp.eq.s32.totalorder %s59, 0
      %p95 = por %p93, %p94
      %p96 = scmp.ne.s32.totalorder %s88, %s90
      %p97 = scmp.eq.s32.totalorder %s64, 10
      %p98 = por %p96, %p97
      %p99 = scmp.ne.s32.totalorder %s90, %s91
      %p100 = scmp.eq.s32.totalorder %s64, 0
      %p101 = por %p99, %p100
      %p102 = scmp.ne.s32.totalorder %s90, %s91
      %p103 = scmp.eq.s32.totalorder %s65, 10
      %p104 = por %p102, %p103
      %p106 = scmp.ne.s32.totalorder %s91, %s105
      %p107 = scmp.eq.s32.totalorder %s65, 0
      %p108 = por %p106, %p107
      %s110 = sadd.s32 %s109, 1
      %p113 = scmp.eq.s32.totalorder %s59, 10
      %p114 = scmp.ne.s32.totalorder %s109, %s111
      %p115 = scmp.eq.s32.totalorder %s59, 0
      %p116 = por %p114, %p115
      %p117 = scmp.ne.s32.totalorder %s109, %s111
      %p118 = scmp.eq.s32.totalorder %s64, 10
      %p119 = por %p117, %p118
      %p120 = scmp.ne.s32.totalorder %s111, %s112
      %p121 = scmp.eq.s32.totalorder %s64, 0
      %p122 = por %p120, %p121
      %p123 = scmp.ne.s32.totalorder %s111, %s112
      %p124 = scmp.eq.s32.totalorder %s65, 10
      %p125 = por %p123, %p124
      %p127 = scmp.ne.s32.totalorder %s112, %s126
      %p128 = scmp.eq.s32.totalorder %s65, 0
      %p129 = por %p127, %p128
      %s131 = sadd.s32 %s130, 1
      %p134 = scmp.eq.s32.totalorder %s59, 10
      %p135 = scmp.ne.s32.totalorder %s130, %s132
      %p136 = scmp.eq.s32.totalorder %s59, 0
      %p137 = por %p135, %p136
      %p138 = scmp.ne.s32.totalorder %s130, %s132
      %p139 = scmp.eq.s32.totalorder %s64, 10
      %p140 = por %p138, %p139
      %p141 = scmp.ne.s32.totalorder %s132, %s133
      %p142 = scmp.eq.s32.totalorder %s64, 0
      %p143 = por %p141, %p142
      %p144 = scmp.ne.s32.totalorder %s132, %s133
      %p145 = scmp.eq.s32.totalorder %s65, 10
      %p146 = por %p144, %p145
      %p148 = scmp.ne.s32.totalorder %s133, %s147
      %p149 = scmp.eq.s32.totalorder %s65, 0
      %p150 = por %p148, %p149
      %s151 = ssub.s32 %s59, %s66
      %p152 = scmp.eq.s32.totalorder %s151, 0
      %s154 = sadd.s32 %s153, 1
      %s155 = scalar_select %p152, %s153, %s154
      %p158 = pneg %p152
      %p159 = scmp.eq.s32.totalorder %s59, 10
      %p160 = por %p158, %p159
      %p161 = scmp.ne.s32.totalorder %s153, %s156
      %p162 = scmp.eq.s32.totalorder %s59, 0
      %p163 = por %p161, %p162
      %p164 = scmp.ne.s32.totalorder %s153, %s156
      %p165 = scmp.eq.s32.totalorder %s64, 10
      %p166 = por %p164, %p165
      %p167 = scmp.ne.s32.totalorder %s156, %s157
      %p168 = scmp.eq.s32.totalorder %s64, 0
      %p169 = por %p167, %p168
      %p170 = scmp.ne.s32.totalorder %s156, %s157
      %p171 = scmp.eq.s32.totalorder %s65, 10
      %p172 = por %p170, %p171
      %p174 = scmp.ne.s32.totalorder %s157, %s173
      %p175 = scmp.eq.s32.totalorder %s65, 0
      %p176 = por %p174, %p175
      %s177 = ssub.s32 %s59, %s66
      %p178 = scmp.eq.s32.totalorder %s177, 0
      %s180 = sadd.s32 %s179, 1
      %s181 = scalar_select %p178, %s179, %s180
      %p184 = pneg %p178
      %p185 = scmp.eq.s32.totalorder %s59, 10
      %p186 = por %p184, %p185
      %p187 = scmp.ne.s32.totalorder %s179, %s182
      %p188 = scmp.eq.s32.totalorder %s59, 0
      %p189 = por %p187, %p188
      %p190 = scmp.ne.s32.totalorder %s179, %s182
      %p191 = scmp.eq.s32.totalorder %s64, 10
      %p192 = por %p190, %p191
      %p193 = scmp.ne.s32.totalorder %s182, %s183
      %p194 = scmp.eq.s32.totalorder %s64, 0
      %p195 = por %p193, %p194
      %p196 = scmp.ne.s32.totalorder %s182, %s183
      %p197 = scmp.eq.s32.totalorder %s65, 10
      %p198 = por %p196, %p197
      %p200 = scmp.ne.s32.totalorder %s183, %s199
      %p201 = scmp.eq.s32.totalorder %s65, 0
      %p202 = por %p200, %p201
      %s203 = ssub.s32 %s59, %s66
      %p204 = scmp.eq.s32.totalorder %s203, 0
      %s206 = sadd.s32 %s205, 1
      %s207 = scalar_select %p204, %s205, %s206
      %p210 = pneg %p204
      %p211 = scmp.eq.s32.totalorder %s59, 10
      %p212 = por %p210, %p211
      %p213 = scmp.ne.s32.totalorder %s205, %s208
      %p214 = scmp.eq.s32.totalorder %s59, 0
      %p215 = por %p213, %p214
      %p216 = scmp.ne.s32.totalorder %s205, %s208
      %p217 = scmp.eq.s32.totalorder %s64, 10
      %p218 = por %p216, %p217
      %p219 = scmp.ne.s32.totalorder %s208, %s209
      %p220 = scmp.eq.s32.totalorder %s64, 0
      %p221 = por %p219, %p220
      %p222 = scmp.ne.s32.totalorder %s208, %s209
      %p223 = scmp.eq.s32.totalorder %s65, 10
      %p224 = por %p222, %p223
      %p226 = scmp.ne.s32.totalorder %s209, %s225
      %p227 = scmp.eq.s32.totalorder %s65, 0
      %p228 = por %p226, %p227
      %s229 = ssub.s32 %s59, %s66
      %p230 = scmp.eq.s32.totalorder %s229, 0
      %s232 = sadd.s32 %s231, 1
      %s233 = scalar_select %p230, %s231, %s232
      %p236 = pneg %p230
      %p237 = scmp.eq.s32.totalorder %s59, 10
      %p238 = por %p236, %p237
      %p239 = scmp.ne.s32.totalorder %s231, %s234
      %p240 = scmp.eq.s32.totalorder %s59, 0
      %p241 = por %p239, %p240
      %p242 = scmp.ne.s32.totalorder %s231, %s234
      %p243 = scmp.eq.s32.totalorder %s64, 10
      %p244 = por %p242, %p243
      %p245 = scmp.ne.s32.totalorder %s234, %s235
      %p246 = scmp.eq.s32.totalorder %s64, 0
      %p247 = por %p245, %p246
      %p248 = scmp.ne.s32.totalorder %s234, %s235
      %p249 = scmp.eq.s32.totalorder %s65, 10
      %p250 = por %p248, %p249
      %p252 = scmp.ne.s32.totalorder %s235, %s251
      %p253 = scmp.eq.s32.totalorder %s65, 0
      %p254 = por %p252, %p253
      %s255 = ssub.s32 %s59, %s66
      %p256 = scmp.eq.s32.totalorder %s255, 0
      %s258 = sadd.s32 %s257, 1
      %s259 = scalar_select %p256, %s257, %s258
      %p262 = pneg %p256
      %p263 = scmp.eq.s32.totalorder %s59, 10
      %p264 = por %p262, %p263
      %p265 = scmp.ne.s32.totalorder %s257, %s260
      %p266 = scmp.eq.s32.totalorder %s59, 0
      %p267 = por %p265, %p266
      %p268 = scmp.ne.s32.totalorder %s257, %s260
      %p269 = scmp.eq.s32.totalorder %s64, 10
      %p270 = por %p268, %p269
      %p271 = scmp.ne.s32.totalorder %s260, %s261
      %p272 = scmp.eq.s32.totalorder %s64, 0
      %p273 = por %p271, %p272
      %p274 = scmp.ne.s32.totalorder %s260, %s261
      %p275 = scmp.eq.s32.totalorder %s65, 10
      %p276 = por %p274, %p275
      %p278 = scmp.ne.s32.totalorder %s261, %s277
      %p279 = scmp.eq.s32.totalorder %s65, 0
      %p280 = por %p278, %p279
      %s281 = ssub.s32 %s59, %s66
      %p282 = scmp.eq.s32.totalorder %s281, 0
      %s284 = sadd.s32 %s283, 1
      %s285 = scalar_select %p282, %s283, %s284
      %p288 = pneg %p282
      %p289 = scmp.eq.s32.totalorder %s59, 10
      %p290 = por %p288, %p289
      %p291 = scmp.ne.s32.totalorder %s283, %s286
      %p292 = scmp.eq.s32.totalorder %s59, 0
      %p293 = por %p291, %p292
      %p294 = scmp.ne.s32.totalorder %s283, %s286
      %p295 = scmp.eq.s32.totalorder %s64, 10
      %p296 = por %p294, %p295
      %p297 = scmp.ne.s32.totalorder %s286, %s287
      %p298 = scmp.eq.s32.totalorder %s64, 0
      %p299 = por %p297, %p298
      %p300 = scmp.ne.s32.totalorder %s286, %s287
      %p301 = scmp.eq.s32.totalorder %s65, 10
      %p302 = por %p300, %p301
      %p304 = scmp.ne.s32.totalorder %s287, %s303
      %p305 = scmp.eq.s32.totalorder %s65, 0
      %p306 = por %p304, %p305
      %s307 = ssub.s32 %s59, %s66
      %p308 = scmp.eq.s32.totalorder %s307, 0
      %s310 = sadd.s32 %s309, 1
      %s311 = scalar_select %p308, %s309, %s310
      %p314 = pneg %p308
      %p315 = scmp.eq.s32.totalorder %s59, 10
      %p316 = por %p314, %p315
      %p317 = scmp.ne.s32.totalorder %s309, %s312
      %p318 = scmp.eq.s32.totalorder %s59, 0
      %p319 = por %p317, %p318
      %p320 = scmp.ne.s32.totalorder %s309, %s312
      %p321 = scmp.eq.s32.totalorder %s64, 10
      %p322 = por %p320, %p321
      %p323 = scmp.ne.s32.totalorder %s312, %s313
      %p324 = scmp.eq.s32.totalorder %s64, 0
      %p325 = por %p323, %p324
      %p326 = scmp.ne.s32.totalorder %s312, %s313
      %p327 = scmp.eq.s32.totalorder %s65, 10
      %p328 = por %p326, %p327
      %p330 = scmp.ne.s32.totalorder %s313, %s329
      %p331 = scmp.eq.s32.totalorder %s65, 0
      %p332 = por %p330, %p331
      %s333 = ssub.s32 %s59, %s66
      %p334 = scmp.eq.s32.totalorder %s333, 0
      %s336 = sadd.s32 %s335, 1
      %s337 = scalar_select %p334, %s335, %s336
      %p340 = pneg %p334
      %p341 = scmp.eq.s32.totalorder %s59, 10
      %p342 = por %p340, %p341
      %p343 = scmp.ne.s32.totalorder %s335, %s338
      %p344 = scmp.eq.s32.totalorder %s59, 0
      %p345 = por %p343, %p344
      %p346 = scmp.ne.s32.totalorder %s335, %s338
      %p347 = scmp.eq.s32.totalorder %s64, 10
      %p348 = por %p346, %p347
      %p349 = scmp.ne.s32.totalorder %s338, %s339
      %p350 = scmp.eq.s32.totalorder %s64, 0
      %p351 = por %p349, %p350
      %p352 = scmp.ne.s32.totalorder %s338, %s339
      %p353 = scmp.eq.s32.totalorder %s65, 10
      %p354 = por %p352, %p353
      %p356 = scmp.ne.s32.totalorder %s339, %s355
      %p357 = scmp.eq.s32.totalorder %s65, 0
      %p358 = por %p356, %p357
      %s359 = ssub.s32 %s59, %s66
      %p360 = scmp.eq.s32.totalorder %s359, 0
      %s362 = sadd.s32 %s361, 1
      %s363 = scalar_select %p360, %s361, %s362
      %p366 = pneg %p360
      %p367 = scmp.eq.s32.totalorder %s59, 10
      %p368 = por %p366, %p367
      %p369 = scmp.ne.s32.totalorder %s361, %s364
      %p370 = scmp.eq.s32.totalorder %s59, 0
      %p371 = por %p369, %p370
      %p372 = scmp.ne.s32.totalorder %s361, %s364
      %p373 = scmp.eq.s32.totalorder %s64, 10
      %p374 = por %p372, %p373
      %p375 = scmp.ne.s32.totalorder %s364, %s365
      %p376 = scmp.eq.s32.totalorder %s64, 0
      %p377 = por %p375, %p376
      %p378 = scmp.ne.s32.totalorder %s364, %s365
      %p379 = scmp.eq.s32.totalorder %s65, 10
      %p380 = por %p378, %p379
      %p382 = scmp.ne.s32.totalorder %s365, %s381
      %p383 = scmp.eq.s32.totalorder %s65, 0
      %p384 = por %p382, %p383
      %s385 = ssub.s32 %s59, %s66
      %p386 = scmp.eq.s32.totalorder %s385, 0
      %s388 = sadd.s32 %s387, 1
      %s389 = scalar_select %p386, %s387, %s388
      %p392 = pneg %p386
      %p393 = scmp.eq.s32.totalorder %s59, 10
      %p394 = por %p392, %p393
      %p395 = scmp.ne.s32.totalorder %s387, %s390
      %p396 = scmp.eq.s32.totalorder %s59, 0
      %p397 = por %p395, %p396
      %p398 = scmp.ne.s32.totalorder %s387, %s390
      %p399 = scmp.eq.s32.totalorder %s64, 10
      %p400 = por %p398, %p399
      %p401 = scmp.ne.s32.totalorder %s390, %s391
      %p402 = scmp.eq.s32.totalorder %s64, 0
      %p403 = por %p401, %p402
      %p404 = scmp.ne.s32.totalorder %s390, %s391
      %p405 = scmp.eq.s32.totalorder %s65, 10
      %p406 = por %p404, %p405
      %p408 = scmp.ne.s32.totalorder %s391, %s407
      %p409 = scmp.eq.s32.totalorder %s65, 0
      %p410 = por %p408, %p409
      %s411 = ssub.s32 %s59, %s66
      %p412 = scmp.eq.s32.totalorder %s411, 0
      %s414 = sadd.s32 %s413, 1
      %s415 = scalar_select %p412, %s413, %s414
      %p418 = pneg %p412
      %p419 = scmp.eq.s32.totalorder %s59, 10
      %p420 = por %p418, %p419
      %p421 = scmp.ne.s32.totalorder %s413, %s416
      %p422 = scmp.eq.s32.totalorder %s59, 0
      %p423 = por %p421, %p422
      %p424 = scmp.ne.s32.totalorder %s413, %s416
      %p425 = scmp.eq.s32.totalorder %s64, 10
      %p426 = por %p424, %p425
      %p427 = scmp.ne.s32.totalorder %s416, %s417
      %p428 = scmp.eq.s32.totalorder %s64, 0
      %p429 = por %p427, %p428
      %p430 = scmp.ne.s32.totalorder %s416, %s417
      %p431 = scmp.eq.s32.totalorder %s65, 10
      %p432 = por %p430, %p431
      %p434 = scmp.ne.s32.totalorder %s417, %s433
      %p435 = scmp.eq.s32.totalorder %s65, 0
      %p436 = por %p434, %p435
      %s437 = ssub.s32 %s59, %s66
      %p438 = scmp.eq.s32.totalorder %s437, 0
      %s440 = sadd.s32 %s439, 1
      %s441 = scalar_select %p438, %s439, %s440
      %p444 = pneg %p438
      %p445 = scmp.eq.s32.totalorder %s59, 10
      %p446 = por %p444, %p445
      %p447 = scmp.ne.s32.totalorder %s439, %s442
      %p448 = scmp.eq.s32.totalorder %s59, 0
      %p449 = por %p447, %p448
      %p450 = scmp.ne.s32.totalorder %s439, %s442
      %p451 = scmp.eq.s32.totalorder %s64, 10
      %p452 = por %p450, %p451
      %p453 = scmp.ne.s32.totalorder %s442, %s443
      %p454 = scmp.eq.s32.totalorder %s64, 0
      %p455 = por %p453, %p454
      %p456 = scmp.ne.s32.totalorder %s442, %s443
      %p457 = scmp.eq.s32.totalorder %s65, 10
      %p458 = por %p456, %p457
      %p460 = scmp.ne.s32.totalorder %s443, %s459
      %p461 = scmp.eq.s32.totalorder %s65, 0
      %p462 = por %p460, %p461
      %s463 = ssub.s32 %s59, %s66
      %p464 = scmp.eq.s32.totalorder %s463, 0
      %s466 = sadd.s32 %s465, 1
      %s467 = scalar_select %p464, %s465, %s466
      %p470 = pneg %p464
      %p471 = scmp.eq.s32.totalorder %s59, 10
      %p472 = por %p470, %p471
      %p473 = scmp.ne.s32.totalorder %s465, %s468
      %p474 = scmp.eq.s32.totalorder %s59, 0
      %p475 = por %p473, %p474
      %p476 = scmp.ne.s32.totalorder %s465, %s468
      %p477 = scmp.eq.s32.totalorder %s64, 10
      %p478 = por %p476, %p477
      %p479 = scmp.ne.s32.totalorder %s468, %s469
      %p480 = scmp.eq.s32.totalorder %s64, 0
      %p481 = por %p479, %p480
      %p482 = scmp.ne.s32.totalorder %s468, %s469
      %p483 = scmp.eq.s32.totalorder %s65, 10
      %p484 = por %p482, %p483
      %p486 = scmp.ne.s32.totalorder %s469, %s485
      %p487 = scmp.eq.s32.totalorder %s65, 0
      %p488 = por %p486, %p487
      %s489 = ssub.s32 %s59, %s66
      %p490 = scmp.eq.s32.totalorder %s489, 0
      %s492 = sadd.s32 %s491, 1
      %s493 = scalar_select %p490, %s491, %s492
      %p496 = pneg %p490
      %p497 = scmp.eq.s32.totalorder %s59, 10
      %p498 = por %p496, %p497
      %p499 = scmp.ne.s32.totalorder %s491, %s494
      %p500 = scmp.eq.s32.totalorder %s59, 0
      %p501 = por %p499, %p500
      %p502 = scmp.ne.s32.totalorder %s491, %s494
      %p503 = scmp.eq.s32.totalorder %s64, 10
      %p504 = por %p502, %p503
      %p505 = scmp.ne.s32.totalorder %s494, %s495
      %p506 = scmp.eq.s32.totalorder %s64, 0
      %p507 = por %p505, %p506
      %p508 = scmp.ne.s32.totalorder %s494, %s495
      %p509 = scmp.eq.s32.totalorder %s65, 10
      %p510 = por %p508, %p509
      %p512 = scmp.ne.s32.totalorder %s495, %s511
      %p513 = scmp.eq.s32.totalorder %s65, 0
      %p514 = por %p512, %p513
      %s515 = ssub.s32 %s59, %s66
      %p516 = scmp.eq.s32.totalorder %s515, 0
      %s518 = sadd.s32 %s517, 1
      %s519 = scalar_select %p516, %s517, %s518
      %p522 = pneg %p516
      %p523 = scmp.eq.s32.totalorder %s59, 10
      %p524 = por %p522, %p523
      %p525 = scmp.ne.s32.totalorder %s517, %s520
      %p526 = scmp.eq.s32.totalorder %s59, 0
      %p527 = por %p525, %p526
      %p528 = scmp.ne.s32.totalorder %s517, %s520
      %p529 = scmp.eq.s32.totalorder %s64, 10
      %p530 = por %p528, %p529
      %p531 = scmp.ne.s32.totalorder %s520, %s521
      %p532 = scmp.eq.s32.totalorder %s64, 0
      %p533 = por %p531, %p532
      %p534 = scmp.ne.s32.totalorder %s520, %s521
      %p535 = scmp.eq.s32.totalorder %s65, 10
      %p536 = por %p534, %p535
      %p538 = scmp.ne.s32.totalorder %s521, %s537
      %p539 = scmp.eq.s32.totalorder %s65, 0
      %p540 = por %p538, %p539
      %s541 = ssub.s32 %s59, %s66
      %p542 = scmp.eq.s32.totalorder %s541, 0
      %s544 = sadd.s32 %s543, 1
      %s545 = scalar_select %p542, %s543, %s544
      %p548 = pneg %p542
      %p549 = scmp.eq.s32.totalorder %s59, 10
      %p550 = por %p548, %p549
      %p551 = scmp.ne.s32.totalorder %s543, %s546
      %p552 = scmp.eq.s32.totalorder %s59, 0
      %p553 = por %p551, %p552
      %p554 = scmp.ne.s32.totalorder %s543, %s546
      %p555 = scmp.eq.s32.totalorder %s64, 10
      %p556 = por %p554, %p555
      %p557 = scmp.ne.s32.totalorder %s546, %s547
      %p558 = scmp.eq.s32.totalorder %s64, 0
      %p559 = por %p557, %p558
      %p560 = scmp.ne.s32.totalorder %s546, %s547
      %p561 = scmp.eq.s32.totalorder %s65, 10
      %p562 = por %p560, %p561
      %p564 = scmp.ne.s32.totalorder %s547, %s563
      %p565 = scmp.eq.s32.totalorder %s65, 0
      %p566 = por %p564, %p565
      %s567 = ssub.s32 %s59, %s66
      %p568 = scmp.eq.s32.totalorder %s567, 0
      %s570 = sadd.s32 %s569, 1
      %s571 = scalar_select %p568, %s569, %s570
      %p574 = pneg %p568
      %p575 = scmp.eq.s32.totalorder %s59, 10
      %p576 = por %p574, %p575
      %p577 = scmp.ne.s32.totalorder %s569, %s572
      %p578 = scmp.eq.s32.totalorder %s59, 0
      %p579 = por %p577, %p578
      %p580 = scmp.ne.s32.totalorder %s569, %s572
      %p581 = scmp.eq.s32.totalorder %s64, 10
      %p582 = por %p580, %p581
      %p583 = scmp.ne.s32.totalorder %s572, %s573
      %p584 = scmp.eq.s32.totalorder %s64, 0
      %p585 = por %p583, %p584
      %p586 = scmp.ne.s32.totalorder %s572, %s573
      %p587 = scmp.eq.s32.totalorder %s65, 10
      %p588 = por %p586, %p587
      %p590 = scmp.ne.s32.totalorder %s573, %s589
      %p591 = scmp.eq.s32.totalorder %s65, 0
      %p592 = por %p590, %p591
      %s593 = ssub.s32 %s59, %s66
      %p594 = scmp.eq.s32.totalorder %s593, 0
      %s596 = sadd.s32 %s595, 1
      %s597 = scalar_select %p594, %s595, %s596
      %p600 = pneg %p594
      %p601 = scmp.eq.s32.totalorder %s59, 10
      %p602 = por %p600, %p601
      %p603 = scmp.ne.s32.totalorder %s595, %s598
      %p604 = scmp.eq.s32.totalorder %s59, 0
      %p605 = por %p603, %p604
      %p606 = scmp.ne.s32.totalorder %s595, %s598
      %p607 = scmp.eq.s32.totalorder %s64, 10
      %p608 = por %p606, %p607
      %p609 = scmp.ne.s32.totalorder %s598, %s599
      %p610 = scmp.eq.s32.totalorder %s64, 0
      %p611 = por %p609, %p610
      %p612 = scmp.ne.s32.totalorder %s598, %s599
      %p613 = scmp.eq.s32.totalorder %s65, 10
      %p614 = por %p612, %p613
      %p616 = scmp.ne.s32.totalorder %s599, %s615
      %p617 = scmp.eq.s32.totalorder %s65, 0
      %p618 = por %p616, %p617
      %s619 = ssub.s32 %s59, %s66
      %p620 = scmp.eq.s32.totalorder %s619, 0
      %s622 = sadd.s32 %s621, 1
      %s623 = scalar_select %p620, %s621, %s622
      %p626 = pneg %p620
      %p627 = scmp.eq.s32.totalorder %s59, 10
      %p628 = por %p626, %p627
      %p629 = scmp.ne.s32.totalorder %s621, %s624
      %p630 = scmp.eq.s32.totalorder %s59, 0
      %p631 = por %p629, %p630
      %p632 = scmp.ne.s32.totalorder %s621, %s624
      %p633 = scmp.eq.s32.totalorder %s64, 10
      %p634 = por %p632, %p633
      %p635 = scmp.ne.s32.totalorder %s624, %s625
      %p636 = scmp.eq.s32.totalorder %s64, 0
      %p637 = por %p635, %p636
      %p638 = scmp.ne.s32.totalorder %s624, %s625
      %p639 = scmp.eq.s32.totalorder %s65, 10
      %p640 = por %p638, %p639
      %p642 = scmp.ne.s32.totalorder %s625, %s641
      %p643 = scmp.eq.s32.totalorder %s65, 0
      %p644 = por %p642, %p643
      %s646 = sadd.s32 %s645, 1
      %p649 = scmp.eq.s32.totalorder %s59, 10
      %p650 = scmp.ne.s32.totalorder %s645, %s647
      %p651 = scmp.eq.s32.totalorder %s59, 0
      %p652 = por %p650, %p651
      %p653 = scmp.ne.s32.totalorder %s645, %s647
      %p654 = scmp.eq.s32.totalorder %s64, 10
      %p655 = por %p653, %p654
      %p656 = scmp.ne.s32.totalorder %s647, %s648
      %p657 = scmp.eq.s32.totalorder %s64, 0
      %p658 = por %p656, %p657
      %p659 = scmp.ne.s32.totalorder %s647, %s648
      %p660 = scmp.eq.s32.totalorder %s65, 10
      %p661 = por %p659, %p660
      %p663 = scmp.ne.s32.totalorder %s648, %s662
      %p664 = scmp.eq.s32.totalorder %s65, 0
      %p665 = por %p663, %p664
      %p666 = scmp.le.s32.totalorder 1, %s59
      %p667 = scmp.lt.s32.totalorder %s59, 12
      %p668 = pnand %p666, %p667
      %p669 = pneg %p668
      // Predicated region
      $region9: #{step_diffusion_head_forward.4} parent=5 // pred_check
        _
      $region10: #{step_diffusion_head_forward.4} parent=5 // pred_check_branch
        %671 = sbr.rel (%p668) target = $region12
      $region11: #{step_diffusion_head_forward.4} parent=5 // pred_region
        %s672 = ssub.s32 %s59, 1
        // Predicated region
        $region13: #{step_diffusion_head_forward.4} parent=11 // pred_check
          %p673 = pneg %p80
        $region14: #{step_diffusion_head_forward.4} parent=11 // pred_check_branch
          %675 = sbr.rel (%p673) target = $region16
        $region15: #{step_diffusion_head_forward.4} parent=11 // pred_region
          _
        $region16: #{step_diffusion_head_forward.4} parent=11 // pred_fallthru
          _
        // Predicated region
        $region17: #{step_diffusion_head_forward.4} parent=11 // pred_check
          %p676 = pneg %p101
        $region18: #{step_diffusion_head_forward.4} parent=11 // pred_check_branch
          %678 = sbr.rel (%p676) target = $region20
        $region19: #{step_diffusion_head_forward.4} parent=11 // pred_region
          _
        $region20: #{step_diffusion_head_forward.4} parent=11 // pred_fallthru
          _
        // Predicated region
        $region21: #{step_diffusion_head_forward.4} parent=11 // pred_check
          %p679 = pneg %p122
        $region22: #{step_diffusion_head_forward.4} parent=11 // pred_check_branch
          %681 = sbr.rel (%p679) target = $region24
        $region23: #{step_diffusion_head_forward.4} parent=11 // pred_region
          _
        $region24: #{step_diffusion_head_forward.4} parent=11 // pred_fallthru
          _
        // Predicated region
        $region25: #{step_diffusion_head_forward.4} parent=11 // pred_check
          %p682 = pneg %p143
        $region26: #{step_diffusion_head_forward.4} parent=11 // pred_check_branch
          %684 = sbr.rel (%p682) target = $region28
        $region27: #{step_diffusion_head_forward.4} parent=11 // pred_region
          _
        $region28: #{step_diffusion_head_forward.4} parent=11 // pred_fallthru
          _
      $region12: #{step_diffusion_head_forward.4} parent=5 // pred_fallthru
        _
      %p685 = scmp.lt.s32.totalorder %s59, 11
      // Predicated region
      $region29: #{step_diffusion_head_forward.4} parent=5 // pred_check
        %p686 = pneg %p685
      $region30: #{step_diffusion_head_forward.4} parent=5 // pred_check_branch
        %688 = sbr.rel (%p686) target = $region32
      $region31: #{step_diffusion_head_forward.4} parent=5 // pred_region
        // Predicated region
        $region33: #{step_diffusion_head_forward.4} parent=31 // pred_check
          %p689 = pneg %p163
        $region34: #{step_diffusion_head_forward.4} parent=31 // pred_check_branch
          %691 = sbr.rel (%p689) target = $region36
        $region35: #{step_diffusion_head_forward.4} parent=31 // pred_region
          %s692 = sand.u32 %s153, 1
          %s693 = scalar_lea.sflag [#allocation4], %s692
          %s694 = sand.u32 %s153, 1
          %s695 = smul.addr %s694, 576
          %s696 = scalar_lea.vmem [#allocation3], %s695
          %698 = vsyncadd %s693, 0
          %s699 = smul.addr %s59, 72
          %s700 = smul.addr %s699, 8
          %s701 = scalar_lea.hbm %s4, %s700
          %s702 = sshll.u32 %s701, 4
          %s703 = int_to_ptr.hbm [resolvable:$true] %s702
          %s704 = sshll.u32 %s696, 4
          %s705 = int_to_ptr.vmem [resolvable:$true] %s704
          %710 = dma.hbm_to_vmem [thread:$0]  %s703, 9216, %s705, %s693, 384, 384, 24
        $region36: #{step_diffusion_head_forward.4} parent=31 // pred_fallthru
          _
        // Predicated region
        $region37: #{step_diffusion_head_forward.4} parent=31 // pred_check
          %p711 = pneg %p189
        $region38: #{step_diffusion_head_forward.4} parent=31 // pred_check_branch
          %713 = sbr.rel (%p711) target = $region40
        $region39: #{step_diffusion_head_forward.4} parent=31 // pred_region
          %s714 = sand.u32 %s59, 1
          %s715 = scalar_lea.sflag [#allocation6], %s714
          %s716 = sand.u32 %s179, 1
          %s717 = smul.addr %s716, 3
          %s718 = scalar_lea.vmem [#allocation5], %s717
          %720 = vsyncadd %s715, 0
          %s721 = smul.addr %s59, 3
          %s722 = scalar_lea.hbm %s5, %s721
          %s724 = sshll.u32 %s722, 4
          %s725 = int_to_ptr.hbm [resolvable:$true] %s724
          %s726 = sshll.u32 %s718, 4
          %s727 = int_to_ptr.vmem [resolvable:$true] %s726
          %729 = dma.hbm_to_vmem [thread:$0]  %s725, 48, %s727, %s715
        $region40: #{step_diffusion_head_forward.4} parent=31 // pred_fallthru
          _
        // Predicated region
        $region41: #{step_diffusion_head_forward.4} parent=31 // pred_check
          %p730 = pneg %p215
        $region42: #{step_diffusion_head_forward.4} parent=31 // pred_check_branch
          %732 = sbr.rel (%p730) target = $region44
        $region43: #{step_diffusion_head_forward.4} parent=31 // pred_region
          %s733 = sand.u32 %s59, 1
          %s734 = scalar_lea.sflag [#allocation6], %s733
          %s735 = sand.u32 %s205, 1
          %s736 = smul.addr %s735, 576
          %s737 = scalar_lea.vmem [#allocation7], %s736
          %739 = vsyncadd %s734, 0
          %s740 = smul.addr %s59, 72
          %s741 = smul.addr %s740, 8
          %s742 = scalar_lea.hbm %s6, %s741
          %s743 = sshll.u32 %s742, 4
          %s744 = int_to_ptr.hbm [resolvable:$true] %s743
          %s745 = sshll.u32 %s737, 4
          %s746 = int_to_ptr.vmem [resolvable:$true] %s745
          %751 = dma.hbm_to_vmem [thread:$0]  %s744, 9216, %s746, %s734, 384, 384, 24
        $region44: #{step_diffusion_head_forward.4} parent=31 // pred_fallthru
          _
        // Predicated region
        $region45: #{step_diffusion_head_forward.4} parent=31 // pred_check
          %p752 = pneg %p241
        $region46: #{step_diffusion_head_forward.4} parent=31 // pred_check_branch
          %754 = sbr.rel (%p752) target = $region48
        $region47: #{step_diffusion_head_forward.4} parent=31 // pred_region
          %s755 = sand.u32 %s59, 1
          %s756 = scalar_lea.sflag [#allocation9], %s755
          %s757 = sand.u32 %s231, 1
          %s758 = smul.addr %s757, 3
          %s759 = scalar_lea.vmem [#allocation8], %s758
          %761 = vsyncadd %s756, 0
          %s762 = smul.addr %s59, 3
          %s763 = scalar_lea.hbm %s7, %s762
          %s765 = sshll.u32 %s763, 4
          %s766 = int_to_ptr.hbm [resolvable:$true] %s765
          %s767 = sshll.u32 %s759, 4
          %s768 = int_to_ptr.vmem [resolvable:$true] %s767
          %770 = dma.hbm_to_vmem [thread:$0]  %s766, 48, %s768, %s756
        $region48: #{step_diffusion_head_forward.4} parent=31 // pred_fallthru
          _
        // Predicated region
        $region49: #{step_diffusion_head_forward.4} parent=31 // pred_check
          %p771 = pneg %p267
        $region50: #{step_diffusion_head_forward.4} parent=31 // pred_check_branch
          %773 = sbr.rel (%p771) target = $region52
        $region51: #{step_diffusion_head_forward.4} parent=31 // pred_region
          %s774 = sand.u32 %s59, 1
          %s775 = scalar_lea.sflag [#allocation9], %s774
          %s776 = sand.u32 %s257, 1
          %s777 = smul.addr %s776, 960
          %s778 = scalar_lea.vmem [#allocation10], %s777
          %780 = vsyncadd %s775, 0
          %s781 = smul.addr %s59, 120
          %s782 = smul.addr %s781, 8
          %s783 = scalar_lea.hbm %s8, %s782
          %s784 = sshll.u32 %s783, 4
          %s785 = int_to_ptr.hbm [resolvable:$true] %s784
          %s786 = sshll.u32 %s778, 4
          %s787 = int_to_ptr.vmem [resolvable:$true] %s786
          %792 = dma.hbm_to_vmem [thread:$0]  %s785, 15360, %s787, %s775, 640, 640, 40
        $region52: #{step_diffusion_head_forward.4} parent=31 // pred_fallthru
          _
        // Predicated region
        $region53: #{step_diffusion_head_forward.4} parent=31 // pred_check
          %p793 = pneg %p293
        $region54: #{step_diffusion_head_forward.4} parent=31 // pred_check_branch
          %795 = sbr.rel (%p793) target = $region56
        $region55: #{step_diffusion_head_forward.4} parent=31 // pred_region
          %s796 = sand.u32 %s59, 1
          %s797 = scalar_lea.sflag [#allocation12], %s796
          %s798 = sand.u32 %s283, 1
          %s799 = smul.addr %s798, 5
          %s800 = scalar_lea.vmem [#allocation11], %s799
          %802 = vsyncadd %s797, 0
          %s803 = smul.addr %s59, 5
          %s804 = scalar_lea.hbm %s9, %s803
          %s806 = sshll.u32 %s804, 4
          %s807 = int_to_ptr.hbm [resolvable:$true] %s806
          %s808 = sshll.u32 %s800, 4
          %s809 = int_to_ptr.vmem [resolvable:$true] %s808
          %811 = dma.hbm_to_vmem [thread:$0]  %s807, 80, %s809, %s797
        $region56: #{step_diffusion_head_forward.4} parent=31 // pred_fallthru
          _
        // Predicated region
        $region57: #{step_diffusion_head_forward.4} parent=31 // pred_check
          %p812 = pneg %p319
        $region58: #{step_diffusion_head_forward.4} parent=31 // pred_check_branch
          %814 = sbr.rel (%p812) target = $region60
        $region59: #{step_diffusion_head_forward.4} parent=31 // pred_region
          %s815 = sand.u32 %s59, 1
          %s816 = scalar_lea.sflag [#allocation12], %s815
          %s817 = sand.u32 %s309, 1
          %s818 = smul.addr %s817, 384
          %s819 = scalar_lea.vmem [#allocation13], %s818
          %821 = vsyncadd %s816, 0
          %s822 = smul.addr %s59, 48
          %s823 = smul.addr %s822, 8
          %s824 = scalar_lea.hbm %s10, %s823
          %s825 = sshll.u32 %s824, 4
          %s826 = int_to_ptr.hbm [resolvable:$true] %s825
          %s827 = sshll.u32 %s819, 4
          %s828 = int_to_ptr.vmem [resolvable:$true] %s827
          %833 = dma.hbm_to_vmem [thread:$0]  %s826, 6144, %s828, %s816, 256, 256, 16
        $region60: #{step_diffusion_head_forward.4} parent=31 // pred_fallthru
          _
        // Predicated region
        $region61: #{step_diffusion_head_forward.4} parent=31 // pred_check
          %p834 = pneg %p345
        $region62: #{step_diffusion_head_forward.4} parent=31 // pred_check_branch
          %836 = sbr.rel (%p834) target = $region64
        $region63: #{step_diffusion_head_forward.4} parent=31 // pred_region
          %s837 = sand.u32 %s59, 1
          %s838 = scalar_lea.sflag [#allocation15], %s837
          %s839 = sand.u32 %s335, 1
          %s840 = smul.addr %s839, 2
          %s841 = scalar_lea.vmem [#allocation14], %s840
          %843 = vsyncadd %s838, 0
          %s844 = smul.addr %s59, 2
          %s845 = scalar_lea.hbm %s11, %s844
          %s847 = sshll.u32 %s845, 4
          %s848 = int_to_ptr.hbm [resolvable:$true] %s847
          %s849 = sshll.u32 %s841, 4
          %s850 = int_to_ptr.vmem [resolvable:$true] %s849
          %852 = dma.hbm_to_vmem [thread:$0]  %s848, 32, %s850, %s838
        $region64: #{step_diffusion_head_forward.4} parent=31 // pred_fallthru
          _
        // Predicated region
        $region65: #{step_diffusion_head_forward.4} parent=31 // pred_check
          %p853 = pneg %p371
        $region66: #{step_diffusion_head_forward.4} parent=31 // pred_check_branch
          %855 = sbr.rel (%p853) target = $region68
        $region67: #{step_diffusion_head_forward.4} parent=31 // pred_region
          %s856 = sand.u32 %s59, 1
          %s857 = scalar_lea.sflag [#allocation15], %s856
          %s858 = sand.u32 %s361, 1
          %s859 = smul.addr %s858, 2
          %s860 = scalar_lea.vmem [#allocation16], %s859
          %862 = vsyncadd %s857, 0
          %s863 = smul.addr %s59, 2
          %s864 = scalar_lea.hbm %s12, %s863
          %s866 = sshll.u32 %s864, 4
          %s867 = int_to_ptr.hbm [resolvable:$true] %s866
          %s868 = sshll.u32 %s860, 4
          %s869 = int_to_ptr.vmem [resolvable:$true] %s868
          %871 = dma.hbm_to_vmem [thread:$0]  %s867, 32, %s869, %s857
        $region68: #{step_diffusion_head_forward.4} parent=31 // pred_fallthru
          _
        // Predicated region
        $region69: #{step_diffusion_head_forward.4} parent=31 // pred_check
          %p872 = pneg %p397
        $region70: #{step_diffusion_head_forward.4} parent=31 // pred_check_branch
          %874 = sbr.rel (%p872) target = $region72
        $region71: #{step_diffusion_head_forward.4} parent=31 // pred_region
          %s875 = sand.u32 %s59, 1
          %s876 = scalar_lea.sflag [#allocation18], %s875
          %s877 = sand.u32 %s387, 1
          %s878 = smul.addr %s877, 2
          %s879 = scalar_lea.vmem [#allocation17], %s878
          %881 = vsyncadd %s876, 0
          %s882 = smul.addr %s59, 2
          %s883 = scalar_lea.hbm %s13, %s882
          %s885 = sshll.u32 %s883, 4
          %s886 = int_to_ptr.hbm [resolvable:$true] %s885
          %s887 = sshll.u32 %s879, 4
          %s888 = int_to_ptr.vmem [resolvable:$true] %s887
          %890 = dma.hbm_to_vmem [thread:$0]  %s886, 32, %s888, %s876
        $region72: #{step_diffusion_head_forward.4} parent=31 // pred_fallthru
          _
        // Predicated region
        $region73: #{step_diffusion_head_forward.4} parent=31 // pred_check
          %p891 = pneg %p423
        $region74: #{step_diffusion_head_forward.4} parent=31 // pred_check_branch
          %893 = sbr.rel (%p891) target = $region76
        $region75: #{step_diffusion_head_forward.4} parent=31 // pred_region
          %s894 = sand.u32 %s59, 1
          %s895 = scalar_lea.sflag [#allocation18], %s894
          %s896 = sand.u32 %s413, 1
          %s897 = smul.addr %s896, 2
          %s898 = scalar_lea.vmem [#allocation19], %s897
          %900 = vsyncadd %s895, 0
          %s901 = smul.addr %s59, 2
          %s902 = scalar_lea.hbm %s14, %s901
          %s904 = sshll.u32 %s902, 4
          %s905 = int_to_ptr.hbm [resolvable:$true] %s904
          %s906 = sshll.u32 %s898, 4
          %s907 = int_to_ptr.vmem [resolvable:$true] %s906
          %909 = dma.hbm_to_vmem [thread:$0]  %s905, 32, %s907, %s895
        $region76: #{step_diffusion_head_forward.4} parent=31 // pred_fallthru
          _
        // Predicated region
        $region77: #{step_diffusion_head_forward.4} parent=31 // pred_check
          %p910 = pneg %p449
        $region78: #{step_diffusion_head_forward.4} parent=31 // pred_check_branch
          %912 = sbr.rel (%p910) target = $region80
        $region79: #{step_diffusion_head_forward.4} parent=31 // pred_region
          %s913 = sand.u32 %s59, 1
          %s914 = scalar_lea.sflag [#allocation21], %s913
          %s915 = sand.u32 %s439, 1
          %s916 = smul.addr %s915, 576
          %s917 = scalar_lea.vmem [#allocation20], %s916
          %919 = vsyncadd %s914, 0
          %s920 = smul.addr %s59, 72
          %s921 = smul.addr %s920, 8
          %s922 = scalar_lea.hbm %s15, %s921
          %s923 = sshll.u32 %s922, 4
          %s924 = int_to_ptr.hbm [resolvable:$true] %s923
          %s925 = sshll.u32 %s917, 4
          %s926 = int_to_ptr.vmem [resolvable:$true] %s925
          %931 = dma.hbm_to_vmem [thread:$0]  %s924, 9216, %s926, %s914, 384, 384, 24
        $region80: #{step_diffusion_head_forward.4} parent=31 // pred_fallthru
          _
        // Predicated region
        $region81: #{step_diffusion_head_forward.4} parent=31 // pred_check
          %p932 = pneg %p475
        $region82: #{step_diffusion_head_forward.4} parent=31 // pred_check_branch
          %934 = sbr.rel (%p932) target = $region84
        $region83: #{step_diffusion_head_forward.4} parent=31 // pred_region
          %s935 = sand.u32 %s59, 1
          %s936 = scalar_lea.sflag [#allocation21], %s935
          %s937 = sand.u32 %s465, 1
          %s938 = smul.addr %s937, 3
          %s939 = scalar_lea.vmem [#allocation22], %s938
          %941 = vsyncadd %s936, 0
          %s942 = smul.addr %s59, 3
          %s943 = scalar_lea.hbm %s16, %s942
          %s945 = sshll.u32 %s943, 4
          %s946 = int_to_ptr.hbm [resolvable:$true] %s945
          %s947 = sshll.u32 %s939, 4
          %s948 = int_to_ptr.vmem [resolvable:$true] %s947
          %950 = dma.hbm_to_vmem [thread:$0]  %s946, 48, %s948, %s936
        $region84: #{step_diffusion_head_forward.4} parent=31 // pred_fallthru
          _
        // Predicated region
        $region85: #{step_diffusion_head_forward.4} parent=31 // pred_check
          %p951 = pneg %p501
        $region86: #{step_diffusion_head_forward.4} parent=31 // pred_check_branch
          %953 = sbr.rel (%p951) target = $region88
        $region87: #{step_diffusion_head_forward.4} parent=31 // pred_region
          %s954 = sand.u32 %s59, 1
          %s955 = scalar_lea.sflag [#allocation24], %s954
          %s956 = sand.u32 %s491, 1
          %s957 = smul.addr %s956, 384
          %s958 = scalar_lea.vmem [#allocation23], %s957
          %960 = vsyncadd %s955, 0
          %s961 = smul.addr %s59, 48
          %s962 = smul.addr %s961, 8
          %s963 = scalar_lea.hbm %s17, %s962
          %s964 = sshll.u32 %s963, 4
          %s965 = int_to_ptr.hbm [resolvable:$true] %s964
          %s966 = sshll.u32 %s958, 4
          %s967 = int_to_ptr.vmem [resolvable:$true] %s966
          %972 = dma.hbm_to_vmem [thread:$0]  %s965, 6144, %s967, %s955, 256, 256, 16
        $region88: #{step_diffusion_head_forward.4} parent=31 // pred_fallthru
          _
        // Predicated region
        $region89: #{step_diffusion_head_forward.4} parent=31 // pred_check
          %p973 = pneg %p527
        $region90: #{step_diffusion_head_forward.4} parent=31 // pred_check_branch
          %975 = sbr.rel (%p973) target = $region92
        $region91: #{step_diffusion_head_forward.4} parent=31 // pred_region
          %s976 = sand.u32 %s59, 1
          %s977 = scalar_lea.sflag [#allocation24], %s976
          %s978 = sand.u32 %s517, 1
          %s979 = smul.addr %s978, 2
          %s980 = scalar_lea.vmem [#allocation25], %s979
          %982 = vsyncadd %s977, 0
          %s983 = smul.addr %s59, 2
          %s984 = scalar_lea.hbm %s18, %s983
          %s986 = sshll.u32 %s984, 4
          %s987 = int_to_ptr.hbm [resolvable:$true] %s986
          %s988 = sshll.u32 %s980, 4
          %s989 = int_to_ptr.vmem [resolvable:$true] %s988
          %991 = dma.hbm_to_vmem [thread:$0]  %s987, 32, %s989, %s977
        $region92: #{step_diffusion_head_forward.4} parent=31 // pred_fallthru
          _
        // Predicated region
        $region93: #{step_diffusion_head_forward.4} parent=31 // pred_check
          %p992 = pneg %p553
        $region94: #{step_diffusion_head_forward.4} parent=31 // pred_check_branch
          %994 = sbr.rel (%p992) target = $region96
        $region95: #{step_diffusion_head_forward.4} parent=31 // pred_region
          %s995 = sand.u32 %s59, 1
          %s996 = scalar_lea.sflag [#allocation27], %s995
          %s997 = sand.u32 %s543, 1
          %s998 = smul.addr %s997, 384
          %s999 = scalar_lea.vmem [#allocation26], %s998
          %1001 = vsyncadd %s996, 0
          %s1002 = smul.addr %s59, 48
          %s1003 = smul.addr %s1002, 8
          %s1004 = scalar_lea.hbm %s19, %s1003
          %s1005 = sshll.u32 %s1004, 4
          %s1006 = int_to_ptr.hbm [resolvable:$true] %s1005
          %s1007 = sshll.u32 %s999, 4
          %s1008 = int_to_ptr.vmem [resolvable:$true] %s1007
          %1013 = dma.hbm_to_vmem [thread:$0]  %s1006, 6144, %s1008, %s996, 256, 256, 16
        $region96: #{step_diffusion_head_forward.4} parent=31 // pred_fallthru
          _
        // Predicated region
        $region97: #{step_diffusion_head_forward.4} parent=31 // pred_check
          %p1014 = pneg %p579
        $region98: #{step_diffusion_head_forward.4} parent=31 // pred_check_branch
          %1016 = sbr.rel (%p1014) target = $region100
        $region99: #{step_diffusion_head_forward.4} parent=31 // pred_region
          %s1017 = sand.u32 %s59, 1
          %s1018 = scalar_lea.sflag [#allocation27], %s1017
          %s1019 = sand.u32 %s569, 1
          %s1020 = smul.addr %s1019, 2
          %s1021 = scalar_lea.vmem [#allocation28], %s1020
          %1023 = vsyncadd %s1018, 0
          %s1024 = smul.addr %s59, 2
          %s1025 = scalar_lea.hbm %s20, %s1024
          %s1027 = sshll.u32 %s1025, 4
          %s1028 = int_to_ptr.hbm [resolvable:$true] %s1027
          %s1029 = sshll.u32 %s1021, 4
          %s1030 = int_to_ptr.vmem [resolvable:$true] %s1029
          %1032 = dma.hbm_to_vmem [thread:$0]  %s1028, 32, %s1030, %s1018
        $region100: #{step_diffusion_head_forward.4} parent=31 // pred_fallthru
          _
        // Predicated region
        $region101: #{step_diffusion_head_forward.4} parent=31 // pred_check
          %p1033 = pneg %p605
        $region102: #{step_diffusion_head_forward.4} parent=31 // pred_check_branch
          %1035 = sbr.rel (%p1033) target = $region104
        $region103: #{step_diffusion_head_forward.4} parent=31 // pred_region
          %s1036 = sand.u32 %s59, 1
          %s1037 = scalar_lea.sflag [#allocation30], %s1036
          %s1038 = sand.u32 %s595, 1
          %s1039 = smul.addr %s1038, 2
          %s1040 = scalar_lea.vmem [#allocation29], %s1039
          %1042 = vsyncadd %s1037, 0
          %s1043 = smul.addr %s59, 2
          %s1044 = scalar_lea.hbm %s21, %s1043
          %s1046 = sshll.u32 %s1044, 4
          %s1047 = int_to_ptr.hbm [resolvable:$true] %s1046
          %s1048 = sshll.u32 %s1040, 4
          %s1049 = int_to_ptr.vmem [resolvable:$true] %s1048
          %1051 = dma.hbm_to_vmem [thread:$0]  %s1047, 32, %s1049, %s1037
        $region104: #{step_diffusion_head_forward.4} parent=31 // pred_fallthru
          _
        // Predicated region
        $region105: #{step_diffusion_head_forward.4} parent=31 // pred_check
          %p1052 = pneg %p631
        $region106: #{step_diffusion_head_forward.4} parent=31 // pred_check_branch
          %1054 = sbr.rel (%p1052) target = $region108
        $region107: #{step_diffusion_head_forward.4} parent=31 // pred_region
          %s1055 = sand.u32 %s59, 1
          %s1056 = scalar_lea.sflag [#allocation30], %s1055
          %s1057 = sand.u32 %s621, 1
          %s1058 = smul.addr %s1057, 2
          %s1059 = scalar_lea.vmem [#allocation31], %s1058
          %1061 = vsyncadd %s1056, 0
          %s1062 = smul.addr %s59, 2
          %s1063 = scalar_lea.hbm %s22, %s1062
          %s1065 = sshll.u32 %s1063, 4
          %s1066 = int_to_ptr.hbm [resolvable:$true] %s1065
          %s1067 = sshll.u32 %s1059, 4
          %s1068 = int_to_ptr.vmem [resolvable:$true] %s1067
          %1070 = dma.hbm_to_vmem [thread:$0]  %s1066, 32, %s1068, %s1056
        $region108: #{step_diffusion_head_forward.4} parent=31 // pred_fallthru
          _
      $region32: #{step_diffusion_head_forward.4} parent=5 // pred_fallthru
        _
      %p1071 = scmp.le.s32.totalorder 1, %s59
      %p1072 = scmp.lt.s32.totalorder %s59, 12
      %p1073 = pnand %p1071, %p1072
      %p1074 = pneg %p1073
      // Predicated region
      $region109: #{step_diffusion_head_forward.4} parent=5 // pred_check
        _
      $region110: #{step_diffusion_head_forward.4} parent=5 // pred_check_branch
        %1076 = sbr.rel (%p1073) target = $region112
      $region111: #{step_diffusion_head_forward.4} parent=5 // pred_region
        %s1077 = ssub.s32 %s59, 1
        %s1078 = sand.u32 %s156, 1
        %s1079 = scalar_lea.sflag [#allocation4], %s1078
        %s1080 = sand.u32 %s156, 1
        %s1081 = smul.addr %s1080, 576
        %s1082 = scalar_lea.vmem [#allocation3], %s1081
        // Predicated region
        $region113: #{step_diffusion_head_forward.4} parent=111 // pred_check
          %p1083 = pneg %p169
        $region114: #{step_diffusion_head_forward.4} parent=111 // pred_check_branch
          %1085 = sbr.rel (%p1083) target = $region116
        $region115: #{step_diffusion_head_forward.4} parent=111 // pred_region
          %1087 = dma.done %s1079, 9216
        $region116: #{step_diffusion_head_forward.4} parent=111 // pred_fallthru
          _
        %s1088 = sand.u32 %s64, 1
        %s1089 = scalar_lea.sflag [#allocation6], %s1088
        %s1090 = sand.u32 %s182, 1
        %s1091 = smul.addr %s1090, 3
        %s1092 = scalar_lea.vmem [#allocation5], %s1091
        // Predicated region
        $region117: #{step_diffusion_head_forward.4} parent=111 // pred_check
          %p1093 = pneg %p195
        $region118: #{step_diffusion_head_forward.4} parent=111 // pred_check_branch
          %1095 = sbr.rel (%p1093) target = $region120
        $region119: #{step_diffusion_head_forward.4} parent=111 // pred_region
          %1097 = dma.done %s1089, 48
        $region120: #{step_diffusion_head_forward.4} parent=111 // pred_fallthru
          _
        %s1098 = sand.u32 %s64, 1
        %s1099 = scalar_lea.sflag [#allocation6], %s1098
        %s1100 = sand.u32 %s208, 1
        %s1101 = smul.addr %s1100, 576
        %s1102 = scalar_lea.vmem [#allocation7], %s1101
        // Predicated region
        $region121: #{step_diffusion_head_forward.4} parent=111 // pred_check
          %p1103 = pneg %p221
        $region122: #{step_diffusion_head_forward.4} parent=111 // pred_check_branch
          %1105 = sbr.rel (%p1103) target = $region124
        $region123: #{step_diffusion_head_forward.4} parent=111 // pred_region
          %1107 = dma.done %s1099, 9216
        $region124: #{step_diffusion_head_forward.4} parent=111 // pred_fallthru
          _
        %s1108 = sand.u32 %s64, 1
        %s1109 = scalar_lea.sflag [#allocation9], %s1108
        %s1110 = sand.u32 %s234, 1
        %s1111 = smul.addr %s1110, 3
        %s1112 = scalar_lea.vmem [#allocation8], %s1111
        // Predicated region
        $region125: #{step_diffusion_head_forward.4} parent=111 // pred_check
          %p1113 = pneg %p247
        $region126: #{step_diffusion_head_forward.4} parent=111 // pred_check_branch
          %1115 = sbr.rel (%p1113) target = $region128
        $region127: #{step_diffusion_head_forward.4} parent=111 // pred_region
          %1117 = dma.done %s1109, 48
        $region128: #{step_diffusion_head_forward.4} parent=111 // pred_fallthru
          _
        %s1118 = sand.u32 %s64, 1
        %s1119 = scalar_lea.sflag [#allocation9], %s1118
        %s1120 = sand.u32 %s260, 1
        %s1121 = smul.addr %s1120, 960
        %s1122 = scalar_lea.vmem [#allocation10], %s1121
        // Predicated region
        $region129: #{step_diffusion_head_forward.4} parent=111 // pred_check
          %p1123 = pneg %p273
        $region130: #{step_diffusion_head_forward.4} parent=111 // pred_check_branch
          %1125 = sbr.rel (%p1123) target = $region132
        $region131: #{step_diffusion_head_forward.4} parent=111 // pred_region
          %1127 = dma.done %s1119, 15360
        $region132: #{step_diffusion_head_forward.4} parent=111 // pred_fallthru
          _
        %s1128 = sand.u32 %s64, 1
        %s1129 = scalar_lea.sflag [#allocation12], %s1128
        %s1130 = sand.u32 %s286, 1
        %s1131 = smul.addr %s1130, 5
        %s1132 = scalar_lea.vmem [#allocation11], %s1131
        // Predicated region
        $region133: #{step_diffusion_head_forward.4} parent=111 // pred_check
          %p1133 = pneg %p299
        $region134: #{step_diffusion_head_forward.4} parent=111 // pred_check_branch
          %1135 = sbr.rel (%p1133) target = $region136
        $region135: #{step_diffusion_head_forward.4} parent=111 // pred_region
          %1137 = dma.done %s1129, 80
        $region136: #{step_diffusion_head_forward.4} parent=111 // pred_fallthru
          _
        %s1138 = sand.u32 %s64, 1
        %s1139 = scalar_lea.sflag [#allocation12], %s1138
        %s1140 = sand.u32 %s312, 1
        %s1141 = smul.addr %s1140, 384
        %s1142 = scalar_lea.vmem [#allocation13], %s1141
        // Predicated region
        $region137: #{step_diffusion_head_forward.4} parent=111 // pred_check
          %p1143 = pneg %p325
        $region138: #{step_diffusion_head_forward.4} parent=111 // pred_check_branch
          %1145 = sbr.rel (%p1143) target = $region140
        $region139: #{step_diffusion_head_forward.4} parent=111 // pred_region
          %1147 = dma.done %s1139, 6144
        $region140: #{step_diffusion_head_forward.4} parent=111 // pred_fallthru
          _
        %s1148 = sand.u32 %s64, 1
        %s1149 = scalar_lea.sflag [#allocation15], %s1148
        %s1150 = sand.u32 %s338, 1
        %s1151 = smul.addr %s1150, 2
        %s1152 = scalar_lea.vmem [#allocation14], %s1151
        // Predicated region
        $region141: #{step_diffusion_head_forward.4} parent=111 // pred_check
          %p1153 = pneg %p351
        $region142: #{step_diffusion_head_forward.4} parent=111 // pred_check_branch
          %1155 = sbr.rel (%p1153) target = $region144
        $region143: #{step_diffusion_head_forward.4} parent=111 // pred_region
          %1157 = dma.done %s1149, 32
        $region144: #{step_diffusion_head_forward.4} parent=111 // pred_fallthru
          _
        %s1158 = sand.u32 %s64, 1
        %s1159 = scalar_lea.sflag [#allocation15], %s1158
        %s1160 = sand.u32 %s364, 1
        %s1161 = smul.addr %s1160, 2
        %s1162 = scalar_lea.vmem [#allocation16], %s1161
        // Predicated region
        $region145: #{step_diffusion_head_forward.4} parent=111 // pred_check
          %p1163 = pneg %p377
        $region146: #{step_diffusion_head_forward.4} parent=111 // pred_check_branch
          %1165 = sbr.rel (%p1163) target = $region148
        $region147: #{step_diffusion_head_forward.4} parent=111 // pred_region
          %1167 = dma.done %s1159, 32
        $region148: #{step_diffusion_head_forward.4} parent=111 // pred_fallthru
          _
        %s1168 = sand.u32 %s64, 1
        %s1169 = scalar_lea.sflag [#allocation18], %s1168
        %s1170 = sand.u32 %s390, 1
        %s1171 = smul.addr %s1170, 2
        %s1172 = scalar_lea.vmem [#allocation17], %s1171
        // Predicated region
        $region149: #{step_diffusion_head_forward.4} parent=111 // pred_check
          %p1173 = pneg %p403
        $region150: #{step_diffusion_head_forward.4} parent=111 // pred_check_branch
          %1175 = sbr.rel (%p1173) target = $region152
        $region151: #{step_diffusion_head_forward.4} parent=111 // pred_region
          %1177 = dma.done %s1169, 32
        $region152: #{step_diffusion_head_forward.4} parent=111 // pred_fallthru
          _
        %s1178 = sand.u32 %s64, 1
        %s1179 = scalar_lea.sflag [#allocation18], %s1178
        %s1180 = sand.u32 %s416, 1
        %s1181 = smul.addr %s1180, 2
        %s1182 = scalar_lea.vmem [#allocation19], %s1181
        // Predicated region
        $region153: #{step_diffusion_head_forward.4} parent=111 // pred_check
          %p1183 = pneg %p429
        $region154: #{step_diffusion_head_forward.4} parent=111 // pred_check_branch
          %1185 = sbr.rel (%p1183) target = $region156
        $region155: #{step_diffusion_head_forward.4} parent=111 // pred_region
          %1187 = dma.done %s1179, 32
        $region156: #{step_diffusion_head_forward.4} parent=111 // pred_fallthru
          _
        %s1188 = sand.u32 %s64, 1
        %s1189 = scalar_lea.sflag [#allocation21], %s1188
        %s1190 = sand.u32 %s442, 1
        %s1191 = smul.addr %s1190, 576
        %s1192 = scalar_lea.vmem [#allocation20], %s1191
        // Predicated region
        $region157: #{step_diffusion_head_forward.4} parent=111 // pred_check
          %p1193 = pneg %p455
        $region158: #{step_diffusion_head_forward.4} parent=111 // pred_check_branch
          %1195 = sbr.rel (%p1193) target = $region160
        $region159: #{step_diffusion_head_forward.4} parent=111 // pred_region
          %1197 = dma.done %s1189, 9216
        $region160: #{step_diffusion_head_forward.4} parent=111 // pred_fallthru
          _
        %s1198 = sand.u32 %s64, 1
        %s1199 = scalar_lea.sflag [#allocation21], %s1198
        %s1200 = sand.u32 %s468, 1
        %s1201 = smul.addr %s1200, 3
        %s1202 = scalar_lea.vmem [#allocation22], %s1201
        // Predicated region
        $region161: #{step_diffusion_head_forward.4} parent=111 // pred_check
          %p1203 = pneg %p481
        $region162: #{step_diffusion_head_forward.4} parent=111 // pred_check_branch
          %1205 = sbr.rel (%p1203) target = $region164
        $region163: #{step_diffusion_head_forward.4} parent=111 // pred_region
          %1207 = dma.done %s1199, 48
        $region164: #{step_diffusion_head_forward.4} parent=111 // pred_fallthru
          _
        %s1208 = sand.u32 %s64, 1
        %s1209 = scalar_lea.sflag [#allocation24], %s1208
        %s1210 = sand.u32 %s494, 1
        %s1211 = smul.addr %s1210, 384
        %s1212 = scalar_lea.vmem [#allocation23], %s1211
        // Predicated region
        $region165: #{step_diffusion_head_forward.4} parent=111 // pred_check
          %p1213 = pneg %p507
        $region166: #{step_diffusion_head_forward.4} parent=111 // pred_check_branch
          %1215 = sbr.rel (%p1213) target = $region168
        $region167: #{step_diffusion_head_forward.4} parent=111 // pred_region
          %1217 = dma.done %s1209, 6144
        $region168: #{step_diffusion_head_forward.4} parent=111 // pred_fallthru
          _
        %s1218 = sand.u32 %s64, 1
        %s1219 = scalar_lea.sflag [#allocation24], %s1218
        %s1220 = sand.u32 %s520, 1
        %s1221 = smul.addr %s1220, 2
        %s1222 = scalar_lea.vmem [#allocation25], %s1221
        // Predicated region
        $region169: #{step_diffusion_head_forward.4} parent=111 // pred_check
          %p1223 = pneg %p533
        $region170: #{step_diffusion_head_forward.4} parent=111 // pred_check_branch
          %1225 = sbr.rel (%p1223) target = $region172
        $region171: #{step_diffusion_head_forward.4} parent=111 // pred_region
          %1227 = dma.done %s1219, 32
        $region172: #{step_diffusion_head_forward.4} parent=111 // pred_fallthru
          _
        %s1228 = sand.u32 %s64, 1
        %s1229 = scalar_lea.sflag [#allocation27], %s1228
        %s1230 = sand.u32 %s546, 1
        %s1231 = smul.addr %s1230, 384
        %s1232 = scalar_lea.vmem [#allocation26], %s1231
        // Predicated region
        $region173: #{step_diffusion_head_forward.4} parent=111 // pred_check
          %p1233 = pneg %p559
        $region174: #{step_diffusion_head_forward.4} parent=111 // pred_check_branch
          %1235 = sbr.rel (%p1233) target = $region176
        $region175: #{step_diffusion_head_forward.4} parent=111 // pred_region
          %1237 = dma.done %s1229, 6144
        $region176: #{step_diffusion_head_forward.4} parent=111 // pred_fallthru
          _
        %s1238 = sand.u32 %s64, 1
        %s1239 = scalar_lea.sflag [#allocation27], %s1238
        %s1240 = sand.u32 %s572, 1
        %s1241 = smul.addr %s1240, 2
        %s1242 = scalar_lea.vmem [#allocation28], %s1241
        // Predicated region
        $region177: #{step_diffusion_head_forward.4} parent=111 // pred_check
          %p1243 = pneg %p585
        $region178: #{step_diffusion_head_forward.4} parent=111 // pred_check_branch
          %1245 = sbr.rel (%p1243) target = $region180
        $region179: #{step_diffusion_head_forward.4} parent=111 // pred_region
          %1247 = dma.done %s1239, 32
        $region180: #{step_diffusion_head_forward.4} parent=111 // pred_fallthru
          _
        %s1248 = sand.u32 %s64, 1
        %s1249 = scalar_lea.sflag [#allocation30], %s1248
        %s1250 = sand.u32 %s598, 1
        %s1251 = smul.addr %s1250, 2
        %s1252 = scalar_lea.vmem [#allocation29], %s1251
        // Predicated region
        $region181: #{step_diffusion_head_forward.4} parent=111 // pred_check
          %p1253 = pneg %p611
        $region182: #{step_diffusion_head_forward.4} parent=111 // pred_check_branch
          %1255 = sbr.rel (%p1253) target = $region184
        $region183: #{step_diffusion_head_forward.4} parent=111 // pred_region
          %1257 = dma.done %s1249, 32
        $region184: #{step_diffusion_head_forward.4} parent=111 // pred_fallthru
          _
        %s1258 = sand.u32 %s64, 1
        %s1259 = scalar_lea.sflag [#allocation30], %s1258
        %s1260 = sand.u32 %s624, 1
        %s1261 = smul.addr %s1260, 2
        %s1262 = scalar_lea.vmem [#allocation31], %s1261
        // Predicated region
        $region185: #{step_diffusion_head_forward.4} parent=111 // pred_check
          %p1263 = pneg %p637
        $region186: #{step_diffusion_head_forward.4} parent=111 // pred_check_branch
          %1265 = sbr.rel (%p1263) target = $region188
        $region187: #{step_diffusion_head_forward.4} parent=111 // pred_region
          %1267 = dma.done %s1259, 32
        $region188: #{step_diffusion_head_forward.4} parent=111 // pred_fallthru
          _
        %p1268 = pneg %p80
        %p1269 = pneg %p77
        %p1270 = pneg %p101
        %p1271 = pneg %p98
        %p1272 = pneg %p122
        %p1273 = pneg %p119
        %p1274 = pneg %p143
        %p1275 = pneg %p140
        %s1276 = sand.u32 %s156, 1
        %s1277 = scalar_lea.sflag [#allocation4], %s1276
        %s1278 = sand.u32 %s156, 1
        %s1279 = smul.addr %s1278, 576
        %s1280 = scalar_lea.vmem [#allocation3], %s1279
        %p1281 = pneg %p169
        %p1282 = pneg %p166
        %s1283 = sand.u32 %s64, 1
        %s1284 = scalar_lea.sflag [#allocation6], %s1283
        %s1285 = sand.u32 %s182, 1
        %s1286 = smul.addr %s1285, 3
        %s1287 = scalar_lea.vmem [#allocation5], %s1286
        %p1288 = pneg %p195
        %p1289 = pneg %p192
        %s1290 = sand.u32 %s64, 1
        %s1291 = scalar_lea.sflag [#allocation6], %s1290
        %s1292 = sand.u32 %s208, 1
        %s1293 = smul.addr %s1292, 576
        %s1294 = scalar_lea.vmem [#allocation7], %s1293
        %p1295 = pneg %p221
        %p1296 = pneg %p218
        %s1297 = sand.u32 %s64, 1
        %s1298 = scalar_lea.sflag [#allocation9], %s1297
        %s1299 = sand.u32 %s234, 1
        %s1300 = smul.addr %s1299, 3
        %s1301 = scalar_lea.vmem [#allocation8], %s1300
        %p1302 = pneg %p247
        %p1303 = pneg %p244
        %s1304 = sand.u32 %s64, 1
        %s1305 = scalar_lea.sflag [#allocation9], %s1304
        %s1306 = sand.u32 %s260, 1
        %s1307 = smul.addr %s1306, 960
        %s1308 = scalar_lea.vmem [#allocation10], %s1307
        %p1309 = pneg %p273
        %p1310 = pneg %p270
        %s1311 = sand.u32 %s64, 1
        %s1312 = scalar_lea.sflag [#allocation12], %s1311
        %s1313 = sand.u32 %s286, 1
        %s1314 = smul.addr %s1313, 5
        %s1315 = scalar_lea.vmem [#allocation11], %s1314
        %p1316 = pneg %p299
        %p1317 = pneg %p296
        %s1318 = sand.u32 %s64, 1
        %s1319 = scalar_lea.sflag [#allocation12], %s1318
        %s1320 = sand.u32 %s312, 1
        %s1321 = smul.addr %s1320, 384
        %s1322 = scalar_lea.vmem [#allocation13], %s1321
        %p1323 = pneg %p325
        %p1324 = pneg %p322
        %s1325 = sand.u32 %s64, 1
        %s1326 = scalar_lea.sflag [#allocation15], %s1325
        %s1327 = sand.u32 %s338, 1
        %s1328 = smul.addr %s1327, 2
        %s1329 = scalar_lea.vmem [#allocation14], %s1328
        %p1330 = pneg %p351
        %p1331 = pneg %p348
        %s1332 = sand.u32 %s64, 1
        %s1333 = scalar_lea.sflag [#allocation15], %s1332
        %s1334 = sand.u32 %s364, 1
        %s1335 = smul.addr %s1334, 2
        %s1336 = scalar_lea.vmem [#allocation16], %s1335
        %p1337 = pneg %p377
        %p1338 = pneg %p374
        %s1339 = sand.u32 %s64, 1
        %s1340 = scalar_lea.sflag [#allocation18], %s1339
        %s1341 = sand.u32 %s390, 1
        %s1342 = smul.addr %s1341, 2
        %s1343 = scalar_lea.vmem [#allocation17], %s1342
        %p1344 = pneg %p403
        %p1345 = pneg %p400
        %s1346 = sand.u32 %s64, 1
        %s1347 = scalar_lea.sflag [#allocation18], %s1346
        %s1348 = sand.u32 %s416, 1
        %s1349 = smul.addr %s1348, 2
        %s1350 = scalar_lea.vmem [#allocation19], %s1349
        %p1351 = pneg %p429
        %p1352 = pneg %p426
        %s1353 = sand.u32 %s64, 1
        %s1354 = scalar_lea.sflag [#allocation21], %s1353
        %s1355 = sand.u32 %s442, 1
        %s1356 = smul.addr %s1355, 576
        %s1357 = scalar_lea.vmem [#allocation20], %s1356
        %p1358 = pneg %p455
        %p1359 = pneg %p452
        %s1360 = sand.u32 %s64, 1
        %s1361 = scalar_lea.sflag [#allocation21], %s1360
        %s1362 = sand.u32 %s468, 1
        %s1363 = smul.addr %s1362, 3
        %s1364 = scalar_lea.vmem [#allocation22], %s1363
        %p1365 = pneg %p481
        %p1366 = pneg %p478
        %s1367 = sand.u32 %s64, 1
        %s1368 = scalar_lea.sflag [#allocation24], %s1367
        %s1369 = sand.u32 %s494, 1
        %s1370 = smul.addr %s1369, 384
        %s1371 = scalar_lea.vmem [#allocation23], %s1370
        %p1372 = pneg %p507
        %p1373 = pneg %p504
        %s1374 = sand.u32 %s64, 1
        %s1375 = scalar_lea.sflag [#allocation24], %s1374
        %s1376 = sand.u32 %s520, 1
        %s1377 = smul.addr %s1376, 2
        %s1378 = scalar_lea.vmem [#allocation25], %s1377
        %p1379 = pneg %p533
        %p1380 = pneg %p530
        %s1381 = sand.u32 %s64, 1
        %s1382 = scalar_lea.sflag [#allocation27], %s1381
        %s1383 = sand.u32 %s546, 1
        %s1384 = smul.addr %s1383, 384
        %s1385 = scalar_lea.vmem [#allocation26], %s1384
        %p1386 = pneg %p559
        %p1387 = pneg %p556
        %s1388 = sand.u32 %s64, 1
        %s1389 = scalar_lea.sflag [#allocation27], %s1388
        %s1390 = sand.u32 %s572, 1
        %s1391 = smul.addr %s1390, 2
        %s1392 = scalar_lea.vmem [#allocation28], %s1391
        %p1393 = pneg %p585
        %p1394 = pneg %p582
        %s1395 = sand.u32 %s64, 1
        %s1396 = scalar_lea.sflag [#allocation30], %s1395
        %s1397 = sand.u32 %s598, 1
        %s1398 = smul.addr %s1397, 2
        %s1399 = scalar_lea.vmem [#allocation29], %s1398
        %p1400 = pneg %p611
        %p1401 = pneg %p608
        %s1402 = sand.u32 %s64, 1
        %s1403 = scalar_lea.sflag [#allocation30], %s1402
        %s1404 = sand.u32 %s624, 1
        %s1405 = smul.addr %s1404, 2
        %s1406 = scalar_lea.vmem [#allocation31], %s1405
        %p1407 = pneg %p637
        %p1408 = pneg %p634
        %p1409 = pneg %p658
        %p1410 = pneg %p655
        %p1411 = scmp.eq.s32.totalorder %s64, 0
        // Predicated region
        $region189: #{step_diffusion_head_forward.4} parent=111 // pred_check
          %p1412 = pneg %p1411
        $region190: #{step_diffusion_head_forward.4} parent=111 // pred_check_branch
          %1414 = sbr.rel (%p1412) target = $region192
        $region191: #{step_diffusion_head_forward.4} parent=111 // pred_region
          %v1415 = vld [vmem:[%s0] sm:$0xff]
          %v1416 = vld [vmem:[%s0 + $0x8] sm:$0xff]
          %v1417 = vld [vmem:[%s0 + $0x10] sm:$0xff]
          %v1418 = vld [vmem:[%s0 + $0x18] sm:$0xff]
          %1419 = vst [vmem:[%s23] sm:$0xff] %v1415
          %vm1420 = vcmask 523264
          %1421 = vst.msk [vmem:[%s23 + $0x8] sm:$0xff] %vm1420, %v1416
          %1422 = vst [vmem:[%s23 + $0x10] sm:$0xff] %v1417
          %1423 = vst.msk [vmem:[%s23 + $0x18] sm:$0xff] %vm1420, %v1418
        $region192: #{step_diffusion_head_forward.4} parent=111 // pred_fallthru
          _
        %v1424 = vld [vmem:[%s23] sm:$0xff]
        %v1425 = vld [vmem:[%s23 + $0x8] sm:$0xff]
        %v1426 = vld [vmem:[%s23 + $0x10] sm:$0xff]
        %v1427 = vld [vmem:[%s23 + $0x18] sm:$0xff]
        %v1428 = vld [vmem:[%s3] sm:$0xf]
        %p1429 = scmp.lt.s32.totalorder %s64, 0
        %s1430 = ssub.s32 0, %s64
        %s1431 = scalar_select %p1429, %s1430, %s64
        %s1432 = sand.u32 %s1431, 1
        %s1433 = ssub.s32 0, %s1432
        %s1434 = scalar_select %p1429, %s1433, %s1432
        %p1435 = scmp.ne.s32.totalorder %s1434, 0
        %p1436 = scmp.lt.s32.totalorder %s1434, 0
        %p1437 = pnand %p1436, %p1435
        %p1438 = pneg %p1437
        %s1439 = sadd.s32 %s1434, 2
        %s1440 = scalar_select %p1438, %s1439, %s1434
        %p1441 = scmp.eq.s32.totalorder %s1440, 0
        // Predicated region
        $region193: #{step_diffusion_head_forward.4} parent=111 // pred_check
          %p1442 = pneg %p1441
        $region194: #{step_diffusion_head_forward.4} parent=111 // pred_check_branch
          %1444 = sbr.rel (%p1442) target = $region196
        $region195: #{step_diffusion_head_forward.4} parent=111 // pred_region
          %v1445 = vld [vmem:[%s1082] sm:$0xff]
          %v1446 = vld [vmem:[%s1082 + $0x8] sm:$0xff]
          %v1447 = vld [vmem:[%s1082 + $0x10] sm:$0xff]
          %v1448 = vld [vmem:[%s1082 + $0x18] sm:$0xff]
          %v1449 = vld [vmem:[%s1082 + $0x20] sm:$0xff]
          %v1450 = vld [vmem:[%s1082 + $0x28] sm:$0xff]
          %v1451 = vld [vmem:[%s1082 + $0x30] sm:$0xff]
          %v1452 = vld [vmem:[%s1082 + $0x38] sm:$0xff]
          %v1453 = vld [vmem:[%s1082 + $0x40] sm:$0xff]
          %v1454 = vld [vmem:[%s1082 + $0x48] sm:$0xff]
          %v1455 = vld [vmem:[%s1082 + $0x50] sm:$0xff]
          %v1456 = vld [vmem:[%s1082 + $0x58] sm:$0xff]
          %v1457 = vld [vmem:[%s1082 + $0x60] sm:$0xff]
          %v1458 = vld [vmem:[%s1082 + $0x68] sm:$0xff]
          %v1459 = vld [vmem:[%s1082 + $0x70] sm:$0xff]
          %v1460 = vld [vmem:[%s1082 + $0x78] sm:$0xff]
          %v1461 = vld [vmem:[%s1082 + $0x80] sm:$0xff]
          %v1462 = vld [vmem:[%s1082 + $0x88] sm:$0xff]
          %v1463 = vld [vmem:[%s1082 + $0x90] sm:$0xff]
          %v1464 = vld [vmem:[%s1082 + $0x98] sm:$0xff]
          %v1465 = vld [vmem:[%s1082 + $0xa0] sm:$0xff]
          %v1466 = vld [vmem:[%s1082 + $0xa8] sm:$0xff]
          %v1467 = vld [vmem:[%s1082 + $0xb0] sm:$0xff]
          %v1468 = vld [vmem:[%s1082 + $0xb8] sm:$0xff]
          %v1469 = vld [vmem:[%s1082 + $0xc0] sm:$0xff]
          %v1470 = vld [vmem:[%s1082 + $0xc8] sm:$0xff]
          %v1471 = vld [vmem:[%s1082 + $0xd0] sm:$0xff]
          %v1472 = vld [vmem:[%s1082 + $0xd8] sm:$0xff]
          %v1473 = vld [vmem:[%s1082 + $0xe0] sm:$0xff]
          %v1474 = vld [vmem:[%s1082 + $0xe8] sm:$0xff]
          %v1475 = vld [vmem:[%s1082 + $0xf0] sm:$0xff]
          %v1476 = vld [vmem:[%s1082 + $0xf8] sm:$0xff]
          %v1477 = vld [vmem:[%s1082 + $0x100] sm:$0xff]
          %v1478 = vld [vmem:[%s1082 + $0x108] sm:$0xff]
          %v1479 = vld [vmem:[%s1082 + $0x110] sm:$0xff]
          %v1480 = vld [vmem:[%s1082 + $0x118] sm:$0xff]
          %v1481 = vld [vmem:[%s1082 + $0x120] sm:$0xff]
          %v1482 = vld [vmem:[%s1082 + $0x128] sm:$0xff]
          %v1483 = vld [vmem:[%s1082 + $0x130] sm:$0xff]
          %v1484 = vld [vmem:[%s1082 + $0x138] sm:$0xff]
          %v1485 = vld [vmem:[%s1082 + $0x140] sm:$0xff]
          %v1486 = vld [vmem:[%s1082 + $0x148] sm:$0xff]
          %v1487 = vld [vmem:[%s1082 + $0x150] sm:$0xff]
          %v1488 = vld [vmem:[%s1082 + $0x158] sm:$0xff]
          %v1489 = vld [vmem:[%s1082 + $0x160] sm:$0xff]
          %v1490 = vld [vmem:[%s1082 + $0x168] sm:$0xff]
          %v1491 = vld [vmem:[%s1082 + $0x170] sm:$0xff]
          %v1492 = vld [vmem:[%s1082 + $0x178] sm:$0xff]
          %v1493 = vld [vmem:[%s1082 + $0x180] sm:$0xff]
          %v1494 = vld [vmem:[%s1082 + $0x188] sm:$0xff]
          %v1495 = vld [vmem:[%s1082 + $0x190] sm:$0xff]
          %v1496 = vld [vmem:[%s1082 + $0x198] sm:$0xff]
          %v1497 = vld [vmem:[%s1082 + $0x1a0] sm:$0xff]
          %v1498 = vld [vmem:[%s1082 + $0x1a8] sm:$0xff]
          %v1499 = vld [vmem:[%s1082 + $0x1b0] sm:$0xff]
          %v1500 = vld [vmem:[%s1082 + $0x1b8] sm:$0xff]
          %v1501 = vld [vmem:[%s1082 + $0x1c0] sm:$0xff]
          %v1502 = vld [vmem:[%s1082 + $0x1c8] sm:$0xff]
          %v1503 = vld [vmem:[%s1082 + $0x1d0] sm:$0xff]
          %v1504 = vld [vmem:[%s1082 + $0x1d8] sm:$0xff]
          %v1505 = vld [vmem:[%s1082 + $0x1e0] sm:$0xff]
          %v1506 = vld [vmem:[%s1082 + $0x1e8] sm:$0xff]
          %v1507 = vld [vmem:[%s1082 + $0x1f0] sm:$0xff]
          %v1508 = vld [vmem:[%s1082 + $0x1f8] sm:$0xff]
          %v1509 = vld [vmem:[%s1082 + $0x200] sm:$0xff]
          %v1510 = vld [vmem:[%s1082 + $0x208] sm:$0xff]
          %v1511 = vld [vmem:[%s1082 + $0x210] sm:$0xff]
          %v1512 = vld [vmem:[%s1082 + $0x218] sm:$0xff]
          %v1513 = vld [vmem:[%s1082 + $0x220] sm:$0xff]
          %v1514 = vld [vmem:[%s1082 + $0x228] sm:$0xff]
          %v1515 = vld [vmem:[%s1082 + $0x230] sm:$0xff]
          %v1516 = vld [vmem:[%s1082 + $0x238] sm:$0xff]
          %v1517 = vld [vmem:[%s1092] sm:$0x7]
          %v1519 = vperm.slane %v1517, 0
          %v1520 = vperm.slane %v1517, 1
          %v1521 = vperm.slane %v1517, 2
          %1526 = vst [vmem:[#allocation1] ss:$4 sm:$0xff] %v1428
          %v1527 = vld.sshfl [vmem:[#allocation1] sm:$0xff pattern:$0x73625140]
          %v1528 = vld.sshfl [vmem:[#allocation1 + $0x8] sm:$0xff pattern:$0x73625140]
          %vm1530 = vcmask 523264
          %v1531 = vsel %vm1530, %v1528, 0
          %1533 = vmatpush.msra.mxu0 %v1490
          %1534 = vmatpush.msra.mxu0 %v1487
          %1535 = vmatpush.msra.mxu0 %v1484
          %1536 = vmatpush.msra.mxu0 %v1481
          %1537 = vmatpush.msra.mxu0 %v1478
          %1538 = vmatpush.msra.mxu0 %v1475
          %1539 = vmatpush.msra.mxu0 %v1472
          %1540 = vmatpush.msra.mxu0 %v1469
          %1541 = vmatpush.msra.mxu0 %v1466
          %1542 = vmatpush.msra.mxu0 %v1463
          %1543 = vmatpush.msra.mxu0 %v1460
          %1544 = vmatpush.msra.mxu0 %v1457
          %1545 = vmatpush.msra.mxu0 %v1454
          %1546 = vmatpush.msra.mxu0 %v1451
          %1547 = vmatpush.msra.mxu0 %v1448
          %1548 = vmatpush.msra.mxu0 %v1445
          %1549 = vmatmul.f32.gmra.mxu0 %v1527
          %v1550 = vpop.f32.mrf.mxu0
          %v1551 = vadd.f32 %v1519, %v1550
          %1552 = vdwg.mxu0
          %1553 = vmatpush.msra.mxu0 0.0
          %1554 = vmatpush.msra.mxu0 0.0
          %1555 = vmatpush.msra.mxu0 0.0
          %1556 = vmatpush.msra.mxu0 0.0
          %1557 = vmatpush.msra.mxu0 0.0
          %1558 = vmatpush.msra.mxu0 0.0
          %1559 = vmatpush.msra.mxu0 0.0
          %1560 = vmatpush.msra.mxu0 0.0
          %1561 = vmatpush.msra.mxu0 %v1514
          %1562 = vmatpush.msra.mxu0 %v1511
          %1563 = vmatpush.msra.mxu0 %v1508
          %1564 = vmatpush.msra.mxu0 %v1505
          %1565 = vmatpush.msra.mxu0 %v1502
          %1566 = vmatpush.msra.mxu0 %v1499
          %1567 = vmatpush.msra.mxu0 %v1496
          %1568 = vmatpush.msra.mxu0 %v1493
          %1569 = vmatmul.f32.gmra.mxu0 %v1531
          %v1570 = vpop.f32.mrf.mxu0
          %v1571 = vadd.f32 %v1551, %v1570
          %1572 = vdwg.mxu0
          %1573 = vmatpush.msra.mxu0 %v1491
          %1574 = vmatpush.msra.mxu0 %v1488
          %1575 = vmatpush.msra.mxu0 %v1485
          %1576 = vmatpush.msra.mxu0 %v1482
          %1577 = vmatpush.msra.mxu0 %v1479
          %1578 = vmatpush.msra.mxu0 %v1476
          %1579 = vmatpush.msra.mxu0 %v1473
          %1580 = vmatpush.msra.mxu0 %v1470
          %1581 = vmatpush.msra.mxu0 %v1467
          %1582 = vmatpush.msra.mxu0 %v1464
          %1583 = vmatpush.msra.mxu0 %v1461
          %1584 = vmatpush.msra.mxu0 %v1458
          %1585 = vmatpush.msra.mxu0 %v1455
          %1586 = vmatpush.msra.mxu0 %v1452
          %1587 = vmatpush.msra.mxu0 %v1449
          %1588 = vmatpush.msra.mxu0 %v1446
          %1589 = vmatmul.f32.gmra.mxu0 %v1527
          %v1590 = vpop.f32.mrf.mxu0
          %v1591 = vadd.f32 %v1520, %v1590
          %1592 = vdwg.mxu0
          %1593 = vmatpush.msra.mxu0 0.0
          %1594 = vmatpush.msra.mxu0 0.0
          %1595 = vmatpush.msra.mxu0 0.0
          %1596 = vmatpush.msra.mxu0 0.0
          %1597 = vmatpush.msra.mxu0 0.0
          %1598 = vmatpush.msra.mxu0 0.0
          %1599 = vmatpush.msra.mxu0 0.0
          %1600 = vmatpush.msra.mxu0 0.0
          %1601 = vmatpush.msra.mxu0 %v1515
          %1602 = vmatpush.msra.mxu0 %v1512
          %1603 = vmatpush.msra.mxu0 %v1509
          %1604 = vmatpush.msra.mxu0 %v1506
          %1605 = vmatpush.msra.mxu0 %v1503
          %1606 = vmatpush.msra.mxu0 %v1500
          %1607 = vmatpush.msra.mxu0 %v1497
          %1608 = vmatpush.msra.mxu0 %v1494
          %1609 = vmatmul.f32.gmra.mxu0 %v1531
          %v1610 = vpop.f32.mrf.mxu0
          %v1611 = vadd.f32 %v1591, %v1610
          %1612 = vdwg.mxu0
          %1613 = vmatpush.msra.mxu0 %v1492
          %1614 = vmatpush.msra.mxu0 %v1489
          %1615 = vmatpush.msra.mxu0 %v1486
          %1616 = vmatpush.msra.mxu0 %v1483
          %1617 = vmatpush.msra.mxu0 %v1480
          %1618 = vmatpush.msra.mxu0 %v1477
          %1619 = vmatpush.msra.mxu0 %v1474
          %1620 = vmatpush.msra.mxu0 %v1471
          %1621 = vmatpush.msra.mxu0 %v1468
          %1622 = vmatpush.msra.mxu0 %v1465
          %1623 = vmatpush.msra.mxu0 %v1462
          %1624 = vmatpush.msra.mxu0 %v1459
          %1625 = vmatpush.msra.mxu0 %v1456
          %1626 = vmatpush.msra.mxu0 %v1453
          %1627 = vmatpush.msra.mxu0 %v1450
          %1628 = vmatpush.msra.mxu0 %v1447
          %1629 = vmatmul.f32.gmra.mxu0 %v1527
          %v1630 = vpop.f32.mrf.mxu0
          %v1631 = vadd.f32 %v1521, %v1630
          %1632 = vdwg.mxu0
          %1633 = vmatpush.msra.mxu0 0.0
          %1634 = vmatpush.msra.mxu0 0.0
          %1635 = vmatpush.msra.mxu0 0.0
          %1636 = vmatpush.msra.mxu0 0.0
          %1637 = vmatpush.msra.mxu0 0.0
          %1638 = vmatpush.msra.mxu0 0.0
          %1639 = vmatpush.msra.mxu0 0.0
          %1640 = vmatpush.msra.mxu0 0.0
          %1641 = vmatpush.msra.mxu0 %v1516
          %1642 = vmatpush.msra.mxu0 %v1513
          %1643 = vmatpush.msra.mxu0 %v1510
          %1644 = vmatpush.msra.mxu0 %v1507
          %1645 = vmatpush.msra.mxu0 %v1504
          %1646 = vmatpush.msra.mxu0 %v1501
          %1647 = vmatpush.msra.mxu0 %v1498
          %1648 = vmatpush.msra.mxu0 %v1495
          %1649 = vmatmul.f32.gmra.mxu0 %v1531
          %v1650 = vpop.f32.mrf.mxu0
          %v1651 = vadd.f32 %v1631, %v1650
          %1652 = vdwg.mxu0
          %v1655 = vrot.slane %v1611, 7
          %vm1656 = vcmask 1040384
          %v1657 = vsel %vm1656, %v1571, %v1655
          %vm1658 = vcmask 1041409
          %v1659 = vsel %vm1658, %v1571, %v1655
          %v1660 = vrot.slane %v1659, 1
          %v1663 = vadd.f32 %v1657, 1.0
          %v1664 = vadd.f32 %v1660, 1.0
          %v1667 = vperm.slane %v1663, 0
          %v1668 = vperm.slane %v1663, 1
          %v1669 = vperm.slane %v1664, 0
          %v1670 = vperm.slane %v1664, 1
          %v1675 = vmul.f32 %v1424, %v1667
          %v1676 = vmul.f32 %v1425, %v1668
          %v1677 = vmul.f32 %v1426, %v1669
          %v1678 = vmul.f32 %v1427, %v1670
          %v1680 = vrot.slane %v1651, 7
          %v1681 = vsel %vm1656, %v1611, %v1680
          %v1682 = vsel %vm1658, %v1611, %v1680
          %v1683 = vrot.slane %v1682, 1
          %v1684 = vperm.slane %v1681, 0
          %v1685 = vperm.slane %v1681, 1
          %v1686 = vperm.slane %v1683, 0
          %v1687 = vperm.slane %v1683, 1
          %1688 = vrot.lane.b32.xlu0 %v1684, 64
          %v1689 = vpop.permute.xlu0 %1688
          %1690 = vrot.lane.b32.xlu0 %v1685, 64
          %v1691 = vpop.permute.xlu0 %1690
          %1692 = vrot.lane.b32.xlu0 %v1686, 64
          %v1693 = vpop.permute.xlu0 %1692
          %1694 = vrot.lane.b32.xlu0 %v1687, 64
          %v1695 = vpop.permute.xlu0 %1694
          %v1696 = vsel %vm1530, %v1689, %v1691
          %v1697 = vsel %vm1530, %v1693, %v1695
          %v1702 = vadd.f32 %v1675, %v1696
          %v1703 = vadd.f32 %v1676, %v1691
          %v1704 = vadd.f32 %v1677, %v1697
          %v1705 = vadd.f32 %v1678, %v1695
          %v1706 = vld [vmem:[%s1] sm:$0xff]
          %v1707 = vld [vmem:[%s1 + $0x8] sm:$0xff]
          %v1708 = vld [vmem:[%s1 + $0x10] sm:$0xff]
          %v1709 = vld [vmem:[%s1 + $0x18] sm:$0xff]
          %v1710 = vld [vmem:[%s2] sm:$0xff]
          %v1711 = vld [vmem:[%s2 + $0x8] sm:$0xff]
          %v1712 = vld [vmem:[%s2 + $0x10] sm:$0xff]
          %v1713 = vld [vmem:[%s2 + $0x18] sm:$0xff]
          %v1714 = vld [vmem:[%s1102] sm:$0xff]
          %v1715 = vld [vmem:[%s1102 + $0x8] sm:$0xff]
          %v1716 = vld [vmem:[%s1102 + $0x10] sm:$0xff]
          %v1717 = vld [vmem:[%s1102 + $0x18] sm:$0xff]
          %v1718 = vld [vmem:[%s1102 + $0x20] sm:$0xff]
          %v1719 = vld [vmem:[%s1102 + $0x28] sm:$0xff]
          %v1720 = vld [vmem:[%s1102 + $0x30] sm:$0xff]
          %v1721 = vld [vmem:[%s1102 + $0x38] sm:$0xff]
          %v1722 = vld [vmem:[%s1102 + $0x40] sm:$0xff]
          %v1723 = vld [vmem:[%s1102 + $0x48] sm:$0xff]
          %v1724 = vld [vmem:[%s1102 + $0x50] sm:$0xff]
          %v1725 = vld [vmem:[%s1102 + $0x58] sm:$0xff]
          %v1726 = vld [vmem:[%s1102 + $0x60] sm:$0xff]
          %v1727 = vld [vmem:[%s1102 + $0x68] sm:$0xff]
          %v1728 = vld [vmem:[%s1102 + $0x70] sm:$0xff]
          %v1729 = vld [vmem:[%s1102 + $0x78] sm:$0xff]
          %v1730 = vld [vmem:[%s1102 + $0x80] sm:$0xff]
          %v1731 = vld [vmem:[%s1102 + $0x88] sm:$0xff]
          %v1732 = vld [vmem:[%s1102 + $0x90] sm:$0xff]
          %v1733 = vld [vmem:[%s1102 + $0x98] sm:$0xff]
          %v1734 = vld [vmem:[%s1102 + $0xa0] sm:$0xff]
          %v1735 = vld [vmem:[%s1102 + $0xa8] sm:$0xff]
          %v1736 = vld [vmem:[%s1102 + $0xb0] sm:$0xff]
          %v1737 = vld [vmem:[%s1102 + $0xb8] sm:$0xff]
          %v1738 = vld [vmem:[%s1102 + $0xc0] sm:$0xff]
          %v1739 = vld [vmem:[%s1102 + $0xc8] sm:$0xff]
          %v1740 = vld [vmem:[%s1102 + $0xd0] sm:$0xff]
          %v1741 = vld [vmem:[%s1102 + $0xd8] sm:$0xff]
          %v1742 = vld [vmem:[%s1102 + $0xe0] sm:$0xff]
          %v1743 = vld [vmem:[%s1102 + $0xe8] sm:$0xff]
          %v1744 = vld [vmem:[%s1102 + $0xf0] sm:$0xff]
          %v1745 = vld [vmem:[%s1102 + $0xf8] sm:$0xff]
          %v1746 = vld [vmem:[%s1102 + $0x100] sm:$0xff]
          %v1747 = vld [vmem:[%s1102 + $0x108] sm:$0xff]
          %v1748 = vld [vmem:[%s1102 + $0x110] sm:$0xff]
          %v1749 = vld [vmem:[%s1102 + $0x118] sm:$0xff]
          %v1750 = vld [vmem:[%s1102 + $0x120] sm:$0xff]
          %v1751 = vld [vmem:[%s1102 + $0x128] sm:$0xff]
          %v1752 = vld [vmem:[%s1102 + $0x130] sm:$0xff]
          %v1753 = vld [vmem:[%s1102 + $0x138] sm:$0xff]
          %v1754 = vld [vmem:[%s1102 + $0x140] sm:$0xff]
          %v1755 = vld [vmem:[%s1102 + $0x148] sm:$0xff]
          %v1756 = vld [vmem:[%s1102 + $0x150] sm:$0xff]
          %v1757 = vld [vmem:[%s1102 + $0x158] sm:$0xff]
          %v1758 = vld [vmem:[%s1102 + $0x160] sm:$0xff]
          %v1759 = vld [vmem:[%s1102 + $0x168] sm:$0xff]
          %v1760 = vld [vmem:[%s1102 + $0x170] sm:$0xff]
          %v1761 = vld [vmem:[%s1102 + $0x178] sm:$0xff]
          %v1762 = vld [vmem:[%s1102 + $0x180] sm:$0xff]
          %v1763 = vld [vmem:[%s1102 + $0x188] sm:$0xff]
          %v1764 = vld [vmem:[%s1102 + $0x190] sm:$0xff]
          %v1765 = vld [vmem:[%s1102 + $0x198] sm:$0xff]
          %v1766 = vld [vmem:[%s1102 + $0x1a0] sm:$0xff]
          %v1767 = vld [vmem:[%s1102 + $0x1a8] sm:$0xff]
          %v1768 = vld [vmem:[%s1102 + $0x1b0] sm:$0xff]
          %v1769 = vld [vmem:[%s1102 + $0x1b8] sm:$0xff]
          %v1770 = vld [vmem:[%s1102 + $0x1c0] sm:$0xff]
          %v1771 = vld [vmem:[%s1102 + $0x1c8] sm:$0xff]
          %v1772 = vld [vmem:[%s1102 + $0x1d0] sm:$0xff]
          %v1773 = vld [vmem:[%s1102 + $0x1d8] sm:$0xff]
          %v1774 = vld [vmem:[%s1102 + $0x1e0] sm:$0xff]
          %v1775 = vld [vmem:[%s1102 + $0x1e8] sm:$0xff]
          %v1776 = vld [vmem:[%s1102 + $0x1f0] sm:$0xff]
          %v1777 = vld [vmem:[%s1102 + $0x1f8] sm:$0xff]
          %v1778 = vld [vmem:[%s1102 + $0x200] sm:$0xff]
          %v1779 = vld [vmem:[%s1102 + $0x208] sm:$0xff]
          %v1780 = vld [vmem:[%s1102 + $0x210] sm:$0xff]
          %v1781 = vld [vmem:[%s1102 + $0x218] sm:$0xff]
          %v1782 = vld [vmem:[%s1102 + $0x220] sm:$0xff]
          %v1783 = vld [vmem:[%s1102 + $0x228] sm:$0xff]
          %v1784 = vld [vmem:[%s1102 + $0x230] sm:$0xff]
          %v1785 = vld [vmem:[%s1102 + $0x238] sm:$0xff]
          %v1786 = vld [vmem:[%s1112] sm:$0x7]
          %v1788 = vperm.slane %v1786, 0
          %v1789 = vperm.slane %v1786, 1
          %v1790 = vperm.slane %v1786, 2
          %v1795 = vsel %vm1530, %v1703, 0
          %v1798 = vsel %vm1530, %v1705, 0
          %1800 = vmatpush.msra.mxu0 %v1759
          %1801 = vmatpush.msra.mxu0 %v1756
          %1802 = vmatpush.msra.mxu0 %v1753
          %1803 = vmatpush.msra.mxu0 %v1750
          %1804 = vmatpush.msra.mxu0 %v1747
          %1805 = vmatpush.msra.mxu0 %v1744
          %1806 = vmatpush.msra.mxu0 %v1741
          %1807 = vmatpush.msra.mxu0 %v1738
          %1808 = vmatpush.msra.mxu0 %v1735
          %1809 = vmatpush.msra.mxu0 %v1732
          %1810 = vmatpush.msra.mxu0 %v1729
          %1811 = vmatpush.msra.mxu0 %v1726
          %1812 = vmatpush.msra.mxu0 %v1723
          %1813 = vmatpush.msra.mxu0 %v1720
          %1814 = vmatpush.msra.mxu0 %v1717
          %1815 = vmatpush.msra.mxu0 %v1714
          %1816 = vmatmul.f32.gmra.mxu0 %v1702
          %v1817 = vpop.f32.mrf.mxu0
          %v1818 = vadd.f32 %v1788, %v1817
          %1819 = vmatmul.f32.gmra.mxu0 %v1704
          %v1820 = vpop.f32.mrf.mxu0
          %v1821 = vadd.f32 %v1788, %v1820
          %1822 = vdwg.mxu0
          %1823 = vmatpush.msra.mxu0 0.0
          %1824 = vmatpush.msra.mxu0 0.0
          %1825 = vmatpush.msra.mxu0 0.0
          %1826 = vmatpush.msra.mxu0 0.0
          %1827 = vmatpush.msra.mxu0 0.0
          %1828 = vmatpush.msra.mxu0 0.0
          %1829 = vmatpush.msra.mxu0 0.0
          %1830 = vmatpush.msra.mxu0 0.0
          %1831 = vmatpush.msra.mxu0 %v1783
          %1832 = vmatpush.msra.mxu0 %v1780
          %1833 = vmatpush.msra.mxu0 %v1777
          %1834 = vmatpush.msra.mxu0 %v1774
          %1835 = vmatpush.msra.mxu0 %v1771
          %1836 = vmatpush.msra.mxu0 %v1768
          %1837 = vmatpush.msra.mxu0 %v1765
          %1838 = vmatpush.msra.mxu0 %v1762
          %1839 = vmatmul.f32.gmra.mxu0 %v1795
          %v1840 = vpop.f32.mrf.mxu0
          %v1841 = vadd.f32 %v1818, %v1840
          %1842 = vmatmul.f32.gmra.mxu0 %v1798
          %v1843 = vpop.f32.mrf.mxu0
          %v1844 = vadd.f32 %v1821, %v1843
          %1845 = vdwg.mxu0
          %1846 = vmatpush.msra.mxu0 %v1760
          %1847 = vmatpush.msra.mxu0 %v1757
          %1848 = vmatpush.msra.mxu0 %v1754
          %1849 = vmatpush.msra.mxu0 %v1751
          %1850 = vmatpush.msra.mxu0 %v1748
          %1851 = vmatpush.msra.mxu0 %v1745
          %1852 = vmatpush.msra.mxu0 %v1742
          %1853 = vmatpush.msra.mxu0 %v1739
          %1854 = vmatpush.msra.mxu0 %v1736
          %1855 = vmatpush.msra.mxu0 %v1733
          %1856 = vmatpush.msra.mxu0 %v1730
          %1857 = vmatpush.msra.mxu0 %v1727
          %1858 = vmatpush.msra.mxu0 %v1724
          %1859 = vmatpush.msra.mxu0 %v1721
          %1860 = vmatpush.msra.mxu0 %v1718
          %1861 = vmatpush.msra.mxu0 %v1715
          %1862 = vmatmul.f32.gmra.mxu0 %v1702
          %v1863 = vpop.f32.mrf.mxu0
          %v1864 = vadd.f32 %v1789, %v1863
          %1865 = vmatmul.f32.gmra.mxu0 %v1704
          %v1866 = vpop.f32.mrf.mxu0
          %v1867 = vadd.f32 %v1789, %v1866
          %1868 = vdwg.mxu0
          %1869 = vmatpush.msra.mxu0 0.0
          %1870 = vmatpush.msra.mxu0 0.0
          %1871 = vmatpush.msra.mxu0 0.0
          %1872 = vmatpush.msra.mxu0 0.0
          %1873 = vmatpush.msra.mxu0 0.0
          %1874 = vmatpush.msra.mxu0 0.0
          %1875 = vmatpush.msra.mxu0 0.0
          %1876 = vmatpush.msra.mxu0 0.0
          %1877 = vmatpush.msra.mxu0 %v1784
          %1878 = vmatpush.msra.mxu0 %v1781
          %1879 = vmatpush.msra.mxu0 %v1778
          %1880 = vmatpush.msra.mxu0 %v1775
          %1881 = vmatpush.msra.mxu0 %v1772
          %1882 = vmatpush.msra.mxu0 %v1769
          %1883 = vmatpush.msra.mxu0 %v1766
          %1884 = vmatpush.msra.mxu0 %v1763
          %1885 = vmatmul.f32.gmra.mxu0 %v1795
          %v1886 = vpop.f32.mrf.mxu0
          %v1887 = vadd.f32 %v1864, %v1886
          %1888 = vmatmul.f32.gmra.mxu0 %v1798
          %v1889 = vpop.f32.mrf.mxu0
          %v1890 = vadd.f32 %v1867, %v1889
          %1891 = vdwg.mxu0
          %1892 = vmatpush.msra.mxu0 %v1761
          %1893 = vmatpush.msra.mxu0 %v1758
          %1894 = vmatpush.msra.mxu0 %v1755
          %1895 = vmatpush.msra.mxu0 %v1752
          %1896 = vmatpush.msra.mxu0 %v1749
          %1897 = vmatpush.msra.mxu0 %v1746
          %1898 = vmatpush.msra.mxu0 %v1743
          %1899 = vmatpush.msra.mxu0 %v1740
          %1900 = vmatpush.msra.mxu0 %v1737
          %1901 = vmatpush.msra.mxu0 %v1734
          %1902 = vmatpush.msra.mxu0 %v1731
          %1903 = vmatpush.msra.mxu0 %v1728
          %1904 = vmatpush.msra.mxu0 %v1725
          %1905 = vmatpush.msra.mxu0 %v1722
          %1906 = vmatpush.msra.mxu0 %v1719
          %1907 = vmatpush.msra.mxu0 %v1716
          %1908 = vmatmul.f32.gmra.mxu0 %v1702
          %v1909 = vpop.f32.mrf.mxu0
          %v1910 = vadd.f32 %v1790, %v1909
          %1911 = vmatmul.f32.gmra.mxu0 %v1704
          %v1912 = vpop.f32.mrf.mxu0
          %v1913 = vadd.f32 %v1790, %v1912
          %1914 = vdwg.mxu0
          %1915 = vmatpush.msra.mxu0 0.0
          %1916 = vmatpush.msra.mxu0 0.0
          %1917 = vmatpush.msra.mxu0 0.0
          %1918 = vmatpush.msra.mxu0 0.0
          %1919 = vmatpush.msra.mxu0 0.0
          %1920 = vmatpush.msra.mxu0 0.0
          %1921 = vmatpush.msra.mxu0 0.0
          %1922 = vmatpush.msra.mxu0 0.0
          %1923 = vmatpush.msra.mxu0 %v1785
          %1924 = vmatpush.msra.mxu0 %v1782
          %1925 = vmatpush.msra.mxu0 %v1779
          %1926 = vmatpush.msra.mxu0 %v1776
          %1927 = vmatpush.msra.mxu0 %v1773
          %1928 = vmatpush.msra.mxu0 %v1770
          %1929 = vmatpush.msra.mxu0 %v1767
          %1930 = vmatpush.msra.mxu0 %v1764
          %1931 = vmatmul.f32.gmra.mxu0 %v1795
          %v1932 = vpop.f32.mrf.mxu0
          %v1933 = vadd.f32 %v1910, %v1932
          %1934 = vmatmul.f32.gmra.mxu0 %v1798
          %v1935 = vpop.f32.mrf.mxu0
          %v1936 = vadd.f32 %v1913, %v1935
          %1937 = vdwg.mxu0
          %v1938 = vmul.f32 %v1841, %v1706
          %v1939 = vmul.f32 %v1887, %v1707
          %v1940 = vmul.f32 %v1844, %v1708
          %v1941 = vmul.f32 %v1890, %v1709
          %1946 = vrot.lane.b32.xlu0 %v1710, 64
          %v1947 = vpop.permute.xlu0 %1946
          %1948 = vrot.lane.b32.xlu0 %v1711, 64
          %v1949 = vpop.permute.xlu0 %1948
          %1950 = vrot.lane.b32.xlu0 %v1712, 64
          %v1951 = vpop.permute.xlu0 %1950
          %1952 = vrot.lane.b32.xlu0 %v1713, 64
          %v1953 = vpop.permute.xlu0 %1952
          %v1954 = vsel %vm1530, %v1947, %v1949
          %v1955 = vsel %vm1530, %v1951, %v1953
          %v1960 = vmul.f32 %v1887, %v1947
          %v1961 = vmul.f32 %v1933, %v1954
          %v1962 = vmul.f32 %v1890, %v1951
          %v1963 = vmul.f32 %v1936, %v1955
          %1968 = vrot.lane.b32.xlu0 %v1960, 64
          %v1969 = vpop.permute.xlu0 %1968
          %1970 = vrot.lane.b32.xlu0 %v1961, 64
          %v1971 = vpop.permute.xlu0 %1970
          %1972 = vrot.lane.b32.xlu0 %v1962, 64
          %v1973 = vpop.permute.xlu0 %1972
          %1974 = vrot.lane.b32.xlu0 %v1963, 64
          %v1975 = vpop.permute.xlu0 %1974
          %v1976 = vsel %vm1530, %v1969, %v1971
          %v1977 = vsel %vm1530, %v1973, %v1975
          %v1982 = vadd.f32 %v1938, %v1976
          %v1983 = vadd.f32 %v1939, %v1971
          %v1984 = vadd.f32 %v1940, %v1977
          %v1985 = vadd.f32 %v1941, %v1975
          %v1986 = vld [vmem:[%s1122] sm:$0xff]
          %v1987 = vld [vmem:[%s1122 + $0x8] sm:$0xff]
          %v1988 = vld [vmem:[%s1122 + $0x10] sm:$0xff]
          %v1989 = vld [vmem:[%s1122 + $0x18] sm:$0xff]
          %v1990 = vld [vmem:[%s1122 + $0x20] sm:$0xff]
          %v1991 = vld [vmem:[%s1122 + $0x28] sm:$0xff]
          %v1992 = vld [vmem:[%s1122 + $0x30] sm:$0xff]
          %v1993 = vld [vmem:[%s1122 + $0x38] sm:$0xff]
          %v1994 = vld [vmem:[%s1122 + $0x40] sm:$0xff]
          %v1995 = vld [vmem:[%s1122 + $0x48] sm:$0xff]
          %v1996 = vld [vmem:[%s1122 + $0x50] sm:$0xff]
          %v1997 = vld [vmem:[%s1122 + $0x58] sm:$0xff]
          %v1998 = vld [vmem:[%s1122 + $0x60] sm:$0xff]
          %v1999 = vld [vmem:[%s1122 + $0x68] sm:$0xff]
          %v2000 = vld [vmem:[%s1122 + $0x70] sm:$0xff]
          %v2001 = vld [vmem:[%s1122 + $0x78] sm:$0xff]
          %v2002 = vld [vmem:[%s1122 + $0x80] sm:$0xff]
          %v2003 = vld [vmem:[%s1122 + $0x88] sm:$0xff]
          %v2004 = vld [vmem:[%s1122 + $0x90] sm:$0xff]
          %v2005 = vld [vmem:[%s1122 + $0x98] sm:$0xff]
          %v2006 = vld [vmem:[%s1122 + $0xa0] sm:$0xff]
          %v2007 = vld [vmem:[%s1122 + $0xa8] sm:$0xff]
          %v2008 = vld [vmem:[%s1122 + $0xb0] sm:$0xff]
          %v2009 = vld [vmem:[%s1122 + $0xb8] sm:$0xff]
          %v2010 = vld [vmem:[%s1122 + $0xc0] sm:$0xff]
          %v2011 = vld [vmem:[%s1122 + $0xc8] sm:$0xff]
          %v2012 = vld [vmem:[%s1122 + $0xd0] sm:$0xff]
          %v2013 = vld [vmem:[%s1122 + $0xd8] sm:$0xff]
          %v2014 = vld [vmem:[%s1122 + $0xe0] sm:$0xff]
          %v2015 = vld [vmem:[%s1122 + $0xe8] sm:$0xff]
          %v2016 = vld [vmem:[%s1122 + $0xf0] sm:$0xff]
          %v2017 = vld [vmem:[%s1122 + $0xf8] sm:$0xff]
          %v2018 = vld [vmem:[%s1122 + $0x100] sm:$0xff]
          %v2019 = vld [vmem:[%s1122 + $0x108] sm:$0xff]
          %v2020 = vld [vmem:[%s1122 + $0x110] sm:$0xff]
          %v2021 = vld [vmem:[%s1122 + $0x118] sm:$0xff]
          %v2022 = vld [vmem:[%s1122 + $0x120] sm:$0xff]
          %v2023 = vld [vmem:[%s1122 + $0x128] sm:$0xff]
          %v2024 = vld [vmem:[%s1122 + $0x130] sm:$0xff]
          %v2025 = vld [vmem:[%s1122 + $0x138] sm:$0xff]
          %v2026 = vld [vmem:[%s1122 + $0x140] sm:$0xff]
          %v2027 = vld [vmem:[%s1122 + $0x148] sm:$0xff]
          %v2028 = vld [vmem:[%s1122 + $0x150] sm:$0xff]
          %v2029 = vld [vmem:[%s1122 + $0x158] sm:$0xff]
          %v2030 = vld [vmem:[%s1122 + $0x160] sm:$0xff]
          %v2031 = vld [vmem:[%s1122 + $0x168] sm:$0xff]
          %v2032 = vld [vmem:[%s1122 + $0x170] sm:$0xff]
          %v2033 = vld [vmem:[%s1122 + $0x178] sm:$0xff]
          %v2034 = vld [vmem:[%s1122 + $0x180] sm:$0xff]
          %v2035 = vld [vmem:[%s1122 + $0x188] sm:$0xff]
          %v2036 = vld [vmem:[%s1122 + $0x190] sm:$0xff]
          %v2037 = vld [vmem:[%s1122 + $0x198] sm:$0xff]
          %v2038 = vld [vmem:[%s1122 + $0x1a0] sm:$0xff]
          %v2039 = vld [vmem:[%s1122 + $0x1a8] sm:$0xff]
          %v2040 = vld [vmem:[%s1122 + $0x1b0] sm:$0xff]
          %v2041 = vld [vmem:[%s1122 + $0x1b8] sm:$0xff]
          %v2042 = vld [vmem:[%s1122 + $0x1c0] sm:$0xff]
          %v2043 = vld [vmem:[%s1122 + $0x1c8] sm:$0xff]
          %v2044 = vld [vmem:[%s1122 + $0x1d0] sm:$0xff]
          %v2045 = vld [vmem:[%s1122 + $0x1d8] sm:$0xff]
          %v2046 = vld [vmem:[%s1122 + $0x1e0] sm:$0xff]
          %v2047 = vld [vmem:[%s1122 + $0x1e8] sm:$0xff]
          %v2048 = vld [vmem:[%s1122 + $0x1f0] sm:$0xff]
          %v2049 = vld [vmem:[%s1122 + $0x1f8] sm:$0xff]
          %v2050 = vld [vmem:[%s1122 + $0x200] sm:$0xff]
          %v2051 = vld [vmem:[%s1122 + $0x208] sm:$0xff]
          %v2052 = vld [vmem:[%s1122 + $0x210] sm:$0xff]
          %v2053 = vld [vmem:[%s1122 + $0x218] sm:$0xff]
          %v2054 = vld [vmem:[%s1122 + $0x220] sm:$0xff]
          %v2055 = vld [vmem:[%s1122 + $0x228] sm:$0xff]
          %v2056 = vld [vmem:[%s1122 + $0x230] sm:$0xff]
          %v2057 = vld [vmem:[%s1122 + $0x238] sm:$0xff]
          %v2058 = vld [vmem:[%s1122 + $0x240] sm:$0xff]
          %v2059 = vld [vmem:[%s1122 + $0x248] sm:$0xff]
          %v2060 = vld [vmem:[%s1122 + $0x250] sm:$0xff]
          %v2061 = vld [vmem:[%s1122 + $0x258] sm:$0xff]
          %v2062 = vld [vmem:[%s1122 + $0x260] sm:$0xff]
          %v2063 = vld [vmem:[%s1122 + $0x268] sm:$0xff]
          %v2064 = vld [vmem:[%s1122 + $0x270] sm:$0xff]
          %v2065 = vld [vmem:[%s1122 + $0x278] sm:$0xff]
          %v2066 = vld [vmem:[%s1122 + $0x280] sm:$0xff]
          %v2067 = vld [vmem:[%s1122 + $0x288] sm:$0xff]
          %v2068 = vld [vmem:[%s1122 + $0x290] sm:$0xff]
          %v2069 = vld [vmem:[%s1122 + $0x298] sm:$0xff]
          %v2070 = vld [vmem:[%s1122 + $0x2a0] sm:$0xff]
          %v2071 = vld [vmem:[%s1122 + $0x2a8] sm:$0xff]
          %v2072 = vld [vmem:[%s1122 + $0x2b0] sm:$0xff]
          %v2073 = vld [vmem:[%s1122 + $0x2b8] sm:$0xff]
          %v2074 = vld [vmem:[%s1122 + $0x2c0] sm:$0xff]
          %v2075 = vld [vmem:[%s1122 + $0x2c8] sm:$0xff]
          %v2076 = vld [vmem:[%s1122 + $0x2d0] sm:$0xff]
          %v2077 = vld [vmem:[%s1122 + $0x2d8] sm:$0xff]
          %v2078 = vld [vmem:[%s1122 + $0x2e0] sm:$0xff]
          %v2079 = vld [vmem:[%s1122 + $0x2e8] sm:$0xff]
          %v2080 = vld [vmem:[%s1122 + $0x2f0] sm:$0xff]
          %v2081 = vld [vmem:[%s1122 + $0x2f8] sm:$0xff]
          %v2082 = vld [vmem:[%s1122 + $0x300] sm:$0xff]
          %v2083 = vld [vmem:[%s1122 + $0x308] sm:$0xff]
          %v2084 = vld [vmem:[%s1122 + $0x310] sm:$0xff]
          %v2085 = vld [vmem:[%s1122 + $0x318] sm:$0xff]
          %v2086 = vld [vmem:[%s1122 + $0x320] sm:$0xff]
          %v2087 = vld [vmem:[%s1122 + $0x328] sm:$0xff]
          %v2088 = vld [vmem:[%s1122 + $0x330] sm:$0xff]
          %v2089 = vld [vmem:[%s1122 + $0x338] sm:$0xff]
          %v2090 = vld [vmem:[%s1122 + $0x340] sm:$0xff]
          %v2091 = vld [vmem:[%s1122 + $0x348] sm:$0xff]
          %v2092 = vld [vmem:[%s1122 + $0x350] sm:$0xff]
          %v2093 = vld [vmem:[%s1122 + $0x358] sm:$0xff]
          %v2094 = vld [vmem:[%s1122 + $0x360] sm:$0xff]
          %v2095 = vld [vmem:[%s1122 + $0x368] sm:$0xff]
          %v2096 = vld [vmem:[%s1122 + $0x370] sm:$0xff]
          %v2097 = vld [vmem:[%s1122 + $0x378] sm:$0xff]
          %v2098 = vld [vmem:[%s1122 + $0x380] sm:$0xff]
          %v2099 = vld [vmem:[%s1122 + $0x388] sm:$0xff]
          %v2100 = vld [vmem:[%s1122 + $0x390] sm:$0xff]
          %v2101 = vld [vmem:[%s1122 + $0x398] sm:$0xff]
          %v2102 = vld [vmem:[%s1122 + $0x3a0] sm:$0xff]
          %v2103 = vld [vmem:[%s1122 + $0x3a8] sm:$0xff]
          %v2104 = vld [vmem:[%s1122 + $0x3b0] sm:$0xff]
          %v2105 = vld [vmem:[%s1122 + $0x3b8] sm:$0xff]
          %v2106 = vld [vmem:[%s1132] sm:$0x1f]
          %v2108 = vperm.slane %v2106, 0
          %v2109 = vperm.slane %v2106, 1
          %v2110 = vperm.slane %v2106, 2
          %v2111 = vperm.slane %v2106, 3
          %v2112 = vperm.slane %v2106, 4
          %v2119 = vsel %vm1530, %v1425, 0
          %v2122 = vsel %vm1530, %v1427, 0
          %2124 = vmatpush.msra.mxu0 %v2061
          %2125 = vmatpush.msra.mxu0 %v2056
          %2126 = vmatpush.msra.mxu0 %v2051
          %2127 = vmatpush.msra.mxu0 %v2046
          %2128 = vmatpush.msra.mxu0 %v2041
          %2129 = vmatpush.msra.mxu0 %v2036
          %2130 = vmatpush.msra.mxu0 %v2031
          %2131 = vmatpush.msra.mxu0 %v2026
          %2132 = vmatpush.msra.mxu0 %v2021
          %2133 = vmatpush.msra.mxu0 %v2016
          %2134 = vmatpush.msra.mxu0 %v2011
          %2135 = vmatpush.msra.mxu0 %v2006
          %2136 = vmatpush.msra.mxu0 %v2001
          %2137 = vmatpush.msra.mxu0 %v1996
          %2138 = vmatpush.msra.mxu0 %v1991
          %2139 = vmatpush.msra.mxu0 %v1986
          %2140 = vmatmul.f32.gmra.mxu0 %v1424
          %v2141 = vpop.f32.mrf.mxu0
          %v2142 = vadd.f32 %v2108, %v2141
          %2143 = vmatmul.f32.gmra.mxu0 %v1426
          %v2144 = vpop.f32.mrf.mxu0
          %v2145 = vadd.f32 %v2108, %v2144
          %2146 = vdwg.mxu0
          %2147 = vmatpush.msra.mxu0 0.0
          %2148 = vmatpush.msra.mxu0 0.0
          %2149 = vmatpush.msra.mxu0 0.0
          %2150 = vmatpush.msra.mxu0 0.0
          %2151 = vmatpush.msra.mxu0 0.0
          %2152 = vmatpush.msra.mxu0 0.0
          %2153 = vmatpush.msra.mxu0 0.0
          %2154 = vmatpush.msra.mxu0 0.0
          %2155 = vmatpush.msra.mxu0 %v2101
          %2156 = vmatpush.msra.mxu0 %v2096
          %2157 = vmatpush.msra.mxu0 %v2091
          %2158 = vmatpush.msra.mxu0 %v2086
          %2159 = vmatpush.msra.mxu0 %v2081
          %2160 = vmatpush.msra.mxu0 %v2076
          %2161 = vmatpush.msra.mxu0 %v2071
          %2162 = vmatpush.msra.mxu0 %v2066
          %2163 = vmatmul.f32.gmra.mxu0 %v2119
          %v2164 = vpop.f32.mrf.mxu0
          %v2165 = vadd.f32 %v2142, %v2164
          %2166 = vmatmul.f32.gmra.mxu0 %v2122
          %v2167 = vpop.f32.mrf.mxu0
          %v2168 = vadd.f32 %v2145, %v2167
          %2169 = vdwg.mxu0
          %2170 = vmatpush.msra.mxu0 %v2062
          %2171 = vmatpush.msra.mxu0 %v2057
          %2172 = vmatpush.msra.mxu0 %v2052
          %2173 = vmatpush.msra.mxu0 %v2047
          %2174 = vmatpush.msra.mxu0 %v2042
          %2175 = vmatpush.msra.mxu0 %v2037
          %2176 = vmatpush.msra.mxu0 %v2032
          %2177 = vmatpush.msra.mxu0 %v2027
          %2178 = vmatpush.msra.mxu0 %v2022
          %2179 = vmatpush.msra.mxu0 %v2017
          %2180 = vmatpush.msra.mxu0 %v2012
          %2181 = vmatpush.msra.mxu0 %v2007
          %2182 = vmatpush.msra.mxu0 %v2002
          %2183 = vmatpush.msra.mxu0 %v1997
          %2184 = vmatpush.msra.mxu0 %v1992
          %2185 = vmatpush.msra.mxu0 %v1987
          %2186 = vmatmul.f32.gmra.mxu0 %v1424
          %v2187 = vpop.f32.mrf.mxu0
          %v2188 = vadd.f32 %v2109, %v2187
          %2189 = vmatmul.f32.gmra.mxu0 %v1426
          %v2190 = vpop.f32.mrf.mxu0
          %v2191 = vadd.f32 %v2109, %v2190
          %2192 = vdwg.mxu0
          %2193 = vmatpush.msra.mxu0 0.0
          %2194 = vmatpush.msra.mxu0 0.0
          %2195 = vmatpush.msra.mxu0 0.0
          %2196 = vmatpush.msra.mxu0 0.0
          %2197 = vmatpush.msra.mxu0 0.0
          %2198 = vmatpush.msra.mxu0 0.0
          %2199 = vmatpush.msra.mxu0 0.0
          %2200 = vmatpush.msra.mxu0 0.0
          %2201 = vmatpush.msra.mxu0 %v2102
          %2202 = vmatpush.msra.mxu0 %v2097
          %2203 = vmatpush.msra.mxu0 %v2092
          %2204 = vmatpush.msra.mxu0 %v2087
          %2205 = vmatpush.msra.mxu0 %v2082
          %2206 = vmatpush.msra.mxu0 %v2077
          %2207 = vmatpush.msra.mxu0 %v2072
          %2208 = vmatpush.msra.mxu0 %v2067
          %2209 = vmatmul.f32.gmra.mxu0 %v2119
          %v2210 = vpop.f32.mrf.mxu0
          %v2211 = vadd.f32 %v2188, %v2210
          %2212 = vmatmul.f32.gmra.mxu0 %v2122
          %v2213 = vpop.f32.mrf.mxu0
          %v2214 = vadd.f32 %v2191, %v2213
          %2215 = vdwg.mxu0
          %2216 = vmatpush.msra.mxu0 %v2063
          %2217 = vmatpush.msra.mxu0 %v2058
          %2218 = vmatpush.msra.mxu0 %v2053
          %2219 = vmatpush.msra.mxu0 %v2048
          %2220 = vmatpush.msra.mxu0 %v2043
          %2221 = vmatpush.msra.mxu0 %v2038
          %2222 = vmatpush.msra.mxu0 %v2033
          %2223 = vmatpush.msra.mxu0 %v2028
          %2224 = vmatpush.msra.mxu0 %v2023
          %2225 = vmatpush.msra.mxu0 %v2018
          %2226 = vmatpush.msra.mxu0 %v2013
          %2227 = vmatpush.msra.mxu0 %v2008
          %2228 = vmatpush.msra.mxu0 %v2003
          %2229 = vmatpush.msra.mxu0 %v1998
          %2230 = vmatpush.msra.mxu0 %v1993
          %2231 = vmatpush.msra.mxu0 %v1988
          %2232 = vmatmul.f32.gmra.mxu0 %v1424
          %v2233 = vpop.f32.mrf.mxu0
          %v2234 = vadd.f32 %v2110, %v2233
          %2235 = vmatmul.f32.gmra.mxu0 %v1426
          %v2236 = vpop.f32.mrf.mxu0
          %v2237 = vadd.f32 %v2110, %v2236
          %2238 = vdwg.mxu0
          %2239 = vmatpush.msra.mxu0 0.0
          %2240 = vmatpush.msra.mxu0 0.0
          %2241 = vmatpush.msra.mxu0 0.0
          %2242 = vmatpush.msra.mxu0 0.0
          %2243 = vmatpush.msra.mxu0 0.0
          %2244 = vmatpush.msra.mxu0 0.0
          %2245 = vmatpush.msra.mxu0 0.0
          %2246 = vmatpush.msra.mxu0 0.0
          %2247 = vmatpush.msra.mxu0 %v2103
          %2248 = vmatpush.msra.mxu0 %v2098
          %2249 = vmatpush.msra.mxu0 %v2093
          %2250 = vmatpush.msra.mxu0 %v2088
          %2251 = vmatpush.msra.mxu0 %v2083
          %2252 = vmatpush.msra.mxu0 %v2078
          %2253 = vmatpush.msra.mxu0 %v2073
          %2254 = vmatpush.msra.mxu0 %v2068
          %2255 = vmatmul.f32.gmra.mxu0 %v2119
          %v2256 = vpop.f32.mrf.mxu0
          %v2257 = vadd.f32 %v2234, %v2256
          %2258 = vmatmul.f32.gmra.mxu0 %v2122
          %v2259 = vpop.f32.mrf.mxu0
          %v2260 = vadd.f32 %v2237, %v2259
          %2261 = vdwg.mxu0
          %2262 = vmatpush.msra.mxu0 %v2064
          %2263 = vmatpush.msra.mxu0 %v2059
          %2264 = vmatpush.msra.mxu0 %v2054
          %2265 = vmatpush.msra.mxu0 %v2049
          %2266 = vmatpush.msra.mxu0 %v2044
          %2267 = vmatpush.msra.mxu0 %v2039
          %2268 = vmatpush.msra.mxu0 %v2034
          %2269 = vmatpush.msra.mxu0 %v2029
          %2270 = vmatpush.msra.mxu0 %v2024
          %2271 = vmatpush.msra.mxu0 %v2019
          %2272 = vmatpush.msra.mxu0 %v2014
          %2273 = vmatpush.msra.mxu0 %v2009
          %2274 = vmatpush.msra.mxu0 %v2004
          %2275 = vmatpush.msra.mxu0 %v1999
          %2276 = vmatpush.msra.mxu0 %v1994
          %2277 = vmatpush.msra.mxu0 %v1989
          %2278 = vmatmul.f32.gmra.mxu0 %v1424
          %v2279 = vpop.f32.mrf.mxu0
          %v2280 = vadd.f32 %v2111, %v2279
          %2281 = vmatmul.f32.gmra.mxu0 %v1426
          %v2282 = vpop.f32.mrf.mxu0
          %v2283 = vadd.f32 %v2111, %v2282
          %2284 = vdwg.mxu0
          %2285 = vmatpush.msra.mxu0 0.0
          %2286 = vmatpush.msra.mxu0 0.0
          %2287 = vmatpush.msra.mxu0 0.0
          %2288 = vmatpush.msra.mxu0 0.0
          %2289 = vmatpush.msra.mxu0 0.0
          %2290 = vmatpush.msra.mxu0 0.0
          %2291 = vmatpush.msra.mxu0 0.0
          %2292 = vmatpush.msra.mxu0 0.0
          %2293 = vmatpush.msra.mxu0 %v2104
          %2294 = vmatpush.msra.mxu0 %v2099
          %2295 = vmatpush.msra.mxu0 %v2094
          %2296 = vmatpush.msra.mxu0 %v2089
          %2297 = vmatpush.msra.mxu0 %v2084
          %2298 = vmatpush.msra.mxu0 %v2079
          %2299 = vmatpush.msra.mxu0 %v2074
          %2300 = vmatpush.msra.mxu0 %v2069
          %2301 = vmatmul.f32.gmra.mxu0 %v2119
          %v2302 = vpop.f32.mrf.mxu0
          %v2303 = vadd.f32 %v2280, %v2302
          %2304 = vmatmul.f32.gmra.mxu0 %v2122
          %v2305 = vpop.f32.mrf.mxu0
          %v2306 = vadd.f32 %v2283, %v2305
          %2307 = vdwg.mxu0
          %2308 = vmatpush.msra.mxu0 %v2065
          %2309 = vmatpush.msra.mxu0 %v2060
          %2310 = vmatpush.msra.mxu0 %v2055
          %2311 = vmatpush.msra.mxu0 %v2050
          %2312 = vmatpush.msra.mxu0 %v2045
          %2313 = vmatpush.msra.mxu0 %v2040
          %2314 = vmatpush.msra.mxu0 %v2035
          %2315 = vmatpush.msra.mxu0 %v2030
          %2316 = vmatpush.msra.mxu0 %v2025
          %2317 = vmatpush.msra.mxu0 %v2020
          %2318 = vmatpush.msra.mxu0 %v2015
          %2319 = vmatpush.msra.mxu0 %v2010
          %2320 = vmatpush.msra.mxu0 %v2005
          %2321 = vmatpush.msra.mxu0 %v2000
          %2322 = vmatpush.msra.mxu0 %v1995
          %2323 = vmatpush.msra.mxu0 %v1990
          %2324 = vmatmul.f32.gmra.mxu0 %v1424
          %v2325 = vpop.f32.mrf.mxu0
          %v2326 = vadd.f32 %v2112, %v2325
          %2327 = vmatmul.f32.gmra.mxu0 %v1426
          %v2328 = vpop.f32.mrf.mxu0
          %v2329 = vadd.f32 %v2112, %v2328
          %2330 = vdwg.mxu0
          %2331 = vmatpush.msra.mxu0 0.0
          %2332 = vmatpush.msra.mxu0 0.0
          %2333 = vmatpush.msra.mxu0 0.0
          %2334 = vmatpush.msra.mxu0 0.0
          %2335 = vmatpush.msra.mxu0 0.0
          %2336 = vmatpush.msra.mxu0 0.0
          %2337 = vmatpush.msra.mxu0 0.0
          %2338 = vmatpush.msra.mxu0 0.0
          %2339 = vmatpush.msra.mxu0 %v2105
          %2340 = vmatpush.msra.mxu0 %v2100
          %2341 = vmatpush.msra.mxu0 %v2095
          %2342 = vmatpush.msra.mxu0 %v2090
          %2343 = vmatpush.msra.mxu0 %v2085
          %2344 = vmatpush.msra.mxu0 %v2080
          %2345 = vmatpush.msra.mxu0 %v2075
          %2346 = vmatpush.msra.mxu0 %v2070
          %2347 = vmatmul.f32.gmra.mxu0 %v2119
          %v2348 = vpop.f32.mrf.mxu0
          %v2349 = vadd.f32 %v2326, %v2348
          %2350 = vmatmul.f32.gmra.mxu0 %v2122
          %v2351 = vpop.f32.mrf.mxu0
          %v2352 = vadd.f32 %v2329, %v2351
          %2353 = vdwg.mxu0
          %v2354 = vmul.f32 %v2165, %v1706
          %v2355 = vmul.f32 %v2211, %v1707
          %v2356 = vmul.f32 %v2168, %v1708
          %v2357 = vmul.f32 %v2214, %v1709
          %v2358 = vmul.f32 %v2211, %v1947
          %v2359 = vmul.f32 %v2257, %v1954
          %v2360 = vmul.f32 %v2214, %v1951
          %v2361 = vmul.f32 %v2260, %v1955
          %2366 = vrot.lane.b32.xlu0 %v2358, 64
          %v2367 = vpop.permute.xlu0 %2366
          %2368 = vrot.lane.b32.xlu0 %v2359, 64
          %v2369 = vpop.permute.xlu0 %2368
          %2370 = vrot.lane.b32.xlu0 %v2360, 64
          %v2371 = vpop.permute.xlu0 %2370
          %2372 = vrot.lane.b32.xlu0 %v2361, 64
          %v2373 = vpop.permute.xlu0 %2372
          %v2374 = vsel %vm1530, %v2367, %v2369
          %v2375 = vsel %vm1530, %v2371, %v2373
          %v2380 = vadd.f32 %v2354, %v2374
          %v2381 = vadd.f32 %v2355, %v2369
          %v2382 = vadd.f32 %v2356, %v2375
          %v2383 = vadd.f32 %v2357, %v2373
          %v2384 = vld [vmem:[%s1142] sm:$0xff]
          %v2385 = vld [vmem:[%s1142 + $0x8] sm:$0xff]
          %v2386 = vld [vmem:[%s1142 + $0x10] sm:$0xff]
          %v2387 = vld [vmem:[%s1142 + $0x18] sm:$0xff]
          %v2388 = vld [vmem:[%s1142 + $0x20] sm:$0xff]
          %v2389 = vld [vmem:[%s1142 + $0x28] sm:$0xff]
          %v2390 = vld [vmem:[%s1142 + $0x30] sm:$0xff]
          %v2391 = vld [vmem:[%s1142 + $0x38] sm:$0xff]
          %v2392 = vld [vmem:[%s1142 + $0x40] sm:$0xff]
          %v2393 = vld [vmem:[%s1142 + $0x48] sm:$0xff]
          %v2394 = vld [vmem:[%s1142 + $0x50] sm:$0xff]
          %v2395 = vld [vmem:[%s1142 + $0x58] sm:$0xff]
          %v2396 = vld [vmem:[%s1142 + $0x60] sm:$0xff]
          %v2397 = vld [vmem:[%s1142 + $0x68] sm:$0xff]
          %v2398 = vld [vmem:[%s1142 + $0x70] sm:$0xff]
          %v2399 = vld [vmem:[%s1142 + $0x78] sm:$0xff]
          %v2400 = vld [vmem:[%s1142 + $0x80] sm:$0xff]
          %v2401 = vld [vmem:[%s1142 + $0x88] sm:$0xff]
          %v2402 = vld [vmem:[%s1142 + $0x90] sm:$0xff]
          %v2403 = vld [vmem:[%s1142 + $0x98] sm:$0xff]
          %v2404 = vld [vmem:[%s1142 + $0xa0] sm:$0xff]
          %v2405 = vld [vmem:[%s1142 + $0xa8] sm:$0xff]
          %v2406 = vld [vmem:[%s1142 + $0xb0] sm:$0xff]
          %v2407 = vld [vmem:[%s1142 + $0xb8] sm:$0xff]
          %v2408 = vld [vmem:[%s1142 + $0xc0] sm:$0xff]
          %v2409 = vld [vmem:[%s1142 + $0xc8] sm:$0xff]
          %v2410 = vld [vmem:[%s1142 + $0xd0] sm:$0xff]
          %v2411 = vld [vmem:[%s1142 + $0xd8] sm:$0xff]
          %v2412 = vld [vmem:[%s1142 + $0xe0] sm:$0xff]
          %v2413 = vld [vmem:[%s1142 + $0xe8] sm:$0xff]
          %v2414 = vld [vmem:[%s1142 + $0xf0] sm:$0xff]
          %v2415 = vld [vmem:[%s1142 + $0xf8] sm:$0xff]
          %v2416 = vld [vmem:[%s1142 + $0x100] sm:$0xff]
          %v2417 = vld [vmem:[%s1142 + $0x108] sm:$0xff]
          %v2418 = vld [vmem:[%s1142 + $0x110] sm:$0xff]
          %v2419 = vld [vmem:[%s1142 + $0x118] sm:$0xff]
          %v2420 = vld [vmem:[%s1142 + $0x120] sm:$0xff]
          %v2421 = vld [vmem:[%s1142 + $0x128] sm:$0xff]
          %v2422 = vld [vmem:[%s1142 + $0x130] sm:$0xff]
          %v2423 = vld [vmem:[%s1142 + $0x138] sm:$0xff]
          %v2424 = vld [vmem:[%s1142 + $0x140] sm:$0xff]
          %v2425 = vld [vmem:[%s1142 + $0x148] sm:$0xff]
          %v2426 = vld [vmem:[%s1142 + $0x150] sm:$0xff]
          %v2427 = vld [vmem:[%s1142 + $0x158] sm:$0xff]
          %v2428 = vld [vmem:[%s1142 + $0x160] sm:$0xff]
          %v2429 = vld [vmem:[%s1142 + $0x168] sm:$0xff]
          %v2430 = vld [vmem:[%s1142 + $0x170] sm:$0xff]
          %v2431 = vld [vmem:[%s1142 + $0x178] sm:$0xff]
          %v2432 = vmul.f32 %v1982, 0.20412415
          %vm2433 = vcmask 195584
          %v2435 = vsel %vm2433, %v2432, 0
          %v2438 = vsel %vm2433, %v2380, 0
          %2440 = vmatpush.xpose.msra.mxu0 0.0
          %2441 = vmatpush.xpose.msra.mxu0 0.0
          %2442 = vmatpush.xpose.msra.mxu0 0.0
          %2443 = vmatpush.xpose.msra.mxu0 0.0
          %2444 = vmatpush.xpose.msra.mxu0 0.0
          %2445 = vmatpush.xpose.msra.mxu0 0.0
          %2446 = vmatpush.xpose.msra.mxu0 0.0
          %2447 = vmatpush.xpose.msra.mxu0 0.0
          %2448 = vmatpush.xpose.msra.mxu0 0.0
          %2449 = vmatpush.xpose.msra.mxu0 0.0
          %2450 = vmatpush.xpose.msra.mxu0 0.0
          %2451 = vmatpush.xpose.msra.mxu0 0.0
          %2452 = vmatpush.xpose.msra.mxu0 0.0
          %2453 = vmatpush.xpose.msra.mxu0 0.0
          %2454 = vmatpush.xpose.msra.mxu0 0.0
          %2455 = vmatpush.xpose.msra.mxu0 %v2438
          %2456 = vmatmul.f32.gmra.mxu0 %v2435
          %v2457 = vpop.f32.mrf.mxu0
          %v2458 = vadd.f32 0.0, %v2457
          %2459 = vdwg.mxu0
          %vm2460 = vcmask 64512
          %v2461 = vsel %vm2460, %v2458, -inf
          %2462 = vmax.xlane.f32.xlu0 %v2461
          %v2463 = vpop.xlane.xlu0 %2462
          %v2464 = vsub.f32 %v2458, %v2463
          %v2465 = vmul.f32 %v2464, 1.442695
          %v2466 = vpow.pop %v2465
          %v2467 = vsel %vm2460, %v2466, 0.0
          %2468 = vadd.xlane.f32.xlu0 %v2467
          %v2469 = vpop.xlane.xlu0 %2468
          %v2470 = vrcp.pop %v2469
          %v2471 = vmul.f32 %v2469, %v2470
          %v2472 = vsub.f32 1.0, %v2471
          %v2473 = vmul.f32 %v2470, %v2472
          %v2474 = vadd.f32 %v2470, %v2473
          %vm2475 = vweird.f32 %v2469
          %vm2476 = vweird.f32 %v2470
          %vm2477 = vmor %vm2475, %vm2476
          %v2478 = vsel %vm2477, %v2470, %v2474
          %v2479 = vand.u32 2147483647, %v2469
          %vm2480 = vcmp.eq.f32.partialorder %v2479, 8.507059e+37
          %v2481 = vand.u32 %v2469, 2147483648
          %v2482 = vor.u32 1.1754944e-38, %v2481
          %v2483 = vsel %vm2480, %v2482, %v2478
          %v2484 = vmul.f32 %v2466, %v2483
          %v2486 = vsel %vm2460, %v2484, 0
          %2488 = vmatpush.msra.mxu0 0.0
          %2489 = vmatpush.msra.mxu0 0.0
          %2490 = vmatpush.msra.mxu0 0.0
          %2491 = vmatpush.msra.mxu0 0.0
          %2492 = vmatpush.msra.mxu0 0.0
          %2493 = vmatpush.msra.mxu0 0.0
          %2494 = vmatpush.msra.mxu0 0.0
          %2495 = vmatpush.msra.mxu0 0.0
          %2496 = vmatpush.msra.mxu0 0.0
          %2497 = vmatpush.msra.mxu0 0.0
          %2498 = vmatpush.msra.mxu0 0.0
          %2499 = vmatpush.msra.mxu0 0.0
          %2500 = vmatpush.msra.mxu0 0.0
          %2501 = vmatpush.msra.mxu0 0.0
          %2502 = vmatpush.msra.mxu0 0.0
          %2503 = vmatpush.msra.mxu0 %v2303
          %2504 = vmatmul.f32.gmra.mxu0 %v2486
          %v2505 = vpop.f32.mrf.mxu0
          %v2506 = vadd.f32 0.0, %v2505
          %2507 = vdwg.mxu0
          %2508 = vrot.lane.b32.xlu0 %v2432, 104
          %v2509 = vpop.permute.xlu0 %2508
          %2510 = vrot.lane.b32.xlu0 %v2380, 104
          %v2511 = vpop.permute.xlu0 %2510
          %v2512 = vsel %vm2433, %v2509, 0
          %v2514 = vsel %vm2433, %v2511, 0
          %2516 = vmatpush.xpose.msra.mxu0 0.0
          %2517 = vmatpush.xpose.msra.mxu0 0.0
          %2518 = vmatpush.xpose.msra.mxu0 0.0
          %2519 = vmatpush.xpose.msra.mxu0 0.0
          %2520 = vmatpush.xpose.msra.mxu0 0.0
          %2521 = vmatpush.xpose.msra.mxu0 0.0
          %2522 = vmatpush.xpose.msra.mxu0 0.0
          %2523 = vmatpush.xpose.msra.mxu0 0.0
          %2524 = vmatpush.xpose.msra.mxu0 0.0
          %2525 = vmatpush.xpose.msra.mxu0 0.0
          %2526 = vmatpush.xpose.msra.mxu0 0.0
          %2527 = vmatpush.xpose.msra.mxu0 0.0
          %2528 = vmatpush.xpose.msra.mxu0 0.0
          %2529 = vmatpush.xpose.msra.mxu0 0.0
          %2530 = vmatpush.xpose.msra.mxu0 0.0
          %2531 = vmatpush.xpose.msra.mxu0 %v2514
          %2532 = vmatmul.f32.gmra.mxu0 %v2512
          %v2533 = vpop.f32.mrf.mxu0
          %v2534 = vadd.f32 0.0, %v2533
          %2535 = vdwg.mxu0
          %v2536 = vsel %vm2460, %v2534, -inf
          %2537 = vmax.xlane.f32.xlu0 %v2536
          %v2538 = vpop.xlane.xlu0 %2537
          %v2539 = vsub.f32 %v2534, %v2538
          %v2540 = vmul.f32 %v2539, 1.442695
          %v2541 = vpow.pop %v2540
          %v2542 = vsel %vm2460, %v2541, 0.0
          %2543 = vadd.xlane.f32.xlu0 %v2542
          %v2544 = vpop.xlane.xlu0 %2543
          %v2545 = vrcp.pop %v2544
          %v2546 = vmul.f32 %v2544, %v2545
          %v2547 = vsub.f32 1.0, %v2546
          %v2548 = vmul.f32 %v2545, %v2547
          %v2549 = vadd.f32 %v2545, %v2548
          %vm2550 = vweird.f32 %v2544
          %vm2551 = vweird.f32 %v2545
          %vm2552 = vmor %vm2550, %vm2551
          %v2553 = vsel %vm2552, %v2545, %v2549
          %v2554 = vand.u32 2147483647, %v2544
          %vm2555 = vcmp.eq.f32.partialorder %v2554, 8.507059e+37
          %v2556 = vand.u32 %v2544, 2147483648
          %v2557 = vor.u32 1.1754944e-38, %v2556
          %v2558 = vsel %vm2555, %v2557, %v2553
          %v2559 = vmul.f32 %v2541, %v2558
          %2561 = vrot.lane.b32.xlu0 %v2303, 104
          %v2562 = vpop.permute.xlu0 %2561
          %v2565 = vsel %vm2460, %v2559, 0
          %2567 = vmatpush.msra.mxu0 0.0
          %2568 = vmatpush.msra.mxu0 0.0
          %2569 = vmatpush.msra.mxu0 0.0
          %2570 = vmatpush.msra.mxu0 0.0
          %2571 = vmatpush.msra.mxu0 0.0
          %2572 = vmatpush.msra.mxu0 0.0
          %2573 = vmatpush.msra.mxu0 0.0
          %2574 = vmatpush.msra.mxu0 0.0
          %2575 = vmatpush.msra.mxu0 0.0
          %2576 = vmatpush.msra.mxu0 0.0
          %2577 = vmatpush.msra.mxu0 0.0
          %2578 = vmatpush.msra.mxu0 0.0
          %2579 = vmatpush.msra.mxu0 0.0
          %2580 = vmatpush.msra.mxu0 0.0
          %2581 = vmatpush.msra.mxu0 0.0
          %2582 = vmatpush.msra.mxu0 %v2562
          %2583 = vmatmul.f32.gmra.mxu0 %v2565
          %v2584 = vpop.f32.mrf.mxu0
          %v2585 = vadd.f32 0.0, %v2584
          %2586 = vdwg.mxu0
          %v2588 = vsel %vm2433, %v2585, 0
          %2590 = vmatpush.msra.mxu0 0.0
          %2591 = vmatpush.msra.mxu0 0.0
          %2592 = vmatpush.msra.mxu0 0.0
          %2593 = vmatpush.msra.mxu0 0.0
          %2594 = vmatpush.msra.mxu0 0.0
          %2595 = vmatpush.msra.mxu0 0.0
          %2596 = vmatpush.msra.mxu0 0.0
          %2597 = vmatpush.msra.mxu0 0.0
          %2598 = vmatpush.msra.mxu0 0.0
          %2599 = vmatpush.msra.mxu0 0.0
          %2600 = vmatpush.msra.mxu0 0.0
          %2601 = vmatpush.msra.mxu0 0.0
          %2602 = vmatpush.msra.mxu0 0.0
          %2603 = vmatpush.msra.mxu0 %v2394
          %2604 = vmatpush.msra.mxu0 %v2392
          %2605 = vmatpush.msra.mxu0 %v2390
          %2606 = vmatmul.f32.gmra.mxu0 %v2588
          %v2607 = vpop.f32.mrf.mxu0
          %v2608 = vadd.f32 0.0, %v2607
          %2609 = vdwg.mxu0
          %2610 = vmatpush.msra.mxu0 0.0
          %2611 = vmatpush.msra.mxu0 0.0
          %2612 = vmatpush.msra.mxu0 0.0
          %2613 = vmatpush.msra.mxu0 0.0
          %2614 = vmatpush.msra.mxu0 0.0
          %2615 = vmatpush.msra.mxu0 0.0
          %2616 = vmatpush.msra.mxu0 0.0
          %2617 = vmatpush.msra.mxu0 0.0
          %2618 = vmatpush.msra.mxu0 0.0
          %2619 = vmatpush.msra.mxu0 0.0
          %2620 = vmatpush.msra.mxu0 0.0
          %2621 = vmatpush.msra.mxu0 0.0
          %2622 = vmatpush.msra.mxu0 0.0
          %2623 = vmatpush.msra.mxu0 %v2395
          %2624 = vmatpush.msra.mxu0 %v2393
          %2625 = vmatpush.msra.mxu0 %v2391
          %2626 = vmatmul.f32.gmra.mxu0 %v2588
          %v2627 = vpop.f32.mrf.mxu0
          %v2628 = vadd.f32 0.0, %v2627
          %2629 = vdwg.mxu0
          %v2631 = vsel %vm2433, %v2506, 0
          %2633 = vmatpush.msra.mxu0 0.0
          %2634 = vmatpush.msra.mxu0 0.0
          %2635 = vmatpush.msra.mxu0 0.0
          %2636 = vmatpush.msra.mxu0 0.0
          %2637 = vmatpush.msra.mxu0 0.0
          %2638 = vmatpush.msra.mxu0 0.0
          %2639 = vmatpush.msra.mxu0 0.0
          %2640 = vmatpush.msra.mxu0 0.0
          %2641 = vmatpush.msra.mxu0 0.0
          %2642 = vmatpush.msra.mxu0 0.0
          %2643 = vmatpush.msra.mxu0 0.0
          %2644 = vmatpush.msra.mxu0 0.0
          %2645 = vmatpush.msra.mxu0 0.0
          %2646 = vmatpush.msra.mxu0 %v2388
          %2647 = vmatpush.msra.mxu0 %v2386
          %2648 = vmatpush.msra.mxu0 %v2384
          %2649 = vmatmul.f32.gmra.mxu0 %v2631
          %v2650 = vpop.f32.mrf.mxu0
          %v2651 = vadd.f32 %v2608, %v2650
          %2652 = vdwg.mxu0
          %2653 = vmatpush.msra.mxu0 0.0
          %2654 = vmatpush.msra.mxu0 0.0
          %2655 = vmatpush.msra.mxu0 0.0
          %2656 = vmatpush.msra.mxu0 0.0
          %2657 = vmatpush.msra.mxu0 0.0
          %2658 = vmatpush.msra.mxu0 0.0
          %2659 = vmatpush.msra.mxu0 0.0
          %2660 = vmatpush.msra.mxu0 0.0
          %2661 = vmatpush.msra.mxu0 0.0
          %2662 = vmatpush.msra.mxu0 0.0
          %2663 = vmatpush.msra.mxu0 0.0
          %2664 = vmatpush.msra.mxu0 0.0
          %2665 = vmatpush.msra.mxu0 0.0
          %2666 = vmatpush.msra.mxu0 %v2389
          %2667 = vmatpush.msra.mxu0 %v2387
          %2668 = vmatpush.msra.mxu0 %v2385
          %2669 = vmatmul.f32.gmra.mxu0 %v2631
          %v2670 = vpop.f32.mrf.mxu0
          %v2671 = vadd.f32 %v2628, %v2670
          %2672 = vdwg.mxu0
          %2673 = vrot.lane.b32.xlu0 %v2432, 80
          %v2674 = vpop.permute.xlu0 %2673
          %2675 = vrot.lane.b32.xlu0 %v2380, 80
          %v2676 = vpop.permute.xlu0 %2675
          %v2677 = vsel %vm2433, %v2674, 0
          %v2679 = vsel %vm2433, %v2676, 0
          %2681 = vmatpush.xpose.msra.mxu0 0.0
          %2682 = vmatpush.xpose.msra.mxu0 0.0
          %2683 = vmatpush.xpose.msra.mxu0 0.0
          %2684 = vmatpush.xpose.msra.mxu0 0.0
          %2685 = vmatpush.xpose.msra.mxu0 0.0
          %2686 = vmatpush.xpose.msra.mxu0 0.0
          %2687 = vmatpush.xpose.msra.mxu0 0.0
          %2688 = vmatpush.xpose.msra.mxu0 0.0
          %2689 = vmatpush.xpose.msra.mxu0 0.0
          %2690 = vmatpush.xpose.msra.mxu0 0.0
          %2691 = vmatpush.xpose.msra.mxu0 0.0
          %2692 = vmatpush.xpose.msra.mxu0 0.0
          %2693 = vmatpush.xpose.msra.mxu0 0.0
          %2694 = vmatpush.xpose.msra.mxu0 0.0
          %2695 = vmatpush.xpose.msra.mxu0 0.0
          %2696 = vmatpush.xpose.msra.mxu0 %v2679
          %2697 = vmatmul.f32.gmra.mxu0 %v2677
          %v2698 = vpop.f32.mrf.mxu0
          %v2699 = vadd.f32 0.0, %v2698
          %2700 = vdwg.mxu0
          %v2701 = vsel %vm2460, %v2699, -inf
          %2702 = vmax.xlane.f32.xlu0 %v2701
          %v2703 = vpop.xlane.xlu0 %2702
          %v2704 = vsub.f32 %v2699, %v2703
          %v2705 = vmul.f32 %v2704, 1.442695
          %v2706 = vpow.pop %v2705
          %v2707 = vsel %vm2460, %v2706, 0.0
          %2708 = vadd.xlane.f32.xlu0 %v2707
          %v2709 = vpop.xlane.xlu0 %2708
          %v2710 = vrcp.pop %v2709
          %v2711 = vmul.f32 %v2709, %v2710
          %v2712 = vsub.f32 1.0, %v2711
          %v2713 = vmul.f32 %v2710, %v2712
          %v2714 = vadd.f32 %v2710, %v2713
          %vm2715 = vweird.f32 %v2709
          %vm2716 = vweird.f32 %v2710
          %vm2717 = vmor %vm2715, %vm2716
          %v2718 = vsel %vm2717, %v2710, %v2714
          %v2719 = vand.u32 2147483647, %v2709
          %vm2720 = vcmp.eq.f32.partialorder %v2719, 8.507059e+37
          %v2721 = vand.u32 %v2709, 2147483648
          %v2722 = vor.u32 1.1754944e-38, %v2721
          %v2723 = vsel %vm2720, %v2722, %v2718
          %v2724 = vmul.f32 %v2706, %v2723
          %2725 = vrot.lane.b32.xlu0 %v2303, 80
          %v2726 = vpop.permute.xlu0 %2725
          %v2729 = vsel %vm2460, %v2724, 0
          %2731 = vmatpush.msra.mxu0 0.0
          %2732 = vmatpush.msra.mxu0 0.0
          %2733 = vmatpush.msra.mxu0 0.0
          %2734 = vmatpush.msra.mxu0 0.0
          %2735 = vmatpush.msra.mxu0 0.0
          %2736 = vmatpush.msra.mxu0 0.0
          %2737 = vmatpush.msra.mxu0 0.0
          %2738 = vmatpush.msra.mxu0 0.0
          %2739 = vmatpush.msra.mxu0 0.0
          %2740 = vmatpush.msra.mxu0 0.0
          %2741 = vmatpush.msra.mxu0 0.0
          %2742 = vmatpush.msra.mxu0 0.0
          %2743 = vmatpush.msra.mxu0 0.0
          %2744 = vmatpush.msra.mxu0 0.0
          %2745 = vmatpush.msra.mxu0 0.0
          %2746 = vmatpush.msra.mxu0 %v2726
          %2747 = vmatmul.f32.gmra.mxu0 %v2729
          %v2748 = vpop.f32.mrf.mxu0
          %v2749 = vadd.f32 0.0, %v2748
          %2750 = vdwg.mxu0
          %v2752 = vsel %vm2433, %v2749, 0
          %2754 = vmatpush.msra.mxu0 0.0
          %2755 = vmatpush.msra.mxu0 0.0
          %2756 = vmatpush.msra.mxu0 0.0
          %2757 = vmatpush.msra.mxu0 0.0
          %2758 = vmatpush.msra.mxu0 0.0
          %2759 = vmatpush.msra.mxu0 0.0
          %2760 = vmatpush.msra.mxu0 0.0
          %2761 = vmatpush.msra.mxu0 0.0
          %2762 = vmatpush.msra.mxu0 0.0
          %2763 = vmatpush.msra.mxu0 0.0
          %2764 = vmatpush.msra.mxu0 0.0
          %2765 = vmatpush.msra.mxu0 0.0
          %2766 = vmatpush.msra.mxu0 0.0
          %2767 = vmatpush.msra.mxu0 %v2400
          %2768 = vmatpush.msra.mxu0 %v2398
          %2769 = vmatpush.msra.mxu0 %v2396
          %2770 = vmatmul.f32.gmra.mxu0 %v2752
          %v2771 = vpop.f32.mrf.mxu0
          %v2772 = vadd.f32 0.0, %v2771
          %2773 = vdwg.mxu0
          %2774 = vmatpush.msra.mxu0 0.0
          %2775 = vmatpush.msra.mxu0 0.0
          %2776 = vmatpush.msra.mxu0 0.0
          %2777 = vmatpush.msra.mxu0 0.0
          %2778 = vmatpush.msra.mxu0 0.0
          %2779 = vmatpush.msra.mxu0 0.0
          %2780 = vmatpush.msra.mxu0 0.0
          %2781 = vmatpush.msra.mxu0 0.0
          %2782 = vmatpush.msra.mxu0 0.0
          %2783 = vmatpush.msra.mxu0 0.0
          %2784 = vmatpush.msra.mxu0 0.0
          %2785 = vmatpush.msra.mxu0 0.0
          %2786 = vmatpush.msra.mxu0 0.0
          %2787 = vmatpush.msra.mxu0 %v2401
          %2788 = vmatpush.msra.mxu0 %v2399
          %2789 = vmatpush.msra.mxu0 %v2397
          %2790 = vmatmul.f32.gmra.mxu0 %v2752
          %v2791 = vpop.f32.mrf.mxu0
          %v2792 = vadd.f32 0.0, %v2791
          %2793 = vdwg.mxu0
          %v2794 = vadd.f32 %v2651, %v2772
          %v2795 = vadd.f32 %v2671, %v2792
          %2796 = vrot.lane.b32.xlu0 %v2432, 56
          %v2797 = vpop.permute.xlu0 %2796
          %2798 = vrot.lane.b32.xlu0 %v2380, 56
          %v2799 = vpop.permute.xlu0 %2798
          %v2800 = vsel %vm2433, %v2797, 0
          %v2802 = vsel %vm2433, %v2799, 0
          %2804 = vmatpush.xpose.msra.mxu0 0.0
          %2805 = vmatpush.xpose.msra.mxu0 0.0
          %2806 = vmatpush.xpose.msra.mxu0 0.0
          %2807 = vmatpush.xpose.msra.mxu0 0.0
          %2808 = vmatpush.xpose.msra.mxu0 0.0
          %2809 = vmatpush.xpose.msra.mxu0 0.0
          %2810 = vmatpush.xpose.msra.mxu0 0.0
          %2811 = vmatpush.xpose.msra.mxu0 0.0
          %2812 = vmatpush.xpose.msra.mxu0 0.0
          %2813 = vmatpush.xpose.msra.mxu0 0.0
          %2814 = vmatpush.xpose.msra.mxu0 0.0
          %2815 = vmatpush.xpose.msra.mxu0 0.0
          %2816 = vmatpush.xpose.msra.mxu0 0.0
          %2817 = vmatpush.xpose.msra.mxu0 0.0
          %2818 = vmatpush.xpose.msra.mxu0 0.0
          %2819 = vmatpush.xpose.msra.mxu0 %v2802
          %2820 = vmatmul.f32.gmra.mxu0 %v2800
          %v2821 = vpop.f32.mrf.mxu0
          %v2822 = vadd.f32 0.0, %v2821
          %2823 = vdwg.mxu0
          %v2824 = vsel %vm2460, %v2822, -inf
          %2825 = vmax.xlane.f32.xlu0 %v2824
          %v2826 = vpop.xlane.xlu0 %2825
          %v2827 = vsub.f32 %v2822, %v2826
          %v2828 = vmul.f32 %v2827, 1.442695
          %v2829 = vpow.pop %v2828
          %v2830 = vsel %vm2460, %v2829, 0.0
          %2831 = vadd.xlane.f32.xlu0 %v2830
          %v2832 = vpop.xlane.xlu0 %2831
          %v2833 = vrcp.pop %v2832
          %v2834 = vmul.f32 %v2832, %v2833
          %v2835 = vsub.f32 1.0, %v2834
          %v2836 = vmul.f32 %v2833, %v2835
          %v2837 = vadd.f32 %v2833, %v2836
          %vm2838 = vweird.f32 %v2832
          %vm2839 = vweird.f32 %v2833
          %vm2840 = vmor %vm2838, %vm2839
          %v2841 = vsel %vm2840, %v2833, %v2837
          %v2842 = vand.u32 2147483647, %v2832
          %vm2843 = vcmp.eq.f32.partialorder %v2842, 8.507059e+37
          %v2844 = vand.u32 %v2832, 2147483648
          %v2845 = vor.u32 1.1754944e-38, %v2844
          %v2846 = vsel %vm2843, %v2845, %v2841
          %v2847 = vmul.f32 %v2829, %v2846
          %2848 = vrot.lane.b32.xlu0 %v2303, 56
          %v2849 = vpop.permute.xlu0 %2848
          %v2852 = vsel %vm2460, %v2847, 0
          %2854 = vmatpush.msra.mxu0 0.0
          %2855 = vmatpush.msra.mxu0 0.0
          %2856 = vmatpush.msra.mxu0 0.0
          %2857 = vmatpush.msra.mxu0 0.0
          %2858 = vmatpush.msra.mxu0 0.0
          %2859 = vmatpush.msra.mxu0 0.0
          %2860 = vmatpush.msra.mxu0 0.0
          %2861 = vmatpush.msra.mxu0 0.0
          %2862 = vmatpush.msra.mxu0 0.0
          %2863 = vmatpush.msra.mxu0 0.0
          %2864 = vmatpush.msra.mxu0 0.0
          %2865 = vmatpush.msra.mxu0 0.0
          %2866 = vmatpush.msra.mxu0 0.0
          %2867 = vmatpush.msra.mxu0 0.0
          %2868 = vmatpush.msra.mxu0 0.0
          %2869 = vmatpush.msra.mxu0 %v2849
          %2870 = vmatmul.f32.gmra.mxu0 %v2852
          %v2871 = vpop.f32.mrf.mxu0
          %v2872 = vadd.f32 0.0, %v2871
          %2873 = vdwg.mxu0
          %v2875 = vsel %vm2433, %v2872, 0
          %2877 = vmatpush.msra.mxu0 0.0
          %2878 = vmatpush.msra.mxu0 0.0
          %2879 = vmatpush.msra.mxu0 0.0
          %2880 = vmatpush.msra.mxu0 0.0
          %2881 = vmatpush.msra.mxu0 0.0
          %2882 = vmatpush.msra.mxu0 0.0
          %2883 = vmatpush.msra.mxu0 0.0
          %2884 = vmatpush.msra.mxu0 0.0
          %2885 = vmatpush.msra.mxu0 0.0
          %2886 = vmatpush.msra.mxu0 0.0
          %2887 = vmatpush.msra.mxu0 0.0
          %2888 = vmatpush.msra.mxu0 0.0
          %2889 = vmatpush.msra.mxu0 0.0
          %2890 = vmatpush.msra.mxu0 %v2406
          %2891 = vmatpush.msra.mxu0 %v2404
          %2892 = vmatpush.msra.mxu0 %v2402
          %2893 = vmatmul.f32.gmra.mxu0 %v2875
          %v2894 = vpop.f32.mrf.mxu0
          %v2895 = vadd.f32 0.0, %v2894
          %2896 = vdwg.mxu0
          %2897 = vmatpush.msra.mxu0 0.0
          %2898 = vmatpush.msra.mxu0 0.0
          %2899 = vmatpush.msra.mxu0 0.0
          %2900 = vmatpush.msra.mxu0 0.0
          %2901 = vmatpush.msra.mxu0 0.0
          %2902 = vmatpush.msra.mxu0 0.0
          %2903 = vmatpush.msra.mxu0 0.0
          %2904 = vmatpush.msra.mxu0 0.0
          %2905 = vmatpush.msra.mxu0 0.0
          %2906 = vmatpush.msra.mxu0 0.0
          %2907 = vmatpush.msra.mxu0 0.0
          %2908 = vmatpush.msra.mxu0 0.0
          %2909 = vmatpush.msra.mxu0 0.0
          %2910 = vmatpush.msra.mxu0 %v2407
          %2911 = vmatpush.msra.mxu0 %v2405
          %2912 = vmatpush.msra.mxu0 %v2403
          %2913 = vmatmul.f32.gmra.mxu0 %v2875
          %v2914 = vpop.f32.mrf.mxu0
          %v2915 = vadd.f32 0.0, %v2914
          %2916 = vdwg.mxu0
          %v2917 = vadd.f32 %v2794, %v2895
          %v2918 = vadd.f32 %v2795, %v2915
          %2919 = vrot.lane.b32.xlu0 %v2432, 32
          %v2920 = vpop.permute.xlu0 %2919
          %2921 = vrot.lane.b32.xlu0 %v2380, 32
          %v2922 = vpop.permute.xlu0 %2921
          %v2923 = vsel %vm2433, %v2920, 0
          %v2925 = vsel %vm2433, %v2922, 0
          %2927 = vmatpush.xpose.msra.mxu0 0.0
          %2928 = vmatpush.xpose.msra.mxu0 0.0
          %2929 = vmatpush.xpose.msra.mxu0 0.0
          %2930 = vmatpush.xpose.msra.mxu0 0.0
          %2931 = vmatpush.xpose.msra.mxu0 0.0
          %2932 = vmatpush.xpose.msra.mxu0 0.0
          %2933 = vmatpush.xpose.msra.mxu0 0.0
          %2934 = vmatpush.xpose.msra.mxu0 0.0
          %2935 = vmatpush.xpose.msra.mxu0 0.0
          %2936 = vmatpush.xpose.msra.mxu0 0.0
          %2937 = vmatpush.xpose.msra.mxu0 0.0
          %2938 = vmatpush.xpose.msra.mxu0 0.0
          %2939 = vmatpush.xpose.msra.mxu0 0.0
          %2940 = vmatpush.xpose.msra.mxu0 0.0
          %2941 = vmatpush.xpose.msra.mxu0 0.0
          %2942 = vmatpush.xpose.msra.mxu0 %v2925
          %2943 = vmatmul.f32.gmra.mxu0 %v2923
          %v2944 = vpop.f32.mrf.mxu0
          %v2945 = vadd.f32 0.0, %v2944
          %2946 = vdwg.mxu0
          %v2947 = vsel %vm2460, %v2945, -inf
          %2948 = vmax.xlane.f32.xlu0 %v2947
          %v2949 = vpop.xlane.xlu0 %2948
          %v2950 = vsub.f32 %v2945, %v2949
          %v2951 = vmul.f32 %v2950, 1.442695
          %v2952 = vpow.pop %v2951
          %v2953 = vsel %vm2460, %v2952, 0.0
          %2954 = vadd.xlane.f32.xlu0 %v2953
          %v2955 = vpop.xlane.xlu0 %2954
          %v2956 = vrcp.pop %v2955
          %v2957 = vmul.f32 %v2955, %v2956
          %v2958 = vsub.f32 1.0, %v2957
          %v2959 = vmul.f32 %v2956, %v2958
          %v2960 = vadd.f32 %v2956, %v2959
          %vm2961 = vweird.f32 %v2955
          %vm2962 = vweird.f32 %v2956
          %vm2963 = vmor %vm2961, %vm2962
          %v2964 = vsel %vm2963, %v2956, %v2960
          %v2965 = vand.u32 2147483647, %v2955
          %vm2966 = vcmp.eq.f32.partialorder %v2965, 8.507059e+37
          %v2967 = vand.u32 %v2955, 2147483648
          %v2968 = vor.u32 1.1754944e-38, %v2967
          %v2969 = vsel %vm2966, %v2968, %v2964
          %v2970 = vmul.f32 %v2952, %v2969
          %2971 = vrot.lane.b32.xlu0 %v2303, 32
          %v2972 = vpop.permute.xlu0 %2971
          %v2975 = vsel %vm2460, %v2970, 0
          %2977 = vmatpush.msra.mxu0 0.0
          %2978 = vmatpush.msra.mxu0 0.0
          %2979 = vmatpush.msra.mxu0 0.0
          %2980 = vmatpush.msra.mxu0 0.0
          %2981 = vmatpush.msra.mxu0 0.0
          %2982 = vmatpush.msra.mxu0 0.0
          %2983 = vmatpush.msra.mxu0 0.0
          %2984 = vmatpush.msra.mxu0 0.0
          %2985 = vmatpush.msra.mxu0 0.0
          %2986 = vmatpush.msra.mxu0 0.0
          %2987 = vmatpush.msra.mxu0 0.0
          %2988 = vmatpush.msra.mxu0 0.0
          %2989 = vmatpush.msra.mxu0 0.0
          %2990 = vmatpush.msra.mxu0 0.0
          %2991 = vmatpush.msra.mxu0 0.0
          %2992 = vmatpush.msra.mxu0 %v2972
          %2993 = vmatmul.f32.gmra.mxu0 %v2975
          %v2994 = vpop.f32.mrf.mxu0
          %v2995 = vadd.f32 0.0, %v2994
          %2996 = vdwg.mxu0
          %v2998 = vsel %vm2433, %v2995, 0
          %3000 = vmatpush.msra.mxu0 0.0
          %3001 = vmatpush.msra.mxu0 0.0
          %3002 = vmatpush.msra.mxu0 0.0
          %3003 = vmatpush.msra.mxu0 0.0
          %3004 = vmatpush.msra.mxu0 0.0
          %3005 = vmatpush.msra.mxu0 0.0
          %3006 = vmatpush.msra.mxu0 0.0
          %3007 = vmatpush.msra.mxu0 0.0
          %3008 = vmatpush.msra.mxu0 0.0
          %3009 = vmatpush.msra.mxu0 0.0
          %3010 = vmatpush.msra.mxu0 0.0
          %3011 = vmatpush.msra.mxu0 0.0
          %3012 = vmatpush.msra.mxu0 0.0
          %3013 = vmatpush.msra.mxu0 %v2412
          %3014 = vmatpush.msra.mxu0 %v2410
          %3015 = vmatpush.msra.mxu0 %v2408
          %3016 = vmatmul.f32.gmra.mxu0 %v2998
          %v3017 = vpop.f32.mrf.mxu0
          %v3018 = vadd.f32 0.0, %v3017
          %3019 = vdwg.mxu0
          %3020 = vmatpush.msra.mxu0 0.0
          %3021 = vmatpush.msra.mxu0 0.0
          %3022 = vmatpush.msra.mxu0 0.0
          %3023 = vmatpush.msra.mxu0 0.0
          %3024 = vmatpush.msra.mxu0 0.0
          %3025 = vmatpush.msra.mxu0 0.0
          %3026 = vmatpush.msra.mxu0 0.0
          %3027 = vmatpush.msra.mxu0 0.0
          %3028 = vmatpush.msra.mxu0 0.0
          %3029 = vmatpush.msra.mxu0 0.0
          %3030 = vmatpush.msra.mxu0 0.0
          %3031 = vmatpush.msra.mxu0 0.0
          %3032 = vmatpush.msra.mxu0 0.0
          %3033 = vmatpush.msra.mxu0 %v2413
          %3034 = vmatpush.msra.mxu0 %v2411
          %3035 = vmatpush.msra.mxu0 %v2409
          %3036 = vmatmul.f32.gmra.mxu0 %v2998
          %v3037 = vpop.f32.mrf.mxu0
          %v3038 = vadd.f32 0.0, %v3037
          %3039 = vdwg.mxu0
          %v3040 = vadd.f32 %v2917, %v3018
          %v3041 = vadd.f32 %v2918, %v3038
          %v3042 = vmul.f32 %v1983, 0.20412415
          %3044 = vrot.lane.b32.xlu0 %v2432, 8
          %v3045 = vpop.permute.xlu0 %3044
          %3046 = vrot.lane.b32.xlu0 %v3042, 8
          %v3047 = vpop.permute.xlu0 %3046
          %v3048 = vsel %vm2460, %v3045, %v3047
          %3050 = vrot.lane.b32.xlu0 %v2380, 8
          %v3051 = vpop.permute.xlu0 %3050
          %3052 = vrot.lane.b32.xlu0 %v2381, 8
          %v3053 = vpop.permute.xlu0 %3052
          %v3054 = vsel %vm2460, %v3051, %v3053
          %v3055 = vsel %vm2433, %v3048, 0
          %v3057 = vsel %vm2433, %v3054, 0
          %3059 = vmatpush.xpose.msra.mxu0 0.0
          %3060 = vmatpush.xpose.msra.mxu0 0.0
          %3061 = vmatpush.xpose.msra.mxu0 0.0
          %3062 = vmatpush.xpose.msra.mxu0 0.0
          %3063 = vmatpush.xpose.msra.mxu0 0.0
          %3064 = vmatpush.xpose.msra.mxu0 0.0
          %3065 = vmatpush.xpose.msra.mxu0 0.0
          %3066 = vmatpush.xpose.msra.mxu0 0.0
          %3067 = vmatpush.xpose.msra.mxu0 0.0
          %3068 = vmatpush.xpose.msra.mxu0 0.0
          %3069 = vmatpush.xpose.msra.mxu0 0.0
          %3070 = vmatpush.xpose.msra.mxu0 0.0
          %3071 = vmatpush.xpose.msra.mxu0 0.0
          %3072 = vmatpush.xpose.msra.mxu0 0.0
          %3073 = vmatpush.xpose.msra.mxu0 0.0
          %3074 = vmatpush.xpose.msra.mxu0 %v3057
          %3075 = vmatmul.f32.gmra.mxu0 %v3055
          %v3076 = vpop.f32.mrf.mxu0
          %v3077 = vadd.f32 0.0, %v3076
          %3078 = vdwg.mxu0
          %v3079 = vsel %vm2460, %v3077, -inf
          %3080 = vmax.xlane.f32.xlu0 %v3079
          %v3081 = vpop.xlane.xlu0 %3080
          %v3082 = vsub.f32 %v3077, %v3081
          %v3083 = vmul.f32 %v3082, 1.442695
          %v3084 = vpow.pop %v3083
          %v3085 = vsel %vm2460, %v3084, 0.0
          %3086 = vadd.xlane.f32.xlu0 %v3085
          %v3087 = vpop.xlane.xlu0 %3086
          %v3088 = vrcp.pop %v3087
          %v3089 = vmul.f32 %v3087, %v3088
          %v3090 = vsub.f32 1.0, %v3089
          %v3091 = vmul.f32 %v3088, %v3090
          %v3092 = vadd.f32 %v3088, %v3091
          %vm3093 = vweird.f32 %v3087
          %vm3094 = vweird.f32 %v3088
          %vm3095 = vmor %vm3093, %vm3094
          %v3096 = vsel %vm3095, %v3088, %v3092
          %v3097 = vand.u32 2147483647, %v3087
          %vm3098 = vcmp.eq.f32.partialorder %v3097, 8.507059e+37
          %v3099 = vand.u32 %v3087, 2147483648
          %v3100 = vor.u32 1.1754944e-38, %v3099
          %v3101 = vsel %vm3098, %v3100, %v3096
          %v3102 = vmul.f32 %v3084, %v3101
          %3104 = vrot.lane.b32.xlu0 %v2303, 8
          %v3105 = vpop.permute.xlu0 %3104
          %3106 = vrot.lane.b32.xlu0 %v2349, 8
          %v3107 = vpop.permute.xlu0 %3106
          %v3108 = vsel %vm2460, %v3105, %v3107
          %v3111 = vsel %vm2460, %v3102, 0
          %3113 = vmatpush.msra.mxu0 0.0
          %3114 = vmatpush.msra.mxu0 0.0
          %3115 = vmatpush.msra.mxu0 0.0
          %3116 = vmatpush.msra.mxu0 0.0
          %3117 = vmatpush.msra.mxu0 0.0
          %3118 = vmatpush.msra.mxu0 0.0
          %3119 = vmatpush.msra.mxu0 0.0
          %3120 = vmatpush.msra.mxu0 0.0
          %3121 = vmatpush.msra.mxu0 0.0
          %3122 = vmatpush.msra.mxu0 0.0
          %3123 = vmatpush.msra.mxu0 0.0
          %3124 = vmatpush.msra.mxu0 0.0
          %3125 = vmatpush.msra.mxu0 0.0
          %3126 = vmatpush.msra.mxu0 0.0
          %3127 = vmatpush.msra.mxu0 0.0
          %3128 = vmatpush.msra.mxu0 %v3108
          %3129 = vmatmul.f32.gmra.mxu0 %v3111
          %v3130 = vpop.f32.mrf.mxu0
          %v3131 = vadd.f32 0.0, %v3130
          %3132 = vdwg.mxu0
          %v3134 = vsel %vm2433, %v3131, 0
          %3136 = vmatpush.msra.mxu0 0.0
          %3137 = vmatpush.msra.mxu0 0.0
          %3138 = vmatpush.msra.mxu0 0.0
          %3139 = vmatpush.msra.mxu0 0.0
          %3140 = vmatpush.msra.mxu0 0.0
          %3141 = vmatpush.msra.mxu0 0.0
          %3142 = vmatpush.msra.mxu0 0.0
          %3143 = vmatpush.msra.mxu0 0.0
          %3144 = vmatpush.msra.mxu0 0.0
          %3145 = vmatpush.msra.mxu0 0.0
          %3146 = vmatpush.msra.mxu0 0.0
          %3147 = vmatpush.msra.mxu0 0.0
          %3148 = vmatpush.msra.mxu0 0.0
          %3149 = vmatpush.msra.mxu0 %v2418
          %3150 = vmatpush.msra.mxu0 %v2416
          %3151 = vmatpush.msra.mxu0 %v2414
          %3152 = vmatmul.f32.gmra.mxu0 %v3134
          %v3153 = vpop.f32.mrf.mxu0
          %v3154 = vadd.f32 0.0, %v3153
          %3155 = vdwg.mxu0
          %3156 = vmatpush.msra.mxu0 0.0
          %3157 = vmatpush.msra.mxu0 0.0
          %3158 = vmatpush.msra.mxu0 0.0
          %3159 = vmatpush.msra.mxu0 0.0
          %3160 = vmatpush.msra.mxu0 0.0
          %3161 = vmatpush.msra.mxu0 0.0
          %3162 = vmatpush.msra.mxu0 0.0
          %3163 = vmatpush.msra.mxu0 0.0
          %3164 = vmatpush.msra.mxu0 0.0
          %3165 = vmatpush.msra.mxu0 0.0
          %3166 = vmatpush.msra.mxu0 0.0
          %3167 = vmatpush.msra.mxu0 0.0
          %3168 = vmatpush.msra.mxu0 0.0
          %3169 = vmatpush.msra.mxu0 %v2419
          %3170 = vmatpush.msra.mxu0 %v2417
          %3171 = vmatpush.msra.mxu0 %v2415
          %3172 = vmatmul.f32.gmra.mxu0 %v3134
          %v3173 = vpop.f32.mrf.mxu0
          %v3174 = vadd.f32 0.0, %v3173
          %3175 = vdwg.mxu0
          %v3176 = vadd.f32 %v3040, %v3154
          %v3177 = vadd.f32 %v3041, %v3174
          %3178 = vrot.lane.b32.xlu0 %v3042, 112
          %v3179 = vpop.permute.xlu0 %3178
          %3180 = vrot.lane.b32.xlu0 %v2381, 112
          %v3181 = vpop.permute.xlu0 %3180
          %v3182 = vsel %vm2433, %v3179, 0
          %v3184 = vsel %vm2433, %v3181, 0
          %3186 = vmatpush.xpose.msra.mxu0 0.0
          %3187 = vmatpush.xpose.msra.mxu0 0.0
          %3188 = vmatpush.xpose.msra.mxu0 0.0
          %3189 = vmatpush.xpose.msra.mxu0 0.0
          %3190 = vmatpush.xpose.msra.mxu0 0.0
          %3191 = vmatpush.xpose.msra.mxu0 0.0
          %3192 = vmatpush.xpose.msra.mxu0 0.0
          %3193 = vmatpush.xpose.msra.mxu0 0.0
          %3194 = vmatpush.xpose.msra.mxu0 0.0
          %3195 = vmatpush.xpose.msra.mxu0 0.0
          %3196 = vmatpush.xpose.msra.mxu0 0.0
          %3197 = vmatpush.xpose.msra.mxu0 0.0
          %3198 = vmatpush.xpose.msra.mxu0 0.0
          %3199 = vmatpush.xpose.msra.mxu0 0.0
          %3200 = vmatpush.xpose.msra.mxu0 0.0
          %3201 = vmatpush.xpose.msra.mxu0 %v3184
          %3202 = vmatmul.f32.gmra.mxu0 %v3182
          %v3203 = vpop.f32.mrf.mxu0
          %v3204 = vadd.f32 0.0, %v3203
          %3205 = vdwg.mxu0
          %v3206 = vsel %vm2460, %v3204, -inf
          %3207 = vmax.xlane.f32.xlu0 %v3206
          %v3208 = vpop.xlane.xlu0 %3207
          %v3209 = vsub.f32 %v3204, %v3208
          %v3210 = vmul.f32 %v3209, 1.442695
          %v3211 = vpow.pop %v3210
          %v3212 = vsel %vm2460, %v3211, 0.0
          %3213 = vadd.xlane.f32.xlu0 %v3212
          %v3214 = vpop.xlane.xlu0 %3213
          %v3215 = vrcp.pop %v3214
          %v3216 = vmul.f32 %v3214, %v3215
          %v3217 = vsub.f32 1.0, %v3216
          %v3218 = vmul.f32 %v3215, %v3217
          %v3219 = vadd.f32 %v3215, %v3218
          %vm3220 = vweird.f32 %v3214
          %vm3221 = vweird.f32 %v3215
          %vm3222 = vmor %vm3220, %vm3221
          %v3223 = vsel %vm3222, %v3215, %v3219
          %v3224 = vand.u32 2147483647, %v3214
          %vm3225 = vcmp.eq.f32.partialorder %v3224, 8.507059e+37
          %v3226 = vand.u32 %v3214, 2147483648
          %v3227 = vor.u32 1.1754944e-38, %v3226
          %v3228 = vsel %vm3225, %v3227, %v3223
          %v3229 = vmul.f32 %v3211, %v3228
          %3230 = vrot.lane.b32.xlu0 %v2349, 112
          %v3231 = vpop.permute.xlu0 %3230
          %v3234 = vsel %vm2460, %v3229, 0
          %3236 = vmatpush.msra.mxu0 0.0
          %3237 = vmatpush.msra.mxu0 0.0
          %3238 = vmatpush.msra.mxu0 0.0
          %3239 = vmatpush.msra.mxu0 0.0
          %3240 = vmatpush.msra.mxu0 0.0
          %3241 = vmatpush.msra.mxu0 0.0
          %3242 = vmatpush.msra.mxu0 0.0
          %3243 = vmatpush.msra.mxu0 0.0
          %3244 = vmatpush.msra.mxu0 0.0
          %3245 = vmatpush.msra.mxu0 0.0
          %3246 = vmatpush.msra.mxu0 0.0
          %3247 = vmatpush.msra.mxu0 0.0
          %3248 = vmatpush.msra.mxu0 0.0
          %3249 = vmatpush.msra.mxu0 0.0
          %3250 = vmatpush.msra.mxu0 0.0
          %3251 = vmatpush.msra.mxu0 %v3231
          %3252 = vmatmul.f32.gmra.mxu0 %v3234
          %v3253 = vpop.f32.mrf.mxu0
          %v3254 = vadd.f32 0.0, %v3253
          %3255 = vdwg.mxu0
          %v3257 = vsel %vm2433, %v3254, 0
          %3259 = vmatpush.msra.mxu0 0.0
          %3260 = vmatpush.msra.mxu0 0.0
          %3261 = vmatpush.msra.mxu0 0.0
          %3262 = vmatpush.msra.mxu0 0.0
          %3263 = vmatpush.msra.mxu0 0.0
          %3264 = vmatpush.msra.mxu0 0.0
          %3265 = vmatpush.msra.mxu0 0.0
          %3266 = vmatpush.msra.mxu0 0.0
          %3267 = vmatpush.msra.mxu0 0.0
          %3268 = vmatpush.msra.mxu0 0.0
          %3269 = vmatpush.msra.mxu0 0.0
          %3270 = vmatpush.msra.mxu0 0.0
          %3271 = vmatpush.msra.mxu0 0.0
          %3272 = vmatpush.msra.mxu0 %v2424
          %3273 = vmatpush.msra.mxu0 %v2422
          %3274 = vmatpush.msra.mxu0 %v2420
          %3275 = vmatmul.f32.gmra.mxu0 %v3257
          %v3276 = vpop.f32.mrf.mxu0
          %v3277 = vadd.f32 0.0, %v3276
          %3278 = vdwg.mxu0
          %3279 = vmatpush.msra.mxu0 0.0
          %3280 = vmatpush.msra.mxu0 0.0
          %3281 = vmatpush.msra.mxu0 0.0
          %3282 = vmatpush.msra.mxu0 0.0
          %3283 = vmatpush.msra.mxu0 0.0
          %3284 = vmatpush.msra.mxu0 0.0
          %3285 = vmatpush.msra.mxu0 0.0
          %3286 = vmatpush.msra.mxu0 0.0
          %3287 = vmatpush.msra.mxu0 0.0
          %3288 = vmatpush.msra.mxu0 0.0
          %3289 = vmatpush.msra.mxu0 0.0
          %3290 = vmatpush.msra.mxu0 0.0
          %3291 = vmatpush.msra.mxu0 0.0
          %3292 = vmatpush.msra.mxu0 %v2425
          %3293 = vmatpush.msra.mxu0 %v2423
          %3294 = vmatpush.msra.mxu0 %v2421
          %3295 = vmatmul.f32.gmra.mxu0 %v3257
          %v3296 = vpop.f32.mrf.mxu0
          %v3297 = vadd.f32 0.0, %v3296
          %3298 = vdwg.mxu0
          %v3299 = vadd.f32 %v3176, %v3277
          %v3300 = vadd.f32 %v3177, %v3297
          %3301 = vrot.lane.b32.xlu0 %v3042, 88
          %v3302 = vpop.permute.xlu0 %3301
          %3303 = vrot.lane.b32.xlu0 %v2381, 88
          %v3304 = vpop.permute.xlu0 %3303
          %v3305 = vsel %vm2433, %v3302, 0
          %v3307 = vsel %vm2433, %v3304, 0
          %3309 = vmatpush.xpose.msra.mxu0 0.0
          %3310 = vmatpush.xpose.msra.mxu0 0.0
          %3311 = vmatpush.xpose.msra.mxu0 0.0
          %3312 = vmatpush.xpose.msra.mxu0 0.0
          %3313 = vmatpush.xpose.msra.mxu0 0.0
          %3314 = vmatpush.xpose.msra.mxu0 0.0
          %3315 = vmatpush.xpose.msra.mxu0 0.0
          %3316 = vmatpush.xpose.msra.mxu0 0.0
          %3317 = vmatpush.xpose.msra.mxu0 0.0
          %3318 = vmatpush.xpose.msra.mxu0 0.0
          %3319 = vmatpush.xpose.msra.mxu0 0.0
          %3320 = vmatpush.xpose.msra.mxu0 0.0
          %3321 = vmatpush.xpose.msra.mxu0 0.0
          %3322 = vmatpush.xpose.msra.mxu0 0.0
          %3323 = vmatpush.xpose.msra.mxu0 0.0
          %3324 = vmatpush.xpose.msra.mxu0 %v3307
          %3325 = vmatmul.f32.gmra.mxu0 %v3305
          %v3326 = vpop.f32.mrf.mxu0
          %v3327 = vadd.f32 0.0, %v3326
          %3328 = vdwg.mxu0
          %v3329 = vsel %vm2460, %v3327, -inf
          %3330 = vmax.xlane.f32.xlu0 %v3329
          %v3331 = vpop.xlane.xlu0 %3330
          %v3332 = vsub.f32 %v3327, %v3331
          %v3333 = vmul.f32 %v3332, 1.442695
          %v3334 = vpow.pop %v3333
          %v3335 = vsel %vm2460, %v3334, 0.0
          %3336 = vadd.xlane.f32.xlu0 %v3335
          %v3337 = vpop.xlane.xlu0 %3336
          %v3338 = vrcp.pop %v3337
          %v3339 = vmul.f32 %v3337, %v3338
          %v3340 = vsub.f32 1.0, %v3339
          %v3341 = vmul.f32 %v3338, %v3340
          %v3342 = vadd.f32 %v3338, %v3341
          %vm3343 = vweird.f32 %v3337
          %vm3344 = vweird.f32 %v3338
          %vm3345 = vmor %vm3343, %vm3344
          %v3346 = vsel %vm3345, %v3338, %v3342
          %v3347 = vand.u32 2147483647, %v3337
          %vm3348 = vcmp.eq.f32.partialorder %v3347, 8.507059e+37
          %v3349 = vand.u32 %v3337, 2147483648
          %v3350 = vor.u32 1.1754944e-38, %v3349
          %v3351 = vsel %vm3348, %v3350, %v3346
          %v3352 = vmul.f32 %v3334, %v3351
          %3353 = vrot.lane.b32.xlu0 %v2349, 88
          %v3354 = vpop.permute.xlu0 %3353
          %v3357 = vsel %vm2460, %v3352, 0
          %3359 = vmatpush.msra.mxu0 0.0
          %3360 = vmatpush.msra.mxu0 0.0
          %3361 = vmatpush.msra.mxu0 0.0
          %3362 = vmatpush.msra.mxu0 0.0
          %3363 = vmatpush.msra.mxu0 0.0
          %3364 = vmatpush.msra.mxu0 0.0
          %3365 = vmatpush.msra.mxu0 0.0
          %3366 = vmatpush.msra.mxu0 0.0
          %3367 = vmatpush.msra.mxu0 0.0
          %3368 = vmatpush.msra.mxu0 0.0
          %3369 = vmatpush.msra.mxu0 0.0
          %3370 = vmatpush.msra.mxu0 0.0
          %3371 = vmatpush.msra.mxu0 0.0
          %3372 = vmatpush.msra.mxu0 0.0
          %3373 = vmatpush.msra.mxu0 0.0
          %3374 = vmatpush.msra.mxu0 %v3354
          %3375 = vmatmul.f32.gmra.mxu0 %v3357
          %v3376 = vpop.f32.mrf.mxu0
          %v3377 = vadd.f32 0.0, %v3376
          %3378 = vdwg.mxu0
          %v3380 = vsel %vm2433, %v3377, 0
          %3382 = vmatpush.msra.mxu0 0.0
          %3383 = vmatpush.msra.mxu0 0.0
          %3384 = vmatpush.msra.mxu0 0.0
          %3385 = vmatpush.msra.mxu0 0.0
          %3386 = vmatpush.msra.mxu0 0.0
          %3387 = vmatpush.msra.mxu0 0.0
          %3388 = vmatpush.msra.mxu0 0.0
          %3389 = vmatpush.msra.mxu0 0.0
          %3390 = vmatpush.msra.mxu0 0.0
          %3391 = vmatpush.msra.mxu0 0.0
          %3392 = vmatpush.msra.mxu0 0.0
          %3393 = vmatpush.msra.mxu0 0.0
          %3394 = vmatpush.msra.mxu0 0.0
          %3395 = vmatpush.msra.mxu0 %v2430
          %3396 = vmatpush.msra.mxu0 %v2428
          %3397 = vmatpush.msra.mxu0 %v2426
          %3398 = vmatmul.f32.gmra.mxu0 %v3380
          %v3399 = vpop.f32.mrf.mxu0
          %v3400 = vadd.f32 0.0, %v3399
          %3401 = vdwg.mxu0
          %3402 = vmatpush.msra.mxu0 0.0
          %3403 = vmatpush.msra.mxu0 0.0
          %3404 = vmatpush.msra.mxu0 0.0
          %3405 = vmatpush.msra.mxu0 0.0
          %3406 = vmatpush.msra.mxu0 0.0
          %3407 = vmatpush.msra.mxu0 0.0
          %3408 = vmatpush.msra.mxu0 0.0
          %3409 = vmatpush.msra.mxu0 0.0
          %3410 = vmatpush.msra.mxu0 0.0
          %3411 = vmatpush.msra.mxu0 0.0
          %3412 = vmatpush.msra.mxu0 0.0
          %3413 = vmatpush.msra.mxu0 0.0
          %3414 = vmatpush.msra.mxu0 0.0
          %3415 = vmatpush.msra.mxu0 %v2431
          %3416 = vmatpush.msra.mxu0 %v2429
          %3417 = vmatpush.msra.mxu0 %v2427
          %3418 = vmatmul.f32.gmra.mxu0 %v3380
          %v3419 = vpop.f32.mrf.mxu0
          %v3420 = vadd.f32 0.0, %v3419
          %3421 = vdwg.mxu0
          %v3422 = vadd.f32 %v3299, %v3400
          %v3423 = vadd.f32 %v3300, %v3420
          %v3424 = vld [vmem:[%s1152] sm:$0x3]
          %v3426 = vperm.slane %v3424, 0
          %v3427 = vperm.slane %v3424, 1
          %v3430 = vadd.f32 %v3422, %v3426
          %v3431 = vadd.f32 %v3423, %v3427
          %3432 = vst [vmem:[#allocation2] sm:$0xff] %v3430
          %3433 = vst.msk [vmem:[#allocation2 + $0x8] sm:$0xff] %vm1530, %v3431
          %v3434 = vmul.f32 %v1984, 0.20412415
          %v3436 = vsel %vm2433, %v3434, 0
          %v3439 = vsel %vm2433, %v2382, 0
          %3441 = vmatpush.xpose.msra.mxu0 0.0
          %3442 = vmatpush.xpose.msra.mxu0 0.0
          %3443 = vmatpush.xpose.msra.mxu0 0.0
          %3444 = vmatpush.xpose.msra.mxu0 0.0
          %3445 = vmatpush.xpose.msra.mxu0 0.0
          %3446 = vmatpush.xpose.msra.mxu0 0.0
          %3447 = vmatpush.xpose.msra.mxu0 0.0
          %3448 = vmatpush.xpose.msra.mxu0 0.0
          %3449 = vmatpush.xpose.msra.mxu0 0.0
          %3450 = vmatpush.xpose.msra.mxu0 0.0
          %3451 = vmatpush.xpose.msra.mxu0 0.0
          %3452 = vmatpush.xpose.msra.mxu0 0.0
          %3453 = vmatpush.xpose.msra.mxu0 0.0
          %3454 = vmatpush.xpose.msra.mxu0 0.0
          %3455 = vmatpush.xpose.msra.mxu0 0.0
          %3456 = vmatpush.xpose.msra.mxu0 %v3439
          %3457 = vmatmul.f32.gmra.mxu0 %v3436
          %v3458 = vpop.f32.mrf.mxu0
          %v3459 = vadd.f32 0.0, %v3458
          %3460 = vdwg.mxu0
          %v3461 = vsel %vm2460, %v3459, -inf
          %3462 = vmax.xlane.f32.xlu0 %v3461
          %v3463 = vpop.xlane.xlu0 %3462
          %v3464 = vsub.f32 %v3459, %v3463
          %v3465 = vmul.f32 %v3464, 1.442695
          %v3466 = vpow.pop %v3465
          %v3467 = vsel %vm2460, %v3466, 0.0
          %3468 = vadd.xlane.f32.xlu0 %v3467
          %v3469 = vpop.xlane.xlu0 %3468
          %v3470 = vrcp.pop %v3469
          %v3471 = vmul.f32 %v3469, %v3470
          %v3472 = vsub.f32 1.0, %v3471
          %v3473 = vmul.f32 %v3470, %v3472
          %v3474 = vadd.f32 %v3470, %v3473
          %vm3475 = vweird.f32 %v3469
          %vm3476 = vweird.f32 %v3470
          %vm3477 = vmor %vm3475, %vm3476
          %v3478 = vsel %vm3477, %v3470, %v3474
          %v3479 = vand.u32 2147483647, %v3469
          %vm3480 = vcmp.eq.f32.partialorder %v3479, 8.507059e+37
          %v3481 = vand.u32 %v3469, 2147483648
          %v3482 = vor.u32 1.1754944e-38, %v3481
          %v3483 = vsel %vm3480, %v3482, %v3478
          %v3484 = vmul.f32 %v3466, %v3483
          %v3486 = vsel %vm2460, %v3484, 0
          %3488 = vmatpush.msra.mxu0 0.0
          %3489 = vmatpush.msra.mxu0 0.0
          %3490 = vmatpush.msra.mxu0 0.0
          %3491 = vmatpush.msra.mxu0 0.0
          %3492 = vmatpush.msra.mxu0 0.0
          %3493 = vmatpush.msra.mxu0 0.0
          %3494 = vmatpush.msra.mxu0 0.0
          %3495 = vmatpush.msra.mxu0 0.0
          %3496 = vmatpush.msra.mxu0 0.0
          %3497 = vmatpush.msra.mxu0 0.0
          %3498 = vmatpush.msra.mxu0 0.0
          %3499 = vmatpush.msra.mxu0 0.0
          %3500 = vmatpush.msra.mxu0 0.0
          %3501 = vmatpush.msra.mxu0 0.0
          %3502 = vmatpush.msra.mxu0 0.0
          %3503 = vmatpush.msra.mxu0 %v2306
          %3504 = vmatmul.f32.gmra.mxu0 %v3486
          %v3505 = vpop.f32.mrf.mxu0
          %v3506 = vadd.f32 0.0, %v3505
          %3507 = vdwg.mxu0
          %3508 = vrot.lane.b32.xlu0 %v3434, 104
          %v3509 = vpop.permute.xlu0 %3508
          %3510 = vrot.lane.b32.xlu0 %v2382, 104
          %v3511 = vpop.permute.xlu0 %3510
          %v3512 = vsel %vm2433, %v3509, 0
          %v3514 = vsel %vm2433, %v3511, 0
          %3516 = vmatpush.xpose.msra.mxu0 0.0
          %3517 = vmatpush.xpose.msra.mxu0 0.0
          %3518 = vmatpush.xpose.msra.mxu0 0.0
          %3519 = vmatpush.xpose.msra.mxu0 0.0
          %3520 = vmatpush.xpose.msra.mxu0 0.0
          %3521 = vmatpush.xpose.msra.mxu0 0.0
          %3522 = vmatpush.xpose.msra.mxu0 0.0
          %3523 = vmatpush.xpose.msra.mxu0 0.0
          %3524 = vmatpush.xpose.msra.mxu0 0.0
          %3525 = vmatpush.xpose.msra.mxu0 0.0
          %3526 = vmatpush.xpose.msra.mxu0 0.0
          %3527 = vmatpush.xpose.msra.mxu0 0.0
          %3528 = vmatpush.xpose.msra.mxu0 0.0
          %3529 = vmatpush.xpose.msra.mxu0 0.0
          %3530 = vmatpush.xpose.msra.mxu0 0.0
          %3531 = vmatpush.xpose.msra.mxu0 %v3514
          %3532 = vmatmul.f32.gmra.mxu0 %v3512
          %v3533 = vpop.f32.mrf.mxu0
          %v3534 = vadd.f32 0.0, %v3533
          %3535 = vdwg.mxu0
          %v3536 = vsel %vm2460, %v3534, -inf
          %3537 = vmax.xlane.f32.xlu0 %v3536
          %v3538 = vpop.xlane.xlu0 %3537
          %v3539 = vsub.f32 %v3534, %v3538
          %v3540 = vmul.f32 %v3539, 1.442695
          %v3541 = vpow.pop %v3540
          %v3542 = vsel %vm2460, %v3541, 0.0
          %3543 = vadd.xlane.f32.xlu0 %v3542
          %v3544 = vpop.xlane.xlu0 %3543
          %v3545 = vrcp.pop %v3544
          %v3546 = vmul.f32 %v3544, %v3545
          %v3547 = vsub.f32 1.0, %v3546
          %v3548 = vmul.f32 %v3545, %v3547
          %v3549 = vadd.f32 %v3545, %v3548
          %vm3550 = vweird.f32 %v3544
          %vm3551 = vweird.f32 %v3545
          %vm3552 = vmor %vm3550, %vm3551
          %v3553 = vsel %vm3552, %v3545, %v3549
          %v3554 = vand.u32 2147483647, %v3544
          %vm3555 = vcmp.eq.f32.partialorder %v3554, 8.507059e+37
          %v3556 = vand.u32 %v3544, 2147483648
          %v3557 = vor.u32 1.1754944e-38, %v3556
          %v3558 = vsel %vm3555, %v3557, %v3553
          %v3559 = vmul.f32 %v3541, %v3558
          %3561 = vrot.lane.b32.xlu0 %v2306, 104
          %v3562 = vpop.permute.xlu0 %3561
          %v3565 = vsel %vm2460, %v3559, 0
          %3567 = vmatpush.msra.mxu0 0.0
          %3568 = vmatpush.msra.mxu0 0.0
          %3569 = vmatpush.msra.mxu0 0.0
          %3570 = vmatpush.msra.mxu0 0.0
          %3571 = vmatpush.msra.mxu0 0.0
          %3572 = vmatpush.msra.mxu0 0.0
          %3573 = vmatpush.msra.mxu0 0.0
          %3574 = vmatpush.msra.mxu0 0.0
          %3575 = vmatpush.msra.mxu0 0.0
          %3576 = vmatpush.msra.mxu0 0.0
          %3577 = vmatpush.msra.mxu0 0.0
          %3578 = vmatpush.msra.mxu0 0.0
          %3579 = vmatpush.msra.mxu0 0.0
          %3580 = vmatpush.msra.mxu0 0.0
          %3581 = vmatpush.msra.mxu0 0.0
          %3582 = vmatpush.msra.mxu0 %v3562
          %3583 = vmatmul.f32.gmra.mxu0 %v3565
          %v3584 = vpop.f32.mrf.mxu0
          %v3585 = vadd.f32 0.0, %v3584
          %3586 = vdwg.mxu0
          %v3588 = vsel %vm2433, %v3585, 0
          %3590 = vmatpush.msra.mxu0 0.0
          %3591 = vmatpush.msra.mxu0 0.0
          %3592 = vmatpush.msra.mxu0 0.0
          %3593 = vmatpush.msra.mxu0 0.0
          %3594 = vmatpush.msra.mxu0 0.0
          %3595 = vmatpush.msra.mxu0 0.0
          %3596 = vmatpush.msra.mxu0 0.0
          %3597 = vmatpush.msra.mxu0 0.0
          %3598 = vmatpush.msra.mxu0 0.0
          %3599 = vmatpush.msra.mxu0 0.0
          %3600 = vmatpush.msra.mxu0 0.0
          %3601 = vmatpush.msra.mxu0 0.0
          %3602 = vmatpush.msra.mxu0 0.0
          %3603 = vmatpush.msra.mxu0 %v2394
          %3604 = vmatpush.msra.mxu0 %v2392
          %3605 = vmatpush.msra.mxu0 %v2390
          %3606 = vmatmul.f32.gmra.mxu0 %v3588
          %v3607 = vpop.f32.mrf.mxu0
          %v3608 = vadd.f32 0.0, %v3607
          %3609 = vdwg.mxu0
          %3610 = vmatpush.msra.mxu0 0.0
          %3611 = vmatpush.msra.mxu0 0.0
          %3612 = vmatpush.msra.mxu0 0.0
          %3613 = vmatpush.msra.mxu0 0.0
          %3614 = vmatpush.msra.mxu0 0.0
          %3615 = vmatpush.msra.mxu0 0.0
          %3616 = vmatpush.msra.mxu0 0.0
          %3617 = vmatpush.msra.mxu0 0.0
          %3618 = vmatpush.msra.mxu0 0.0
          %3619 = vmatpush.msra.mxu0 0.0
          %3620 = vmatpush.msra.mxu0 0.0
          %3621 = vmatpush.msra.mxu0 0.0
          %3622 = vmatpush.msra.mxu0 0.0
          %3623 = vmatpush.msra.mxu0 %v2395
          %3624 = vmatpush.msra.mxu0 %v2393
          %3625 = vmatpush.msra.mxu0 %v2391
          %3626 = vmatmul.f32.gmra.mxu0 %v3588
          %v3627 = vpop.f32.mrf.mxu0
          %v3628 = vadd.f32 0.0, %v3627
          %3629 = vdwg.mxu0
          %v3631 = vsel %vm2433, %v3506, 0
          %3633 = vmatpush.msra.mxu0 0.0
          %3634 = vmatpush.msra.mxu0 0.0
          %3635 = vmatpush.msra.mxu0 0.0
          %3636 = vmatpush.msra.mxu0 0.0
          %3637 = vmatpush.msra.mxu0 0.0
          %3638 = vmatpush.msra.mxu0 0.0
          %3639 = vmatpush.msra.mxu0 0.0
          %3640 = vmatpush.msra.mxu0 0.0
          %3641 = vmatpush.msra.mxu0 0.0
          %3642 = vmatpush.msra.mxu0 0.0
          %3643 = vmatpush.msra.mxu0 0.0
          %3644 = vmatpush.msra.mxu0 0.0
          %3645 = vmatpush.msra.mxu0 0.0
          %3646 = vmatpush.msra.mxu0 %v2388
          %3647 = vmatpush.msra.mxu0 %v2386
          %3648 = vmatpush.msra.mxu0 %v2384
          %3649 = vmatmul.f32.gmra.mxu0 %v3631
          %v3650 = vpop.f32.mrf.mxu0
          %v3651 = vadd.f32 %v3608, %v3650
          %3652 = vdwg.mxu0
          %3653 = vmatpush.msra.mxu0 0.0
          %3654 = vmatpush.msra.mxu0 0.0
          %3655 = vmatpush.msra.mxu0 0.0
          %3656 = vmatpush.msra.mxu0 0.0
          %3657 = vmatpush.msra.mxu0 0.0
          %3658 = vmatpush.msra.mxu0 0.0
          %3659 = vmatpush.msra.mxu0 0.0
          %3660 = vmatpush.msra.mxu0 0.0
          %3661 = vmatpush.msra.mxu0 0.0
          %3662 = vmatpush.msra.mxu0 0.0
          %3663 = vmatpush.msra.mxu0 0.0
          %3664 = vmatpush.msra.mxu0 0.0
          %3665 = vmatpush.msra.mxu0 0.0
          %3666 = vmatpush.msra.mxu0 %v2389
          %3667 = vmatpush.msra.mxu0 %v2387
          %3668 = vmatpush.msra.mxu0 %v2385
          %3669 = vmatmul.f32.gmra.mxu0 %v3631
          %v3670 = vpop.f32.mrf.mxu0
          %v3671 = vadd.f32 %v3628, %v3670
          %3672 = vdwg.mxu0
          %3673 = vrot.lane.b32.xlu0 %v3434, 80
          %v3674 = vpop.permute.xlu0 %3673
          %3675 = vrot.lane.b32.xlu0 %v2382, 80
          %v3676 = vpop.permute.xlu0 %3675
          %v3677 = vsel %vm2433, %v3674, 0
          %v3679 = vsel %vm2433, %v3676, 0
          %3681 = vmatpush.xpose.msra.mxu0 0.0
          %3682 = vmatpush.xpose.msra.mxu0 0.0
          %3683 = vmatpush.xpose.msra.mxu0 0.0
          %3684 = vmatpush.xpose.msra.mxu0 0.0
          %3685 = vmatpush.xpose.msra.mxu0 0.0
          %3686 = vmatpush.xpose.msra.mxu0 0.0
          %3687 = vmatpush.xpose.msra.mxu0 0.0
          %3688 = vmatpush.xpose.msra.mxu0 0.0
          %3689 = vmatpush.xpose.msra.mxu0 0.0
          %3690 = vmatpush.xpose.msra.mxu0 0.0
          %3691 = vmatpush.xpose.msra.mxu0 0.0
          %3692 = vmatpush.xpose.msra.mxu0 0.0
          %3693 = vmatpush.xpose.msra.mxu0 0.0
          %3694 = vmatpush.xpose.msra.mxu0 0.0
          %3695 = vmatpush.xpose.msra.mxu0 0.0
          %3696 = vmatpush.xpose.msra.mxu0 %v3679
          %3697 = vmatmul.f32.gmra.mxu0 %v3677
          %v3698 = vpop.f32.mrf.mxu0
          %v3699 = vadd.f32 0.0, %v3698
          %3700 = vdwg.mxu0
          %v3701 = vsel %vm2460, %v3699, -inf
          %3702 = vmax.xlane.f32.xlu0 %v3701
          %v3703 = vpop.xlane.xlu0 %3702
          %v3704 = vsub.f32 %v3699, %v3703
          %v3705 = vmul.f32 %v3704, 1.442695
          %v3706 = vpow.pop %v3705
          %v3707 = vsel %vm2460, %v3706, 0.0
          %3708 = vadd.xlane.f32.xlu0 %v3707
          %v3709 = vpop.xlane.xlu0 %3708
          %v3710 = vrcp.pop %v3709
          %v3711 = vmul.f32 %v3709, %v3710
          %v3712 = vsub.f32 1.0, %v3711
          %v3713 = vmul.f32 %v3710, %v3712
          %v3714 = vadd.f32 %v3710, %v3713
          %vm3715 = vweird.f32 %v3709
          %vm3716 = vweird.f32 %v3710
          %vm3717 = vmor %vm3715, %vm3716
          %v3718 = vsel %vm3717, %v3710, %v3714
          %v3719 = vand.u32 2147483647, %v3709
          %vm3720 = vcmp.eq.f32.partialorder %v3719, 8.507059e+37
          %v3721 = vand.u32 %v3709, 2147483648
          %v3722 = vor.u32 1.1754944e-38, %v3721
          %v3723 = vsel %vm3720, %v3722, %v3718
          %v3724 = vmul.f32 %v3706, %v3723
          %3725 = vrot.lane.b32.xlu0 %v2306, 80
          %v3726 = vpop.permute.xlu0 %3725
          %v3729 = vsel %vm2460, %v3724, 0
          %3731 = vmatpush.msra.mxu0 0.0
          %3732 = vmatpush.msra.mxu0 0.0
          %3733 = vmatpush.msra.mxu0 0.0
          %3734 = vmatpush.msra.mxu0 0.0
          %3735 = vmatpush.msra.mxu0 0.0
          %3736 = vmatpush.msra.mxu0 0.0
          %3737 = vmatpush.msra.mxu0 0.0
          %3738 = vmatpush.msra.mxu0 0.0
          %3739 = vmatpush.msra.mxu0 0.0
          %3740 = vmatpush.msra.mxu0 0.0
          %3741 = vmatpush.msra.mxu0 0.0
          %3742 = vmatpush.msra.mxu0 0.0
          %3743 = vmatpush.msra.mxu0 0.0
          %3744 = vmatpush.msra.mxu0 0.0
          %3745 = vmatpush.msra.mxu0 0.0
          %3746 = vmatpush.msra.mxu0 %v3726
          %3747 = vmatmul.f32.gmra.mxu0 %v3729
          %v3748 = vpop.f32.mrf.mxu0
          %v3749 = vadd.f32 0.0, %v3748
          %3750 = vdwg.mxu0
          %v3752 = vsel %vm2433, %v3749, 0
          %3754 = vmatpush.msra.mxu0 0.0
          %3755 = vmatpush.msra.mxu0 0.0
          %3756 = vmatpush.msra.mxu0 0.0
          %3757 = vmatpush.msra.mxu0 0.0
          %3758 = vmatpush.msra.mxu0 0.0
          %3759 = vmatpush.msra.mxu0 0.0
          %3760 = vmatpush.msra.mxu0 0.0
          %3761 = vmatpush.msra.mxu0 0.0
          %3762 = vmatpush.msra.mxu0 0.0
          %3763 = vmatpush.msra.mxu0 0.0
          %3764 = vmatpush.msra.mxu0 0.0
          %3765 = vmatpush.msra.mxu0 0.0
          %3766 = vmatpush.msra.mxu0 0.0
          %3767 = vmatpush.msra.mxu0 %v2400
          %3768 = vmatpush.msra.mxu0 %v2398
          %3769 = vmatpush.msra.mxu0 %v2396
          %3770 = vmatmul.f32.gmra.mxu0 %v3752
          %v3771 = vpop.f32.mrf.mxu0
          %v3772 = vadd.f32 0.0, %v3771
          %3773 = vdwg.mxu0
          %3774 = vmatpush.msra.mxu0 0.0
          %3775 = vmatpush.msra.mxu0 0.0
          %3776 = vmatpush.msra.mxu0 0.0
          %3777 = vmatpush.msra.mxu0 0.0
          %3778 = vmatpush.msra.mxu0 0.0
          %3779 = vmatpush.msra.mxu0 0.0
          %3780 = vmatpush.msra.mxu0 0.0
          %3781 = vmatpush.msra.mxu0 0.0
          %3782 = vmatpush.msra.mxu0 0.0
          %3783 = vmatpush.msra.mxu0 0.0
          %3784 = vmatpush.msra.mxu0 0.0
          %3785 = vmatpush.msra.mxu0 0.0
          %3786 = vmatpush.msra.mxu0 0.0
          %3787 = vmatpush.msra.mxu0 %v2401
          %3788 = vmatpush.msra.mxu0 %v2399
          %3789 = vmatpush.msra.mxu0 %v2397
          %3790 = vmatmul.f32.gmra.mxu0 %v3752
          %v3791 = vpop.f32.mrf.mxu0
          %v3792 = vadd.f32 0.0, %v3791
          %3793 = vdwg.mxu0
          %v3794 = vadd.f32 %v3651, %v3772
          %v3795 = vadd.f32 %v3671, %v3792
          %3796 = vrot.lane.b32.xlu0 %v3434, 56
          %v3797 = vpop.permute.xlu0 %3796
          %3798 = vrot.lane.b32.xlu0 %v2382, 56
          %v3799 = vpop.permute.xlu0 %3798
          %v3800 = vsel %vm2433, %v3797, 0
          %v3802 = vsel %vm2433, %v3799, 0
          %3804 = vmatpush.xpose.msra.mxu0 0.0
          %3805 = vmatpush.xpose.msra.mxu0 0.0
          %3806 = vmatpush.xpose.msra.mxu0 0.0
          %3807 = vmatpush.xpose.msra.mxu0 0.0
          %3808 = vmatpush.xpose.msra.mxu0 0.0
          %3809 = vmatpush.xpose.msra.mxu0 0.0
          %3810 = vmatpush.xpose.msra.mxu0 0.0
          %3811 = vmatpush.xpose.msra.mxu0 0.0
          %3812 = vmatpush.xpose.msra.mxu0 0.0
          %3813 = vmatpush.xpose.msra.mxu0 0.0
          %3814 = vmatpush.xpose.msra.mxu0 0.0
          %3815 = vmatpush.xpose.msra.mxu0 0.0
          %3816 = vmatpush.xpose.msra.mxu0 0.0
          %3817 = vmatpush.xpose.msra.mxu0 0.0
          %3818 = vmatpush.xpose.msra.mxu0 0.0
          %3819 = vmatpush.xpose.msra.mxu0 %v3802
          %3820 = vmatmul.f32.gmra.mxu0 %v3800
          %v3821 = vpop.f32.mrf.mxu0
          %v3822 = vadd.f32 0.0, %v3821
          %3823 = vdwg.mxu0
          %v3824 = vsel %vm2460, %v3822, -inf
          %3825 = vmax.xlane.f32.xlu0 %v3824
          %v3826 = vpop.xlane.xlu0 %3825
          %v3827 = vsub.f32 %v3822, %v3826
          %v3828 = vmul.f32 %v3827, 1.442695
          %v3829 = vpow.pop %v3828
          %v3830 = vsel %vm2460, %v3829, 0.0
          %3831 = vadd.xlane.f32.xlu0 %v3830
          %v3832 = vpop.xlane.xlu0 %3831
          %v3833 = vrcp.pop %v3832
          %v3834 = vmul.f32 %v3832, %v3833
          %v3835 = vsub.f32 1.0, %v3834
          %v3836 = vmul.f32 %v3833, %v3835
          %v3837 = vadd.f32 %v3833, %v3836
          %vm3838 = vweird.f32 %v3832
          %vm3839 = vweird.f32 %v3833
          %vm3840 = vmor %vm3838, %vm3839
          %v3841 = vsel %vm3840, %v3833, %v3837
          %v3842 = vand.u32 2147483647, %v3832
          %vm3843 = vcmp.eq.f32.partialorder %v3842, 8.507059e+37
          %v3844 = vand.u32 %v3832, 2147483648
          %v3845 = vor.u32 1.1754944e-38, %v3844
          %v3846 = vsel %vm3843, %v3845, %v3841
          %v3847 = vmul.f32 %v3829, %v3846
          %3848 = vrot.lane.b32.xlu0 %v2306, 56
          %v3849 = vpop.permute.xlu0 %3848
          %v3852 = vsel %vm2460, %v3847, 0
          %3854 = vmatpush.msra.mxu0 0.0
          %3855 = vmatpush.msra.mxu0 0.0
          %3856 = vmatpush.msra.mxu0 0.0
          %3857 = vmatpush.msra.mxu0 0.0
          %3858 = vmatpush.msra.mxu0 0.0
          %3859 = vmatpush.msra.mxu0 0.0
          %3860 = vmatpush.msra.mxu0 0.0
          %3861 = vmatpush.msra.mxu0 0.0
          %3862 = vmatpush.msra.mxu0 0.0
          %3863 = vmatpush.msra.mxu0 0.0
          %3864 = vmatpush.msra.mxu0 0.0
          %3865 = vmatpush.msra.mxu0 0.0
          %3866 = vmatpush.msra.mxu0 0.0
          %3867 = vmatpush.msra.mxu0 0.0
          %3868 = vmatpush.msra.mxu0 0.0
          %3869 = vmatpush.msra.mxu0 %v3849
          %3870 = vmatmul.f32.gmra.mxu0 %v3852
          %v3871 = vpop.f32.mrf.mxu0
          %v3872 = vadd.f32 0.0, %v3871
          %3873 = vdwg.mxu0
          %v3875 = vsel %vm2433, %v3872, 0
          %3877 = vmatpush.msra.mxu0 0.0
          %3878 = vmatpush.msra.mxu0 0.0
          %3879 = vmatpush.msra.mxu0 0.0
          %3880 = vmatpush.msra.mxu0 0.0
          %3881 = vmatpush.msra.mxu0 0.0
          %3882 = vmatpush.msra.mxu0 0.0
          %3883 = vmatpush.msra.mxu0 0.0
          %3884 = vmatpush.msra.mxu0 0.0
          %3885 = vmatpush.msra.mxu0 0.0
          %3886 = vmatpush.msra.mxu0 0.0
          %3887 = vmatpush.msra.mxu0 0.0
          %3888 = vmatpush.msra.mxu0 0.0
          %3889 = vmatpush.msra.mxu0 0.0
          %3890 = vmatpush.msra.mxu0 %v2406
          %3891 = vmatpush.msra.mxu0 %v2404
          %3892 = vmatpush.msra.mxu0 %v2402
          %3893 = vmatmul.f32.gmra.mxu0 %v3875
          %v3894 = vpop.f32.mrf.mxu0
          %v3895 = vadd.f32 0.0, %v3894
          %3896 = vdwg.mxu0
          %3897 = vmatpush.msra.mxu0 0.0
          %3898 = vmatpush.msra.mxu0 0.0
          %3899 = vmatpush.msra.mxu0 0.0
          %3900 = vmatpush.msra.mxu0 0.0
          %3901 = vmatpush.msra.mxu0 0.0
          %3902 = vmatpush.msra.mxu0 0.0
          %3903 = vmatpush.msra.mxu0 0.0
          %3904 = vmatpush.msra.mxu0 0.0
          %3905 = vmatpush.msra.mxu0 0.0
          %3906 = vmatpush.msra.mxu0 0.0
          %3907 = vmatpush.msra.mxu0 0.0
          %3908 = vmatpush.msra.mxu0 0.0
          %3909 = vmatpush.msra.mxu0 0.0
          %3910 = vmatpush.msra.mxu0 %v2407
          %3911 = vmatpush.msra.mxu0 %v2405
          %3912 = vmatpush.msra.mxu0 %v2403
          %3913 = vmatmul.f32.gmra.mxu0 %v3875
          %v3914 = vpop.f32.mrf.mxu0
          %v3915 = vadd.f32 0.0, %v3914
          %3916 = vdwg.mxu0
          %v3917 = vadd.f32 %v3794, %v3895
          %v3918 = vadd.f32 %v3795, %v3915
          %3919 = vrot.lane.b32.xlu0 %v3434, 32
          %v3920 = vpop.permute.xlu0 %3919
          %3921 = vrot.lane.b32.xlu0 %v2382, 32
          %v3922 = vpop.permute.xlu0 %3921
          %v3923 = vsel %vm2433, %v3920, 0
          %v3925 = vsel %vm2433, %v3922, 0
          %3927 = vmatpush.xpose.msra.mxu0 0.0
          %3928 = vmatpush.xpose.msra.mxu0 0.0
          %3929 = vmatpush.xpose.msra.mxu0 0.0
          %3930 = vmatpush.xpose.msra.mxu0 0.0
          %3931 = vmatpush.xpose.msra.mxu0 0.0
          %3932 = vmatpush.xpose.msra.mxu0 0.0
          %3933 = vmatpush.xpose.msra.mxu0 0.0
          %3934 = vmatpush.xpose.msra.mxu0 0.0
          %3935 = vmatpush.xpose.msra.mxu0 0.0
          %3936 = vmatpush.xpose.msra.mxu0 0.0
          %3937 = vmatpush.xpose.msra.mxu0 0.0
          %3938 = vmatpush.xpose.msra.mxu0 0.0
          %3939 = vmatpush.xpose.msra.mxu0 0.0
          %3940 = vmatpush.xpose.msra.mxu0 0.0
          %3941 = vmatpush.xpose.msra.mxu0 0.0
          %3942 = vmatpush.xpose.msra.mxu0 %v3925
          %3943 = vmatmul.f32.gmra.mxu0 %v3923
          %v3944 = vpop.f32.mrf.mxu0
          %v3945 = vadd.f32 0.0, %v3944
          %3946 = vdwg.mxu0
          %v3947 = vsel %vm2460, %v3945, -inf
          %3948 = vmax.xlane.f32.xlu0 %v3947
          %v3949 = vpop.xlane.xlu0 %3948
          %v3950 = vsub.f32 %v3945, %v3949
          %v3951 = vmul.f32 %v3950, 1.442695
          %v3952 = vpow.pop %v3951
          %v3953 = vsel %vm2460, %v3952, 0.0
          %3954 = vadd.xlane.f32.xlu0 %v3953
          %v3955 = vpop.xlane.xlu0 %3954
          %v3956 = vrcp.pop %v3955
          %v3957 = vmul.f32 %v3955, %v3956
          %v3958 = vsub.f32 1.0, %v3957
          %v3959 = vmul.f32 %v3956, %v3958
          %v3960 = vadd.f32 %v3956, %v3959
          %vm3961 = vweird.f32 %v3955
          %vm3962 = vweird.f32 %v3956
          %vm3963 = vmor %vm3961, %vm3962
          %v3964 = vsel %vm3963, %v3956, %v3960
          %v3965 = vand.u32 2147483647, %v3955
          %vm3966 = vcmp.eq.f32.partialorder %v3965, 8.507059e+37
          %v3967 = vand.u32 %v3955, 2147483648
          %v3968 = vor.u32 1.1754944e-38, %v3967
          %v3969 = vsel %vm3966, %v3968, %v3964
          %v3970 = vmul.f32 %v3952, %v3969
          %3971 = vrot.lane.b32.xlu0 %v2306, 32
          %v3972 = vpop.permute.xlu0 %3971
          %v3975 = vsel %vm2460, %v3970, 0
          %3977 = vmatpush.msra.mxu0 0.0
          %3978 = vmatpush.msra.mxu0 0.0
          %3979 = vmatpush.msra.mxu0 0.0
          %3980 = vmatpush.msra.mxu0 0.0
          %3981 = vmatpush.msra.mxu0 0.0
          %3982 = vmatpush.msra.mxu0 0.0
          %3983 = vmatpush.msra.mxu0 0.0
          %3984 = vmatpush.msra.mxu0 0.0
          %3985 = vmatpush.msra.mxu0 0.0
          %3986 = vmatpush.msra.mxu0 0.0
          %3987 = vmatpush.msra.mxu0 0.0
          %3988 = vmatpush.msra.mxu0 0.0
          %3989 = vmatpush.msra.mxu0 0.0
          %3990 = vmatpush.msra.mxu0 0.0
          %3991 = vmatpush.msra.mxu0 0.0
          %3992 = vmatpush.msra.mxu0 %v3972
          %3993 = vmatmul.f32.gmra.mxu0 %v3975
          %v3994 = vpop.f32.mrf.mxu0
          %v3995 = vadd.f32 0.0, %v3994
          %3996 = vdwg.mxu0
          %v3998 = vsel %vm2433, %v3995, 0
          %4000 = vmatpush.msra.mxu0 0.0
          %4001 = vmatpush.msra.mxu0 0.0
          %4002 = vmatpush.msra.mxu0 0.0
          %4003 = vmatpush.msra.mxu0 0.0
          %4004 = vmatpush.msra.mxu0 0.0
          %4005 = vmatpush.msra.mxu0 0.0
          %4006 = vmatpush.msra.mxu0 0.0
          %4007 = vmatpush.msra.mxu0 0.0
          %4008 = vmatpush.msra.mxu0 0.0
          %4009 = vmatpush.msra.mxu0 0.0
          %4010 = vmatpush.msra.mxu0 0.0
          %4011 = vmatpush.msra.mxu0 0.0
          %4012 = vmatpush.msra.mxu0 0.0
          %4013 = vmatpush.msra.mxu0 %v2412
          %4014 = vmatpush.msra.mxu0 %v2410
          %4015 = vmatpush.msra.mxu0 %v2408
          %4016 = vmatmul.f32.gmra.mxu0 %v3998
          %v4017 = vpop.f32.mrf.mxu0
          %v4018 = vadd.f32 0.0, %v4017
          %4019 = vdwg.mxu0
          %4020 = vmatpush.msra.mxu0 0.0
          %4021 = vmatpush.msra.mxu0 0.0
          %4022 = vmatpush.msra.mxu0 0.0
          %4023 = vmatpush.msra.mxu0 0.0
          %4024 = vmatpush.msra.mxu0 0.0
          %4025 = vmatpush.msra.mxu0 0.0
          %4026 = vmatpush.msra.mxu0 0.0
          %4027 = vmatpush.msra.mxu0 0.0
          %4028 = vmatpush.msra.mxu0 0.0
          %4029 = vmatpush.msra.mxu0 0.0
          %4030 = vmatpush.msra.mxu0 0.0
          %4031 = vmatpush.msra.mxu0 0.0
          %4032 = vmatpush.msra.mxu0 0.0
          %4033 = vmatpush.msra.mxu0 %v2413
          %4034 = vmatpush.msra.mxu0 %v2411
          %4035 = vmatpush.msra.mxu0 %v2409
          %4036 = vmatmul.f32.gmra.mxu0 %v3998
          %v4037 = vpop.f32.mrf.mxu0
          %v4038 = vadd.f32 0.0, %v4037
          %4039 = vdwg.mxu0
          %v4040 = vadd.f32 %v3917, %v4018
          %v4041 = vadd.f32 %v3918, %v4038
          %v4042 = vmul.f32 %v1985, 0.20412415
          %4044 = vrot.lane.b32.xlu0 %v3434, 8
          %v4045 = vpop.permute.xlu0 %4044
          %4046 = vrot.lane.b32.xlu0 %v4042, 8
          %v4047 = vpop.permute.xlu0 %4046
          %v4048 = vsel %vm2460, %v4045, %v4047
          %4050 = vrot.lane.b32.xlu0 %v2382, 8
          %v4051 = vpop.permute.xlu0 %4050
          %4052 = vrot.lane.b32.xlu0 %v2383, 8
          %v4053 = vpop.permute.xlu0 %4052
          %v4054 = vsel %vm2460, %v4051, %v4053
          %v4055 = vsel %vm2433, %v4048, 0
          %v4057 = vsel %vm2433, %v4054, 0
          %4059 = vmatpush.xpose.msra.mxu0 0.0
          %4060 = vmatpush.xpose.msra.mxu0 0.0
          %4061 = vmatpush.xpose.msra.mxu0 0.0
          %4062 = vmatpush.xpose.msra.mxu0 0.0
          %4063 = vmatpush.xpose.msra.mxu0 0.0
          %4064 = vmatpush.xpose.msra.mxu0 0.0
          %4065 = vmatpush.xpose.msra.mxu0 0.0
          %4066 = vmatpush.xpose.msra.mxu0 0.0
          %4067 = vmatpush.xpose.msra.mxu0 0.0
          %4068 = vmatpush.xpose.msra.mxu0 0.0
          %4069 = vmatpush.xpose.msra.mxu0 0.0
          %4070 = vmatpush.xpose.msra.mxu0 0.0
          %4071 = vmatpush.xpose.msra.mxu0 0.0
          %4072 = vmatpush.xpose.msra.mxu0 0.0
          %4073 = vmatpush.xpose.msra.mxu0 0.0
          %4074 = vmatpush.xpose.msra.mxu0 %v4057
          %4075 = vmatmul.f32.gmra.mxu0 %v4055
          %v4076 = vpop.f32.mrf.mxu0
          %v4077 = vadd.f32 0.0, %v4076
          %4078 = vdwg.mxu0
          %v4079 = vsel %vm2460, %v4077, -inf
          %4080 = vmax.xlane.f32.xlu0 %v4079
          %v4081 = vpop.xlane.xlu0 %4080
          %v4082 = vsub.f32 %v4077, %v4081
          %v4083 = vmul.f32 %v4082, 1.442695
          %v4084 = vpow.pop %v4083
          %v4085 = vsel %vm2460, %v4084, 0.0
          %4086 = vadd.xlane.f32.xlu0 %v4085
          %v4087 = vpop.xlane.xlu0 %4086
          %v4088 = vrcp.pop %v4087
          %v4089 = vmul.f32 %v4087, %v4088
          %v4090 = vsub.f32 1.0, %v4089
          %v4091 = vmul.f32 %v4088, %v4090
          %v4092 = vadd.f32 %v4088, %v4091
          %vm4093 = vweird.f32 %v4087
          %vm4094 = vweird.f32 %v4088
          %vm4095 = vmor %vm4093, %vm4094
          %v4096 = vsel %vm4095, %v4088, %v4092
          %v4097 = vand.u32 2147483647, %v4087
          %vm4098 = vcmp.eq.f32.partialorder %v4097, 8.507059e+37
          %v4099 = vand.u32 %v4087, 2147483648
          %v4100 = vor.u32 1.1754944e-38, %v4099
          %v4101 = vsel %vm4098, %v4100, %v4096
          %v4102 = vmul.f32 %v4084, %v4101
          %4104 = vrot.lane.b32.xlu0 %v2306, 8
          %v4105 = vpop.permute.xlu0 %4104
          %4106 = vrot.lane.b32.xlu0 %v2352, 8
          %v4107 = vpop.permute.xlu0 %4106
          %v4108 = vsel %vm2460, %v4105, %v4107
          %v4111 = vsel %vm2460, %v4102, 0
          %4113 = vmatpush.msra.mxu0 0.0
          %4114 = vmatpush.msra.mxu0 0.0
          %4115 = vmatpush.msra.mxu0 0.0
          %4116 = vmatpush.msra.mxu0 0.0
          %4117 = vmatpush.msra.mxu0 0.0
          %4118 = vmatpush.msra.mxu0 0.0
          %4119 = vmatpush.msra.mxu0 0.0
          %4120 = vmatpush.msra.mxu0 0.0
          %4121 = vmatpush.msra.mxu0 0.0
          %4122 = vmatpush.msra.mxu0 0.0
          %4123 = vmatpush.msra.mxu0 0.0
          %4124 = vmatpush.msra.mxu0 0.0
          %4125 = vmatpush.msra.mxu0 0.0
          %4126 = vmatpush.msra.mxu0 0.0
          %4127 = vmatpush.msra.mxu0 0.0
          %4128 = vmatpush.msra.mxu0 %v4108
          %4129 = vmatmul.f32.gmra.mxu0 %v4111
          %v4130 = vpop.f32.mrf.mxu0
          %v4131 = vadd.f32 0.0, %v4130
          %4132 = vdwg.mxu0
          %v4134 = vsel %vm2433, %v4131, 0
          %4136 = vmatpush.msra.mxu0 0.0
          %4137 = vmatpush.msra.mxu0 0.0
          %4138 = vmatpush.msra.mxu0 0.0
          %4139 = vmatpush.msra.mxu0 0.0
          %4140 = vmatpush.msra.mxu0 0.0
          %4141 = vmatpush.msra.mxu0 0.0
          %4142 = vmatpush.msra.mxu0 0.0
          %4143 = vmatpush.msra.mxu0 0.0
          %4144 = vmatpush.msra.mxu0 0.0
          %4145 = vmatpush.msra.mxu0 0.0
          %4146 = vmatpush.msra.mxu0 0.0
          %4147 = vmatpush.msra.mxu0 0.0
          %4148 = vmatpush.msra.mxu0 0.0
          %4149 = vmatpush.msra.mxu0 %v2418
          %4150 = vmatpush.msra.mxu0 %v2416
          %4151 = vmatpush.msra.mxu0 %v2414
          %4152 = vmatmul.f32.gmra.mxu0 %v4134
          %v4153 = vpop.f32.mrf.mxu0
          %v4154 = vadd.f32 0.0, %v4153
          %4155 = vdwg.mxu0
          %4156 = vmatpush.msra.mxu0 0.0
          %4157 = vmatpush.msra.mxu0 0.0
          %4158 = vmatpush.msra.mxu0 0.0
          %4159 = vmatpush.msra.mxu0 0.0
          %4160 = vmatpush.msra.mxu0 0.0
          %4161 = vmatpush.msra.mxu0 0.0
          %4162 = vmatpush.msra.mxu0 0.0
          %4163 = vmatpush.msra.mxu0 0.0
          %4164 = vmatpush.msra.mxu0 0.0
          %4165 = vmatpush.msra.mxu0 0.0
          %4166 = vmatpush.msra.mxu0 0.0
          %4167 = vmatpush.msra.mxu0 0.0
          %4168 = vmatpush.msra.mxu0 0.0
          %4169 = vmatpush.msra.mxu0 %v2419
          %4170 = vmatpush.msra.mxu0 %v2417
          %4171 = vmatpush.msra.mxu0 %v2415
          %4172 = vmatmul.f32.gmra.mxu0 %v4134
          %v4173 = vpop.f32.mrf.mxu0
          %v4174 = vadd.f32 0.0, %v4173
          %4175 = vdwg.mxu0
          %v4176 = vadd.f32 %v4040, %v4154
          %v4177 = vadd.f32 %v4041, %v4174
          %4178 = vrot.lane.b32.xlu0 %v4042, 112
          %v4179 = vpop.permute.xlu0 %4178
          %4180 = vrot.lane.b32.xlu0 %v2383, 112
          %v4181 = vpop.permute.xlu0 %4180
          %v4182 = vsel %vm2433, %v4179, 0
          %v4184 = vsel %vm2433, %v4181, 0
          %4186 = vmatpush.xpose.msra.mxu0 0.0
          %4187 = vmatpush.xpose.msra.mxu0 0.0
          %4188 = vmatpush.xpose.msra.mxu0 0.0
          %4189 = vmatpush.xpose.msra.mxu0 0.0
          %4190 = vmatpush.xpose.msra.mxu0 0.0
          %4191 = vmatpush.xpose.msra.mxu0 0.0
          %4192 = vmatpush.xpose.msra.mxu0 0.0
          %4193 = vmatpush.xpose.msra.mxu0 0.0
          %4194 = vmatpush.xpose.msra.mxu0 0.0
          %4195 = vmatpush.xpose.msra.mxu0 0.0
          %4196 = vmatpush.xpose.msra.mxu0 0.0
          %4197 = vmatpush.xpose.msra.mxu0 0.0
          %4198 = vmatpush.xpose.msra.mxu0 0.0
          %4199 = vmatpush.xpose.msra.mxu0 0.0
          %4200 = vmatpush.xpose.msra.mxu0 0.0
          %4201 = vmatpush.xpose.msra.mxu0 %v4184
          %4202 = vmatmul.f32.gmra.mxu0 %v4182
          %v4203 = vpop.f32.mrf.mxu0
          %v4204 = vadd.f32 0.0, %v4203
          %4205 = vdwg.mxu0
          %v4206 = vsel %vm2460, %v4204, -inf
          %4207 = vmax.xlane.f32.xlu0 %v4206
          %v4208 = vpop.xlane.xlu0 %4207
          %v4209 = vsub.f32 %v4204, %v4208
          %v4210 = vmul.f32 %v4209, 1.442695
          %v4211 = vpow.pop %v4210
          %v4212 = vsel %vm2460, %v4211, 0.0
          %4213 = vadd.xlane.f32.xlu0 %v4212
          %v4214 = vpop.xlane.xlu0 %4213
          %v4215 = vrcp.pop %v4214
          %v4216 = vmul.f32 %v4214, %v4215
          %v4217 = vsub.f32 1.0, %v4216
          %v4218 = vmul.f32 %v4215, %v4217
          %v4219 = vadd.f32 %v4215, %v4218
          %vm4220 = vweird.f32 %v4214
          %vm4221 = vweird.f32 %v4215
          %vm4222 = vmor %vm4220, %vm4221
          %v4223 = vsel %vm4222, %v4215, %v4219
          %v4224 = vand.u32 2147483647, %v4214
          %vm4225 = vcmp.eq.f32.partialorder %v4224, 8.507059e+37
          %v4226 = vand.u32 %v4214, 2147483648
          %v4227 = vor.u32 1.1754944e-38, %v4226
          %v4228 = vsel %vm4225, %v4227, %v4223
          %v4229 = vmul.f32 %v4211, %v4228
          %4230 = vrot.lane.b32.xlu0 %v2352, 112
          %v4231 = vpop.permute.xlu0 %4230
          %v4234 = vsel %vm2460, %v4229, 0
          %4236 = vmatpush.msra.mxu0 0.0
          %4237 = vmatpush.msra.mxu0 0.0
          %4238 = vmatpush.msra.mxu0 0.0
          %4239 = vmatpush.msra.mxu0 0.0
          %4240 = vmatpush.msra.mxu0 0.0
          %4241 = vmatpush.msra.mxu0 0.0
          %4242 = vmatpush.msra.mxu0 0.0
          %4243 = vmatpush.msra.mxu0 0.0
          %4244 = vmatpush.msra.mxu0 0.0
          %4245 = vmatpush.msra.mxu0 0.0
          %4246 = vmatpush.msra.mxu0 0.0
          %4247 = vmatpush.msra.mxu0 0.0
          %4248 = vmatpush.msra.mxu0 0.0
          %4249 = vmatpush.msra.mxu0 0.0
          %4250 = vmatpush.msra.mxu0 0.0
          %4251 = vmatpush.msra.mxu0 %v4231
          %4252 = vmatmul.f32.gmra.mxu0 %v4234
          %v4253 = vpop.f32.mrf.mxu0
          %v4254 = vadd.f32 0.0, %v4253
          %4255 = vdwg.mxu0
          %v4257 = vsel %vm2433, %v4254, 0
          %4259 = vmatpush.msra.mxu0 0.0
          %4260 = vmatpush.msra.mxu0 0.0
          %4261 = vmatpush.msra.mxu0 0.0
          %4262 = vmatpush.msra.mxu0 0.0
          %4263 = vmatpush.msra.mxu0 0.0
          %4264 = vmatpush.msra.mxu0 0.0
          %4265 = vmatpush.msra.mxu0 0.0
          %4266 = vmatpush.msra.mxu0 0.0
          %4267 = vmatpush.msra.mxu0 0.0
          %4268 = vmatpush.msra.mxu0 0.0
          %4269 = vmatpush.msra.mxu0 0.0
          %4270 = vmatpush.msra.mxu0 0.0
          %4271 = vmatpush.msra.mxu0 0.0
          %4272 = vmatpush.msra.mxu0 %v2424
          %4273 = vmatpush.msra.mxu0 %v2422
          %4274 = vmatpush.msra.mxu0 %v2420
          %4275 = vmatmul.f32.gmra.mxu0 %v4257
          %v4276 = vpop.f32.mrf.mxu0
          %v4277 = vadd.f32 0.0, %v4276
          %4278 = vdwg.mxu0
          %4279 = vmatpush.msra.mxu0 0.0
          %4280 = vmatpush.msra.mxu0 0.0
          %4281 = vmatpush.msra.mxu0 0.0
          %4282 = vmatpush.msra.mxu0 0.0
          %4283 = vmatpush.msra.mxu0 0.0
          %4284 = vmatpush.msra.mxu0 0.0
          %4285 = vmatpush.msra.mxu0 0.0
          %4286 = vmatpush.msra.mxu0 0.0
          %4287 = vmatpush.msra.mxu0 0.0
          %4288 = vmatpush.msra.mxu0 0.0
          %4289 = vmatpush.msra.mxu0 0.0
          %4290 = vmatpush.msra.mxu0 0.0
          %4291 = vmatpush.msra.mxu0 0.0
          %4292 = vmatpush.msra.mxu0 %v2425
          %4293 = vmatpush.msra.mxu0 %v2423
          %4294 = vmatpush.msra.mxu0 %v2421
          %4295 = vmatmul.f32.gmra.mxu0 %v4257
          %v4296 = vpop.f32.mrf.mxu0
          %v4297 = vadd.f32 0.0, %v4296
          %4298 = vdwg.mxu0
          %v4299 = vadd.f32 %v4176, %v4277
          %v4300 = vadd.f32 %v4177, %v4297
          %4301 = vrot.lane.b32.xlu0 %v4042, 88
          %v4302 = vpop.permute.xlu0 %4301
          %4303 = vrot.lane.b32.xlu0 %v2383, 88
          %v4304 = vpop.permute.xlu0 %4303
          %v4305 = vsel %vm2433, %v4302, 0
          %v4307 = vsel %vm2433, %v4304, 0
          %4309 = vmatpush.xpose.msra.mxu0 0.0
          %4310 = vmatpush.xpose.msra.mxu0 0.0
          %4311 = vmatpush.xpose.msra.mxu0 0.0
          %4312 = vmatpush.xpose.msra.mxu0 0.0
          %4313 = vmatpush.xpose.msra.mxu0 0.0
          %4314 = vmatpush.xpose.msra.mxu0 0.0
          %4315 = vmatpush.xpose.msra.mxu0 0.0
          %4316 = vmatpush.xpose.msra.mxu0 0.0
          %4317 = vmatpush.xpose.msra.mxu0 0.0
          %4318 = vmatpush.xpose.msra.mxu0 0.0
          %4319 = vmatpush.xpose.msra.mxu0 0.0
          %4320 = vmatpush.xpose.msra.mxu0 0.0
          %4321 = vmatpush.xpose.msra.mxu0 0.0
          %4322 = vmatpush.xpose.msra.mxu0 0.0
          %4323 = vmatpush.xpose.msra.mxu0 0.0
          %4324 = vmatpush.xpose.msra.mxu0 %v4307
          %4325 = vmatmul.f32.gmra.mxu0 %v4305
          %v4326 = vpop.f32.mrf.mxu0
          %v4327 = vadd.f32 0.0, %v4326
          %4328 = vdwg.mxu0
          %v4329 = vsel %vm2460, %v4327, -inf
          %4330 = vmax.xlane.f32.xlu0 %v4329
          %v4331 = vpop.xlane.xlu0 %4330
          %v4332 = vsub.f32 %v4327, %v4331
          %v4333 = vmul.f32 %v4332, 1.442695
          %v4334 = vpow.pop %v4333
          %v4335 = vsel %vm2460, %v4334, 0.0
          %4336 = vadd.xlane.f32.xlu0 %v4335
          %v4337 = vpop.xlane.xlu0 %4336
          %v4338 = vrcp.pop %v4337
          %v4339 = vmul.f32 %v4337, %v4338
          %v4340 = vsub.f32 1.0, %v4339
          %v4341 = vmul.f32 %v4338, %v4340
          %v4342 = vadd.f32 %v4338, %v4341
          %vm4343 = vweird.f32 %v4337
          %vm4344 = vweird.f32 %v4338
          %vm4345 = vmor %vm4343, %vm4344
          %v4346 = vsel %vm4345, %v4338, %v4342
          %v4347 = vand.u32 2147483647, %v4337
          %vm4348 = vcmp.eq.f32.partialorder %v4347, 8.507059e+37
          %v4349 = vand.u32 %v4337, 2147483648
          %v4350 = vor.u32 1.1754944e-38, %v4349
          %v4351 = vsel %vm4348, %v4350, %v4346
          %v4352 = vmul.f32 %v4334, %v4351
          %4353 = vrot.lane.b32.xlu0 %v2352, 88
          %v4354 = vpop.permute.xlu0 %4353
          %v4357 = vsel %vm2460, %v4352, 0
          %4359 = vmatpush.msra.mxu0 0.0
          %4360 = vmatpush.msra.mxu0 0.0
          %4361 = vmatpush.msra.mxu0 0.0
          %4362 = vmatpush.msra.mxu0 0.0
          %4363 = vmatpush.msra.mxu0 0.0
          %4364 = vmatpush.msra.mxu0 0.0
          %4365 = vmatpush.msra.mxu0 0.0
          %4366 = vmatpush.msra.mxu0 0.0
          %4367 = vmatpush.msra.mxu0 0.0
          %4368 = vmatpush.msra.mxu0 0.0
          %4369 = vmatpush.msra.mxu0 0.0
          %4370 = vmatpush.msra.mxu0 0.0
          %4371 = vmatpush.msra.mxu0 0.0
          %4372 = vmatpush.msra.mxu0 0.0
          %4373 = vmatpush.msra.mxu0 0.0
          %4374 = vmatpush.msra.mxu0 %v4354
          %4375 = vmatmul.f32.gmra.mxu0 %v4357
          %v4376 = vpop.f32.mrf.mxu0
          %v4377 = vadd.f32 0.0, %v4376
          %4378 = vdwg.mxu0
          %v4380 = vsel %vm2433, %v4377, 0
          %4382 = vmatpush.msra.mxu0 0.0
          %4383 = vmatpush.msra.mxu0 0.0
          %4384 = vmatpush.msra.mxu0 0.0
          %4385 = vmatpush.msra.mxu0 0.0
          %4386 = vmatpush.msra.mxu0 0.0
          %4387 = vmatpush.msra.mxu0 0.0
          %4388 = vmatpush.msra.mxu0 0.0
          %4389 = vmatpush.msra.mxu0 0.0
          %4390 = vmatpush.msra.mxu0 0.0
          %4391 = vmatpush.msra.mxu0 0.0
          %4392 = vmatpush.msra.mxu0 0.0
          %4393 = vmatpush.msra.mxu0 0.0
          %4394 = vmatpush.msra.mxu0 0.0
          %4395 = vmatpush.msra.mxu0 %v2430
          %4396 = vmatpush.msra.mxu0 %v2428
          %4397 = vmatpush.msra.mxu0 %v2426
          %4398 = vmatmul.f32.gmra.mxu0 %v4380
          %v4399 = vpop.f32.mrf.mxu0
          %v4400 = vadd.f32 0.0, %v4399
          %4401 = vdwg.mxu0
          %4402 = vmatpush.msra.mxu0 0.0
          %4403 = vmatpush.msra.mxu0 0.0
          %4404 = vmatpush.msra.mxu0 0.0
          %4405 = vmatpush.msra.mxu0 0.0
          %4406 = vmatpush.msra.mxu0 0.0
          %4407 = vmatpush.msra.mxu0 0.0
          %4408 = vmatpush.msra.mxu0 0.0
          %4409 = vmatpush.msra.mxu0 0.0
          %4410 = vmatpush.msra.mxu0 0.0
          %4411 = vmatpush.msra.mxu0 0.0
          %4412 = vmatpush.msra.mxu0 0.0
          %4413 = vmatpush.msra.mxu0 0.0
          %4414 = vmatpush.msra.mxu0 0.0
          %4415 = vmatpush.msra.mxu0 %v2431
          %4416 = vmatpush.msra.mxu0 %v2429
          %4417 = vmatpush.msra.mxu0 %v2427
          %4418 = vmatmul.f32.gmra.mxu0 %v4380
          %v4419 = vpop.f32.mrf.mxu0
          %v4420 = vadd.f32 0.0, %v4419
          %4421 = vdwg.mxu0
          %v4422 = vadd.f32 %v4299, %v4400
          %v4423 = vadd.f32 %v4300, %v4420
          %v4424 = vld [vmem:[%s1152] sm:$0x3]
          %v4426 = vperm.slane %v4424, 0
          %v4427 = vperm.slane %v4424, 1
          %v4430 = vadd.f32 %v4422, %v4426
          %v4431 = vadd.f32 %v4423, %v4427
          %4432 = vst [vmem:[#allocation2 + $0x10] sm:$0xff] %v4430
          %4433 = vst.msk [vmem:[#allocation2 + $0x18] sm:$0xff] %vm1530, %v4431
        $region196: #{step_diffusion_head_forward.4} parent=111 // pred_fallthru
          _
        %p4434 = scmp.eq.s32.totalorder %s1440, 1
        // Predicated region
        $region197: #{step_diffusion_head_forward.4} parent=111 // pred_check
          %p4435 = pneg %p4434
        $region198: #{step_diffusion_head_forward.4} parent=111 // pred_check_branch
          %4437 = sbr.rel (%p4435) target = $region200
        $region199: #{step_diffusion_head_forward.4} parent=111 // pred_region
          %v4438 = vld [vmem:[%s1162] sm:$0x3]
          %v4439 = vld [vmem:[%s1142] sm:$0xff]
          %v4440 = vld [vmem:[%s1142 + $0x8] sm:$0xff]
          %v4441 = vld [vmem:[%s1142 + $0x10] sm:$0xff]
          %v4442 = vld [vmem:[%s1142 + $0x18] sm:$0xff]
          %v4443 = vld [vmem:[%s1142 + $0x20] sm:$0xff]
          %v4444 = vld [vmem:[%s1142 + $0x28] sm:$0xff]
          %v4445 = vld [vmem:[%s1142 + $0x30] sm:$0xff]
          %v4446 = vld [vmem:[%s1142 + $0x38] sm:$0xff]
          %v4447 = vld [vmem:[%s1142 + $0x40] sm:$0xff]
          %v4448 = vld [vmem:[%s1142 + $0x48] sm:$0xff]
          %v4449 = vld [vmem:[%s1142 + $0x50] sm:$0xff]
          %v4450 = vld [vmem:[%s1142 + $0x58] sm:$0xff]
          %v4451 = vld [vmem:[%s1142 + $0x60] sm:$0xff]
          %v4452 = vld [vmem:[%s1142 + $0x68] sm:$0xff]
          %v4453 = vld [vmem:[%s1142 + $0x70] sm:$0xff]
          %v4454 = vld [vmem:[%s1142 + $0x78] sm:$0xff]
          %v4455 = vld [vmem:[%s1142 + $0x80] sm:$0xff]
          %v4456 = vld [vmem:[%s1142 + $0x88] sm:$0xff]
          %v4457 = vld [vmem:[%s1142 + $0x90] sm:$0xff]
          %v4458 = vld [vmem:[%s1142 + $0x98] sm:$0xff]
          %v4459 = vld [vmem:[%s1142 + $0xa0] sm:$0xff]
          %v4460 = vld [vmem:[%s1142 + $0xa8] sm:$0xff]
          %v4461 = vld [vmem:[%s1142 + $0xb0] sm:$0xff]
          %v4462 = vld [vmem:[%s1142 + $0xb8] sm:$0xff]
          %v4463 = vld [vmem:[%s1142 + $0xc0] sm:$0xff]
          %v4464 = vld [vmem:[%s1142 + $0xc8] sm:$0xff]
          %v4465 = vld [vmem:[%s1142 + $0xd0] sm:$0xff]
          %v4466 = vld [vmem:[%s1142 + $0xd8] sm:$0xff]
          %v4467 = vld [vmem:[%s1142 + $0xe0] sm:$0xff]
          %v4468 = vld [vmem:[%s1142 + $0xe8] sm:$0xff]
          %v4469 = vld [vmem:[%s1142 + $0xf0] sm:$0xff]
          %v4470 = vld [vmem:[%s1142 + $0xf8] sm:$0xff]
          %v4471 = vld [vmem:[%s1142 + $0x100] sm:$0xff]
          %v4472 = vld [vmem:[%s1142 + $0x108] sm:$0xff]
          %v4473 = vld [vmem:[%s1142 + $0x110] sm:$0xff]
          %v4474 = vld [vmem:[%s1142 + $0x118] sm:$0xff]
          %v4475 = vld [vmem:[%s1142 + $0x120] sm:$0xff]
          %v4476 = vld [vmem:[%s1142 + $0x128] sm:$0xff]
          %v4477 = vld [vmem:[%s1142 + $0x130] sm:$0xff]
          %v4478 = vld [vmem:[%s1142 + $0x138] sm:$0xff]
          %v4479 = vld [vmem:[%s1142 + $0x140] sm:$0xff]
          %v4480 = vld [vmem:[%s1142 + $0x148] sm:$0xff]
          %v4481 = vld [vmem:[%s1142 + $0x150] sm:$0xff]
          %v4482 = vld [vmem:[%s1142 + $0x158] sm:$0xff]
          %v4483 = vld [vmem:[%s1142 + $0x160] sm:$0xff]
          %v4484 = vld [vmem:[%s1142 + $0x168] sm:$0xff]
          %v4485 = vld [vmem:[%s1142 + $0x170] sm:$0xff]
          %v4486 = vld [vmem:[%s1142 + $0x178] sm:$0xff]
          %v4487 = vld [vmem:[%s1152] sm:$0x3]
          %v4489 = vperm.slane %v4438, 0
          %v4490 = vperm.slane %v4438, 1
          %v4493 = vperm.slane %v4487, 0
          %v4494 = vperm.slane %v4487, 1
          %vm4497 = vcmask 523264
          %v4498 = vsel %vm4497, %v4490, 0
          %4500 = vmatpush.msra.mxu0 %v4469
          %4501 = vmatpush.msra.mxu0 %v4467
          %4502 = vmatpush.msra.mxu0 %v4465
          %4503 = vmatpush.msra.mxu0 %v4463
          %4504 = vmatpush.msra.mxu0 %v4461
          %4505 = vmatpush.msra.mxu0 %v4459
          %4506 = vmatpush.msra.mxu0 %v4457
          %4507 = vmatpush.msra.mxu0 %v4455
          %4508 = vmatpush.msra.mxu0 %v4453
          %4509 = vmatpush.msra.mxu0 %v4451
          %4510 = vmatpush.msra.mxu0 %v4449
          %4511 = vmatpush.msra.mxu0 %v4447
          %4512 = vmatpush.msra.mxu0 %v4445
          %4513 = vmatpush.msra.mxu0 %v4443
          %4514 = vmatpush.msra.mxu0 %v4441
          %4515 = vmatpush.msra.mxu0 %v4439
          %4516 = vmatmul.f32.gmra.mxu0 %v4489
          %v4517 = vpop.f32.mrf.mxu0
          %v4518 = vadd.f32 %v4493, %v4517
          %4519 = vdwg.mxu0
          %4520 = vmatpush.msra.mxu0 0.0
          %4521 = vmatpush.msra.mxu0 0.0
          %4522 = vmatpush.msra.mxu0 0.0
          %4523 = vmatpush.msra.mxu0 0.0
          %4524 = vmatpush.msra.mxu0 0.0
          %4525 = vmatpush.msra.mxu0 0.0
          %4526 = vmatpush.msra.mxu0 0.0
          %4527 = vmatpush.msra.mxu0 0.0
          %4528 = vmatpush.msra.mxu0 %v4485
          %4529 = vmatpush.msra.mxu0 %v4483
          %4530 = vmatpush.msra.mxu0 %v4481
          %4531 = vmatpush.msra.mxu0 %v4479
          %4532 = vmatpush.msra.mxu0 %v4477
          %4533 = vmatpush.msra.mxu0 %v4475
          %4534 = vmatpush.msra.mxu0 %v4473
          %4535 = vmatpush.msra.mxu0 %v4471
          %4536 = vmatmul.f32.gmra.mxu0 %v4498
          %v4537 = vpop.f32.mrf.mxu0
          %v4538 = vadd.f32 %v4518, %v4537
          %4539 = vdwg.mxu0
          %4540 = vmatpush.msra.mxu0 %v4470
          %4541 = vmatpush.msra.mxu0 %v4468
          %4542 = vmatpush.msra.mxu0 %v4466
          %4543 = vmatpush.msra.mxu0 %v4464
          %4544 = vmatpush.msra.mxu0 %v4462
          %4545 = vmatpush.msra.mxu0 %v4460
          %4546 = vmatpush.msra.mxu0 %v4458
          %4547 = vmatpush.msra.mxu0 %v4456
          %4548 = vmatpush.msra.mxu0 %v4454
          %4549 = vmatpush.msra.mxu0 %v4452
          %4550 = vmatpush.msra.mxu0 %v4450
          %4551 = vmatpush.msra.mxu0 %v4448
          %4552 = vmatpush.msra.mxu0 %v4446
          %4553 = vmatpush.msra.mxu0 %v4444
          %4554 = vmatpush.msra.mxu0 %v4442
          %4555 = vmatpush.msra.mxu0 %v4440
          %4556 = vmatmul.f32.gmra.mxu0 %v4489
          %v4557 = vpop.f32.mrf.mxu0
          %v4558 = vadd.f32 %v4494, %v4557
          %4559 = vdwg.mxu0
          %4560 = vmatpush.msra.mxu0 0.0
          %4561 = vmatpush.msra.mxu0 0.0
          %4562 = vmatpush.msra.mxu0 0.0
          %4563 = vmatpush.msra.mxu0 0.0
          %4564 = vmatpush.msra.mxu0 0.0
          %4565 = vmatpush.msra.mxu0 0.0
          %4566 = vmatpush.msra.mxu0 0.0
          %4567 = vmatpush.msra.mxu0 0.0
          %4568 = vmatpush.msra.mxu0 %v4486
          %4569 = vmatpush.msra.mxu0 %v4484
          %4570 = vmatpush.msra.mxu0 %v4482
          %4571 = vmatpush.msra.mxu0 %v4480
          %4572 = vmatpush.msra.mxu0 %v4478
          %4573 = vmatpush.msra.mxu0 %v4476
          %4574 = vmatpush.msra.mxu0 %v4474
          %4575 = vmatpush.msra.mxu0 %v4472
          %4576 = vmatmul.f32.gmra.mxu0 %v4498
          %v4577 = vpop.f32.mrf.mxu0
          %v4578 = vadd.f32 %v4558, %v4577
          %4579 = vdwg.mxu0
          %v4580 = vperm.slane %v4538, 0
          %v4581 = vperm.slane %v4578, 0
          %4582 = vst [vmem:[#allocation2] sm:$0xff] %v4580
          %4583 = vst.msk [vmem:[#allocation2 + $0x8] sm:$0xff] %vm4497, %v4581
          %4584 = vst [vmem:[#allocation2 + $0x10] sm:$0xff] %v4580
          %4585 = vst.msk [vmem:[#allocation2 + $0x18] sm:$0xff] %vm4497, %v4581
        $region200: #{step_diffusion_head_forward.4} parent=111 // pred_fallthru
          _
        %v4586 = vld [vmem:[#allocation2] sm:$0xff]
        %v4587 = vld [vmem:[#allocation2 + $0x8] sm:$0xff]
        %v4588 = vld [vmem:[#allocation2 + $0x10] sm:$0xff]
        %v4589 = vld [vmem:[#allocation2 + $0x18] sm:$0xff]
        %v4590 = vadd.f32 %v1424, %v4586
        %v4591 = vadd.f32 %v1425, %v4587
        %v4592 = vadd.f32 %v1426, %v4588
        %v4593 = vadd.f32 %v1427, %v4589
        %v4594 = vld [vmem:[%s1172] sm:$0x3]
        %v4595 = vld [vmem:[%s1182] sm:$0x3]
        %vm4596 = vcmask 523264
        %v4597 = vsel %vm4596, %v4591, 0.0
        %v4598 = vadd.f32 %v4590, %v4597
        %4599 = vadd.xlane.f32.xlu0 %v4598
        %v4600 = vpop.xlane.xlu0 %4599
        %v4601 = vsel %vm4596, %v4593, 0.0
        %v4602 = vadd.f32 %v4592, %v4601
        %4603 = vadd.xlane.f32.xlu0 %v4602
        %v4604 = vpop.xlane.xlu0 %4603
        %v4605 = vrcp.pop 192.0
        %v4606 = vmul.f32 192.0, %v4605
        %v4607 = vsub.f32 1.0, %v4606
        %v4608 = vmul.f32 %v4605, %v4607
        %v4609 = vadd.f32 %v4605, %v4608
        %vm4610 = vweird.f32 %v4605
        %v4611 = vsel %vm4610, %v4605, %v4609
        %v4612 = vmul.f32 %v4600, %v4611
        %v4613 = vmul.f32 %v4604, %v4611
        %v4614 = vsub.f32 %v4590, %v4612
        %v4615 = vsub.f32 %v4591, %v4612
        %v4616 = vsub.f32 %v4592, %v4613
        %v4617 = vsub.f32 %v4593, %v4613
        %v4618 = vmul.f32 %v4614, %v4614
        %v4619 = vmul.f32 %v4615, %v4615
        %v4620 = vmul.f32 %v4616, %v4616
        %v4621 = vmul.f32 %v4617, %v4617
        %v4622 = vsel %vm4596, %v4619, 0.0
        %v4623 = vadd.f32 %v4618, %v4622
        %4624 = vadd.xlane.f32.xlu0 %v4623
        %v4625 = vpop.xlane.xlu0 %4624
        %v4626 = vsel %vm4596, %v4621, 0.0
        %v4627 = vadd.f32 %v4620, %v4626
        %4628 = vadd.xlane.f32.xlu0 %v4627
        %v4629 = vpop.xlane.xlu0 %4628
        %v4630 = vmul.f32 %v4625, %v4611
        %v4631 = vmul.f32 %v4629, %v4611
        %v4632 = vadd.f32 %v4630, 1e-05
        %v4633 = vadd.f32 %v4631, 1e-05
        %v4634 = vrsqrt.pop %v4632
        %v4635 = vmul.f32 %v4634, %v4632
        %v4636 = vmul.f32 %v4635, %v4634
        %v4637 = vmul.f32 0.5, %v4636
        %v4638 = vsub.f32 1.5, %v4637
        %v4639 = vmul.f32 %v4634, %v4638
        %vm4640 = vweird.f32 %v4632
        %vm4641 = vweird.f32 %v4634
        %vm4642 = vmor %vm4640, %vm4641
        %v4643 = vsel %vm4642, %v4634, %v4639
        %v4644 = vrsqrt.pop %v4633
        %v4645 = vmul.f32 %v4644, %v4633
        %v4646 = vmul.f32 %v4645, %v4644
        %v4647 = vmul.f32 0.5, %v4646
        %v4648 = vsub.f32 1.5, %v4647
        %v4649 = vmul.f32 %v4644, %v4648
        %vm4650 = vweird.f32 %v4633
        %vm4651 = vweird.f32 %v4644
        %vm4652 = vmor %vm4650, %vm4651
        %v4653 = vsel %vm4652, %v4644, %v4649
        %v4654 = vmul.f32 %v4614, %v4643
        %v4655 = vmul.f32 %v4615, %v4643
        %v4656 = vmul.f32 %v4616, %v4653
        %v4657 = vmul.f32 %v4617, %v4653
        %v4659 = vperm.slane %v4594, 0
        %v4660 = vperm.slane %v4594, 1
        %v4663 = vmul.f32 %v4654, %v4659
        %v4664 = vmul.f32 %v4655, %v4660
        %v4665 = vmul.f32 %v4656, %v4659
        %v4666 = vmul.f32 %v4657, %v4660
        %v4668 = vperm.slane %v4595, 0
        %v4669 = vperm.slane %v4595, 1
        %v4672 = vadd.f32 %v4663, %v4668
        %v4673 = vadd.f32 %v4664, %v4669
        %v4674 = vadd.f32 %v4665, %v4668
        %v4675 = vadd.f32 %v4666, %v4669
        %v4676 = vld [vmem:[%s1192] sm:$0xff]
        %v4677 = vld [vmem:[%s1192 + $0x8] sm:$0xff]
        %v4678 = vld [vmem:[%s1192 + $0x10] sm:$0xff]
        %v4679 = vld [vmem:[%s1192 + $0x18] sm:$0xff]
        %v4680 = vld [vmem:[%s1192 + $0x20] sm:$0xff]
        %v4681 = vld [vmem:[%s1192 + $0x28] sm:$0xff]
        %v4682 = vld [vmem:[%s1192 + $0x30] sm:$0xff]
        %v4683 = vld [vmem:[%s1192 + $0x38] sm:$0xff]
        %v4684 = vld [vmem:[%s1192 + $0x40] sm:$0xff]
        %v4685 = vld [vmem:[%s1192 + $0x48] sm:$0xff]
        %v4686 = vld [vmem:[%s1192 + $0x50] sm:$0xff]
        %v4687 = vld [vmem:[%s1192 + $0x58] sm:$0xff]
        %v4688 = vld [vmem:[%s1192 + $0x60] sm:$0xff]
        %v4689 = vld [vmem:[%s1192 + $0x68] sm:$0xff]
        %v4690 = vld [vmem:[%s1192 + $0x70] sm:$0xff]
        %v4691 = vld [vmem:[%s1192 + $0x78] sm:$0xff]
        %v4692 = vld [vmem:[%s1192 + $0x80] sm:$0xff]
        %v4693 = vld [vmem:[%s1192 + $0x88] sm:$0xff]
        %v4694 = vld [vmem:[%s1192 + $0x90] sm:$0xff]
        %v4695 = vld [vmem:[%s1192 + $0x98] sm:$0xff]
        %v4696 = vld [vmem:[%s1192 + $0xa0] sm:$0xff]
        %v4697 = vld [vmem:[%s1192 + $0xa8] sm:$0xff]
        %v4698 = vld [vmem:[%s1192 + $0xb0] sm:$0xff]
        %v4699 = vld [vmem:[%s1192 + $0xb8] sm:$0xff]
        %v4700 = vld [vmem:[%s1192 + $0xc0] sm:$0xff]
        %v4701 = vld [vmem:[%s1192 + $0xc8] sm:$0xff]
        %v4702 = vld [vmem:[%s1192 + $0xd0] sm:$0xff]
        %v4703 = vld [vmem:[%s1192 + $0xd8] sm:$0xff]
        %v4704 = vld [vmem:[%s1192 + $0xe0] sm:$0xff]
        %v4705 = vld [vmem:[%s1192 + $0xe8] sm:$0xff]
        %v4706 = vld [vmem:[%s1192 + $0xf0] sm:$0xff]
        %v4707 = vld [vmem:[%s1192 + $0xf8] sm:$0xff]
        %v4708 = vld [vmem:[%s1192 + $0x100] sm:$0xff]
        %v4709 = vld [vmem:[%s1192 + $0x108] sm:$0xff]
        %v4710 = vld [vmem:[%s1192 + $0x110] sm:$0xff]
        %v4711 = vld [vmem:[%s1192 + $0x118] sm:$0xff]
        %v4712 = vld [vmem:[%s1192 + $0x120] sm:$0xff]
        %v4713 = vld [vmem:[%s1192 + $0x128] sm:$0xff]
        %v4714 = vld [vmem:[%s1192 + $0x130] sm:$0xff]
        %v4715 = vld [vmem:[%s1192 + $0x138] sm:$0xff]
        %v4716 = vld [vmem:[%s1192 + $0x140] sm:$0xff]
        %v4717 = vld [vmem:[%s1192 + $0x148] sm:$0xff]
        %v4718 = vld [vmem:[%s1192 + $0x150] sm:$0xff]
        %v4719 = vld [vmem:[%s1192 + $0x158] sm:$0xff]
        %v4720 = vld [vmem:[%s1192 + $0x160] sm:$0xff]
        %v4721 = vld [vmem:[%s1192 + $0x168] sm:$0xff]
        %v4722 = vld [vmem:[%s1192 + $0x170] sm:$0xff]
        %v4723 = vld [vmem:[%s1192 + $0x178] sm:$0xff]
        %v4724 = vld [vmem:[%s1192 + $0x180] sm:$0xff]
        %v4725 = vld [vmem:[%s1192 + $0x188] sm:$0xff]
        %v4726 = vld [vmem:[%s1192 + $0x190] sm:$0xff]
        %v4727 = vld [vmem:[%s1192 + $0x198] sm:$0xff]
        %v4728 = vld [vmem:[%s1192 + $0x1a0] sm:$0xff]
        %v4729 = vld [vmem:[%s1192 + $0x1a8] sm:$0xff]
        %v4730 = vld [vmem:[%s1192 + $0x1b0] sm:$0xff]
        %v4731 = vld [vmem:[%s1192 + $0x1b8] sm:$0xff]
        %v4732 = vld [vmem:[%s1192 + $0x1c0] sm:$0xff]
        %v4733 = vld [vmem:[%s1192 + $0x1c8] sm:$0xff]
        %v4734 = vld [vmem:[%s1192 + $0x1d0] sm:$0xff]
        %v4735 = vld [vmem:[%s1192 + $0x1d8] sm:$0xff]
        %v4736 = vld [vmem:[%s1192 + $0x1e0] sm:$0xff]
        %v4737 = vld [vmem:[%s1192 + $0x1e8] sm:$0xff]
        %v4738 = vld [vmem:[%s1192 + $0x1f0] sm:$0xff]
        %v4739 = vld [vmem:[%s1192 + $0x1f8] sm:$0xff]
        %v4740 = vld [vmem:[%s1192 + $0x200] sm:$0xff]
        %v4741 = vld [vmem:[%s1192 + $0x208] sm:$0xff]
        %v4742 = vld [vmem:[%s1192 + $0x210] sm:$0xff]
        %v4743 = vld [vmem:[%s1192 + $0x218] sm:$0xff]
        %v4744 = vld [vmem:[%s1192 + $0x220] sm:$0xff]
        %v4745 = vld [vmem:[%s1192 + $0x228] sm:$0xff]
        %v4746 = vld [vmem:[%s1192 + $0x230] sm:$0xff]
        %v4747 = vld [vmem:[%s1192 + $0x238] sm:$0xff]
        %v4748 = vld [vmem:[%s1202] sm:$0x7]
        %v4750 = vperm.slane %v4748, 0
        %v4751 = vperm.slane %v4748, 1
        %v4752 = vperm.slane %v4748, 2
        %4757 = vst [vmem:[#allocation1] ss:$4 sm:$0xff] %v1428
        %v4758 = vld.sshfl [vmem:[#allocation1] sm:$0xff pattern:$0x73625140]
        %v4759 = vld.sshfl [vmem:[#allocation1 + $0x8] sm:$0xff pattern:$0x73625140]
        %v4761 = vsel %vm4596, %v4759, 0
        %4763 = vmatpush.msra.mxu0 %v4721
        %4764 = vmatpush.msra.mxu0 %v4718
        %4765 = vmatpush.msra.mxu0 %v4715
        %4766 = vmatpush.msra.mxu0 %v4712
        %4767 = vmatpush.msra.mxu0 %v4709
        %4768 = vmatpush.msra.mxu0 %v4706
        %4769 = vmatpush.msra.mxu0 %v4703
        %4770 = vmatpush.msra.mxu0 %v4700
        %4771 = vmatpush.msra.mxu0 %v4697
        %4772 = vmatpush.msra.mxu0 %v4694
        %4773 = vmatpush.msra.mxu0 %v4691
        %4774 = vmatpush.msra.mxu0 %v4688
        %4775 = vmatpush.msra.mxu0 %v4685
        %4776 = vmatpush.msra.mxu0 %v4682
        %4777 = vmatpush.msra.mxu0 %v4679
        %4778 = vmatpush.msra.mxu0 %v4676
        %4779 = vmatmul.f32.gmra.mxu0 %v4758
        %v4780 = vpop.f32.mrf.mxu0
        %v4781 = vadd.f32 %v4750, %v4780
        %4782 = vdwg.mxu0
        %4783 = vmatpush.msra.mxu0 0.0
        %4784 = vmatpush.msra.mxu0 0.0
        %4785 = vmatpush.msra.mxu0 0.0
        %4786 = vmatpush.msra.mxu0 0.0
        %4787 = vmatpush.msra.mxu0 0.0
        %4788 = vmatpush.msra.mxu0 0.0
        %4789 = vmatpush.msra.mxu0 0.0
        %4790 = vmatpush.msra.mxu0 0.0
        %4791 = vmatpush.msra.mxu0 %v4745
        %4792 = vmatpush.msra.mxu0 %v4742
        %4793 = vmatpush.msra.mxu0 %v4739
        %4794 = vmatpush.msra.mxu0 %v4736
        %4795 = vmatpush.msra.mxu0 %v4733
        %4796 = vmatpush.msra.mxu0 %v4730
        %4797 = vmatpush.msra.mxu0 %v4727
        %4798 = vmatpush.msra.mxu0 %v4724
        %4799 = vmatmul.f32.gmra.mxu0 %v4761
        %v4800 = vpop.f32.mrf.mxu0
        %v4801 = vadd.f32 %v4781, %v4800
        %4802 = vdwg.mxu0
        %4803 = vmatpush.msra.mxu0 %v4722
        %4804 = vmatpush.msra.mxu0 %v4719
        %4805 = vmatpush.msra.mxu0 %v4716
        %4806 = vmatpush.msra.mxu0 %v4713
        %4807 = vmatpush.msra.mxu0 %v4710
        %4808 = vmatpush.msra.mxu0 %v4707
        %4809 = vmatpush.msra.mxu0 %v4704
        %4810 = vmatpush.msra.mxu0 %v4701
        %4811 = vmatpush.msra.mxu0 %v4698
        %4812 = vmatpush.msra.mxu0 %v4695
        %4813 = vmatpush.msra.mxu0 %v4692
        %4814 = vmatpush.msra.mxu0 %v4689
        %4815 = vmatpush.msra.mxu0 %v4686
        %4816 = vmatpush.msra.mxu0 %v4683
        %4817 = vmatpush.msra.mxu0 %v4680
        %4818 = vmatpush.msra.mxu0 %v4677
        %4819 = vmatmul.f32.gmra.mxu0 %v4758
        %v4820 = vpop.f32.mrf.mxu0
        %v4821 = vadd.f32 %v4751, %v4820
        %4822 = vdwg.mxu0
        %4823 = vmatpush.msra.mxu0 0.0
        %4824 = vmatpush.msra.mxu0 0.0
        %4825 = vmatpush.msra.mxu0 0.0
        %4826 = vmatpush.msra.mxu0 0.0
        %4827 = vmatpush.msra.mxu0 0.0
        %4828 = vmatpush.msra.mxu0 0.0
        %4829 = vmatpush.msra.mxu0 0.0
        %4830 = vmatpush.msra.mxu0 0.0
        %4831 = vmatpush.msra.mxu0 %v4746
        %4832 = vmatpush.msra.mxu0 %v4743
        %4833 = vmatpush.msra.mxu0 %v4740
        %4834 = vmatpush.msra.mxu0 %v4737
        %4835 = vmatpush.msra.mxu0 %v4734
        %4836 = vmatpush.msra.mxu0 %v4731
        %4837 = vmatpush.msra.mxu0 %v4728
        %4838 = vmatpush.msra.mxu0 %v4725
        %4839 = vmatmul.f32.gmra.mxu0 %v4761
        %v4840 = vpop.f32.mrf.mxu0
        %v4841 = vadd.f32 %v4821, %v4840
        %4842 = vdwg.mxu0
        %4843 = vmatpush.msra.mxu0 %v4723
        %4844 = vmatpush.msra.mxu0 %v4720
        %4845 = vmatpush.msra.mxu0 %v4717
        %4846 = vmatpush.msra.mxu0 %v4714
        %4847 = vmatpush.msra.mxu0 %v4711
        %4848 = vmatpush.msra.mxu0 %v4708
        %4849 = vmatpush.msra.mxu0 %v4705
        %4850 = vmatpush.msra.mxu0 %v4702
        %4851 = vmatpush.msra.mxu0 %v4699
        %4852 = vmatpush.msra.mxu0 %v4696
        %4853 = vmatpush.msra.mxu0 %v4693
        %4854 = vmatpush.msra.mxu0 %v4690
        %4855 = vmatpush.msra.mxu0 %v4687
        %4856 = vmatpush.msra.mxu0 %v4684
        %4857 = vmatpush.msra.mxu0 %v4681
        %4858 = vmatpush.msra.mxu0 %v4678
        %4859 = vmatmul.f32.gmra.mxu0 %v4758
        %v4860 = vpop.f32.mrf.mxu0
        %v4861 = vadd.f32 %v4752, %v4860
        %4862 = vdwg.mxu0
        %4863 = vmatpush.msra.mxu0 0.0
        %4864 = vmatpush.msra.mxu0 0.0
        %4865 = vmatpush.msra.mxu0 0.0
        %4866 = vmatpush.msra.mxu0 0.0
        %4867 = vmatpush.msra.mxu0 0.0
        %4868 = vmatpush.msra.mxu0 0.0
        %4869 = vmatpush.msra.mxu0 0.0
        %4870 = vmatpush.msra.mxu0 0.0
        %4871 = vmatpush.msra.mxu0 %v4747
        %4872 = vmatpush.msra.mxu0 %v4744
        %4873 = vmatpush.msra.mxu0 %v4741
        %4874 = vmatpush.msra.mxu0 %v4738
        %4875 = vmatpush.msra.mxu0 %v4735
        %4876 = vmatpush.msra.mxu0 %v4732
        %4877 = vmatpush.msra.mxu0 %v4729
        %4878 = vmatpush.msra.mxu0 %v4726
        %4879 = vmatmul.f32.gmra.mxu0 %v4761
        %v4880 = vpop.f32.mrf.mxu0
        %v4881 = vadd.f32 %v4861, %v4880
        %4882 = vdwg.mxu0
        %v4885 = vrot.slane %v4841, 7
        %vm4886 = vcmask 1040384
        %v4887 = vsel %vm4886, %v4801, %v4885
        %vm4888 = vcmask 1041409
        %v4889 = vsel %vm4888, %v4801, %v4885
        %v4890 = vrot.slane %v4889, 1
        %v4893 = vadd.f32 %v4887, 1.0
        %v4894 = vadd.f32 %v4890, 1.0
        %v4897 = vperm.slane %v4893, 0
        %v4898 = vperm.slane %v4893, 1
        %v4899 = vperm.slane %v4894, 0
        %v4900 = vperm.slane %v4894, 1
        %v4905 = vmul.f32 %v4672, %v4897
        %v4906 = vmul.f32 %v4673, %v4898
        %v4907 = vmul.f32 %v4674, %v4899
        %v4908 = vmul.f32 %v4675, %v4900
        %v4910 = vrot.slane %v4881, 7
        %v4911 = vsel %vm4886, %v4841, %v4910
        %v4912 = vsel %vm4888, %v4841, %v4910
        %v4913 = vrot.slane %v4912, 1
        %v4914 = vperm.slane %v4911, 0
        %v4915 = vperm.slane %v4911, 1
        %v4916 = vperm.slane %v4913, 0
        %v4917 = vperm.slane %v4913, 1
        %4918 = vrot.lane.b32.xlu0 %v4914, 64
        %v4919 = vpop.permute.xlu0 %4918
        %4920 = vrot.lane.b32.xlu0 %v4915, 64
        %v4921 = vpop.permute.xlu0 %4920
        %4922 = vrot.lane.b32.xlu0 %v4916, 64
        %v4923 = vpop.permute.xlu0 %4922
        %4924 = vrot.lane.b32.xlu0 %v4917, 64
        %v4925 = vpop.permute.xlu0 %4924
        %v4926 = vsel %vm4596, %v4919, %v4921
        %v4927 = vsel %vm4596, %v4923, %v4925
        %v4932 = vadd.f32 %v4905, %v4926
        %v4933 = vadd.f32 %v4906, %v4921
        %v4934 = vadd.f32 %v4907, %v4927
        %v4935 = vadd.f32 %v4908, %v4925
        %v4936 = vld [vmem:[%s1212] sm:$0xff]
        %v4937 = vld [vmem:[%s1212 + $0x8] sm:$0xff]
        %v4938 = vld [vmem:[%s1212 + $0x10] sm:$0xff]
        %v4939 = vld [vmem:[%s1212 + $0x18] sm:$0xff]
        %v4940 = vld [vmem:[%s1212 + $0x20] sm:$0xff]
        %v4941 = vld [vmem:[%s1212 + $0x28] sm:$0xff]
        %v4942 = vld [vmem:[%s1212 + $0x30] sm:$0xff]
        %v4943 = vld [vmem:[%s1212 + $0x38] sm:$0xff]
        %v4944 = vld [vmem:[%s1212 + $0x40] sm:$0xff]
        %v4945 = vld [vmem:[%s1212 + $0x48] sm:$0xff]
        %v4946 = vld [vmem:[%s1212 + $0x50] sm:$0xff]
        %v4947 = vld [vmem:[%s1212 + $0x58] sm:$0xff]
        %v4948 = vld [vmem:[%s1212 + $0x60] sm:$0xff]
        %v4949 = vld [vmem:[%s1212 + $0x68] sm:$0xff]
        %v4950 = vld [vmem:[%s1212 + $0x70] sm:$0xff]
        %v4951 = vld [vmem:[%s1212 + $0x78] sm:$0xff]
        %v4952 = vld [vmem:[%s1212 + $0x80] sm:$0xff]
        %v4953 = vld [vmem:[%s1212 + $0x88] sm:$0xff]
        %v4954 = vld [vmem:[%s1212 + $0x90] sm:$0xff]
        %v4955 = vld [vmem:[%s1212 + $0x98] sm:$0xff]
        %v4956 = vld [vmem:[%s1212 + $0xa0] sm:$0xff]
        %v4957 = vld [vmem:[%s1212 + $0xa8] sm:$0xff]
        %v4958 = vld [vmem:[%s1212 + $0xb0] sm:$0xff]
        %v4959 = vld [vmem:[%s1212 + $0xb8] sm:$0xff]
        %v4960 = vld [vmem:[%s1212 + $0xc0] sm:$0xff]
        %v4961 = vld [vmem:[%s1212 + $0xc8] sm:$0xff]
        %v4962 = vld [vmem:[%s1212 + $0xd0] sm:$0xff]
        %v4963 = vld [vmem:[%s1212 + $0xd8] sm:$0xff]
        %v4964 = vld [vmem:[%s1212 + $0xe0] sm:$0xff]
        %v4965 = vld [vmem:[%s1212 + $0xe8] sm:$0xff]
        %v4966 = vld [vmem:[%s1212 + $0xf0] sm:$0xff]
        %v4967 = vld [vmem:[%s1212 + $0xf8] sm:$0xff]
        %v4968 = vld [vmem:[%s1212 + $0x100] sm:$0xff]
        %v4969 = vld [vmem:[%s1212 + $0x108] sm:$0xff]
        %v4970 = vld [vmem:[%s1212 + $0x110] sm:$0xff]
        %v4971 = vld [vmem:[%s1212 + $0x118] sm:$0xff]
        %v4972 = vld [vmem:[%s1212 + $0x120] sm:$0xff]
        %v4973 = vld [vmem:[%s1212 + $0x128] sm:$0xff]
        %v4974 = vld [vmem:[%s1212 + $0x130] sm:$0xff]
        %v4975 = vld [vmem:[%s1212 + $0x138] sm:$0xff]
        %v4976 = vld [vmem:[%s1212 + $0x140] sm:$0xff]
        %v4977 = vld [vmem:[%s1212 + $0x148] sm:$0xff]
        %v4978 = vld [vmem:[%s1212 + $0x150] sm:$0xff]
        %v4979 = vld [vmem:[%s1212 + $0x158] sm:$0xff]
        %v4980 = vld [vmem:[%s1212 + $0x160] sm:$0xff]
        %v4981 = vld [vmem:[%s1212 + $0x168] sm:$0xff]
        %v4982 = vld [vmem:[%s1212 + $0x170] sm:$0xff]
        %v4983 = vld [vmem:[%s1212 + $0x178] sm:$0xff]
        %v4984 = vld [vmem:[%s1222] sm:$0x3]
        %v4986 = vperm.slane %v4984, 0
        %v4987 = vperm.slane %v4984, 1
        %v4991 = vsel %vm4596, %v4933, 0
        %v4994 = vsel %vm4596, %v4935, 0
        %4996 = vmatpush.msra.mxu0 %v4966
        %4997 = vmatpush.msra.mxu0 %v4964
        %4998 = vmatpush.msra.mxu0 %v4962
        %4999 = vmatpush.msra.mxu0 %v4960
        %5000 = vmatpush.msra.mxu0 %v4958
        %5001 = vmatpush.msra.mxu0 %v4956
        %5002 = vmatpush.msra.mxu0 %v4954
        %5003 = vmatpush.msra.mxu0 %v4952
        %5004 = vmatpush.msra.mxu0 %v4950
        %5005 = vmatpush.msra.mxu0 %v4948
        %5006 = vmatpush.msra.mxu0 %v4946
        %5007 = vmatpush.msra.mxu0 %v4944
        %5008 = vmatpush.msra.mxu0 %v4942
        %5009 = vmatpush.msra.mxu0 %v4940
        %5010 = vmatpush.msra.mxu0 %v4938
        %5011 = vmatpush.msra.mxu0 %v4936
        %5012 = vmatmul.f32.gmra.mxu0 %v4932
        %v5013 = vpop.f32.mrf.mxu0
        %v5014 = vadd.f32 %v4986, %v5013
        %5015 = vmatmul.f32.gmra.mxu0 %v4934
        %v5016 = vpop.f32.mrf.mxu0
        %v5017 = vadd.f32 %v4986, %v5016
        %5018 = vdwg.mxu0
        %5019 = vmatpush.msra.mxu0 0.0
        %5020 = vmatpush.msra.mxu0 0.0
        %5021 = vmatpush.msra.mxu0 0.0
        %5022 = vmatpush.msra.mxu0 0.0
        %5023 = vmatpush.msra.mxu0 0.0
        %5024 = vmatpush.msra.mxu0 0.0
        %5025 = vmatpush.msra.mxu0 0.0
        %5026 = vmatpush.msra.mxu0 0.0
        %5027 = vmatpush.msra.mxu0 %v4982
        %5028 = vmatpush.msra.mxu0 %v4980
        %5029 = vmatpush.msra.mxu0 %v4978
        %5030 = vmatpush.msra.mxu0 %v4976
        %5031 = vmatpush.msra.mxu0 %v4974
        %5032 = vmatpush.msra.mxu0 %v4972
        %5033 = vmatpush.msra.mxu0 %v4970
        %5034 = vmatpush.msra.mxu0 %v4968
        %5035 = vmatmul.f32.gmra.mxu0 %v4991
        %v5036 = vpop.f32.mrf.mxu0
        %v5037 = vadd.f32 %v5014, %v5036
        %5038 = vmatmul.f32.gmra.mxu0 %v4994
        %v5039 = vpop.f32.mrf.mxu0
        %v5040 = vadd.f32 %v5017, %v5039
        %5041 = vdwg.mxu0
        %5042 = vmatpush.msra.mxu0 %v4967
        %5043 = vmatpush.msra.mxu0 %v4965
        %5044 = vmatpush.msra.mxu0 %v4963
        %5045 = vmatpush.msra.mxu0 %v4961
        %5046 = vmatpush.msra.mxu0 %v4959
        %5047 = vmatpush.msra.mxu0 %v4957
        %5048 = vmatpush.msra.mxu0 %v4955
        %5049 = vmatpush.msra.mxu0 %v4953
        %5050 = vmatpush.msra.mxu0 %v4951
        %5051 = vmatpush.msra.mxu0 %v4949
        %5052 = vmatpush.msra.mxu0 %v4947
        %5053 = vmatpush.msra.mxu0 %v4945
        %5054 = vmatpush.msra.mxu0 %v4943
        %5055 = vmatpush.msra.mxu0 %v4941
        %5056 = vmatpush.msra.mxu0 %v4939
        %5057 = vmatpush.msra.mxu0 %v4937
        %5058 = vmatmul.f32.gmra.mxu0 %v4932
        %v5059 = vpop.f32.mrf.mxu0
        %v5060 = vadd.f32 %v4987, %v5059
        %5061 = vmatmul.f32.gmra.mxu0 %v4934
        %v5062 = vpop.f32.mrf.mxu0
        %v5063 = vadd.f32 %v4987, %v5062
        %5064 = vdwg.mxu0
        %5065 = vmatpush.msra.mxu0 0.0
        %5066 = vmatpush.msra.mxu0 0.0
        %5067 = vmatpush.msra.mxu0 0.0
        %5068 = vmatpush.msra.mxu0 0.0
        %5069 = vmatpush.msra.mxu0 0.0
        %5070 = vmatpush.msra.mxu0 0.0
        %5071 = vmatpush.msra.mxu0 0.0
        %5072 = vmatpush.msra.mxu0 0.0
        %5073 = vmatpush.msra.mxu0 %v4983
        %5074 = vmatpush.msra.mxu0 %v4981
        %5075 = vmatpush.msra.mxu0 %v4979
        %5076 = vmatpush.msra.mxu0 %v4977
        %5077 = vmatpush.msra.mxu0 %v4975
        %5078 = vmatpush.msra.mxu0 %v4973
        %5079 = vmatpush.msra.mxu0 %v4971
        %5080 = vmatpush.msra.mxu0 %v4969
        %5081 = vmatmul.f32.gmra.mxu0 %v4991
        %v5082 = vpop.f32.mrf.mxu0
        %v5083 = vadd.f32 %v5060, %v5082
        %5084 = vmatmul.f32.gmra.mxu0 %v4994
        %v5085 = vpop.f32.mrf.mxu0
        %v5086 = vadd.f32 %v5063, %v5085
        %5087 = vdwg.mxu0
        %v5088 = vmax.f32 %v5037, 0.0
        %v5089 = vmax.f32 %v5083, 0.0
        %v5090 = vmax.f32 %v5040, 0.0
        %v5091 = vmax.f32 %v5086, 0.0
        %v5092 = vld [vmem:[%s1232] sm:$0xff]
        %v5093 = vld [vmem:[%s1232 + $0x8] sm:$0xff]
        %v5094 = vld [vmem:[%s1232 + $0x10] sm:$0xff]
        %v5095 = vld [vmem:[%s1232 + $0x18] sm:$0xff]
        %v5096 = vld [vmem:[%s1232 + $0x20] sm:$0xff]
        %v5097 = vld [vmem:[%s1232 + $0x28] sm:$0xff]
        %v5098 = vld [vmem:[%s1232 + $0x30] sm:$0xff]
        %v5099 = vld [vmem:[%s1232 + $0x38] sm:$0xff]
        %v5100 = vld [vmem:[%s1232 + $0x40] sm:$0xff]
        %v5101 = vld [vmem:[%s1232 + $0x48] sm:$0xff]
        %v5102 = vld [vmem:[%s1232 + $0x50] sm:$0xff]
        %v5103 = vld [vmem:[%s1232 + $0x58] sm:$0xff]
        %v5104 = vld [vmem:[%s1232 + $0x60] sm:$0xff]
        %v5105 = vld [vmem:[%s1232 + $0x68] sm:$0xff]
        %v5106 = vld [vmem:[%s1232 + $0x70] sm:$0xff]
        %v5107 = vld [vmem:[%s1232 + $0x78] sm:$0xff]
        %v5108 = vld [vmem:[%s1232 + $0x80] sm:$0xff]
        %v5109 = vld [vmem:[%s1232 + $0x88] sm:$0xff]
        %v5110 = vld [vmem:[%s1232 + $0x90] sm:$0xff]
        %v5111 = vld [vmem:[%s1232 + $0x98] sm:$0xff]
        %v5112 = vld [vmem:[%s1232 + $0xa0] sm:$0xff]
        %v5113 = vld [vmem:[%s1232 + $0xa8] sm:$0xff]
        %v5114 = vld [vmem:[%s1232 + $0xb0] sm:$0xff]
        %v5115 = vld [vmem:[%s1232 + $0xb8] sm:$0xff]
        %v5116 = vld [vmem:[%s1232 + $0xc0] sm:$0xff]
        %v5117 = vld [vmem:[%s1232 + $0xc8] sm:$0xff]
        %v5118 = vld [vmem:[%s1232 + $0xd0] sm:$0xff]
        %v5119 = vld [vmem:[%s1232 + $0xd8] sm:$0xff]
        %v5120 = vld [vmem:[%s1232 + $0xe0] sm:$0xff]
        %v5121 = vld [vmem:[%s1232 + $0xe8] sm:$0xff]
        %v5122 = vld [vmem:[%s1232 + $0xf0] sm:$0xff]
        %v5123 = vld [vmem:[%s1232 + $0xf8] sm:$0xff]
        %v5124 = vld [vmem:[%s1232 + $0x100] sm:$0xff]
        %v5125 = vld [vmem:[%s1232 + $0x108] sm:$0xff]
        %v5126 = vld [vmem:[%s1232 + $0x110] sm:$0xff]
        %v5127 = vld [vmem:[%s1232 + $0x118] sm:$0xff]
        %v5128 = vld [vmem:[%s1232 + $0x120] sm:$0xff]
        %v5129 = vld [vmem:[%s1232 + $0x128] sm:$0xff]
        %v5130 = vld [vmem:[%s1232 + $0x130] sm:$0xff]
        %v5131 = vld [vmem:[%s1232 + $0x138] sm:$0xff]
        %v5132 = vld [vmem:[%s1232 + $0x140] sm:$0xff]
        %v5133 = vld [vmem:[%s1232 + $0x148] sm:$0xff]
        %v5134 = vld [vmem:[%s1232 + $0x150] sm:$0xff]
        %v5135 = vld [vmem:[%s1232 + $0x158] sm:$0xff]
        %v5136 = vld [vmem:[%s1232 + $0x160] sm:$0xff]
        %v5137 = vld [vmem:[%s1232 + $0x168] sm:$0xff]
        %v5138 = vld [vmem:[%s1232 + $0x170] sm:$0xff]
        %v5139 = vld [vmem:[%s1232 + $0x178] sm:$0xff]
        %v5140 = vld [vmem:[%s1242] sm:$0x3]
        %v5142 = vperm.slane %v5140, 0
        %v5143 = vperm.slane %v5140, 1
        %v5147 = vsel %vm4596, %v5089, 0
        %v5150 = vsel %vm4596, %v5091, 0
        %5152 = vmatpush.msra.mxu0 %v5122
        %5153 = vmatpush.msra.mxu0 %v5120
        %5154 = vmatpush.msra.mxu0 %v5118
        %5155 = vmatpush.msra.mxu0 %v5116
        %5156 = vmatpush.msra.mxu0 %v5114
        %5157 = vmatpush.msra.mxu0 %v5112
        %5158 = vmatpush.msra.mxu0 %v5110
        %5159 = vmatpush.msra.mxu0 %v5108
        %5160 = vmatpush.msra.mxu0 %v5106
        %5161 = vmatpush.msra.mxu0 %v5104
        %5162 = vmatpush.msra.mxu0 %v5102
        %5163 = vmatpush.msra.mxu0 %v5100
        %5164 = vmatpush.msra.mxu0 %v5098
        %5165 = vmatpush.msra.mxu0 %v5096
        %5166 = vmatpush.msra.mxu0 %v5094
        %5167 = vmatpush.msra.mxu0 %v5092
        %5168 = vmatmul.f32.gmra.mxu0 %v5088
        %v5169 = vpop.f32.mrf.mxu0
        %v5170 = vadd.f32 %v5142, %v5169
        %5171 = vmatmul.f32.gmra.mxu0 %v5090
        %v5172 = vpop.f32.mrf.mxu0
        %v5173 = vadd.f32 %v5142, %v5172
        %5174 = vdwg.mxu0
        %5175 = vmatpush.msra.mxu0 0.0
        %5176 = vmatpush.msra.mxu0 0.0
        %5177 = vmatpush.msra.mxu0 0.0
        %5178 = vmatpush.msra.mxu0 0.0
        %5179 = vmatpush.msra.mxu0 0.0
        %5180 = vmatpush.msra.mxu0 0.0
        %5181 = vmatpush.msra.mxu0 0.0
        %5182 = vmatpush.msra.mxu0 0.0
        %5183 = vmatpush.msra.mxu0 %v5138
        %5184 = vmatpush.msra.mxu0 %v5136
        %5185 = vmatpush.msra.mxu0 %v5134
        %5186 = vmatpush.msra.mxu0 %v5132
        %5187 = vmatpush.msra.mxu0 %v5130
        %5188 = vmatpush.msra.mxu0 %v5128
        %5189 = vmatpush.msra.mxu0 %v5126
        %5190 = vmatpush.msra.mxu0 %v5124
        %5191 = vmatmul.f32.gmra.mxu0 %v5147
        %v5192 = vpop.f32.mrf.mxu0
        %v5193 = vadd.f32 %v5170, %v5192
        %5194 = vmatmul.f32.gmra.mxu0 %v5150
        %v5195 = vpop.f32.mrf.mxu0
        %v5196 = vadd.f32 %v5173, %v5195
        %5197 = vdwg.mxu0
        %5198 = vmatpush.msra.mxu0 %v5123
        %5199 = vmatpush.msra.mxu0 %v5121
        %5200 = vmatpush.msra.mxu0 %v5119
        %5201 = vmatpush.msra.mxu0 %v5117
        %5202 = vmatpush.msra.mxu0 %v5115
        %5203 = vmatpush.msra.mxu0 %v5113
        %5204 = vmatpush.msra.mxu0 %v5111
        %5205 = vmatpush.msra.mxu0 %v5109
        %5206 = vmatpush.msra.mxu0 %v5107
        %5207 = vmatpush.msra.mxu0 %v5105
        %5208 = vmatpush.msra.mxu0 %v5103
        %5209 = vmatpush.msra.mxu0 %v5101
        %5210 = vmatpush.msra.mxu0 %v5099
        %5211 = vmatpush.msra.mxu0 %v5097
        %5212 = vmatpush.msra.mxu0 %v5095
        %5213 = vmatpush.msra.mxu0 %v5093
        %5214 = vmatmul.f32.gmra.mxu0 %v5088
        %v5215 = vpop.f32.mrf.mxu0
        %v5216 = vadd.f32 %v5143, %v5215
        %5217 = vmatmul.f32.gmra.mxu0 %v5090
        %v5218 = vpop.f32.mrf.mxu0
        %v5219 = vadd.f32 %v5143, %v5218
        %5220 = vdwg.mxu0
        %5221 = vmatpush.msra.mxu0 0.0
        %5222 = vmatpush.msra.mxu0 0.0
        %5223 = vmatpush.msra.mxu0 0.0
        %5224 = vmatpush.msra.mxu0 0.0
        %5225 = vmatpush.msra.mxu0 0.0
        %5226 = vmatpush.msra.mxu0 0.0
        %5227 = vmatpush.msra.mxu0 0.0
        %5228 = vmatpush.msra.mxu0 0.0
        %5229 = vmatpush.msra.mxu0 %v5139
        %5230 = vmatpush.msra.mxu0 %v5137
        %5231 = vmatpush.msra.mxu0 %v5135
        %5232 = vmatpush.msra.mxu0 %v5133
        %5233 = vmatpush.msra.mxu0 %v5131
        %5234 = vmatpush.msra.mxu0 %v5129
        %5235 = vmatpush.msra.mxu0 %v5127
        %5236 = vmatpush.msra.mxu0 %v5125
        %5237 = vmatmul.f32.gmra.mxu0 %v5147
        %v5238 = vpop.f32.mrf.mxu0
        %v5239 = vadd.f32 %v5216, %v5238
        %5240 = vmatmul.f32.gmra.mxu0 %v5150
        %v5241 = vpop.f32.mrf.mxu0
        %v5242 = vadd.f32 %v5219, %v5241
        %5243 = vdwg.mxu0
        %v5244 = vadd.f32 %v4672, %v5193
        %v5245 = vadd.f32 %v4673, %v5239
        %v5246 = vadd.f32 %v4674, %v5196
        %v5247 = vadd.f32 %v4675, %v5242
        %v5248 = vld [vmem:[%s1252] sm:$0x3]
        %v5249 = vld [vmem:[%s1262] sm:$0x3]
        %v5250 = vsel %vm4596, %v5245, 0.0
        %v5251 = vadd.f32 %v5244, %v5250
        %5252 = vadd.xlane.f32.xlu0 %v5251
        %v5253 = vpop.xlane.xlu0 %5252
        %v5254 = vsel %vm4596, %v5247, 0.0
        %v5255 = vadd.f32 %v5246, %v5254
        %5256 = vadd.xlane.f32.xlu0 %v5255
        %v5257 = vpop.xlane.xlu0 %5256
        %v5258 = vmul.f32 %v5253, %v4611
        %v5259 = vmul.f32 %v5257, %v4611
        %v5260 = vsub.f32 %v5244, %v5258
        %v5261 = vsub.f32 %v5245, %v5258
        %v5262 = vsub.f32 %v5246, %v5259
        %v5263 = vsub.f32 %v5247, %v5259
        %v5264 = vmul.f32 %v5260, %v5260
        %v5265 = vmul.f32 %v5261, %v5261
        %v5266 = vmul.f32 %v5262, %v5262
        %v5267 = vmul.f32 %v5263, %v5263
        %v5268 = vsel %vm4596, %v5265, 0.0
        %v5269 = vadd.f32 %v5264, %v5268
        %5270 = vadd.xlane.f32.xlu0 %v5269
        %v5271 = vpop.xlane.xlu0 %5270
        %v5272 = vsel %vm4596, %v5267, 0.0
        %v5273 = vadd.f32 %v5266, %v5272
        %5274 = vadd.xlane.f32.xlu0 %v5273
        %v5275 = vpop.xlane.xlu0 %5274
        %v5276 = vmul.f32 %v5271, %v4611
        %v5277 = vmul.f32 %v5275, %v4611
        %v5278 = vadd.f32 %v5276, 1e-05
        %v5279 = vadd.f32 %v5277, 1e-05
        %v5280 = vrsqrt.pop %v5278
        %v5281 = vmul.f32 %v5280, %v5278
        %v5282 = vmul.f32 %v5281, %v5280
        %v5283 = vmul.f32 0.5, %v5282
        %v5284 = vsub.f32 1.5, %v5283
        %v5285 = vmul.f32 %v5280, %v5284
        %vm5286 = vweird.f32 %v5278
        %vm5287 = vweird.f32 %v5280
        %vm5288 = vmor %vm5286, %vm5287
        %v5289 = vsel %vm5288, %v5280, %v5285
        %v5290 = vrsqrt.pop %v5279
        %v5291 = vmul.f32 %v5290, %v5279
        %v5292 = vmul.f32 %v5291, %v5290
        %v5293 = vmul.f32 0.5, %v5292
        %v5294 = vsub.f32 1.5, %v5293
        %v5295 = vmul.f32 %v5290, %v5294
        %vm5296 = vweird.f32 %v5279
        %vm5297 = vweird.f32 %v5290
        %vm5298 = vmor %vm5296, %vm5297
        %v5299 = vsel %vm5298, %v5290, %v5295
        %v5300 = vmul.f32 %v5260, %v5289
        %v5301 = vmul.f32 %v5261, %v5289
        %v5302 = vmul.f32 %v5262, %v5299
        %v5303 = vmul.f32 %v5263, %v5299
        %v5305 = vperm.slane %v5248, 0
        %v5306 = vperm.slane %v5248, 1
        %v5309 = vmul.f32 %v5300, %v5305
        %v5310 = vmul.f32 %v5301, %v5306
        %v5311 = vmul.f32 %v5302, %v5305
        %v5312 = vmul.f32 %v5303, %v5306
        %v5314 = vperm.slane %v5249, 0
        %v5315 = vperm.slane %v5249, 1
        %v5318 = vadd.f32 %v5309, %v5314
        %v5319 = vadd.f32 %v5310, %v5315
        %v5320 = vadd.f32 %v5311, %v5314
        %v5321 = vadd.f32 %v5312, %v5315
        %5322 = vst [vmem:[%s23] sm:$0xff] %v5318
        %5323 = vst.msk [vmem:[%s23 + $0x8] sm:$0xff] %vm4596, %v5319
        %5324 = vst [vmem:[%s23 + $0x10] sm:$0xff] %v5320
        %5325 = vst.msk [vmem:[%s23 + $0x18] sm:$0xff] %vm4596, %v5321
        // Predicated region
        $region201: #{step_diffusion_head_forward.4} parent=111 // pred_check
          %p5326 = pneg %p655
        $region202: #{step_diffusion_head_forward.4} parent=111 // pred_check_branch
          %5328 = sbr.rel (%p5326) target = $region204
        $region203: #{step_diffusion_head_forward.4} parent=111 // pred_region
          _
        $region204: #{step_diffusion_head_forward.4} parent=111 // pred_fallthru
          _
        // Predicated region
        $region205: #{step_diffusion_head_forward.4} parent=111 // pred_check
          %p5329 = pneg %p655
        $region206: #{step_diffusion_head_forward.4} parent=111 // pred_check_branch
          %5331 = sbr.rel (%p5329) target = $region208
        $region207: #{step_diffusion_head_forward.4} parent=111 // pred_region
          _
        $region208: #{step_diffusion_head_forward.4} parent=111 // pred_fallthru
          _
      $region112: #{step_diffusion_head_forward.4} parent=5 // pred_fallthru
        _
      %p5332 = scmp.le.s32.totalorder 2, %s59
      // Predicated region
      $region209: #{step_diffusion_head_forward.4} parent=5 // pred_check
        %p5333 = pneg %p5332
      $region210: #{step_diffusion_head_forward.4} parent=5 // pred_check_branch
        %5335 = sbr.rel (%p5333) target = $region212
      $region211: #{step_diffusion_head_forward.4} parent=5 // pred_region
        %s5336 = ssub.s32 %s59, 2
      $region212: #{step_diffusion_head_forward.4} parent=5 // pred_fallthru
        _
    $region6: #{step_diffusion_head_forward.4} parent=1 // loop_footer
      %s63 = sadd.s32 1, %s59
    $region7: #{step_diffusion_head_forward.4} parent=1 // loop_footer_branch
      %58 = sbr.rel target = $region3
    $region8: #{step_diffusion_head_forward.4} parent=1 // loop_exit
      _
    %5337 = vsyncpa [#allocation4], 1
    %s5338 = scalar_lea.sflag [#allocation4], 1
    %5339 = vsyncpa %s5338, 1
    %5340 = vsyncpa [#allocation6], 1
    %s5341 = scalar_lea.sflag [#allocation6], 1
    %5342 = vsyncpa %s5341, 1
    %5343 = vsyncpa [#allocation9], 1
    %s5344 = scalar_lea.sflag [#allocation9], 1
    %5345 = vsyncpa %s5344, 1
    %5346 = vsyncpa [#allocation12], 1
    %s5347 = scalar_lea.sflag [#allocation12], 1
    %5348 = vsyncpa %s5347, 1
    %5349 = vsyncpa [#allocation15], 1
    %s5350 = scalar_lea.sflag [#allocation15], 1
    %5351 = vsyncpa %s5350, 1
    %5352 = vsyncpa [#allocation18], 1
    %s5353 = scalar_lea.sflag [#allocation18], 1
    %5354 = vsyncpa %s5353, 1
    %5355 = vsyncpa [#allocation21], 1
    %s5356 = scalar_lea.sflag [#allocation21], 1
    %5357 = vsyncpa %s5356, 1
    %5358 = vsyncpa [#allocation24], 1
    %s5359 = scalar_lea.sflag [#allocation24], 1
    %5360 = vsyncpa %s5359, 1
    %5361 = vsyncpa [#allocation27], 1
    %s5362 = scalar_lea.sflag [#allocation27], 1
    %5363 = vsyncpa %s5362, 1
    %5364 = vsyncpa [#allocation30], 1
    %s5365 = scalar_lea.sflag [#allocation30], 1
    %5366 = vsyncpa %s5365, 1

</llo_original>
